<compile_context>
chip_gen: v5e
topology: v5e:2x2
jax: 0.10.0
libtpu: 0.0.40
codegen_flags: <defaults>
</compile_context>

<pallas_src>
import functools

import jax
import jax.numpy as jnp
from jax.experimental import pallas as pl
from jax.experimental.pallas import tpu as pltpu


def _round_up(x, m):
    return ((x + m - 1) // m) * m


# ----------------------------------------------------------------------------
# Fused conv3x3(pad=1) + bias + ReLU + 2x2/2 max-pool kernel (Bt images / step)
# ----------------------------------------------------------------------------
def _conv3x3_relu_pool_kernel(H, W, Cin, Cout, Bt, xe_ref, xo_ref, w_ref, b_ref,
                              o_ref):
    """xe_ref/xo_ref: (Bt, H+2, Wp+1, Cin) even/odd padded columns (bf16)
       w_ref: (9*Cin, Cout) flattened HWIO weights, K ordered (di, dj, cin) (bf16)
       b_ref: (1, Cout) bias (f32)
       o_ref: (Bt, Hp, Wp, Cout) pooled output (bf16)
    """
    Hp, Wp = H // 2, W // 2
    M = Bt * H * Wp

    def patch(col_sources):
        # col_sources[dj] = (ref, shift): padded input column 2*w' + dj for this
        # output-column parity lives at ref[:, :, w' + shift, :].
        taps = []
        for di in range(3):
            for src, s in col_sources:
                taps.append(src[:, di:di + H, s:s + Wp, :])    # (Bt, H, Wp, Cin)
        # Single K-fused LHS per parity: (Bt*H*Wp, 9*Cin); K order (di, dj, cin)
        # matches the pre-flattened weight.
        return jnp.concatenate(taps, axis=-1).reshape(M, 9 * Cin)

    w = w_ref[...]                                             # (9*Cin, Cout) bf16
    bias = b_ref[...]                                          # (1, Cout) f32
    # Conv output columns 2*w' (even) / 2*w'+1 (odd): one MXU matmul each,
    # f32 accumulation, bias + ReLU fused.
    acc_e = jnp.maximum(
        jnp.dot(patch([(xe_ref, 0), (xo_ref, 0), (xe_ref, 1)]), w,
                preferred_element_type=jnp.float32) + bias, 0.0)
    acc_o = jnp.maximum(
        jnp.dot(patch([(xo_ref, 0), (xe_ref, 1), (xo_ref, 1)]), w,
                preferred_element_type=jnp.float32) + bias, 0.0)

    # 2x2 max-pool on the VPU: column-pair max is pure elementwise thanks to the
    # parity split; row-pair max selects whole aligned Wp-row groups.
    m = jnp.maximum(acc_e, acc_o).reshape(Bt * Hp, 2, Wp, Cout)
    pooled = jnp.maximum(m[:, 0], m[:, 1])                     # (Bt*Hp, Wp, Cout)
    o_ref[...] = pooled.reshape(Bt, Hp, Wp, Cout).astype(o_ref.dtype)


def _pick_batch_tile(B):
    # Bt amortizes per-step overhead; capped at 4 so the lane-padded
    # (.., Wp+1, Cin) input tiles stay well inside VMEM, and chosen so the
    # (parallel) batch grid has >= 2 steps whenever B >= 2.
    if B >= 8:
        return 4
    return max(1, B // 2)


def conv3x3_relu_pool(x_nhwc, w_flat, b_row):
    """Fused 3x3 conv (padding=1, stride=1) + bias + ReLU + 2x2 max-pool.

    x_nhwc: (B, H, W, Cin); w_flat: (9*Cin, Cout) bf16; b_row: (1, Cout) f32.
    Returns (B, H//2, W//2, Cout) bf16.
    """
    B, H, W, Cin = x_nhwc.shape
    Cout = w_flat.shape[-1]
    assert H % 2 == 0 and W % 2 == 0 and w_flat.shape[0] == 9 * Cin
    Hp, Wp = H // 2, W // 2

    Bt = _pick_batch_tile(B)
    Bpad = _round_up(B, Bt)

    # Cheap glue in XLA: batch-pad + spatial-pad once, split padded columns by
    # parity so the kernel only ever takes unit-stride slices.
    # TODO(synk): fold this into the producing kernel to remove these HBM passes.
    xp = jnp.pad(x_nhwc.astype(jnp.bfloat16),
                 ((0, Bpad - B), (1, 1), (1, 1), (0, 0)))      # (Bpad,H+2,W+2,Cin)
    xe = xp[:, :, 0::2, :]                                     # (Bpad,H+2,Wp+1,Cin)
    xo = xp[:, :, 1::2, :]

    out = pl.pallas_call(
        functools.partial(_conv3x3_relu_pool_kernel, H, W, Cin, Cout, Bt),
        out_shape=jax.ShapeDtypeStruct((Bpad, Hp, Wp, Cout), jnp.bfloat16),
        grid=(Bpad // Bt,),
        in_specs=[
            pl.BlockSpec((Bt, H + 2, Wp + 1, Cin), lambda b: (b, 0, 0, 0)),
            pl.BlockSpec((Bt, H + 2, Wp + 1, Cin), lambda b: (b, 0, 0, 0)),
            pl.BlockSpec((9 * Cin, Cout), lambda b: (0, 0)),
            pl.BlockSpec((1, Cout), lambda b: (0, 0)),
        ],
        out_specs=pl.BlockSpec((Bt, Hp, Wp, Cout), lambda b: (b, 0, 0, 0)),
        compiler_params=pltpu.CompilerParams(
            dimension_semantics=("parallel",),
            vmem_limit_bytes=48 * 1024 * 1024),
    )(xe, xo, w_flat, b_row)
    return out[:B]


# ----------------------------------------------------------------------------
# Fused fc1 + ReLU + fc2 kernel (hidden activation never leaves the chip)
# ----------------------------------------------------------------------------
def _fc1_relu_fc2_kernel(x_ref, w1_ref, b1_ref, w2_ref, b2_ref, o_ref):
    h = jnp.dot(x_ref[...], w1_ref[...], preferred_element_type=jnp.float32)
    h = jnp.maximum(h + b1_ref[...], 0.0)
    logits = jnp.dot(h.astype(jnp.bfloat16), w2_ref[...],
                     preferred_element_type=jnp.float32)
    o_ref[...] = logits + b2_ref[...]


def fc1_relu_fc2(x, w1, b1, w2, b2, n_out):
    """x: (M, K) bf16; w1: (K, N1) bf16; w2: (N1, 128) zero-padded bf16;
    biases (1, N1)/(1, 128) f32.  Returns (M, n_out) f32."""
    M, K = x.shape
    N1 = w1.shape[1]
    N2 = w2.shape[1]                      # 128: lane-dense, zero-padded past n_out

    # tm=256 keeps the f32 hidden at (256,128)=32 vregs and gives a >=2-step
    # parallel grid for M >= 512 (review sweep point).
    tm = min(256, _round_up(M, 8))
    Mp = _round_up(M, tm)
    if Mp != M:
        x = jnp.pad(x, ((0, Mp - M), (0, 0)))

    out = pl.pallas_call(
        _fc1_relu_fc2_kernel,
        out_shape=jax.ShapeDtypeStruct((Mp, N2), jnp.float32),
        grid=(Mp // tm,),
        in_specs=[
            pl.BlockSpec((tm, K), lambda i: (i, 0)),
            pl.BlockSpec((K, N1), lambda i: (0, 0)),
            pl.BlockSpec((1, N1), lambda i: (0, 0)),
            pl.BlockSpec((N1, N2), lambda i: (0, 0)),
            pl.BlockSpec((1, N2), lambda i: (0, 0)),
        ],
        out_specs=pl.BlockSpec((tm, N2), lambda i: (i, 0)),
        compiler_params=pltpu.CompilerParams(
            dimension_semantics=("parallel",)),
    )(x, w1, b1, w2, b2)
    return out[:M, :n_out]


# ----------------------------------------------------------------------------
# Parameters (PyTorch layouts) + one-time kernel-friendly preparation
# ----------------------------------------------------------------------------
def init_params(key):
    ks = jax.random.split(key, 8)
    s = 0.05
    return {
        "conv1_w": jax.random.normal(ks[0], (16, 3, 3, 3), jnp.float32) * s,
        "conv1_b": jax.random.normal(ks[1], (16,), jnp.float32) * s,
        "conv2_w": jax.random.normal(ks[2], (32, 16, 3, 3), jnp.float32) * s,
        "conv2_b": jax.random.normal(ks[3], (32,), jnp.float32) * s,
        "fc1_w": jax.random.normal(ks[4], (128, 32 * 8 * 8), jnp.float32) * s,
        "fc1_b": jax.random.normal(ks[5], (128,), jnp.float32) * s,
        "fc2_w": jax.random.normal(ks[6], (10, 128), jnp.float32) * s,
        "fc2_b": jax.random.normal(ks[7], (10,), jnp.float32) * s,
    }


def prepare_params(params):
    """One-time layout/dtype prep (no per-forward transposes):
      * conv OIHW -> flattened 2-D (9*Cin, Cout) bf16, K ordered (di, dj, cin)
        to match the kernel's K-fused patch;
      * fc1 (out,in) -> (in,out) bf16 with columns permuted so the kernel can
        consume the NHWC (h,w,c) flatten while matching PyTorch's (c,h,w)-major
        x.view(-1, 32*8*8);
      * fc2 zero-padded to lane-dense (128, 128) bf16 / (1, 128) f32;
      * biases as (1, N) f32 rows."""
    def conv_w(w_oihw):
        co, ci, kh, kw = w_oihw.shape
        return (jnp.transpose(w_oihw, (2, 3, 1, 0))            # (kh, kw, ci, co)
                .reshape(kh * kw * ci, co).astype(jnp.bfloat16))

    w1 = params["fc1_w"].reshape(128, 32, 8, 8)                # (out, C, H, W)
    w1 = jnp.transpose(w1, (2, 3, 1, 0)).reshape(8 * 8 * 32, 128)  # rows (h,w,c)

    w2 = jnp.zeros((128, 128), jnp.bfloat16)
    w2 = w2.at[:, :10].set(jnp.transpose(params["fc2_w"]).astype(jnp.bfloat16))
    b2 = jnp.zeros((1, 128), jnp.float32)
    b2 = b2.at[:, :10].set(params["fc2_b"].astype(jnp.float32)[None, :])

    return {
        "conv1_w": conv_w(params["conv1_w"]),                  # (27, 16)
        "conv1_b": params["conv1_b"].astype(jnp.float32).reshape(1, -1),
        "conv2_w": conv_w(params["conv2_w"]),                  # (144, 32)
        "conv2_b": params["conv2_b"].astype(jnp.float32).reshape(1, -1),
        "fc1_w": w1.astype(jnp.bfloat16),                      # (2048, 128)
        "fc1_b": params["fc1_b"].astype(jnp.float32).reshape(1, -1),
        "fc2_w": w2,                                           # (128, 128), cols>=10 zero
        "fc2_b": b2,                                           # (1, 128)
    }


# ----------------------------------------------------------------------------
# Forward pass
# ----------------------------------------------------------------------------
@jax.jit
def simple_cnn_forward(prepped, x_nchw):
    """x_nchw: (B, 3, 32, 32) float32 -> logits (B, 10) float32."""
    B = x_nchw.shape[0]
    x = jnp.transpose(x_nchw, (0, 2, 3, 1))                    # NCHW -> NHWC
    x = conv3x3_relu_pool(x, prepped["conv1_w"], prepped["conv1_b"])  # (B,16,16,16)
    x = conv3x3_relu_pool(x, prepped["conv2_w"], prepped["conv2_b"])  # (B,8,8,32)
    # NHWC flatten; fc1_w columns were permuted at init to match PyTorch's flatten.
    x = x.reshape(B, -1)                                       # (B, 2048) bf16
    return fc1_relu_fc2(x, prepped["fc1_w"], prepped["fc1_b"],
                        prepped["fc2_w"], prepped["fc2_b"], n_out=10)


if __name__ == "__main__":
    key = jax.random.PRNGKey(0)
    pkey, xkey = jax.random.split(key)
    params = init_params(pkey)          # PyTorch-layout parameters
    prepped = prepare_params(params)    # one-time kernel-friendly layouts
    # fc1 = Linear(32*8*8, 128) after two 2x2 pools implies 3x32x32 inputs.
    x = jax.random.normal(xkey, (2, 3, 32, 32), jnp.float32)
    out = simple_cnn_forward(prepped, x)
    jax.block_until_ready(out)
    assert out.shape == (2, 10) and out.dtype == jnp.float32
    print("KERNEL_OK")
</pallas_src>

<mosaic_0001>
module attributes {stable_mosaic.version = 11 : i64} {
  func.func @_conv3x3_relu_pool_kernel(%arg0: i32, %arg1: memref<1x34x17x3xbf16, #tpu.memory_space<vmem>>, %arg2: memref<1x34x17x3xbf16, #tpu.memory_space<vmem>>, %arg3: memref<27x16xbf16, #tpu.memory_space<vmem>>, %arg4: memref<1x16xf32, #tpu.memory_space<vmem>>, %arg5: memref<1x16x16x16xbf16, #tpu.memory_space<vmem>>) attributes {dimension_semantics = [#tpu.dimension_semantics<parallel>], iteration_bounds = array<i64: 2>, scalar_prefetch = 0 : i64, scratch_operands = 0 : i64, tpu.core_type = #tpu.core_type<tc>, window_params = [{transform_indices = @transform_0, window_bounds = array<i64: 1, 34, 17, 3>}, {transform_indices = @transform_1, window_bounds = array<i64: 1, 34, 17, 3>}, {pipeline_mode = #tpu.pipeline_mode<synchronous>, transform_indices = @transform_2, window_bounds = array<i64: 27, 16>}, {pipeline_mode = #tpu.pipeline_mode<synchronous>, transform_indices = @transform_3, window_bounds = array<i64: 1, 16>}, {transform_indices = @transform_4, window_bounds = array<i64: 1, 16, 16, 16>}]} {
    %c0 = arith.constant 0 : index
    %c0_0 = arith.constant 0 : index
    %0 = vector.load %arg3[%c0, %c0_0] : memref<27x16xbf16, #tpu.memory_space<vmem>>, vector<27x16xbf16>
    %c0_1 = arith.constant 0 : index
    %c0_2 = arith.constant 0 : index
    %1 = vector.load %arg4[%c0_1, %c0_2] : memref<1x16xf32, #tpu.memory_space<vmem>>, vector<1x16xf32>
    %c0_3 = arith.constant 0 : index
    %c0_4 = arith.constant 0 : index
    %c0_5 = arith.constant 0 : index
    %c0_6 = arith.constant 0 : index
    %2 = vector.load %arg1[%c0_3, %c0_4, %c0_5, %c0_6] : memref<1x34x17x3xbf16, #tpu.memory_space<vmem>>, vector<1x32x16x3xbf16>
    %c0_7 = arith.constant 0 : index
    %c0_8 = arith.constant 0 : index
    %c0_9 = arith.constant 0 : index
    %c0_10 = arith.constant 0 : index
    %3 = vector.load %arg2[%c0_7, %c0_8, %c0_9, %c0_10] : memref<1x34x17x3xbf16, #tpu.memory_space<vmem>>, vector<1x32x16x3xbf16>
    %c0_11 = arith.constant 0 : index
    %c0_12 = arith.constant 0 : index
    %c1 = arith.constant 1 : index
    %c0_13 = arith.constant 0 : index
    %4 = vector.load %arg1[%c0_11, %c0_12, %c1, %c0_13] : memref<1x34x17x3xbf16, #tpu.memory_space<vmem>>, vector<1x32x16x3xbf16>
    %c0_14 = arith.constant 0 : index
    %c1_15 = arith.constant 1 : index
    %c0_16 = arith.constant 0 : index
    %c0_17 = arith.constant 0 : index
    %5 = vector.load %arg1[%c0_14, %c1_15, %c0_16, %c0_17] : memref<1x34x17x3xbf16, #tpu.memory_space<vmem>>, vector<1x32x16x3xbf16>
    %c0_18 = arith.constant 0 : index
    %c1_19 = arith.constant 1 : index
    %c0_20 = arith.constant 0 : index
    %c0_21 = arith.constant 0 : index
    %6 = vector.load %arg2[%c0_18, %c1_19, %c0_20, %c0_21] : memref<1x34x17x3xbf16, #tpu.memory_space<vmem>>, vector<1x32x16x3xbf16>
    %c0_22 = arith.constant 0 : index
    %c1_23 = arith.constant 1 : index
    %c1_24 = arith.constant 1 : index
    %c0_25 = arith.constant 0 : index
    %7 = vector.load %arg1[%c0_22, %c1_23, %c1_24, %c0_25] : memref<1x34x17x3xbf16, #tpu.memory_space<vmem>>, vector<1x32x16x3xbf16>
    %c0_26 = arith.constant 0 : index
    %c2 = arith.constant 2 : index
    %c0_27 = arith.constant 0 : index
    %c0_28 = arith.constant 0 : index
    %8 = vector.load %arg1[%c0_26, %c2, %c0_27, %c0_28] : memref<1x34x17x3xbf16, #tpu.memory_space<vmem>>, vector<1x32x16x3xbf16>
    %c0_29 = arith.constant 0 : index
    %c2_30 = arith.constant 2 : index
    %c0_31 = arith.constant 0 : index
    %c0_32 = arith.constant 0 : index
    %9 = vector.load %arg2[%c0_29, %c2_30, %c0_31, %c0_32] : memref<1x34x17x3xbf16, #tpu.memory_space<vmem>>, vector<1x32x16x3xbf16>
    %c0_33 = arith.constant 0 : index
    %c2_34 = arith.constant 2 : index
    %c1_35 = arith.constant 1 : index
    %c0_36 = arith.constant 0 : index
    %10 = vector.load %arg1[%c0_33, %c2_34, %c1_35, %c0_36] : memref<1x34x17x3xbf16, #tpu.memory_space<vmem>>, vector<1x32x16x3xbf16>
    %11 = tpu.concatenate %2, %3, %4, %5, %6, %7, %8, %9, %10 in 3 : vector<1x32x16x3xbf16>, vector<1x32x16x3xbf16>, vector<1x32x16x3xbf16>, vector<1x32x16x3xbf16>, vector<1x32x16x3xbf16>, vector<1x32x16x3xbf16>, vector<1x32x16x3xbf16>, vector<1x32x16x3xbf16>, vector<1x32x16x3xbf16> -> vector<1x32x16x27xbf16>
    %12 = vector.shape_cast %11 : vector<1x32x16x27xbf16> to vector<512x27xbf16>
    %cst = arith.constant dense<0.000000e+00> : vector<512x16xf32>
    %13 = tpu.matmul %12, %0, %cst {dimension_numbers = #tpu.dot_dimension_numbers<[1], [0], [0], [1], [0, 0, 1, 1], [], []>} : vector<512x27xbf16>, vector<27x16xbf16>, vector<512x16xf32> -> vector<512x16xf32>
    %14 = vector.broadcast %1 : vector<1x16xf32> to vector<512x16xf32>
    %15 = arith.addf %13, %14 : vector<512x16xf32>
    %cst_37 = arith.constant 0.000000e+00 : f32
    %16 = vector.broadcast %cst_37 : f32 to vector<512x16xf32>
    %17 = arith.maximumf %15, %16 : vector<512x16xf32>
    %c0_38 = arith.constant 0 : index
    %c0_39 = arith.constant 0 : index
    %c0_40 = arith.constant 0 : index
    %c0_41 = arith.constant 0 : index
    %18 = vector.load %arg2[%c0_38, %c0_39, %c0_40, %c0_41] : memref<1x34x17x3xbf16, #tpu.memory_space<vmem>>, vector<1x32x16x3xbf16>
    %c0_42 = arith.constant 0 : index
    %c0_43 = arith.constant 0 : index
    %c1_44 = arith.constant 1 : index
    %c0_45 = arith.constant 0 : index
    %19 = vector.load %arg1[%c0_42, %c0_43, %c1_44, %c0_45] : memref<1x34x17x3xbf16, #tpu.memory_space<vmem>>, vector<1x32x16x3xbf16>
    %c0_46 = arith.constant 0 : index
    %c0_47 = arith.constant 0 : index
    %c1_48 = arith.constant 1 : index
    %c0_49 = arith.constant 0 : index
    %20 = vector.load %arg2[%c0_46, %c0_47, %c1_48, %c0_49] : memref<1x34x17x3xbf16, #tpu.memory_space<vmem>>, vector<1x32x16x3xbf16>
    %c0_50 = arith.constant 0 : index
    %c1_51 = arith.constant 1 : index
    %c0_52 = arith.constant 0 : index
    %c0_53 = arith.constant 0 : index
    %21 = vector.load %arg2[%c0_50, %c1_51, %c0_52, %c0_53] : memref<1x34x17x3xbf16, #tpu.memory_space<vmem>>, vector<1x32x16x3xbf16>
    %c0_54 = arith.constant 0 : index
    %c1_55 = arith.constant 1 : index
    %c1_56 = arith.constant 1 : index
    %c0_57 = arith.constant 0 : index
    %22 = vector.load %arg1[%c0_54, %c1_55, %c1_56, %c0_57] : memref<1x34x17x3xbf16, #tpu.memory_space<vmem>>, vector<1x32x16x3xbf16>
    %c0_58 = arith.constant 0 : index
    %c1_59 = arith.constant 1 : index
    %c1_60 = arith.constant 1 : index
    %c0_61 = arith.constant 0 : index
    %23 = vector.load %arg2[%c0_58, %c1_59, %c1_60, %c0_61] : memref<1x34x17x3xbf16, #tpu.memory_space<vmem>>, vector<1x32x16x3xbf16>
    %c0_62 = arith.constant 0 : index
    %c2_63 = arith.constant 2 : index
    %c0_64 = arith.constant 0 : index
    %c0_65 = arith.constant 0 : index
    %24 = vector.load %arg2[%c0_62, %c2_63, %c0_64, %c0_65] : memref<1x34x17x3xbf16, #tpu.memory_space<vmem>>, vector<1x32x16x3xbf16>
    %c0_66 = arith.constant 0 : index
    %c2_67 = arith.constant 2 : index
    %c1_68 = arith.constant 1 : index
    %c0_69 = arith.constant 0 : index
    %25 = vector.load %arg1[%c0_66, %c2_67, %c1_68, %c0_69] : memref<1x34x17x3xbf16, #tpu.memory_space<vmem>>, vector<1x32x16x3xbf16>
    %c0_70 = arith.constant 0 : index
    %c2_71 = arith.constant 2 : index
    %c1_72 = arith.constant 1 : index
    %c0_73 = arith.constant 0 : index
    %26 = vector.load %arg2[%c0_70, %c2_71, %c1_72, %c0_73] : memref<1x34x17x3xbf16, #tpu.memory_space<vmem>>, vector<1x32x16x3xbf16>
    %27 = tpu.concatenate %18, %19, %20, %21, %22, %23, %24, %25, %26 in 3 : vector<1x32x16x3xbf16>, vector<1x32x16x3xbf16>, vector<1x32x16x3xbf16>, vector<1x32x16x3xbf16>, vector<1x32x16x3xbf16>, vector<1x32x16x3xbf16>, vector<1x32x16x3xbf16>, vector<1x32x16x3xbf16>, vector<1x32x16x3xbf16> -> vector<1x32x16x27xbf16>
    %28 = vector.shape_cast %27 : vector<1x32x16x27xbf16> to vector<512x27xbf16>
    %cst_74 = arith.constant dense<0.000000e+00> : vector<512x16xf32>
    %29 = tpu.matmul %28, %0, %cst_74 {dimension_numbers = #tpu.dot_dimension_numbers<[1], [0], [0], [1], [0, 0, 1, 1], [], []>} : vector<512x27xbf16>, vector<27x16xbf16>, vector<512x16xf32> -> vector<512x16xf32>
    %30 = vector.broadcast %1 : vector<1x16xf32> to vector<512x16xf32>
    %31 = arith.addf %29, %30 : vector<512x16xf32>
    %cst_75 = arith.constant 0.000000e+00 : f32
    %32 = vector.broadcast %cst_75 : f32 to vector<512x16xf32>
    %33 = arith.maximumf %31, %32 : vector<512x16xf32>
    %34 = arith.maximumf %17, %33 : vector<512x16xf32>
    %35 = vector.shape_cast %34 : vector<512x16xf32> to vector<16x2x16x16xf32>
    %36 = vector.extract_strided_slice %35 {offsets = [0, 0, 0, 0], sizes = [16, 1, 16, 16], strides = [1, 1, 1, 1]} : vector<16x2x16x16xf32> to vector<16x1x16x16xf32>
    %37 = vector.shape_cast %36 : vector<16x1x16x16xf32> to vector<16x16x16xf32>
    %38 = vector.extract_strided_slice %35 {offsets = [0, 1, 0, 0], sizes = [16, 1, 16, 16], strides = [1, 1, 1, 1]} : vector<16x2x16x16xf32> to vector<16x1x16x16xf32>
    %39 = vector.shape_cast %38 : vector<16x1x16x16xf32> to vector<16x16x16xf32>
    %40 = arith.maximumf %37, %39 : vector<16x16x16xf32>
    %41 = vector.shape_cast %40 : vector<16x16x16xf32> to vector<1x16x16x16xf32>
    %42 = arith.truncf %41 : vector<1x16x16x16xf32> to vector<1x16x16x16xbf16>
    %c0_76 = arith.constant 0 : index
    %c0_77 = arith.constant 0 : index
    %c0_78 = arith.constant 0 : index
    %c0_79 = arith.constant 0 : index
    %43 = vector.load %arg5[%c0_76, %c0_77, %c0_78, %c0_79] : memref<1x16x16x16xbf16, #tpu.memory_space<vmem>>, vector<1x16x16x16xbf16>
    tpu.vector_store %arg5[%c0_76, %c0_77, %c0_78, %c0_79], %42 {strides = array<i32>} : memref<1x16x16x16xbf16, #tpu.memory_space<vmem>>, vector<1x16x16x16xbf16>,
    return
  }
  func.func @transform_0(%arg0: i32) -> (i32, i32, i32, i32) {
    %c0_i32 = arith.constant 0 : i32
    %c0_i32_0 = arith.constant 0 : i32
    %c0_i32_1 = arith.constant 0 : i32
    %c0_i32_2 = arith.constant 0 : i32
    return %arg0, %c0_i32, %c0_i32_0, %c0_i32_1 : i32, i32, i32, i32
  }
  func.func @transform_1(%arg0: i32) -> (i32, i32, i32, i32) {
    %c0_i32 = arith.constant 0 : i32
    %c0_i32_0 = arith.constant 0 : i32
    %c0_i32_1 = arith.constant 0 : i32
    %c0_i32_2 = arith.constant 0 : i32
    return %arg0, %c0_i32, %c0_i32_0, %c0_i32_1 : i32, i32, i32, i32
  }
  func.func @transform_2(%arg0: i32) -> (i32, i32) {
    %c0_i32 = arith.constant 0 : i32
    %c0_i32_0 = arith.constant 0 : i32
    %c0_i32_1 = arith.constant 0 : i32
    return %c0_i32, %c0_i32_0 : i32, i32
  }
  func.func @transform_3(%arg0: i32) -> (i32, i32) {
    %c0_i32 = arith.constant 0 : i32
    %c0_i32_0 = arith.constant 0 : i32
    %c0_i32_1 = arith.constant 0 : i32
    return %c0_i32, %c0_i32_0 : i32, i32
  }
  func.func @transform_4(%arg0: i32) -> (i32, i32, i32, i32) {
    %c0_i32 = arith.constant 0 : i32
    %c0_i32_0 = arith.constant 0 : i32
    %c0_i32_1 = arith.constant 0 : i32
    %c0_i32_2 = arith.constant 0 : i32
    return %arg0, %c0_i32, %c0_i32_0, %c0_i32_1 : i32, i32, i32, i32
  }
}

module attributes {stable_mosaic.version = 11 : i64} {
  func.func @_fc1_relu_fc2_kernel(%arg0: i32, %arg1: memref<8x2048xbf16, #tpu.memory_space<vmem>>, %arg2: memref<2048x128xbf16, #tpu.memory_space<vmem>>, %arg3: memref<1x128xf32, #tpu.memory_space<vmem>>, %arg4: memref<128x128xbf16, #tpu.memory_space<vmem>>, %arg5: memref<1x128xf32, #tpu.memory_space<vmem>>, %arg6: memref<8x128xf32, #tpu.memory_space<vmem>>) attributes {dimension_semantics = [#tpu.dimension_semantics<parallel>], iteration_bounds = array<i64: 1>, scalar_prefetch = 0 : i64, scratch_operands = 0 : i64, tpu.core_type = #tpu.core_type<tc>, window_params = [{transform_indices = @transform_0, window_bounds = array<i64: 8, 2048>}, {pipeline_mode = #tpu.pipeline_mode<synchronous>, transform_indices = @transform_1, window_bounds = array<i64: 2048, 128>}, {pipeline_mode = #tpu.pipeline_mode<synchronous>, transform_indices = @transform_2, window_bounds = array<i64: 1, 128>}, {pipeline_mode = #tpu.pipeline_mode<synchronous>, transform_indices = @transform_3, window_bounds = array<i64: 128, 128>}, {pipeline_mode = #tpu.pipeline_mode<synchronous>, transform_indices = @transform_4, window_bounds = array<i64: 1, 128>}, {transform_indices = @transform_5, window_bounds = array<i64: 8, 128>}]} {
    %c0 = arith.constant 0 : index
    %c0_0 = arith.constant 0 : index
    %0 = vector.load %arg1[%c0, %c0_0] : memref<8x2048xbf16, #tpu.memory_space<vmem>>, vector<8x2048xbf16>
    %c0_1 = arith.constant 0 : index
    %c0_2 = arith.constant 0 : index
    %1 = vector.load %arg2[%c0_1, %c0_2] : memref<2048x128xbf16, #tpu.memory_space<vmem>>, vector<2048x128xbf16>
    %cst = arith.constant dense<0.000000e+00> : vector<8x128xf32>
    %2 = tpu.matmul %0, %1, %cst {dimension_numbers = #tpu.dot_dimension_numbers<[1], [0], [0], [1], [0, 0, 1, 1], [], []>} : vector<8x2048xbf16>, vector<2048x128xbf16>, vector<8x128xf32> -> vector<8x128xf32>
    %c0_3 = arith.constant 0 : index
    %c0_4 = arith.constant 0 : index
    %3 = vector.load %arg3[%c0_3, %c0_4] : memref<1x128xf32, #tpu.memory_space<vmem>>, vector<1x128xf32>
    %4 = vector.broadcast %3 : vector<1x128xf32> to vector<8x128xf32>
    %5 = arith.addf %2, %4 : vector<8x128xf32>
    %cst_5 = arith.constant 0.000000e+00 : f32
    %6 = vector.broadcast %cst_5 : f32 to vector<8x128xf32>
    %7 = arith.maximumf %5, %6 : vector<8x128xf32>
    %8 = arith.truncf %7 : vector<8x128xf32> to vector<8x128xbf16>
    %c0_6 = arith.constant 0 : index
    %c0_7 = arith.constant 0 : index
    %9 = vector.load %arg4[%c0_6, %c0_7] : memref<128x128xbf16, #tpu.memory_space<vmem>>, vector<128x128xbf16>
    %cst_8 = arith.constant dense<0.000000e+00> : vector<8x128xf32>
    %10 = tpu.matmul %8, %9, %cst_8 {dimension_numbers = #tpu.dot_dimension_numbers<[1], [0], [0], [1], [0, 0, 1, 1], [], []>} : vector<8x128xbf16>, vector<128x128xbf16>, vector<8x128xf32> -> vector<8x128xf32>
    %c0_9 = arith.constant 0 : index
    %c0_10 = arith.constant 0 : index
    %11 = vector.load %arg5[%c0_9, %c0_10] : memref<1x128xf32, #tpu.memory_space<vmem>>, vector<1x128xf32>
    %12 = vector.broadcast %11 : vector<1x128xf32> to vector<8x128xf32>
    %13 = arith.addf %10, %12 : vector<8x128xf32>
    %c0_11 = arith.constant 0 : index
    %c0_12 = arith.constant 0 : index
    %14 = vector.load %arg6[%c0_11, %c0_12] : memref<8x128xf32, #tpu.memory_space<vmem>>, vector<8x128xf32>
    tpu.vector_store %arg6[%c0_11, %c0_12], %13 {strides = array<i32>} : memref<8x128xf32, #tpu.memory_space<vmem>>, vector<8x128xf32>,
    return
  }
  func.func @transform_0(%arg0: i32) -> (i32, i32) {
    %c0_i32 = arith.constant 0 : i32
    %c0_i32_0 = arith.constant 0 : i32
    return %arg0, %c0_i32 : i32, i32
  }
  func.func @transform_1(%arg0: i32) -> (i32, i32) {
    %c0_i32 = arith.constant 0 : i32
    %c0_i32_0 = arith.constant 0 : i32
    %c0_i32_1 = arith.constant 0 : i32
    return %c0_i32, %c0_i32_0 : i32, i32
  }
  func.func @transform_2(%arg0: i32) -> (i32, i32) {
    %c0_i32 = arith.constant 0 : i32
    %c0_i32_0 = arith.constant 0 : i32
    %c0_i32_1 = arith.constant 0 : i32
    return %c0_i32, %c0_i32_0 : i32, i32
  }
  func.func @transform_3(%arg0: i32) -> (i32, i32) {
    %c0_i32 = arith.constant 0 : i32
    %c0_i32_0 = arith.constant 0 : i32
    %c0_i32_1 = arith.constant 0 : i32
    return %c0_i32, %c0_i32_0 : i32, i32
  }
  func.func @transform_4(%arg0: i32) -> (i32, i32) {
    %c0_i32 = arith.constant 0 : i32
    %c0_i32_0 = arith.constant 0 : i32
    %c0_i32_1 = arith.constant 0 : i32
    return %c0_i32, %c0_i32_0 : i32, i32
  }
  func.func @transform_5(%arg0: i32) -> (i32, i32) {
    %c0_i32 = arith.constant 0 : i32
    %c0_i32_0 = arith.constant 0 : i32
    return %arg0, %c0_i32 : i32, i32
  }
}

module attributes {stable_mosaic.version = 11 : i64} {
  func.func @_conv3x3_relu_pool_kernel(%arg0: i32, %arg1: memref<1x18x9x16xbf16, #tpu.memory_space<vmem>>, %arg2: memref<1x18x9x16xbf16, #tpu.memory_space<vmem>>, %arg3: memref<144x32xbf16, #tpu.memory_space<vmem>>, %arg4: memref<1x32xf32, #tpu.memory_space<vmem>>, %arg5: memref<1x8x8x32xbf16, #tpu.memory_space<vmem>>) attributes {dimension_semantics = [#tpu.dimension_semantics<parallel>], iteration_bounds = array<i64: 2>, scalar_prefetch = 0 : i64, scratch_operands = 0 : i64, tpu.core_type = #tpu.core_type<tc>, window_params = [{transform_indices = @transform_0, window_bounds = array<i64: 1, 18, 9, 16>}, {transform_indices = @transform_1, window_bounds = array<i64: 1, 18, 9, 16>}, {pipeline_mode = #tpu.pipeline_mode<synchronous>, transform_indices = @transform_2, window_bounds = array<i64: 144, 32>}, {pipeline_mode = #tpu.pipeline_mode<synchronous>, transform_indices = @transform_3, window_bounds = array<i64: 1, 32>}, {transform_indices = @transform_4, window_bounds = array<i64: 1, 8, 8, 32>}]} {
    %c0 = arith.constant 0 : index
    %c0_0 = arith.constant 0 : index
    %0 = vector.load %arg3[%c0, %c0_0] : memref<144x32xbf16, #tpu.memory_space<vmem>>, vector<144x32xbf16>
    %c0_1 = arith.constant 0 : index
    %c0_2 = arith.constant 0 : index
    %1 = vector.load %arg4[%c0_1, %c0_2] : memref<1x32xf32, #tpu.memory_space<vmem>>, vector<1x32xf32>
    %c0_3 = arith.constant 0 : index
    %c0_4 = arith.constant 0 : index
    %c0_5 = arith.constant 0 : index
    %c0_6 = arith.constant 0 : index
    %2 = vector.load %arg1[%c0_3, %c0_4, %c0_5, %c0_6] : memref<1x18x9x16xbf16, #tpu.memory_space<vmem>>, vector<1x16x8x16xbf16>
    %c0_7 = arith.constant 0 : index
    %c0_8 = arith.constant 0 : index
    %c0_9 = arith.constant 0 : index
    %c0_10 = arith.constant 0 : index
    %3 = vector.load %arg2[%c0_7, %c0_8, %c0_9, %c0_10] : memref<1x18x9x16xbf16, #tpu.memory_space<vmem>>, vector<1x16x8x16xbf16>
    %c0_11 = arith.constant 0 : index
    %c0_12 = arith.constant 0 : index
    %c1 = arith.constant 1 : index
    %c0_13 = arith.constant 0 : index
    %4 = vector.load %arg1[%c0_11, %c0_12, %c1, %c0_13] : memref<1x18x9x16xbf16, #tpu.memory_space<vmem>>, vector<1x16x8x16xbf16>
    %c0_14 = arith.constant 0 : index
    %c1_15 = arith.constant 1 : index
    %c0_16 = arith.constant 0 : index
    %c0_17 = arith.constant 0 : index
    %5 = vector.load %arg1[%c0_14, %c1_15, %c0_16, %c0_17] : memref<1x18x9x16xbf16, #tpu.memory_space<vmem>>, vector<1x16x8x16xbf16>
    %c0_18 = arith.constant 0 : index
    %c1_19 = arith.constant 1 : index
    %c0_20 = arith.constant 0 : index
    %c0_21 = arith.constant 0 : index
    %6 = vector.load %arg2[%c0_18, %c1_19, %c0_20, %c0_21] : memref<1x18x9x16xbf16, #tpu.memory_space<vmem>>, vector<1x16x8x16xbf16>
    %c0_22 = arith.constant 0 : index
    %c1_23 = arith.constant 1 : index
    %c1_24 = arith.constant 1 : index
    %c0_25 = arith.constant 0 : index
    %7 = vector.load %arg1[%c0_22, %c1_23, %c1_24, %c0_25] : memref<1x18x9x16xbf16, #tpu.memory_space<vmem>>, vector<1x16x8x16xbf16>
    %c0_26 = arith.constant 0 : index
    %c2 = arith.constant 2 : index
    %c0_27 = arith.constant 0 : index
    %c0_28 = arith.constant 0 : index
    %8 = vector.load %arg1[%c0_26, %c2, %c0_27, %c0_28] : memref<1x18x9x16xbf16, #tpu.memory_space<vmem>>, vector<1x16x8x16xbf16>
    %c0_29 = arith.constant 0 : index
    %c2_30 = arith.constant 2 : index
    %c0_31 = arith.constant 0 : index
    %c0_32 = arith.constant 0 : index
    %9 = vector.load %arg2[%c0_29, %c2_30, %c0_31, %c0_32] : memref<1x18x9x16xbf16, #tpu.memory_space<vmem>>, vector<1x16x8x16xbf16>
    %c0_33 = arith.constant 0 : index
    %c2_34 = arith.constant 2 : index
    %c1_35 = arith.constant 1 : index
    %c0_36 = arith.constant 0 : index
    %10 = vector.load %arg1[%c0_33, %c2_34, %c1_35, %c0_36] : memref<1x18x9x16xbf16, #tpu.memory_space<vmem>>, vector<1x16x8x16xbf16>
    %11 = tpu.concatenate %2, %3, %4, %5, %6, %7, %8, %9, %10 in 3 : vector<1x16x8x16xbf16>, vector<1x16x8x16xbf16>, vector<1x16x8x16xbf16>, vector<1x16x8x16xbf16>, vector<1x16x8x16xbf16>, vector<1x16x8x16xbf16>, vector<1x16x8x16xbf16>, vector<1x16x8x16xbf16>, vector<1x16x8x16xbf16> -> vector<1x16x8x144xbf16>
    %12 = vector.shape_cast %11 : vector<1x16x8x144xbf16> to vector<128x144xbf16>
    %cst = arith.constant dense<0.000000e+00> : vector<128x32xf32>
    %13 = tpu.matmul %12, %0, %cst {dimension_numbers = #tpu.dot_dimension_numbers<[1], [0], [0], [1], [0, 0, 1, 1], [], []>} : vector<128x144xbf16>, vector<144x32xbf16>, vector<128x32xf32> -> vector<128x32xf32>
    %14 = vector.broadcast %1 : vector<1x32xf32> to vector<128x32xf32>
    %15 = arith.addf %13, %14 : vector<128x32xf32>
    %cst_37 = arith.constant 0.000000e+00 : f32
    %16 = vector.broadcast %cst_37 : f32 to vector<128x32xf32>
    %17 = arith.maximumf %15, %16 : vector<128x32xf32>
    %c0_38 = arith.constant 0 : index
    %c0_39 = arith.constant 0 : index
    %c0_40 = arith.constant 0 : index
    %c0_41 = arith.constant 0 : index
    %18 = vector.load %arg2[%c0_38, %c0_39, %c0_40, %c0_41] : memref<1x18x9x16xbf16, #tpu.memory_space<vmem>>, vector<1x16x8x16xbf16>
    %c0_42 = arith.constant 0 : index
    %c0_43 = arith.constant 0 : index
    %c1_44 = arith.constant 1 : index
    %c0_45 = arith.constant 0 : index
    %19 = vector.load %arg1[%c0_42, %c0_43, %c1_44, %c0_45] : memref<1x18x9x16xbf16, #tpu.memory_space<vmem>>, vector<1x16x8x16xbf16>
    %c0_46 = arith.constant 0 : index
    %c0_47 = arith.constant 0 : index
    %c1_48 = arith.constant 1 : index
    %c0_49 = arith.constant 0 : index
    %20 = vector.load %arg2[%c0_46, %c0_47, %c1_48, %c0_49] : memref<1x18x9x16xbf16, #tpu.memory_space<vmem>>, vector<1x16x8x16xbf16>
    %c0_50 = arith.constant 0 : index
    %c1_51 = arith.constant 1 : index
    %c0_52 = arith.constant 0 : index
    %c0_53 = arith.constant 0 : index
    %21 = vector.load %arg2[%c0_50, %c1_51, %c0_52, %c0_53] : memref<1x18x9x16xbf16, #tpu.memory_space<vmem>>, vector<1x16x8x16xbf16>
    %c0_54 = arith.constant 0 : index
    %c1_55 = arith.constant 1 : index
    %c1_56 = arith.constant 1 : index
    %c0_57 = arith.constant 0 : index
    %22 = vector.load %arg1[%c0_54, %c1_55, %c1_56, %c0_57] : memref<1x18x9x16xbf16, #tpu.memory_space<vmem>>, vector<1x16x8x16xbf16>
    %c0_58 = arith.constant 0 : index
    %c1_59 = arith.constant 1 : index
    %c1_60 = arith.constant 1 : index
    %c0_61 = arith.constant 0 : index
    %23 = vector.load %arg2[%c0_58, %c1_59, %c1_60, %c0_61] : memref<1x18x9x16xbf16, #tpu.memory_space<vmem>>, vector<1x16x8x16xbf16>
    %c0_62 = arith.constant 0 : index
    %c2_63 = arith.constant 2 : index
    %c0_64 = arith.constant 0 : index
    %c0_65 = arith.constant 0 : index
    %24 = vector.load %arg2[%c0_62, %c2_63, %c0_64, %c0_65] : memref<1x18x9x16xbf16, #tpu.memory_space<vmem>>, vector<1x16x8x16xbf16>
    %c0_66 = arith.constant 0 : index
    %c2_67 = arith.constant 2 : index
    %c1_68 = arith.constant 1 : index
    %c0_69 = arith.constant 0 : index
    %25 = vector.load %arg1[%c0_66, %c2_67, %c1_68, %c0_69] : memref<1x18x9x16xbf16, #tpu.memory_space<vmem>>, vector<1x16x8x16xbf16>
    %c0_70 = arith.constant 0 : index
    %c2_71 = arith.constant 2 : index
    %c1_72 = arith.constant 1 : index
    %c0_73 = arith.constant 0 : index
    %26 = vector.load %arg2[%c0_70, %c2_71, %c1_72, %c0_73] : memref<1x18x9x16xbf16, #tpu.memory_space<vmem>>, vector<1x16x8x16xbf16>
    %27 = tpu.concatenate %18, %19, %20, %21, %22, %23, %24, %25, %26 in 3 : vector<1x16x8x16xbf16>, vector<1x16x8x16xbf16>, vector<1x16x8x16xbf16>, vector<1x16x8x16xbf16>, vector<1x16x8x16xbf16>, vector<1x16x8x16xbf16>, vector<1x16x8x16xbf16>, vector<1x16x8x16xbf16>, vector<1x16x8x16xbf16> -> vector<1x16x8x144xbf16>
    %28 = vector.shape_cast %27 : vector<1x16x8x144xbf16> to vector<128x144xbf16>
    %cst_74 = arith.constant dense<0.000000e+00> : vector<128x32xf32>
    %29 = tpu.matmul %28, %0, %cst_74 {dimension_numbers = #tpu.dot_dimension_numbers<[1], [0], [0], [1], [0, 0, 1, 1], [], []>} : vector<128x144xbf16>, vector<144x32xbf16>, vector<128x32xf32> -> vector<128x32xf32>
    %30 = vector.broadcast %1 : vector<1x32xf32> to vector<128x32xf32>
    %31 = arith.addf %29, %30 : vector<128x32xf32>
    %cst_75 = arith.constant 0.000000e+00 : f32
    %32 = vector.broadcast %cst_75 : f32 to vector<128x32xf32>
    %33 = arith.maximumf %31, %32 : vector<128x32xf32>
    %34 = arith.maximumf %17, %33 : vector<128x32xf32>
    %35 = vector.shape_cast %34 : vector<128x32xf32> to vector<8x2x8x32xf32>
    %36 = vector.extract_strided_slice %35 {offsets = [0, 0, 0, 0], sizes = [8, 1, 8, 32], strides = [1, 1, 1, 1]} : vector<8x2x8x32xf32> to vector<8x1x8x32xf32>
    %37 = vector.shape_cast %36 : vector<8x1x8x32xf32> to vector<8x8x32xf32>
    %38 = vector.extract_strided_slice %35 {offsets = [0, 1, 0, 0], sizes = [8, 1, 8, 32], strides = [1, 1, 1, 1]} : vector<8x2x8x32xf32> to vector<8x1x8x32xf32>
    %39 = vector.shape_cast %38 : vector<8x1x8x32xf32> to vector<8x8x32xf32>
    %40 = arith.maximumf %37, %39 : vector<8x8x32xf32>
    %41 = vector.shape_cast %40 : vector<8x8x32xf32> to vector<1x8x8x32xf32>
    %42 = arith.truncf %41 : vector<1x8x8x32xf32> to vector<1x8x8x32xbf16>
    %c0_76 = arith.constant 0 : index
    %c0_77 = arith.constant 0 : index
    %c0_78 = arith.constant 0 : index
    %c0_79 = arith.constant 0 : index
    %43 = vector.load %arg5[%c0_76, %c0_77, %c0_78, %c0_79] : memref<1x8x8x32xbf16, #tpu.memory_space<vmem>>, vector<1x8x8x32xbf16>
    tpu.vector_store %arg5[%c0_76, %c0_77, %c0_78, %c0_79], %42 {strides = array<i32>} : memref<1x8x8x32xbf16, #tpu.memory_space<vmem>>, vector<1x8x8x32xbf16>,
    return
  }
  func.func @transform_0(%arg0: i32) -> (i32, i32, i32, i32) {
    %c0_i32 = arith.constant 0 : i32
    %c0_i32_0 = arith.constant 0 : i32
    %c0_i32_1 = arith.constant 0 : i32
    %c0_i32_2 = arith.constant 0 : i32
    return %arg0, %c0_i32, %c0_i32_0, %c0_i32_1 : i32, i32, i32, i32
  }
  func.func @transform_1(%arg0: i32) -> (i32, i32, i32, i32) {
    %c0_i32 = arith.constant 0 : i32
    %c0_i32_0 = arith.constant 0 : i32
    %c0_i32_1 = arith.constant 0 : i32
    %c0_i32_2 = arith.constant 0 : i32
    return %arg0, %c0_i32, %c0_i32_0, %c0_i32_1 : i32, i32, i32, i32
  }
  func.func @transform_2(%arg0: i32) -> (i32, i32) {
    %c0_i32 = arith.constant 0 : i32
    %c0_i32_0 = arith.constant 0 : i32
    %c0_i32_1 = arith.constant 0 : i32
    return %c0_i32, %c0_i32_0 : i32, i32
  }
  func.func @transform_3(%arg0: i32) -> (i32, i32) {
    %c0_i32 = arith.constant 0 : i32
    %c0_i32_0 = arith.constant 0 : i32
    %c0_i32_1 = arith.constant 0 : i32
    return %c0_i32, %c0_i32_0 : i32, i32
  }
  func.func @transform_4(%arg0: i32) -> (i32, i32, i32, i32) {
    %c0_i32 = arith.constant 0 : i32
    %c0_i32_0 = arith.constant 0 : i32
    %c0_i32_1 = arith.constant 0 : i32
    %c0_i32_2 = arith.constant 0 : i32
    return %arg0, %c0_i32, %c0_i32_0, %c0_i32_1 : i32, i32, i32, i32
  }
}

</mosaic_0001>

<llo_original>
// kernel: simple_cnn_forward.5
$region0: #{simple_cnn_forward.5}
  #allocation0 [shape = 'u32[]', space=smem, size = 0x4, offset = 0x4, fixed_abs, tag = 'smem constant byte address 0x4 - core index']
  #allocation1 [shape = 'u32[72,128]{1,0:T(1,128)}', space=vmem, size = 0x9000, scoped, tag = 'internal scratch']
  %s0 = inlined_call_operand.vmem [shape: bf16[8,2048], index: 0, kind: input, shape index: {}]
  %s1 = inlined_call_operand.vmem [shape: bf16[2048,128], index: 1, kind: input, shape index: {}]
  %s2 = inlined_call_operand.vmem [shape: f32[1,128], index: 2, kind: input, shape index: {}]
  %s3 = inlined_call_operand.vmem [shape: bf16[128,128], index: 3, kind: input, shape index: {}]
  %s4 = inlined_call_operand.vmem [shape: f32[1,128], index: 4, kind: input, shape index: {}]
  %s5 = inlined_call_operand.vmem [shape: f32[8,128], index: 5, kind: output, shape index: {}]
  %s6 = sld [smem:[#allocation0]]
  $region30: #{simple_cnn_forward.5} parent=0
    _
  %s8 = ssub.s32 1, %s6
  %s9 = scalar_select 0, %s8, %s6
  // Predicated region
  $region2: #{simple_cnn_forward.5} parent=0 // pred_check
    _
  $region3: #{simple_cnn_forward.5} parent=0 // pred_check_branch
    %11 = sbr.rel (0) target = $region5
  $region4: #{simple_cnn_forward.5} parent=0 // pred_region
    _
  $region5: #{simple_cnn_forward.5} parent=0 // pred_fallthru
    _
  // Predicated region
  $region6: #{simple_cnn_forward.5} parent=0 // pred_check
    _
  $region7: #{simple_cnn_forward.5} parent=0 // pred_check_branch
    %13 = sbr.rel (0) target = $region9
  $region8: #{simple_cnn_forward.5} parent=0 // pred_region
    _
  $region9: #{simple_cnn_forward.5} parent=0 // pred_fallthru
    _
  // Predicated region
  $region10: #{simple_cnn_forward.5} parent=0 // pred_check
    _
  $region11: #{simple_cnn_forward.5} parent=0 // pred_check_branch
    %15 = sbr.rel (0) target = $region13
  $region12: #{simple_cnn_forward.5} parent=0 // pred_region
    _
  $region13: #{simple_cnn_forward.5} parent=0 // pred_fallthru
    _
  // Predicated region
  $region14: #{simple_cnn_forward.5} parent=0 // pred_check
    _
  $region15: #{simple_cnn_forward.5} parent=0 // pred_check_branch
    %17 = sbr.rel (0) target = $region17
  $region16: #{simple_cnn_forward.5} parent=0 // pred_region
    _
  $region17: #{simple_cnn_forward.5} parent=0 // pred_fallthru
    _
  // Predicated region
  $region18: #{simple_cnn_forward.5} parent=0 // pred_check
    _
  $region19: #{simple_cnn_forward.5} parent=0 // pred_check_branch
    %19 = sbr.rel (0) target = $region21
  $region20: #{simple_cnn_forward.5} parent=0 // pred_region
    _
  $region21: #{simple_cnn_forward.5} parent=0 // pred_fallthru
    _
  %v20 = vld [vmem:[%s0] sm:$0xff]
  %v21 = vld [vmem:[%s0 + $0x8] sm:$0xff]
  %v22 = vld [vmem:[%s0 + $0x10] sm:$0xff]
  %v23 = vld [vmem:[%s0 + $0x18] sm:$0xff]
  %v24 = vld [vmem:[%s0 + $0x20] sm:$0xff]
  %v25 = vld [vmem:[%s0 + $0x28] sm:$0xff]
  %v26 = vld [vmem:[%s0 + $0x30] sm:$0xff]
  %v27 = vld [vmem:[%s0 + $0x38] sm:$0xff]
  %v28 = vld [vmem:[%s1] sm:$0xf]
  %v29 = vld [vmem:[%s1 + $0x4] sm:$0xf]
  %v30 = vld [vmem:[%s1 + $0x8] sm:$0xf]
  %v31 = vld [vmem:[%s1 + $0xc] sm:$0xf]
  %v32 = vld [vmem:[%s1 + $0x10] sm:$0xf]
  %v33 = vld [vmem:[%s1 + $0x14] sm:$0xf]
  %v34 = vld [vmem:[%s1 + $0x18] sm:$0xf]
  %v35 = vld [vmem:[%s1 + $0x1c] sm:$0xf]
  %v36 = vld [vmem:[%s1 + $0x20] sm:$0xf]
  %v37 = vld [vmem:[%s1 + $0x24] sm:$0xf]
  %v38 = vld [vmem:[%s1 + $0x28] sm:$0xf]
  %v39 = vld [vmem:[%s1 + $0x2c] sm:$0xf]
  %v40 = vld [vmem:[%s1 + $0x30] sm:$0xf]
  %v41 = vld [vmem:[%s1 + $0x34] sm:$0xf]
  %v42 = vld [vmem:[%s1 + $0x38] sm:$0xf]
  %v43 = vld [vmem:[%s1 + $0x3c] sm:$0xf]
  %v44 = vld [vmem:[%s1 + $0x40] sm:$0xf]
  %v45 = vld [vmem:[%s1 + $0x44] sm:$0xf]
  %v46 = vld [vmem:[%s1 + $0x48] sm:$0xf]
  %v47 = vld [vmem:[%s1 + $0x4c] sm:$0xf]
  %v48 = vld [vmem:[%s1 + $0x50] sm:$0xf]
  %v49 = vld [vmem:[%s1 + $0x54] sm:$0xf]
  %v50 = vld [vmem:[%s1 + $0x58] sm:$0xf]
  %v51 = vld [vmem:[%s1 + $0x5c] sm:$0xf]
  %v52 = vld [vmem:[%s1 + $0x60] sm:$0xf]
  %v53 = vld [vmem:[%s1 + $0x64] sm:$0xf]
  %v54 = vld [vmem:[%s1 + $0x68] sm:$0xf]
  %v55 = vld [vmem:[%s1 + $0x6c] sm:$0xf]
  %v56 = vld [vmem:[%s1 + $0x70] sm:$0xf]
  %v57 = vld [vmem:[%s1 + $0x74] sm:$0xf]
  %v58 = vld [vmem:[%s1 + $0x78] sm:$0xf]
  %v59 = vld [vmem:[%s1 + $0x7c] sm:$0xf]
  %v60 = vld [vmem:[%s1 + $0x80] sm:$0xf]
  %v61 = vld [vmem:[%s1 + $0x84] sm:$0xf]
  %v62 = vld [vmem:[%s1 + $0x88] sm:$0xf]
  %v63 = vld [vmem:[%s1 + $0x8c] sm:$0xf]
  %v64 = vld [vmem:[%s1 + $0x90] sm:$0xf]
  %v65 = vld [vmem:[%s1 + $0x94] sm:$0xf]
  %v66 = vld [vmem:[%s1 + $0x98] sm:$0xf]
  %v67 = vld [vmem:[%s1 + $0x9c] sm:$0xf]
  %v68 = vld [vmem:[%s1 + $0xa0] sm:$0xf]
  %v69 = vld [vmem:[%s1 + $0xa4] sm:$0xf]
  %v70 = vld [vmem:[%s1 + $0xa8] sm:$0xf]
  %v71 = vld [vmem:[%s1 + $0xac] sm:$0xf]
  %v72 = vld [vmem:[%s1 + $0xb0] sm:$0xf]
  %v73 = vld [vmem:[%s1 + $0xb4] sm:$0xf]
  %v74 = vld [vmem:[%s1 + $0xb8] sm:$0xf]
  %v75 = vld [vmem:[%s1 + $0xbc] sm:$0xf]
  %v76 = vld [vmem:[%s1 + $0xc0] sm:$0xf]
  %v77 = vld [vmem:[%s1 + $0xc4] sm:$0xf]
  %v78 = vld [vmem:[%s1 + $0xc8] sm:$0xf]
  %v79 = vld [vmem:[%s1 + $0xcc] sm:$0xf]
  %v80 = vld [vmem:[%s1 + $0xd0] sm:$0xf]
  %v81 = vld [vmem:[%s1 + $0xd4] sm:$0xf]
  %v82 = vld [vmem:[%s1 + $0xd8] sm:$0xf]
  %v83 = vld [vmem:[%s1 + $0xdc] sm:$0xf]
  %v84 = vld [vmem:[%s1 + $0xe0] sm:$0xf]
  %v85 = vld [vmem:[%s1 + $0xe4] sm:$0xf]
  %v86 = vld [vmem:[%s1 + $0xe8] sm:$0xf]
  %v87 = vld [vmem:[%s1 + $0xec] sm:$0xf]
  %v88 = vld [vmem:[%s1 + $0xf0] sm:$0xf]
  %v89 = vld [vmem:[%s1 + $0xf4] sm:$0xf]
  %v90 = vld [vmem:[%s1 + $0xf8] sm:$0xf]
  %v91 = vld [vmem:[%s1 + $0xfc] sm:$0xf]
  %v92 = vld [vmem:[%s1 + $0x100] sm:$0xf]
  %v93 = vld [vmem:[%s1 + $0x104] sm:$0xf]
  %v94 = vld [vmem:[%s1 + $0x108] sm:$0xf]
  %v95 = vld [vmem:[%s1 + $0x10c] sm:$0xf]
  %v96 = vld [vmem:[%s1 + $0x110] sm:$0xf]
  %v97 = vld [vmem:[%s1 + $0x114] sm:$0xf]
  %v98 = vld [vmem:[%s1 + $0x118] sm:$0xf]
  %v99 = vld [vmem:[%s1 + $0x11c] sm:$0xf]
  %v100 = vld [vmem:[%s1 + $0x120] sm:$0xf]
  %v101 = vld [vmem:[%s1 + $0x124] sm:$0xf]
  %v102 = vld [vmem:[%s1 + $0x128] sm:$0xf]
  %v103 = vld [vmem:[%s1 + $0x12c] sm:$0xf]
  %v104 = vld [vmem:[%s1 + $0x130] sm:$0xf]
  %v105 = vld [vmem:[%s1 + $0x134] sm:$0xf]
  %v106 = vld [vmem:[%s1 + $0x138] sm:$0xf]
  %v107 = vld [vmem:[%s1 + $0x13c] sm:$0xf]
  %v108 = vld [vmem:[%s1 + $0x140] sm:$0xf]
  %v109 = vld [vmem:[%s1 + $0x144] sm:$0xf]
  %v110 = vld [vmem:[%s1 + $0x148] sm:$0xf]
  %v111 = vld [vmem:[%s1 + $0x14c] sm:$0xf]
  %v112 = vld [vmem:[%s1 + $0x150] sm:$0xf]
  %v113 = vld [vmem:[%s1 + $0x154] sm:$0xf]
  %v114 = vld [vmem:[%s1 + $0x158] sm:$0xf]
  %v115 = vld [vmem:[%s1 + $0x15c] sm:$0xf]
  %v116 = vld [vmem:[%s1 + $0x160] sm:$0xf]
  %v117 = vld [vmem:[%s1 + $0x164] sm:$0xf]
  %v118 = vld [vmem:[%s1 + $0x168] sm:$0xf]
  %v119 = vld [vmem:[%s1 + $0x16c] sm:$0xf]
  %v120 = vld [vmem:[%s1 + $0x170] sm:$0xf]
  %v121 = vld [vmem:[%s1 + $0x174] sm:$0xf]
  %v122 = vld [vmem:[%s1 + $0x178] sm:$0xf]
  %v123 = vld [vmem:[%s1 + $0x17c] sm:$0xf]
  %v124 = vld [vmem:[%s1 + $0x180] sm:$0xf]
  %v125 = vld [vmem:[%s1 + $0x184] sm:$0xf]
  %v126 = vld [vmem:[%s1 + $0x188] sm:$0xf]
  %v127 = vld [vmem:[%s1 + $0x18c] sm:$0xf]
  %v128 = vld [vmem:[%s1 + $0x190] sm:$0xf]
  %v129 = vld [vmem:[%s1 + $0x194] sm:$0xf]
  %v130 = vld [vmem:[%s1 + $0x198] sm:$0xf]
  %v131 = vld [vmem:[%s1 + $0x19c] sm:$0xf]
  %v132 = vld [vmem:[%s1 + $0x1a0] sm:$0xf]
  %v133 = vld [vmem:[%s1 + $0x1a4] sm:$0xf]
  %v134 = vld [vmem:[%s1 + $0x1a8] sm:$0xf]
  %v135 = vld [vmem:[%s1 + $0x1ac] sm:$0xf]
  %v136 = vld [vmem:[%s1 + $0x1b0] sm:$0xf]
  %v137 = vld [vmem:[%s1 + $0x1b4] sm:$0xf]
  %v138 = vld [vmem:[%s1 + $0x1b8] sm:$0xf]
  %v139 = vld [vmem:[%s1 + $0x1bc] sm:$0xf]
  %v140 = vld [vmem:[%s1 + $0x1c0] sm:$0xf]
  %v141 = vld [vmem:[%s1 + $0x1c4] sm:$0xf]
  %v142 = vld [vmem:[%s1 + $0x1c8] sm:$0xf]
  %v143 = vld [vmem:[%s1 + $0x1cc] sm:$0xf]
  %v144 = vld [vmem:[%s1 + $0x1d0] sm:$0xf]
  %v145 = vld [vmem:[%s1 + $0x1d4] sm:$0xf]
  %v146 = vld [vmem:[%s1 + $0x1d8] sm:$0xf]
  %v147 = vld [vmem:[%s1 + $0x1dc] sm:$0xf]
  %v148 = vld [vmem:[%s1 + $0x1e0] sm:$0xf]
  %v149 = vld [vmem:[%s1 + $0x1e4] sm:$0xf]
  %v150 = vld [vmem:[%s1 + $0x1e8] sm:$0xf]
  %v151 = vld [vmem:[%s1 + $0x1ec] sm:$0xf]
  %v152 = vld [vmem:[%s1 + $0x1f0] sm:$0xf]
  %v153 = vld [vmem:[%s1 + $0x1f4] sm:$0xf]
  %v154 = vld [vmem:[%s1 + $0x1f8] sm:$0xf]
  %v155 = vld [vmem:[%s1 + $0x1fc] sm:$0xf]
  %v156 = vld [vmem:[%s1 + $0x200] sm:$0xf]
  %v157 = vld [vmem:[%s1 + $0x204] sm:$0xf]
  %v158 = vld [vmem:[%s1 + $0x208] sm:$0xf]
  %v159 = vld [vmem:[%s1 + $0x20c] sm:$0xf]
  %v160 = vld [vmem:[%s1 + $0x210] sm:$0xf]
  %v161 = vld [vmem:[%s1 + $0x214] sm:$0xf]
  %v162 = vld [vmem:[%s1 + $0x218] sm:$0xf]
  %v163 = vld [vmem:[%s1 + $0x21c] sm:$0xf]
  %v164 = vld [vmem:[%s1 + $0x220] sm:$0xf]
  %v165 = vld [vmem:[%s1 + $0x224] sm:$0xf]
  %v166 = vld [vmem:[%s1 + $0x228] sm:$0xf]
  %v167 = vld [vmem:[%s1 + $0x22c] sm:$0xf]
  %v168 = vld [vmem:[%s1 + $0x230] sm:$0xf]
  %v169 = vld [vmem:[%s1 + $0x234] sm:$0xf]
  %v170 = vld [vmem:[%s1 + $0x238] sm:$0xf]
  %v171 = vld [vmem:[%s1 + $0x23c] sm:$0xf]
  %v172 = vld [vmem:[%s1 + $0x240] sm:$0xf]
  %v173 = vld [vmem:[%s1 + $0x244] sm:$0xf]
  %v174 = vld [vmem:[%s1 + $0x248] sm:$0xf]
  %v175 = vld [vmem:[%s1 + $0x24c] sm:$0xf]
  %v176 = vld [vmem:[%s1 + $0x250] sm:$0xf]
  %v177 = vld [vmem:[%s1 + $0x254] sm:$0xf]
  %v178 = vld [vmem:[%s1 + $0x258] sm:$0xf]
  %v179 = vld [vmem:[%s1 + $0x25c] sm:$0xf]
  %v180 = vld [vmem:[%s1 + $0x260] sm:$0xf]
  %v181 = vld [vmem:[%s1 + $0x264] sm:$0xf]
  %v182 = vld [vmem:[%s1 + $0x268] sm:$0xf]
  %v183 = vld [vmem:[%s1 + $0x26c] sm:$0xf]
  %v184 = vld [vmem:[%s1 + $0x270] sm:$0xf]
  %v185 = vld [vmem:[%s1 + $0x274] sm:$0xf]
  %v186 = vld [vmem:[%s1 + $0x278] sm:$0xf]
  %v187 = vld [vmem:[%s1 + $0x27c] sm:$0xf]
  %v188 = vld [vmem:[%s1 + $0x280] sm:$0xf]
  %v189 = vld [vmem:[%s1 + $0x284] sm:$0xf]
  %v190 = vld [vmem:[%s1 + $0x288] sm:$0xf]
  %v191 = vld [vmem:[%s1 + $0x28c] sm:$0xf]
  %v192 = vld [vmem:[%s1 + $0x290] sm:$0xf]
  %v193 = vld [vmem:[%s1 + $0x294] sm:$0xf]
  %v194 = vld [vmem:[%s1 + $0x298] sm:$0xf]
  %v195 = vld [vmem:[%s1 + $0x29c] sm:$0xf]
  %v196 = vld [vmem:[%s1 + $0x2a0] sm:$0xf]
  %v197 = vld [vmem:[%s1 + $0x2a4] sm:$0xf]
  %v198 = vld [vmem:[%s1 + $0x2a8] sm:$0xf]
  %v199 = vld [vmem:[%s1 + $0x2ac] sm:$0xf]
  %v200 = vld [vmem:[%s1 + $0x2b0] sm:$0xf]
  %v201 = vld [vmem:[%s1 + $0x2b4] sm:$0xf]
  %v202 = vld [vmem:[%s1 + $0x2b8] sm:$0xf]
  %v203 = vld [vmem:[%s1 + $0x2bc] sm:$0xf]
  %v204 = vld [vmem:[%s1 + $0x2c0] sm:$0xf]
  %v205 = vld [vmem:[%s1 + $0x2c4] sm:$0xf]
  %v206 = vld [vmem:[%s1 + $0x2c8] sm:$0xf]
  %v207 = vld [vmem:[%s1 + $0x2cc] sm:$0xf]
  %v208 = vld [vmem:[%s1 + $0x2d0] sm:$0xf]
  %v209 = vld [vmem:[%s1 + $0x2d4] sm:$0xf]
  %v210 = vld [vmem:[%s1 + $0x2d8] sm:$0xf]
  %v211 = vld [vmem:[%s1 + $0x2dc] sm:$0xf]
  %v212 = vld [vmem:[%s1 + $0x2e0] sm:$0xf]
  %v213 = vld [vmem:[%s1 + $0x2e4] sm:$0xf]
  %v214 = vld [vmem:[%s1 + $0x2e8] sm:$0xf]
  %v215 = vld [vmem:[%s1 + $0x2ec] sm:$0xf]
  %v216 = vld [vmem:[%s1 + $0x2f0] sm:$0xf]
  %v217 = vld [vmem:[%s1 + $0x2f4] sm:$0xf]
  %v218 = vld [vmem:[%s1 + $0x2f8] sm:$0xf]
  %v219 = vld [vmem:[%s1 + $0x2fc] sm:$0xf]
  %v220 = vld [vmem:[%s1 + $0x300] sm:$0xf]
  %v221 = vld [vmem:[%s1 + $0x304] sm:$0xf]
  %v222 = vld [vmem:[%s1 + $0x308] sm:$0xf]
  %v223 = vld [vmem:[%s1 + $0x30c] sm:$0xf]
  %v224 = vld [vmem:[%s1 + $0x310] sm:$0xf]
  %v225 = vld [vmem:[%s1 + $0x314] sm:$0xf]
  %v226 = vld [vmem:[%s1 + $0x318] sm:$0xf]
  %v227 = vld [vmem:[%s1 + $0x31c] sm:$0xf]
  %v228 = vld [vmem:[%s1 + $0x320] sm:$0xf]
  %v229 = vld [vmem:[%s1 + $0x324] sm:$0xf]
  %v230 = vld [vmem:[%s1 + $0x328] sm:$0xf]
  %v231 = vld [vmem:[%s1 + $0x32c] sm:$0xf]
  %v232 = vld [vmem:[%s1 + $0x330] sm:$0xf]
  %v233 = vld [vmem:[%s1 + $0x334] sm:$0xf]
  %v234 = vld [vmem:[%s1 + $0x338] sm:$0xf]
  %v235 = vld [vmem:[%s1 + $0x33c] sm:$0xf]
  %v236 = vld [vmem:[%s1 + $0x340] sm:$0xf]
  %v237 = vld [vmem:[%s1 + $0x344] sm:$0xf]
  %v238 = vld [vmem:[%s1 + $0x348] sm:$0xf]
  %v239 = vld [vmem:[%s1 + $0x34c] sm:$0xf]
  %v240 = vld [vmem:[%s1 + $0x350] sm:$0xf]
  %v241 = vld [vmem:[%s1 + $0x354] sm:$0xf]
  %v242 = vld [vmem:[%s1 + $0x358] sm:$0xf]
  %v243 = vld [vmem:[%s1 + $0x35c] sm:$0xf]
  %v244 = vld [vmem:[%s1 + $0x360] sm:$0xf]
  %v245 = vld [vmem:[%s1 + $0x364] sm:$0xf]
  %v246 = vld [vmem:[%s1 + $0x368] sm:$0xf]
  %v247 = vld [vmem:[%s1 + $0x36c] sm:$0xf]
  %v248 = vld [vmem:[%s1 + $0x370] sm:$0xf]
  %v249 = vld [vmem:[%s1 + $0x374] sm:$0xf]
  %v250 = vld [vmem:[%s1 + $0x378] sm:$0xf]
  %v251 = vld [vmem:[%s1 + $0x37c] sm:$0xf]
  %v252 = vld [vmem:[%s1 + $0x380] sm:$0xf]
  %v253 = vld [vmem:[%s1 + $0x384] sm:$0xf]
  %v254 = vld [vmem:[%s1 + $0x388] sm:$0xf]
  %v255 = vld [vmem:[%s1 + $0x38c] sm:$0xf]
  %v256 = vld [vmem:[%s1 + $0x390] sm:$0xf]
  %v257 = vld [vmem:[%s1 + $0x394] sm:$0xf]
  %v258 = vld [vmem:[%s1 + $0x398] sm:$0xf]
  %v259 = vld [vmem:[%s1 + $0x39c] sm:$0xf]
  %v260 = vld [vmem:[%s1 + $0x3a0] sm:$0xf]
  %v261 = vld [vmem:[%s1 + $0x3a4] sm:$0xf]
  %v262 = vld [vmem:[%s1 + $0x3a8] sm:$0xf]
  %v263 = vld [vmem:[%s1 + $0x3ac] sm:$0xf]
  %v264 = vld [vmem:[%s1 + $0x3b0] sm:$0xf]
  %v265 = vld [vmem:[%s1 + $0x3b4] sm:$0xf]
  %v266 = vld [vmem:[%s1 + $0x3b8] sm:$0xf]
  %v267 = vld [vmem:[%s1 + $0x3bc] sm:$0xf]
  %v268 = vld [vmem:[%s1 + $0x3c0] sm:$0xf]
  %v269 = vld [vmem:[%s1 + $0x3c4] sm:$0xf]
  %v270 = vld [vmem:[%s1 + $0x3c8] sm:$0xf]
  %v271 = vld [vmem:[%s1 + $0x3cc] sm:$0xf]
  %v272 = vld [vmem:[%s1 + $0x3d0] sm:$0xf]
  %v273 = vld [vmem:[%s1 + $0x3d4] sm:$0xf]
  %v274 = vld [vmem:[%s1 + $0x3d8] sm:$0xf]
  %v275 = vld [vmem:[%s1 + $0x3dc] sm:$0xf]
  %v276 = vld [vmem:[%s1 + $0x3e0] sm:$0xf]
  %v277 = vld [vmem:[%s1 + $0x3e4] sm:$0xf]
  %v278 = vld [vmem:[%s1 + $0x3e8] sm:$0xf]
  %v279 = vld [vmem:[%s1 + $0x3ec] sm:$0xf]
  %v280 = vld [vmem:[%s1 + $0x3f0] sm:$0xf]
  %v281 = vld [vmem:[%s1 + $0x3f4] sm:$0xf]
  %v282 = vld [vmem:[%s1 + $0x3f8] sm:$0xf]
  %v283 = vld [vmem:[%s1 + $0x3fc] sm:$0xf]
  %v284 = vld [vmem:[%s2] sm:$0x1]
  %v286 = vperm.slane %v284, 0
  %v296 = vunpack.c.l.b16 %v20
  %v297 = vunpack.c.h.b16 %v20
  %v298 = vunpack.c.l.b16 %v21
  %v299 = vunpack.c.h.b16 %v21
  %v300 = vunpack.c.l.b16 %v22
  %v301 = vunpack.c.h.b16 %v22
  %v302 = vunpack.c.l.b16 %v23
  %v303 = vunpack.c.h.b16 %v23
  %v304 = vunpack.c.l.b16 %v24
  %v305 = vunpack.c.h.b16 %v24
  %v306 = vunpack.c.l.b16 %v25
  %v307 = vunpack.c.h.b16 %v25
  %v308 = vunpack.c.l.b16 %v26
  %v309 = vunpack.c.h.b16 %v26
  %v310 = vunpack.c.l.b16 %v27
  %v311 = vunpack.c.h.b16 %v27
  %v312 = vpack.c.b16 %v296, %v296
  %v313 = vpack.c.b16 %v297, %v297
  %v314 = vpack.c.b16 %v298, %v298
  %v315 = vpack.c.b16 %v299, %v299
  %v316 = vpack.c.b16 %v300, %v300
  %v317 = vpack.c.b16 %v301, %v301
  %v318 = vpack.c.b16 %v302, %v302
  %v319 = vpack.c.b16 %v303, %v303
  %v320 = vpack.c.b16 %v304, %v304
  %v321 = vpack.c.b16 %v305, %v305
  %v322 = vpack.c.b16 %v306, %v306
  %v323 = vpack.c.b16 %v307, %v307
  %v324 = vpack.c.b16 %v308, %v308
  %v325 = vpack.c.b16 %v309, %v309
  %v326 = vpack.c.b16 %v310, %v310
  %v327 = vpack.c.b16 %v311, %v311
  %v600 = vunpack.c.l.b16 %v28
  %v601 = vunpack.c.l.b16 %v29
  %v602 = vunpack.c.l.b16 %v30
  %v603 = vunpack.c.l.b16 %v31
  %v604 = vunpack.c.l.b16 %v32
  %v605 = vunpack.c.l.b16 %v33
  %v606 = vunpack.c.l.b16 %v34
  %v607 = vunpack.c.l.b16 %v35
  %v608 = vunpack.c.l.b16 %v36
  %v609 = vunpack.c.l.b16 %v37
  %v610 = vunpack.c.l.b16 %v38
  %v611 = vunpack.c.l.b16 %v39
  %v612 = vunpack.c.l.b16 %v40
  %v613 = vunpack.c.l.b16 %v41
  %v614 = vunpack.c.l.b16 %v42
  %v615 = vunpack.c.l.b16 %v43
  %v616 = vunpack.c.l.b16 %v44
  %v617 = vunpack.c.l.b16 %v45
  %v618 = vunpack.c.l.b16 %v46
  %v619 = vunpack.c.l.b16 %v47
  %v620 = vunpack.c.l.b16 %v48
  %v621 = vunpack.c.l.b16 %v49
  %v622 = vunpack.c.l.b16 %v50
  %v623 = vunpack.c.l.b16 %v51
  %v624 = vunpack.c.l.b16 %v52
  %v625 = vunpack.c.l.b16 %v53
  %v626 = vunpack.c.l.b16 %v54
  %v627 = vunpack.c.l.b16 %v55
  %v628 = vunpack.c.l.b16 %v56
  %v629 = vunpack.c.l.b16 %v57
  %v630 = vunpack.c.l.b16 %v58
  %v631 = vunpack.c.l.b16 %v59
  %v632 = vunpack.c.l.b16 %v60
  %v633 = vunpack.c.l.b16 %v61
  %v634 = vunpack.c.l.b16 %v62
  %v635 = vunpack.c.l.b16 %v63
  %v636 = vunpack.c.l.b16 %v64
  %v637 = vunpack.c.l.b16 %v65
  %v638 = vunpack.c.l.b16 %v66
  %v639 = vunpack.c.l.b16 %v67
  %v640 = vunpack.c.l.b16 %v68
  %v641 = vunpack.c.l.b16 %v69
  %v642 = vunpack.c.l.b16 %v70
  %v643 = vunpack.c.l.b16 %v71
  %v644 = vunpack.c.l.b16 %v72
  %v645 = vunpack.c.l.b16 %v73
  %v646 = vunpack.c.l.b16 %v74
  %v647 = vunpack.c.l.b16 %v75
  %v648 = vunpack.c.l.b16 %v76
  %v649 = vunpack.c.l.b16 %v77
  %v650 = vunpack.c.l.b16 %v78
  %v651 = vunpack.c.l.b16 %v79
  %v652 = vunpack.c.l.b16 %v80
  %v653 = vunpack.c.l.b16 %v81
  %v654 = vunpack.c.l.b16 %v82
  %v655 = vunpack.c.l.b16 %v83
  %v656 = vunpack.c.l.b16 %v84
  %v657 = vunpack.c.l.b16 %v85
  %v658 = vunpack.c.l.b16 %v86
  %v659 = vunpack.c.l.b16 %v87
  %v660 = vunpack.c.l.b16 %v88
  %v661 = vunpack.c.l.b16 %v89
  %v662 = vunpack.c.l.b16 %v90
  %v663 = vunpack.c.l.b16 %v91
  %v664 = vunpack.c.l.b16 %v92
  %v665 = vunpack.c.l.b16 %v93
  %v666 = vunpack.c.l.b16 %v94
  %v667 = vunpack.c.l.b16 %v95
  %v668 = vunpack.c.l.b16 %v96
  %v669 = vunpack.c.l.b16 %v97
  %v670 = vunpack.c.l.b16 %v98
  %v671 = vunpack.c.l.b16 %v99
  %v672 = vunpack.c.l.b16 %v100
  %v673 = vunpack.c.l.b16 %v101
  %v674 = vunpack.c.l.b16 %v102
  %v675 = vunpack.c.l.b16 %v103
  %v676 = vunpack.c.l.b16 %v104
  %v677 = vunpack.c.l.b16 %v105
  %v678 = vunpack.c.l.b16 %v106
  %v679 = vunpack.c.l.b16 %v107
  %v680 = vunpack.c.l.b16 %v108
  %v681 = vunpack.c.l.b16 %v109
  %v682 = vunpack.c.l.b16 %v110
  %v683 = vunpack.c.l.b16 %v111
  %v684 = vunpack.c.l.b16 %v112
  %v685 = vunpack.c.l.b16 %v113
  %v686 = vunpack.c.l.b16 %v114
  %v687 = vunpack.c.l.b16 %v115
  %v688 = vunpack.c.l.b16 %v116
  %v689 = vunpack.c.l.b16 %v117
  %v690 = vunpack.c.l.b16 %v118
  %v691 = vunpack.c.l.b16 %v119
  %v692 = vunpack.c.l.b16 %v120
  %v693 = vunpack.c.l.b16 %v121
  %v694 = vunpack.c.l.b16 %v122
  %v695 = vunpack.c.l.b16 %v123
  %v696 = vunpack.c.l.b16 %v124
  %v697 = vunpack.c.l.b16 %v125
  %v698 = vunpack.c.l.b16 %v126
  %v699 = vunpack.c.l.b16 %v127
  %v700 = vunpack.c.l.b16 %v128
  %v701 = vunpack.c.l.b16 %v129
  %v702 = vunpack.c.l.b16 %v130
  %v703 = vunpack.c.l.b16 %v131
  %v704 = vunpack.c.l.b16 %v132
  %v705 = vunpack.c.l.b16 %v133
  %v706 = vunpack.c.l.b16 %v134
  %v707 = vunpack.c.l.b16 %v135
  %v708 = vunpack.c.l.b16 %v136
  %v709 = vunpack.c.l.b16 %v137
  %v710 = vunpack.c.l.b16 %v138
  %v711 = vunpack.c.l.b16 %v139
  %v712 = vunpack.c.l.b16 %v140
  %v713 = vunpack.c.l.b16 %v141
  %v714 = vunpack.c.l.b16 %v142
  %v715 = vunpack.c.l.b16 %v143
  %v716 = vunpack.c.l.b16 %v144
  %v717 = vunpack.c.l.b16 %v145
  %v718 = vunpack.c.l.b16 %v146
  %v719 = vunpack.c.l.b16 %v147
  %v720 = vunpack.c.l.b16 %v148
  %v721 = vunpack.c.l.b16 %v149
  %v722 = vunpack.c.l.b16 %v150
  %v723 = vunpack.c.l.b16 %v151
  %v724 = vunpack.c.l.b16 %v152
  %v725 = vunpack.c.l.b16 %v153
  %v726 = vunpack.c.l.b16 %v154
  %v727 = vunpack.c.l.b16 %v155
  %v728 = vunpack.c.l.b16 %v156
  %v729 = vunpack.c.l.b16 %v157
  %v730 = vunpack.c.l.b16 %v158
  %v731 = vunpack.c.l.b16 %v159
  %v732 = vunpack.c.l.b16 %v160
  %v733 = vunpack.c.l.b16 %v161
  %v734 = vunpack.c.l.b16 %v162
  %v735 = vunpack.c.l.b16 %v163
  %v736 = vunpack.c.l.b16 %v164
  %v737 = vunpack.c.l.b16 %v165
  %v738 = vunpack.c.l.b16 %v166
  %v739 = vunpack.c.l.b16 %v167
  %v740 = vunpack.c.l.b16 %v168
  %v741 = vunpack.c.l.b16 %v169
  %v742 = vunpack.c.l.b16 %v170
  %v743 = vunpack.c.l.b16 %v171
  %v744 = vunpack.c.l.b16 %v172
  %v745 = vunpack.c.l.b16 %v173
  %v746 = vunpack.c.l.b16 %v174
  %v747 = vunpack.c.l.b16 %v175
  %v748 = vunpack.c.l.b16 %v176
  %v749 = vunpack.c.l.b16 %v177
  %v750 = vunpack.c.l.b16 %v178
  %v751 = vunpack.c.l.b16 %v179
  %v752 = vunpack.c.l.b16 %v180
  %v753 = vunpack.c.l.b16 %v181
  %v754 = vunpack.c.l.b16 %v182
  %v755 = vunpack.c.l.b16 %v183
  %v756 = vunpack.c.l.b16 %v184
  %v757 = vunpack.c.l.b16 %v185
  %v758 = vunpack.c.l.b16 %v186
  %v759 = vunpack.c.l.b16 %v187
  %v760 = vunpack.c.l.b16 %v188
  %v761 = vunpack.c.l.b16 %v189
  %v762 = vunpack.c.l.b16 %v190
  %v763 = vunpack.c.l.b16 %v191
  %v764 = vunpack.c.l.b16 %v192
  %v765 = vunpack.c.l.b16 %v193
  %v766 = vunpack.c.l.b16 %v194
  %v767 = vunpack.c.l.b16 %v195
  %v768 = vunpack.c.l.b16 %v196
  %v769 = vunpack.c.l.b16 %v197
  %v770 = vunpack.c.l.b16 %v198
  %v771 = vunpack.c.l.b16 %v199
  %v772 = vunpack.c.l.b16 %v200
  %v773 = vunpack.c.l.b16 %v201
  %v774 = vunpack.c.l.b16 %v202
  %v775 = vunpack.c.l.b16 %v203
  %v776 = vunpack.c.l.b16 %v204
  %v777 = vunpack.c.l.b16 %v205
  %v778 = vunpack.c.l.b16 %v206
  %v779 = vunpack.c.l.b16 %v207
  %v780 = vunpack.c.l.b16 %v208
  %v781 = vunpack.c.l.b16 %v209
  %v782 = vunpack.c.l.b16 %v210
  %v783 = vunpack.c.l.b16 %v211
  %v784 = vunpack.c.l.b16 %v212
  %v785 = vunpack.c.l.b16 %v213
  %v786 = vunpack.c.l.b16 %v214
  %v787 = vunpack.c.l.b16 %v215
  %v788 = vunpack.c.l.b16 %v216
  %v789 = vunpack.c.l.b16 %v217
  %v790 = vunpack.c.l.b16 %v218
  %v791 = vunpack.c.l.b16 %v219
  %v792 = vunpack.c.l.b16 %v220
  %v793 = vunpack.c.l.b16 %v221
  %v794 = vunpack.c.l.b16 %v222
  %v795 = vunpack.c.l.b16 %v223
  %v796 = vunpack.c.l.b16 %v224
  %v797 = vunpack.c.l.b16 %v225
  %v798 = vunpack.c.l.b16 %v226
  %v799 = vunpack.c.l.b16 %v227
  %v800 = vunpack.c.l.b16 %v228
  %v801 = vunpack.c.l.b16 %v229
  %v802 = vunpack.c.l.b16 %v230
  %v803 = vunpack.c.l.b16 %v231
  %v804 = vunpack.c.l.b16 %v232
  %v805 = vunpack.c.l.b16 %v233
  %v806 = vunpack.c.l.b16 %v234
  %v807 = vunpack.c.l.b16 %v235
  %v808 = vunpack.c.l.b16 %v236
  %v809 = vunpack.c.l.b16 %v237
  %v810 = vunpack.c.l.b16 %v238
  %v811 = vunpack.c.l.b16 %v239
  %v812 = vunpack.c.l.b16 %v240
  %v813 = vunpack.c.l.b16 %v241
  %v814 = vunpack.c.l.b16 %v242
  %v815 = vunpack.c.l.b16 %v243
  %v816 = vunpack.c.l.b16 %v244
  %v817 = vunpack.c.l.b16 %v245
  %v818 = vunpack.c.l.b16 %v246
  %v819 = vunpack.c.l.b16 %v247
  %v820 = vunpack.c.l.b16 %v248
  %v821 = vunpack.c.l.b16 %v249
  %v822 = vunpack.c.l.b16 %v250
  %v823 = vunpack.c.l.b16 %v251
  %v824 = vunpack.c.l.b16 %v252
  %v825 = vunpack.c.l.b16 %v253
  %v826 = vunpack.c.l.b16 %v254
  %v827 = vunpack.c.l.b16 %v255
  %v828 = vunpack.c.l.b16 %v256
  %v829 = vunpack.c.l.b16 %v257
  %v830 = vunpack.c.l.b16 %v258
  %v831 = vunpack.c.l.b16 %v259
  %v832 = vunpack.c.l.b16 %v260
  %v833 = vunpack.c.l.b16 %v261
  %v834 = vunpack.c.l.b16 %v262
  %v835 = vunpack.c.l.b16 %v263
  %v836 = vunpack.c.l.b16 %v264
  %v837 = vunpack.c.l.b16 %v265
  %v838 = vunpack.c.l.b16 %v266
  %v839 = vunpack.c.l.b16 %v267
  %v840 = vunpack.c.l.b16 %v268
  %v841 = vunpack.c.l.b16 %v269
  %v842 = vunpack.c.l.b16 %v270
  %v843 = vunpack.c.l.b16 %v271
  %v844 = vunpack.c.l.b16 %v272
  %v845 = vunpack.c.l.b16 %v273
  %v846 = vunpack.c.l.b16 %v274
  %v847 = vunpack.c.l.b16 %v275
  %v848 = vunpack.c.l.b16 %v276
  %v849 = vunpack.c.l.b16 %v277
  %v850 = vunpack.c.l.b16 %v278
  %v851 = vunpack.c.l.b16 %v279
  %v852 = vunpack.c.l.b16 %v280
  %v853 = vunpack.c.l.b16 %v281
  %v854 = vunpack.c.l.b16 %v282
  %v855 = vunpack.c.l.b16 %v283
  %v856 = vpack.c.b16 %v601, %v600
  %v857 = vpack.c.b16 %v603, %v602
  %v858 = vpack.c.b16 %v605, %v604
  %v859 = vpack.c.b16 %v607, %v606
  %v860 = vpack.c.b16 %v609, %v608
  %v861 = vpack.c.b16 %v611, %v610
  %v862 = vpack.c.b16 %v613, %v612
  %v863 = vpack.c.b16 %v615, %v614
  %v864 = vpack.c.b16 %v617, %v616
  %v865 = vpack.c.b16 %v619, %v618
  %v866 = vpack.c.b16 %v621, %v620
  %v867 = vpack.c.b16 %v623, %v622
  %v868 = vpack.c.b16 %v625, %v624
  %v869 = vpack.c.b16 %v627, %v626
  %v870 = vpack.c.b16 %v629, %v628
  %v871 = vpack.c.b16 %v631, %v630
  %v872 = vpack.c.b16 %v633, %v632
  %v873 = vpack.c.b16 %v635, %v634
  %v874 = vpack.c.b16 %v637, %v636
  %v875 = vpack.c.b16 %v639, %v638
  %v876 = vpack.c.b16 %v641, %v640
  %v877 = vpack.c.b16 %v643, %v642
  %v878 = vpack.c.b16 %v645, %v644
  %v879 = vpack.c.b16 %v647, %v646
  %v880 = vpack.c.b16 %v649, %v648
  %v881 = vpack.c.b16 %v651, %v650
  %v882 = vpack.c.b16 %v653, %v652
  %v883 = vpack.c.b16 %v655, %v654
  %v884 = vpack.c.b16 %v657, %v656
  %v885 = vpack.c.b16 %v659, %v658
  %v886 = vpack.c.b16 %v661, %v660
  %v887 = vpack.c.b16 %v663, %v662
  %v888 = vpack.c.b16 %v665, %v664
  %v889 = vpack.c.b16 %v667, %v666
  %v890 = vpack.c.b16 %v669, %v668
  %v891 = vpack.c.b16 %v671, %v670
  %v892 = vpack.c.b16 %v673, %v672
  %v893 = vpack.c.b16 %v675, %v674
  %v894 = vpack.c.b16 %v677, %v676
  %v895 = vpack.c.b16 %v679, %v678
  %v896 = vpack.c.b16 %v681, %v680
  %v897 = vpack.c.b16 %v683, %v682
  %v898 = vpack.c.b16 %v685, %v684
  %v899 = vpack.c.b16 %v687, %v686
  %v900 = vpack.c.b16 %v689, %v688
  %v901 = vpack.c.b16 %v691, %v690
  %v902 = vpack.c.b16 %v693, %v692
  %v903 = vpack.c.b16 %v695, %v694
  %v904 = vpack.c.b16 %v697, %v696
  %v905 = vpack.c.b16 %v699, %v698
  %v906 = vpack.c.b16 %v701, %v700
  %v907 = vpack.c.b16 %v703, %v702
  %v908 = vpack.c.b16 %v705, %v704
  %v909 = vpack.c.b16 %v707, %v706
  %v910 = vpack.c.b16 %v709, %v708
  %v911 = vpack.c.b16 %v711, %v710
  %v912 = vpack.c.b16 %v713, %v712
  %v913 = vpack.c.b16 %v715, %v714
  %v914 = vpack.c.b16 %v717, %v716
  %v915 = vpack.c.b16 %v719, %v718
  %v916 = vpack.c.b16 %v721, %v720
  %v917 = vpack.c.b16 %v723, %v722
  %v918 = vpack.c.b16 %v725, %v724
  %v919 = vpack.c.b16 %v727, %v726
  %v920 = vpack.c.b16 %v729, %v728
  %v921 = vpack.c.b16 %v731, %v730
  %v922 = vpack.c.b16 %v733, %v732
  %v923 = vpack.c.b16 %v735, %v734
  %v924 = vpack.c.b16 %v737, %v736
  %v925 = vpack.c.b16 %v739, %v738
  %v926 = vpack.c.b16 %v741, %v740
  %v927 = vpack.c.b16 %v743, %v742
  %v928 = vpack.c.b16 %v745, %v744
  %v929 = vpack.c.b16 %v747, %v746
  %v930 = vpack.c.b16 %v749, %v748
  %v931 = vpack.c.b16 %v751, %v750
  %v932 = vpack.c.b16 %v753, %v752
  %v933 = vpack.c.b16 %v755, %v754
  %v934 = vpack.c.b16 %v757, %v756
  %v935 = vpack.c.b16 %v759, %v758
  %v936 = vpack.c.b16 %v761, %v760
  %v937 = vpack.c.b16 %v763, %v762
  %v938 = vpack.c.b16 %v765, %v764
  %v939 = vpack.c.b16 %v767, %v766
  %v940 = vpack.c.b16 %v769, %v768
  %v941 = vpack.c.b16 %v771, %v770
  %v942 = vpack.c.b16 %v773, %v772
  %v943 = vpack.c.b16 %v775, %v774
  %v944 = vpack.c.b16 %v777, %v776
  %v945 = vpack.c.b16 %v779, %v778
  %v946 = vpack.c.b16 %v781, %v780
  %v947 = vpack.c.b16 %v783, %v782
  %v948 = vpack.c.b16 %v785, %v784
  %v949 = vpack.c.b16 %v787, %v786
  %v950 = vpack.c.b16 %v789, %v788
  %v951 = vpack.c.b16 %v791, %v790
  %v952 = vpack.c.b16 %v793, %v792
  %v953 = vpack.c.b16 %v795, %v794
  %v954 = vpack.c.b16 %v797, %v796
  %v955 = vpack.c.b16 %v799, %v798
  %v956 = vpack.c.b16 %v801, %v800
  %v957 = vpack.c.b16 %v803, %v802
  %v958 = vpack.c.b16 %v805, %v804
  %v959 = vpack.c.b16 %v807, %v806
  %v960 = vpack.c.b16 %v809, %v808
  %v961 = vpack.c.b16 %v811, %v810
  %v962 = vpack.c.b16 %v813, %v812
  %v963 = vpack.c.b16 %v815, %v814
  %v964 = vpack.c.b16 %v817, %v816
  %v965 = vpack.c.b16 %v819, %v818
  %v966 = vpack.c.b16 %v821, %v820
  %v967 = vpack.c.b16 %v823, %v822
  %v968 = vpack.c.b16 %v825, %v824
  %v969 = vpack.c.b16 %v827, %v826
  %v970 = vpack.c.b16 %v829, %v828
  %v971 = vpack.c.b16 %v831, %v830
  %v972 = vpack.c.b16 %v833, %v832
  %v973 = vpack.c.b16 %v835, %v834
  %v974 = vpack.c.b16 %v837, %v836
  %v975 = vpack.c.b16 %v839, %v838
  %v976 = vpack.c.b16 %v841, %v840
  %v977 = vpack.c.b16 %v843, %v842
  %v978 = vpack.c.b16 %v845, %v844
  %v979 = vpack.c.b16 %v847, %v846
  %v980 = vpack.c.b16 %v849, %v848
  %v981 = vpack.c.b16 %v851, %v850
  %v982 = vpack.c.b16 %v853, %v852
  %v983 = vpack.c.b16 %v855, %v854
  %1112 = vmatpush.bf16.msra.mxu0 %v863
  %1113 = vmatpush.bf16.msra.mxu0 %v862
  %1114 = vmatpush.bf16.msra.mxu0 %v861
  %1115 = vmatpush.bf16.msra.mxu0 %v860
  %1116 = vmatpush.bf16.msra.mxu0 %v859
  %1117 = vmatpush.bf16.msra.mxu0 %v858
  %1118 = vmatpush.bf16.msra.mxu0 %v857
  %1119 = vmatpush.bf16.msra.mxu0 %v856
  %1120 = vmatmul.bf16.gmra.mxu0 %v312
  %v1121 = vpop.f32.mrf.mxu0
  %v1122 = vadd.f32 %v286, %v1121
  %v1123 = vpop.f32.mrf.mxu0
  %1124 = vdwg.mxu0
  %1125 = vmatpush.bf16.msra.mxu0 %v871
  %1126 = vmatpush.bf16.msra.mxu0 %v870
  %1127 = vmatpush.bf16.msra.mxu0 %v869
  %1128 = vmatpush.bf16.msra.mxu0 %v868
  %1129 = vmatpush.bf16.msra.mxu0 %v867
  %1130 = vmatpush.bf16.msra.mxu0 %v866
  %1131 = vmatpush.bf16.msra.mxu0 %v865
  %1132 = vmatpush.bf16.msra.mxu0 %v864
  %1133 = vmatmul.bf16.gmra.mxu0 %v313
  %v1134 = vpop.f32.mrf.mxu0
  %v1135 = vadd.f32 %v1122, %v1134
  %v1136 = vpop.f32.mrf.mxu0
  %1137 = vdwg.mxu0
  %1138 = vmatpush.bf16.msra.mxu0 %v879
  %1139 = vmatpush.bf16.msra.mxu0 %v878
  %1140 = vmatpush.bf16.msra.mxu0 %v877
  %1141 = vmatpush.bf16.msra.mxu0 %v876
  %1142 = vmatpush.bf16.msra.mxu0 %v875
  %1143 = vmatpush.bf16.msra.mxu0 %v874
  %1144 = vmatpush.bf16.msra.mxu0 %v873
  %1145 = vmatpush.bf16.msra.mxu0 %v872
  %1146 = vmatmul.bf16.gmra.mxu0 %v314
  %v1147 = vpop.f32.mrf.mxu0
  %v1148 = vadd.f32 %v1135, %v1147
  %v1149 = vpop.f32.mrf.mxu0
  %1150 = vdwg.mxu0
  %1151 = vmatpush.bf16.msra.mxu0 %v887
  %1152 = vmatpush.bf16.msra.mxu0 %v886
  %1153 = vmatpush.bf16.msra.mxu0 %v885
  %1154 = vmatpush.bf16.msra.mxu0 %v884
  %1155 = vmatpush.bf16.msra.mxu0 %v883
  %1156 = vmatpush.bf16.msra.mxu0 %v882
  %1157 = vmatpush.bf16.msra.mxu0 %v881
  %1158 = vmatpush.bf16.msra.mxu0 %v880
  %1159 = vmatmul.bf16.gmra.mxu0 %v315
  %v1160 = vpop.f32.mrf.mxu0
  %v1161 = vadd.f32 %v1148, %v1160
  %v1162 = vpop.f32.mrf.mxu0
  %1163 = vdwg.mxu0
  %1164 = vmatpush.bf16.msra.mxu0 %v895
  %1165 = vmatpush.bf16.msra.mxu0 %v894
  %1166 = vmatpush.bf16.msra.mxu0 %v893
  %1167 = vmatpush.bf16.msra.mxu0 %v892
  %1168 = vmatpush.bf16.msra.mxu0 %v891
  %1169 = vmatpush.bf16.msra.mxu0 %v890
  %1170 = vmatpush.bf16.msra.mxu0 %v889
  %1171 = vmatpush.bf16.msra.mxu0 %v888
  %1172 = vmatmul.bf16.gmra.mxu0 %v316
  %v1173 = vpop.f32.mrf.mxu0
  %v1174 = vadd.f32 %v1161, %v1173
  %v1175 = vpop.f32.mrf.mxu0
  %1176 = vdwg.mxu0
  %1177 = vmatpush.bf16.msra.mxu0 %v903
  %1178 = vmatpush.bf16.msra.mxu0 %v902
  %1179 = vmatpush.bf16.msra.mxu0 %v901
  %1180 = vmatpush.bf16.msra.mxu0 %v900
  %1181 = vmatpush.bf16.msra.mxu0 %v899
  %1182 = vmatpush.bf16.msra.mxu0 %v898
  %1183 = vmatpush.bf16.msra.mxu0 %v897
  %1184 = vmatpush.bf16.msra.mxu0 %v896
  %1185 = vmatmul.bf16.gmra.mxu0 %v317
  %v1186 = vpop.f32.mrf.mxu0
  %v1187 = vadd.f32 %v1174, %v1186
  %v1188 = vpop.f32.mrf.mxu0
  %1189 = vdwg.mxu0
  %1190 = vmatpush.bf16.msra.mxu0 %v911
  %1191 = vmatpush.bf16.msra.mxu0 %v910
  %1192 = vmatpush.bf16.msra.mxu0 %v909
  %1193 = vmatpush.bf16.msra.mxu0 %v908
  %1194 = vmatpush.bf16.msra.mxu0 %v907
  %1195 = vmatpush.bf16.msra.mxu0 %v906
  %1196 = vmatpush.bf16.msra.mxu0 %v905
  %1197 = vmatpush.bf16.msra.mxu0 %v904
  %1198 = vmatmul.bf16.gmra.mxu0 %v318
  %v1199 = vpop.f32.mrf.mxu0
  %v1200 = vadd.f32 %v1187, %v1199
  %v1201 = vpop.f32.mrf.mxu0
  %1202 = vdwg.mxu0
  %1203 = vmatpush.bf16.msra.mxu0 %v919
  %1204 = vmatpush.bf16.msra.mxu0 %v918
  %1205 = vmatpush.bf16.msra.mxu0 %v917
  %1206 = vmatpush.bf16.msra.mxu0 %v916
  %1207 = vmatpush.bf16.msra.mxu0 %v915
  %1208 = vmatpush.bf16.msra.mxu0 %v914
  %1209 = vmatpush.bf16.msra.mxu0 %v913
  %1210 = vmatpush.bf16.msra.mxu0 %v912
  %1211 = vmatmul.bf16.gmra.mxu0 %v319
  %v1212 = vpop.f32.mrf.mxu0
  %v1213 = vadd.f32 %v1200, %v1212
  %v1214 = vpop.f32.mrf.mxu0
  %1215 = vdwg.mxu0
  %1216 = vmatpush.bf16.msra.mxu0 %v927
  %1217 = vmatpush.bf16.msra.mxu0 %v926
  %1218 = vmatpush.bf16.msra.mxu0 %v925
  %1219 = vmatpush.bf16.msra.mxu0 %v924
  %1220 = vmatpush.bf16.msra.mxu0 %v923
  %1221 = vmatpush.bf16.msra.mxu0 %v922
  %1222 = vmatpush.bf16.msra.mxu0 %v921
  %1223 = vmatpush.bf16.msra.mxu0 %v920
  %1224 = vmatmul.bf16.gmra.mxu0 %v320
  %v1225 = vpop.f32.mrf.mxu0
  %v1226 = vadd.f32 %v1213, %v1225
  %v1227 = vpop.f32.mrf.mxu0
  %1228 = vdwg.mxu0
  %1229 = vmatpush.bf16.msra.mxu0 %v935
  %1230 = vmatpush.bf16.msra.mxu0 %v934
  %1231 = vmatpush.bf16.msra.mxu0 %v933
  %1232 = vmatpush.bf16.msra.mxu0 %v932
  %1233 = vmatpush.bf16.msra.mxu0 %v931
  %1234 = vmatpush.bf16.msra.mxu0 %v930
  %1235 = vmatpush.bf16.msra.mxu0 %v929
  %1236 = vmatpush.bf16.msra.mxu0 %v928
  %1237 = vmatmul.bf16.gmra.mxu0 %v321
  %v1238 = vpop.f32.mrf.mxu0
  %v1239 = vadd.f32 %v1226, %v1238
  %v1240 = vpop.f32.mrf.mxu0
  %1241 = vdwg.mxu0
  %1242 = vmatpush.bf16.msra.mxu0 %v943
  %1243 = vmatpush.bf16.msra.mxu0 %v942
  %1244 = vmatpush.bf16.msra.mxu0 %v941
  %1245 = vmatpush.bf16.msra.mxu0 %v940
  %1246 = vmatpush.bf16.msra.mxu0 %v939
  %1247 = vmatpush.bf16.msra.mxu0 %v938
  %1248 = vmatpush.bf16.msra.mxu0 %v937
  %1249 = vmatpush.bf16.msra.mxu0 %v936
  %1250 = vmatmul.bf16.gmra.mxu0 %v322
  %v1251 = vpop.f32.mrf.mxu0
  %v1252 = vadd.f32 %v1239, %v1251
  %v1253 = vpop.f32.mrf.mxu0
  %1254 = vdwg.mxu0
  %1255 = vmatpush.bf16.msra.mxu0 %v951
  %1256 = vmatpush.bf16.msra.mxu0 %v950
  %1257 = vmatpush.bf16.msra.mxu0 %v949
  %1258 = vmatpush.bf16.msra.mxu0 %v948
  %1259 = vmatpush.bf16.msra.mxu0 %v947
  %1260 = vmatpush.bf16.msra.mxu0 %v946
  %1261 = vmatpush.bf16.msra.mxu0 %v945
  %1262 = vmatpush.bf16.msra.mxu0 %v944
  %1263 = vmatmul.bf16.gmra.mxu0 %v323
  %v1264 = vpop.f32.mrf.mxu0
  %v1265 = vadd.f32 %v1252, %v1264
  %v1266 = vpop.f32.mrf.mxu0
  %1267 = vdwg.mxu0
  %1268 = vmatpush.bf16.msra.mxu0 %v959
  %1269 = vmatpush.bf16.msra.mxu0 %v958
  %1270 = vmatpush.bf16.msra.mxu0 %v957
  %1271 = vmatpush.bf16.msra.mxu0 %v956
  %1272 = vmatpush.bf16.msra.mxu0 %v955
  %1273 = vmatpush.bf16.msra.mxu0 %v954
  %1274 = vmatpush.bf16.msra.mxu0 %v953
  %1275 = vmatpush.bf16.msra.mxu0 %v952
  %1276 = vmatmul.bf16.gmra.mxu0 %v324
  %v1277 = vpop.f32.mrf.mxu0
  %v1278 = vadd.f32 %v1265, %v1277
  %v1279 = vpop.f32.mrf.mxu0
  %1280 = vdwg.mxu0
  %1281 = vmatpush.bf16.msra.mxu0 %v967
  %1282 = vmatpush.bf16.msra.mxu0 %v966
  %1283 = vmatpush.bf16.msra.mxu0 %v965
  %1284 = vmatpush.bf16.msra.mxu0 %v964
  %1285 = vmatpush.bf16.msra.mxu0 %v963
  %1286 = vmatpush.bf16.msra.mxu0 %v962
  %1287 = vmatpush.bf16.msra.mxu0 %v961
  %1288 = vmatpush.bf16.msra.mxu0 %v960
  %1289 = vmatmul.bf16.gmra.mxu0 %v325
  %v1290 = vpop.f32.mrf.mxu0
  %v1291 = vadd.f32 %v1278, %v1290
  %v1292 = vpop.f32.mrf.mxu0
  %1293 = vdwg.mxu0
  %1294 = vmatpush.bf16.msra.mxu0 %v975
  %1295 = vmatpush.bf16.msra.mxu0 %v974
  %1296 = vmatpush.bf16.msra.mxu0 %v973
  %1297 = vmatpush.bf16.msra.mxu0 %v972
  %1298 = vmatpush.bf16.msra.mxu0 %v971
  %1299 = vmatpush.bf16.msra.mxu0 %v970
  %1300 = vmatpush.bf16.msra.mxu0 %v969
  %1301 = vmatpush.bf16.msra.mxu0 %v968
  %1302 = vmatmul.bf16.gmra.mxu0 %v326
  %v1303 = vpop.f32.mrf.mxu0
  %v1304 = vadd.f32 %v1291, %v1303
  %v1305 = vpop.f32.mrf.mxu0
  %1306 = vdwg.mxu0
  %1307 = vmatpush.bf16.msra.mxu0 %v983
  %1308 = vmatpush.bf16.msra.mxu0 %v982
  %1309 = vmatpush.bf16.msra.mxu0 %v981
  %1310 = vmatpush.bf16.msra.mxu0 %v980
  %1311 = vmatpush.bf16.msra.mxu0 %v979
  %1312 = vmatpush.bf16.msra.mxu0 %v978
  %1313 = vmatpush.bf16.msra.mxu0 %v977
  %1314 = vmatpush.bf16.msra.mxu0 %v976
  %1315 = vmatmul.bf16.gmra.mxu0 %v327
  %v1316 = vpop.f32.mrf.mxu0
  %v1317 = vadd.f32 %v1304, %v1316
  %v1318 = vpop.f32.mrf.mxu0
  %1319 = vdwg.mxu0
  %v1320 = vmax.f32 %v1317, 0.0
  %v1321 = vpack.c.bf16 %v1320, %v1320
  %v1322 = vld [vmem:[%s3] sm:$0xf]
  %v1323 = vld [vmem:[%s3 + $0x4] sm:$0xf]
  %v1324 = vld [vmem:[%s3 + $0x8] sm:$0xf]
  %v1325 = vld [vmem:[%s3 + $0xc] sm:$0xf]
  %v1326 = vld [vmem:[%s3 + $0x10] sm:$0xf]
  %v1327 = vld [vmem:[%s3 + $0x14] sm:$0xf]
  %v1328 = vld [vmem:[%s3 + $0x18] sm:$0xf]
  %v1329 = vld [vmem:[%s3 + $0x1c] sm:$0xf]
  %v1330 = vld [vmem:[%s3 + $0x20] sm:$0xf]
  %v1331 = vld [vmem:[%s3 + $0x24] sm:$0xf]
  %v1332 = vld [vmem:[%s3 + $0x28] sm:$0xf]
  %v1333 = vld [vmem:[%s3 + $0x2c] sm:$0xf]
  %v1334 = vld [vmem:[%s3 + $0x30] sm:$0xf]
  %v1335 = vld [vmem:[%s3 + $0x34] sm:$0xf]
  %v1336 = vld [vmem:[%s3 + $0x38] sm:$0xf]
  %v1337 = vld [vmem:[%s3 + $0x3c] sm:$0xf]
  %v1338 = vld [vmem:[%s4] sm:$0x1]
  %v1340 = vperm.slane %v1338, 0
  %v1358 = vunpack.c.l.b16 %v1322
  %v1359 = vunpack.c.l.b16 %v1323
  %v1360 = vunpack.c.l.b16 %v1324
  %v1361 = vunpack.c.l.b16 %v1325
  %v1362 = vunpack.c.l.b16 %v1326
  %v1363 = vunpack.c.l.b16 %v1327
  %v1364 = vunpack.c.l.b16 %v1328
  %v1365 = vunpack.c.l.b16 %v1329
  %v1366 = vunpack.c.l.b16 %v1330
  %v1367 = vunpack.c.l.b16 %v1331
  %v1368 = vunpack.c.l.b16 %v1332
  %v1369 = vunpack.c.l.b16 %v1333
  %v1370 = vunpack.c.l.b16 %v1334
  %v1371 = vunpack.c.l.b16 %v1335
  %v1372 = vunpack.c.l.b16 %v1336
  %v1373 = vunpack.c.l.b16 %v1337
  %v1374 = vpack.c.b16 %v1359, %v1358
  %v1375 = vpack.c.b16 %v1361, %v1360
  %v1376 = vpack.c.b16 %v1363, %v1362
  %v1377 = vpack.c.b16 %v1365, %v1364
  %v1378 = vpack.c.b16 %v1367, %v1366
  %v1379 = vpack.c.b16 %v1369, %v1368
  %v1380 = vpack.c.b16 %v1371, %v1370
  %v1381 = vpack.c.b16 %v1373, %v1372
  %1390 = vmatpush.bf16.msra.mxu0 %v1381
  %1391 = vmatpush.bf16.msra.mxu0 %v1380
  %1392 = vmatpush.bf16.msra.mxu0 %v1379
  %1393 = vmatpush.bf16.msra.mxu0 %v1378
  %1394 = vmatpush.bf16.msra.mxu0 %v1377
  %1395 = vmatpush.bf16.msra.mxu0 %v1376
  %1396 = vmatpush.bf16.msra.mxu0 %v1375
  %1397 = vmatpush.bf16.msra.mxu0 %v1374
  %1398 = vmatmul.bf16.gmra.mxu0 %v1321
  %v1399 = vpop.f32.mrf.mxu0
  %v1400 = vadd.f32 %v1340, %v1399
  %v1401 = vpop.f32.mrf.mxu0
  %1402 = vdwg.mxu0
  %1403 = vst [vmem:[%s5] sm:$0xff] %v1400
  // Predicated region
  $region22: #{simple_cnn_forward.5} parent=0 // pred_check
    _
  $region23: #{simple_cnn_forward.5} parent=0 // pred_check_branch
    %1405 = sbr.rel (0) target = $region25
  $region24: #{simple_cnn_forward.5} parent=0 // pred_region
    _
  $region25: #{simple_cnn_forward.5} parent=0 // pred_fallthru
    _
  // Predicated region
  $region26: #{simple_cnn_forward.5} parent=0 // pred_check
    _
  $region27: #{simple_cnn_forward.5} parent=0 // pred_check_branch
    %1407 = sbr.rel (0) target = $region29
  $region28: #{simple_cnn_forward.5} parent=0 // pred_region
    _
  $region29: #{simple_cnn_forward.5} parent=0 // pred_fallthru
    _

// kernel: simple_cnn_forward.4
$region0: #{simple_cnn_forward.4}
  #allocation0 [shape = 'u32[]', space=smem, size = 0x4, offset = 0x4, fixed_abs, tag = 'smem constant byte address 0x4 - core index']
  #allocation1 [shape = 'u32[72,128]{1,0:T(1,128)}', space=vmem, size = 0x9000, scoped, tag = 'internal scratch']
  %s0 = inlined_call_operand.vmem [shape: bf16[2,18,9,16], index: 0, kind: input, shape index: {}]
  %s1 = inlined_call_operand.vmem [shape: bf16[2,18,9,16], index: 1, kind: input, shape index: {}]
  %s2 = inlined_call_operand.vmem [shape: bf16[144,32], index: 2, kind: input, shape index: {}]
  %s3 = inlined_call_operand.vmem [shape: f32[1,32], index: 3, kind: input, shape index: {}]
  %s4 = inlined_call_operand.vmem [shape: bf16[2,8,8,32], index: 4, kind: output, shape index: {}]
  %s5 = sld [smem:[#allocation0]]
  $region49: #{simple_cnn_forward.4} parent=0
    _
  %s7 = ssub.s32 1, %s5
  %s8 = scalar_select 0, %s7, %s5
  loop: start=0, step=1, limit=4
  $region2: #{simple_cnn_forward.4} parent=0 // loop_pre_header
    _
  $region3: #{simple_cnn_forward.4} parent=0 // loop_header
    %s10 = sphi 0, %s14
    %p11 = scmp.ge.s32.totalorder %s10, 4
    %s20 = sphi 0, %s22
    %s23 = sphi 0, %s20
    %s24 = sphi 0, %s23
    %s40 = sphi 0, %s24
    %s46 = sphi 0, %s48
    %s49 = sphi 0, %s46
    %s50 = sphi 0, %s49
    %s66 = sphi 0, %s50
    %s70 = sphi 0, %s70
    %s72 = sphi 0, %s70
    %s73 = sphi 0, %s72
    %s87 = sphi 0, %s73
    %s91 = sphi 0, %s91
    %s93 = sphi 0, %s91
    %s94 = sphi 0, %s93
    %s108 = sphi 0, %s94
    %s114 = sphi 0, %s116
    %s117 = sphi 0, %s114
    %s118 = sphi 0, %s117
    %s134 = sphi 0, %s118
  $region4: #{simple_cnn_forward.4} parent=0 // loop_header_branch
    %13 = sbr.rel (%p11) target = $region8
  $region5: #{simple_cnn_forward.4} parent=0 // loop_body
    %s15 = ssub.s32 %s10, 1
    %s16 = ssub.s32 %s10, 2
    %s17 = sadd.s32 %s10, 1
    %s18 = ssub.s32 %s10, %s17
    %p19 = scmp.eq.s32.totalorder %s18, 0
    %s21 = sadd.s32 %s20, 1
    %s22 = scalar_select %p19, %s20, %s21
    %p25 = pneg %p19
    %p26 = scmp.eq.s32.totalorder %s10, 1
    %p27 = por %p25, %p26
    %p28 = scmp.ne.s32.totalorder %s20, %s23
    %p29 = scmp.eq.s32.totalorder %s10, 0
    %p30 = por %p28, %p29
    %p31 = scmp.ne.s32.totalorder %s20, %s23
    %p32 = scmp.eq.s32.totalorder %s15, 1
    %p33 = por %p31, %p32
    %p34 = scmp.ne.s32.totalorder %s23, %s24
    %p35 = scmp.eq.s32.totalorder %s15, 0
    %p36 = por %p34, %p35
    %p37 = scmp.ne.s32.totalorder %s23, %s24
    %p38 = scmp.eq.s32.totalorder %s16, 1
    %p39 = por %p37, %p38
    %p41 = scmp.ne.s32.totalorder %s24, %s40
    %p42 = scmp.eq.s32.totalorder %s16, 0
    %p43 = por %p41, %p42
    %s44 = ssub.s32 %s10, %s17
    %p45 = scmp.eq.s32.totalorder %s44, 0
    %s47 = sadd.s32 %s46, 1
    %s48 = scalar_select %p45, %s46, %s47
    %p51 = pneg %p45
    %p52 = scmp.eq.s32.totalorder %s10, 1
    %p53 = por %p51, %p52
    %p54 = scmp.ne.s32.totalorder %s46, %s49
    %p55 = scmp.eq.s32.totalorder %s10, 0
    %p56 = por %p54, %p55
    %p57 = scmp.ne.s32.totalorder %s46, %s49
    %p58 = scmp.eq.s32.totalorder %s15, 1
    %p59 = por %p57, %p58
    %p60 = scmp.ne.s32.totalorder %s49, %s50
    %p61 = scmp.eq.s32.totalorder %s15, 0
    %p62 = por %p60, %p61
    %p63 = scmp.ne.s32.totalorder %s49, %s50
    %p64 = scmp.eq.s32.totalorder %s16, 1
    %p65 = por %p63, %p64
    %p67 = scmp.ne.s32.totalorder %s50, %s66
    %p68 = scmp.eq.s32.totalorder %s16, 0
    %p69 = por %p67, %p68
    %s71 = sadd.s32 %s70, 1
    %p74 = scmp.eq.s32.totalorder %s10, 1
    %p75 = scmp.ne.s32.totalorder %s70, %s72
    %p76 = scmp.eq.s32.totalorder %s10, 0
    %p77 = por %p75, %p76
    %p78 = scmp.ne.s32.totalorder %s70, %s72
    %p79 = scmp.eq.s32.totalorder %s15, 1
    %p80 = por %p78, %p79
    %p81 = scmp.ne.s32.totalorder %s72, %s73
    %p82 = scmp.eq.s32.totalorder %s15, 0
    %p83 = por %p81, %p82
    %p84 = scmp.ne.s32.totalorder %s72, %s73
    %p85 = scmp.eq.s32.totalorder %s16, 1
    %p86 = por %p84, %p85
    %p88 = scmp.ne.s32.totalorder %s73, %s87
    %p89 = scmp.eq.s32.totalorder %s16, 0
    %p90 = por %p88, %p89
    %s92 = sadd.s32 %s91, 1
    %p95 = scmp.eq.s32.totalorder %s10, 1
    %p96 = scmp.ne.s32.totalorder %s91, %s93
    %p97 = scmp.eq.s32.totalorder %s10, 0
    %p98 = por %p96, %p97
    %p99 = scmp.ne.s32.totalorder %s91, %s93
    %p100 = scmp.eq.s32.totalorder %s15, 1
    %p101 = por %p99, %p100
    %p102 = scmp.ne.s32.totalorder %s93, %s94
    %p103 = scmp.eq.s32.totalorder %s15, 0
    %p104 = por %p102, %p103
    %p105 = scmp.ne.s32.totalorder %s93, %s94
    %p106 = scmp.eq.s32.totalorder %s16, 1
    %p107 = por %p105, %p106
    %p109 = scmp.ne.s32.totalorder %s94, %s108
    %p110 = scmp.eq.s32.totalorder %s16, 0
    %p111 = por %p109, %p110
    %s112 = ssub.s32 %s10, %s17
    %p113 = scmp.eq.s32.totalorder %s112, 0
    %s115 = sadd.s32 %s114, 1
    %s116 = scalar_select %p113, %s114, %s115
    %p119 = pneg %p113
    %p120 = scmp.eq.s32.totalorder %s10, 1
    %p121 = por %p119, %p120
    %p122 = scmp.ne.s32.totalorder %s114, %s117
    %p123 = scmp.eq.s32.totalorder %s10, 0
    %p124 = por %p122, %p123
    %p125 = scmp.ne.s32.totalorder %s114, %s117
    %p126 = scmp.eq.s32.totalorder %s15, 1
    %p127 = por %p125, %p126
    %p128 = scmp.ne.s32.totalorder %s117, %s118
    %p129 = scmp.eq.s32.totalorder %s15, 0
    %p130 = por %p128, %p129
    %p131 = scmp.ne.s32.totalorder %s117, %s118
    %p132 = scmp.eq.s32.totalorder %s16, 1
    %p133 = por %p131, %p132
    %p135 = scmp.ne.s32.totalorder %s118, %s134
    %p136 = scmp.eq.s32.totalorder %s16, 0
    %p137 = por %p135, %p136
    %p138 = scmp.le.s32.totalorder 1, %s10
    %p139 = scmp.lt.s32.totalorder %s10, 3
    %p140 = pnand %p138, %p139
    %p141 = pneg %p140
    // Predicated region
    $region9: #{simple_cnn_forward.4} parent=5 // pred_check
      _
    $region10: #{simple_cnn_forward.4} parent=5 // pred_check_branch
      %143 = sbr.rel (%p140) target = $region12
    $region11: #{simple_cnn_forward.4} parent=5 // pred_region
      %s144 = ssub.s32 %s10, 1
      // Predicated region
      $region13: #{simple_cnn_forward.4} parent=11 // pred_check
        %p145 = pneg %p83
      $region14: #{simple_cnn_forward.4} parent=11 // pred_check_branch
        %147 = sbr.rel (%p145) target = $region16
      $region15: #{simple_cnn_forward.4} parent=11 // pred_region
        _
      $region16: #{simple_cnn_forward.4} parent=11 // pred_fallthru
        _
      // Predicated region
      $region17: #{simple_cnn_forward.4} parent=11 // pred_check
        %p148 = pneg %p104
      $region18: #{simple_cnn_forward.4} parent=11 // pred_check_branch
        %150 = sbr.rel (%p148) target = $region20
      $region19: #{simple_cnn_forward.4} parent=11 // pred_region
        _
      $region20: #{simple_cnn_forward.4} parent=11 // pred_fallthru
        _
    $region12: #{simple_cnn_forward.4} parent=5 // pred_fallthru
      _
    %p151 = scmp.lt.s32.totalorder %s10, 2
    // Predicated region
    $region21: #{simple_cnn_forward.4} parent=5 // pred_check
      %p152 = pneg %p151
    $region22: #{simple_cnn_forward.4} parent=5 // pred_check_branch
      %154 = sbr.rel (%p152) target = $region24
    $region23: #{simple_cnn_forward.4} parent=5 // pred_region
      // Predicated region
      $region25: #{simple_cnn_forward.4} parent=23 // pred_check
        %p155 = pneg %p30
      $region26: #{simple_cnn_forward.4} parent=23 // pred_check_branch
        %157 = sbr.rel (%p155) target = $region28
      $region27: #{simple_cnn_forward.4} parent=23 // pred_region
        %p158 = scmp.lt.s32.totalorder %s10, 1
        %s159 = scalar_select %p158, %s10, 1
        %s160 = smul.addr %s159, 36
        %s161 = smul.addr %s160, 4
        %s162 = scalar_lea.vmem %s0, %s161
      $region28: #{simple_cnn_forward.4} parent=23 // pred_fallthru
        _
      // Predicated region
      $region29: #{simple_cnn_forward.4} parent=23 // pred_check
        %p163 = pneg %p56
      $region30: #{simple_cnn_forward.4} parent=23 // pred_check_branch
        %165 = sbr.rel (%p163) target = $region32
      $region31: #{simple_cnn_forward.4} parent=23 // pred_region
        %p166 = scmp.lt.s32.totalorder %s10, 1
        %s167 = scalar_select %p166, %s10, 1
        %s168 = smul.addr %s167, 36
        %s169 = smul.addr %s168, 4
        %s170 = scalar_lea.vmem %s1, %s169
      $region32: #{simple_cnn_forward.4} parent=23 // pred_fallthru
        _
    $region24: #{simple_cnn_forward.4} parent=5 // pred_fallthru
      _
    %p171 = scmp.le.s32.totalorder 1, %s10
    %p172 = scmp.lt.s32.totalorder %s10, 3
    %p173 = pnand %p171, %p172
    %p174 = pneg %p173
    // Predicated region
    $region33: #{simple_cnn_forward.4} parent=5 // pred_check
      _
    $region34: #{simple_cnn_forward.4} parent=5 // pred_check_branch
      %176 = sbr.rel (%p173) target = $region36
    $region35: #{simple_cnn_forward.4} parent=5 // pred_region
      %s177 = ssub.s32 %s10, 1
      %p178 = scmp.lt.s32.totalorder %s15, 1
      %s179 = scalar_select %p178, %s15, 1
      %s180 = smul.addr %s179, 36
      %s181 = smul.addr %s180, 4
      %s182 = scalar_lea.vmem %s0, %s181
      %p183 = pneg %p36
      %p184 = pneg %p33
      %p185 = scmp.lt.s32.totalorder %s15, 1
      %s186 = scalar_select %p185, %s15, 1
      %s187 = smul.addr %s186, 36
      %s188 = smul.addr %s187, 4
      %s189 = scalar_lea.vmem %s1, %s188
      %p190 = pneg %p62
      %p191 = pneg %p59
      %p192 = pneg %p83
      %p193 = pneg %p80
      %p194 = pneg %p104
      %p195 = pneg %p101
      %p196 = pneg %p130
      %p197 = pneg %p127
      %p198 = scmp.lt.s32.totalorder %s15, 1
      %s199 = scalar_select %p198, %s15, 1
      %s200 = smul.addr %s199, 8
      %s201 = smul.addr %s200, 4
      %s202 = scalar_lea.vmem %s4, %s201
      %p203 = scmp.lt.s32.totalorder %s15, 1
      %s204 = scalar_select %p203, %s15, 1
      %s205 = smul.addr %s204, 36
      %s206 = smul.addr %s205, 4
      %s207 = scalar_lea.vmem %s0, %s206
      %p208 = scmp.lt.s32.totalorder %s15, 1
      %s209 = scalar_select %p208, %s15, 1
      %s210 = smul.addr %s209, 36
      %s211 = smul.addr %s210, 4
      %s212 = scalar_lea.vmem %s1, %s211
      %p213 = scmp.lt.s32.totalorder %s15, 1
      %s214 = scalar_select %p213, %s15, 1
      %s215 = smul.addr %s214, 8
      %s216 = smul.addr %s215, 4
      %s217 = scalar_lea.vmem %s4, %s216
      %v219 = vld [vmem:[%s2] sm:$0xf]
      %v220 = vld [vmem:[%s2 + $0x4] sm:$0xf]
      %v221 = vld [vmem:[%s2 + $0x8] sm:$0xf]
      %v222 = vld [vmem:[%s2 + $0xc] sm:$0xf]
      %v223 = vld [vmem:[%s2 + $0x10] sm:$0xf]
      %v224 = vld [vmem:[%s2 + $0x14] sm:$0xf]
      %v225 = vld [vmem:[%s2 + $0x18] sm:$0xf]
      %v226 = vld [vmem:[%s2 + $0x1c] sm:$0xf]
      %v227 = vld [vmem:[%s2 + $0x20] sm:$0xf]
      %v228 = vld [vmem:[%s2 + $0x24] sm:$0xf]
      %v229 = vld [vmem:[%s2 + $0x28] sm:$0xf]
      %v230 = vld [vmem:[%s2 + $0x2c] sm:$0xf]
      %v231 = vld [vmem:[%s2 + $0x30] sm:$0xf]
      %v232 = vld [vmem:[%s2 + $0x34] sm:$0xf]
      %v233 = vld [vmem:[%s2 + $0x38] sm:$0xf]
      %v234 = vld [vmem:[%s2 + $0x3c] sm:$0xf]
      %v235 = vld [vmem:[%s2 + $0x40] sm:$0xf]
      %v236 = vld [vmem:[%s2 + $0x44] sm:$0xf]
      %v237 = vld [vmem:[%s3] sm:$0x1]
      %v238 = vld [vmem:[%s207] sm:$0xf]
      %v239 = vld [vmem:[%s207 + $0x8] sm:$0xf]
      %v240 = vld [vmem:[%s207 + $0x10] sm:$0xf]
      %v241 = vld [vmem:[%s207 + $0x18] sm:$0xf]
      %v242 = vld [vmem:[%s207 + $0x20] sm:$0xf]
      %v243 = vld [vmem:[%s207 + $0x28] sm:$0xf]
      %v244 = vld [vmem:[%s207 + $0x30] sm:$0xf]
      %v245 = vld [vmem:[%s207 + $0x38] sm:$0xf]
      %v246 = vld [vmem:[%s207 + $0x40] sm:$0xf]
      %v247 = vld [vmem:[%s207 + $0x48] sm:$0xf]
      %v248 = vld [vmem:[%s207 + $0x50] sm:$0xf]
      %v249 = vld [vmem:[%s207 + $0x58] sm:$0xf]
      %v250 = vld [vmem:[%s207 + $0x60] sm:$0xf]
      %v251 = vld [vmem:[%s207 + $0x68] sm:$0xf]
      %v252 = vld [vmem:[%s207 + $0x70] sm:$0xf]
      %v253 = vld [vmem:[%s207 + $0x78] sm:$0xf]
      %v254 = vld [vmem:[%s212] sm:$0xf]
      %v255 = vld [vmem:[%s212 + $0x8] sm:$0xf]
      %v256 = vld [vmem:[%s212 + $0x10] sm:$0xf]
      %v257 = vld [vmem:[%s212 + $0x18] sm:$0xf]
      %v258 = vld [vmem:[%s212 + $0x20] sm:$0xf]
      %v259 = vld [vmem:[%s212 + $0x28] sm:$0xf]
      %v260 = vld [vmem:[%s212 + $0x30] sm:$0xf]
      %v261 = vld [vmem:[%s212 + $0x38] sm:$0xf]
      %v262 = vld [vmem:[%s212 + $0x40] sm:$0xf]
      %v263 = vld [vmem:[%s212 + $0x48] sm:$0xf]
      %v264 = vld [vmem:[%s212 + $0x50] sm:$0xf]
      %v265 = vld [vmem:[%s212 + $0x58] sm:$0xf]
      %v266 = vld [vmem:[%s212 + $0x60] sm:$0xf]
      %v267 = vld [vmem:[%s212 + $0x68] sm:$0xf]
      %v268 = vld [vmem:[%s212 + $0x70] sm:$0xf]
      %v269 = vld [vmem:[%s212 + $0x78] sm:$0xf]
      %v270 = vld [vmem:[%s207 + $0x4] sm:$0x1]
      %v271 = vld [vmem:[%s207 + $0xc] sm:$0x1]
      %v272 = vld [vmem:[%s207 + $0x14] sm:$0x1]
      %v273 = vld [vmem:[%s207 + $0x1c] sm:$0x1]
      %v274 = vld [vmem:[%s207 + $0x24] sm:$0x1]
      %v275 = vld [vmem:[%s207 + $0x2c] sm:$0x1]
      %v276 = vld [vmem:[%s207 + $0x34] sm:$0x1]
      %v277 = vld [vmem:[%s207 + $0x3c] sm:$0x1]
      %v278 = vld [vmem:[%s207 + $0x44] sm:$0x1]
      %v279 = vld [vmem:[%s207 + $0x4c] sm:$0x1]
      %v280 = vld [vmem:[%s207 + $0x54] sm:$0x1]
      %v281 = vld [vmem:[%s207 + $0x5c] sm:$0x1]
      %v282 = vld [vmem:[%s207 + $0x64] sm:$0x1]
      %v283 = vld [vmem:[%s207 + $0x6c] sm:$0x1]
      %v284 = vld [vmem:[%s207 + $0x74] sm:$0x1]
      %v285 = vld [vmem:[%s207 + $0x7c] sm:$0x1]
      %s286 = scalar_lea.vmem %s207, 8
      %v287 = vld [vmem:[%s286] sm:$0xf]
      %v288 = vld [vmem:[%s286 + $0x8] sm:$0xf]
      %v289 = vld [vmem:[%s286 + $0x10] sm:$0xf]
      %v290 = vld [vmem:[%s286 + $0x18] sm:$0xf]
      %v291 = vld [vmem:[%s286 + $0x20] sm:$0xf]
      %v292 = vld [vmem:[%s286 + $0x28] sm:$0xf]
      %v293 = vld [vmem:[%s286 + $0x30] sm:$0xf]
      %v294 = vld [vmem:[%s286 + $0x38] sm:$0xf]
      %v295 = vld [vmem:[%s286 + $0x40] sm:$0xf]
      %v296 = vld [vmem:[%s286 + $0x48] sm:$0xf]
      %v297 = vld [vmem:[%s286 + $0x50] sm:$0xf]
      %v298 = vld [vmem:[%s286 + $0x58] sm:$0xf]
      %v299 = vld [vmem:[%s286 + $0x60] sm:$0xf]
      %v300 = vld [vmem:[%s286 + $0x68] sm:$0xf]
      %v301 = vld [vmem:[%s286 + $0x70] sm:$0xf]
      %v302 = vld [vmem:[%s286 + $0x78] sm:$0xf]
      %s303 = scalar_lea.vmem %s212, 8
      %v304 = vld [vmem:[%s303] sm:$0xf]
      %v305 = vld [vmem:[%s303 + $0x8] sm:$0xf]
      %v306 = vld [vmem:[%s303 + $0x10] sm:$0xf]
      %v307 = vld [vmem:[%s303 + $0x18] sm:$0xf]
      %v308 = vld [vmem:[%s303 + $0x20] sm:$0xf]
      %v309 = vld [vmem:[%s303 + $0x28] sm:$0xf]
      %v310 = vld [vmem:[%s303 + $0x30] sm:$0xf]
      %v311 = vld [vmem:[%s303 + $0x38] sm:$0xf]
      %v312 = vld [vmem:[%s303 + $0x40] sm:$0xf]
      %v313 = vld [vmem:[%s303 + $0x48] sm:$0xf]
      %v314 = vld [vmem:[%s303 + $0x50] sm:$0xf]
      %v315 = vld [vmem:[%s303 + $0x58] sm:$0xf]
      %v316 = vld [vmem:[%s303 + $0x60] sm:$0xf]
      %v317 = vld [vmem:[%s303 + $0x68] sm:$0xf]
      %v318 = vld [vmem:[%s303 + $0x70] sm:$0xf]
      %v319 = vld [vmem:[%s303 + $0x78] sm:$0xf]
      %v320 = vld [vmem:[%s286 + $0x4] sm:$0x1]
      %v321 = vld [vmem:[%s286 + $0xc] sm:$0x1]
      %v322 = vld [vmem:[%s286 + $0x14] sm:$0x1]
      %v323 = vld [vmem:[%s286 + $0x1c] sm:$0x1]
      %v324 = vld [vmem:[%s286 + $0x24] sm:$0x1]
      %v325 = vld [vmem:[%s286 + $0x2c] sm:$0x1]
      %v326 = vld [vmem:[%s286 + $0x34] sm:$0x1]
      %v327 = vld [vmem:[%s286 + $0x3c] sm:$0x1]
      %v328 = vld [vmem:[%s286 + $0x44] sm:$0x1]
      %v329 = vld [vmem:[%s286 + $0x4c] sm:$0x1]
      %v330 = vld [vmem:[%s286 + $0x54] sm:$0x1]
      %v331 = vld [vmem:[%s286 + $0x5c] sm:$0x1]
      %v332 = vld [vmem:[%s286 + $0x64] sm:$0x1]
      %v333 = vld [vmem:[%s286 + $0x6c] sm:$0x1]
      %v334 = vld [vmem:[%s286 + $0x74] sm:$0x1]
      %v335 = vld [vmem:[%s286 + $0x7c] sm:$0x1]
      %s336 = scalar_lea.vmem %s207, 16
      %v337 = vld [vmem:[%s336] sm:$0xf]
      %v338 = vld [vmem:[%s336 + $0x8] sm:$0xf]
      %v339 = vld [vmem:[%s336 + $0x10] sm:$0xf]
      %v340 = vld [vmem:[%s336 + $0x18] sm:$0xf]
      %v341 = vld [vmem:[%s336 + $0x20] sm:$0xf]
      %v342 = vld [vmem:[%s336 + $0x28] sm:$0xf]
      %v343 = vld [vmem:[%s336 + $0x30] sm:$0xf]
      %v344 = vld [vmem:[%s336 + $0x38] sm:$0xf]
      %v345 = vld [vmem:[%s336 + $0x40] sm:$0xf]
      %v346 = vld [vmem:[%s336 + $0x48] sm:$0xf]
      %v347 = vld [vmem:[%s336 + $0x50] sm:$0xf]
      %v348 = vld [vmem:[%s336 + $0x58] sm:$0xf]
      %v349 = vld [vmem:[%s336 + $0x60] sm:$0xf]
      %v350 = vld [vmem:[%s336 + $0x68] sm:$0xf]
      %v351 = vld [vmem:[%s336 + $0x70] sm:$0xf]
      %v352 = vld [vmem:[%s336 + $0x78] sm:$0xf]
      %s353 = scalar_lea.vmem %s212, 16
      %v354 = vld [vmem:[%s353] sm:$0xf]
      %v355 = vld [vmem:[%s353 + $0x8] sm:$0xf]
      %v356 = vld [vmem:[%s353 + $0x10] sm:$0xf]
      %v357 = vld [vmem:[%s353 + $0x18] sm:$0xf]
      %v358 = vld [vmem:[%s353 + $0x20] sm:$0xf]
      %v359 = vld [vmem:[%s353 + $0x28] sm:$0xf]
      %v360 = vld [vmem:[%s353 + $0x30] sm:$0xf]
      %v361 = vld [vmem:[%s353 + $0x38] sm:$0xf]
      %v362 = vld [vmem:[%s353 + $0x40] sm:$0xf]
      %v363 = vld [vmem:[%s353 + $0x48] sm:$0xf]
      %v364 = vld [vmem:[%s353 + $0x50] sm:$0xf]
      %v365 = vld [vmem:[%s353 + $0x58] sm:$0xf]
      %v366 = vld [vmem:[%s353 + $0x60] sm:$0xf]
      %v367 = vld [vmem:[%s353 + $0x68] sm:$0xf]
      %v368 = vld [vmem:[%s353 + $0x70] sm:$0xf]
      %v369 = vld [vmem:[%s353 + $0x78] sm:$0xf]
      %v370 = vld [vmem:[%s336 + $0x4] sm:$0x1]
      %v371 = vld [vmem:[%s336 + $0xc] sm:$0x1]
      %v372 = vld [vmem:[%s336 + $0x14] sm:$0x1]
      %v373 = vld [vmem:[%s336 + $0x1c] sm:$0x1]
      %v374 = vld [vmem:[%s336 + $0x24] sm:$0x1]
      %v375 = vld [vmem:[%s336 + $0x2c] sm:$0x1]
      %v376 = vld [vmem:[%s336 + $0x34] sm:$0x1]
      %v377 = vld [vmem:[%s336 + $0x3c] sm:$0x1]
      %v378 = vld [vmem:[%s336 + $0x44] sm:$0x1]
      %v379 = vld [vmem:[%s336 + $0x4c] sm:$0x1]
      %v380 = vld [vmem:[%s336 + $0x54] sm:$0x1]
      %v381 = vld [vmem:[%s336 + $0x5c] sm:$0x1]
      %v382 = vld [vmem:[%s336 + $0x64] sm:$0x1]
      %v383 = vld [vmem:[%s336 + $0x6c] sm:$0x1]
      %v384 = vld [vmem:[%s336 + $0x74] sm:$0x1]
      %v385 = vld [vmem:[%s336 + $0x7c] sm:$0x1]
      %v402 = vunpack.c.l.b16 %v254
      %v403 = vunpack.c.l.b16 %v255
      %v404 = vunpack.c.l.b16 %v256
      %v405 = vunpack.c.l.b16 %v257
      %v406 = vunpack.c.l.b16 %v258
      %v407 = vunpack.c.l.b16 %v259
      %v408 = vunpack.c.l.b16 %v260
      %v409 = vunpack.c.l.b16 %v261
      %v410 = vunpack.c.l.b16 %v262
      %v411 = vunpack.c.l.b16 %v263
      %v412 = vunpack.c.l.b16 %v264
      %v413 = vunpack.c.l.b16 %v265
      %v414 = vunpack.c.l.b16 %v266
      %v415 = vunpack.c.l.b16 %v267
      %v416 = vunpack.c.l.b16 %v268
      %v417 = vunpack.c.l.b16 %v269
      %v418 = vpack.c.b16 %v402, %v402
      %v419 = vpack.c.b16 %v403, %v403
      %v420 = vpack.c.b16 %v404, %v404
      %v421 = vpack.c.b16 %v405, %v405
      %v422 = vpack.c.b16 %v406, %v406
      %v423 = vpack.c.b16 %v407, %v407
      %v424 = vpack.c.b16 %v408, %v408
      %v425 = vpack.c.b16 %v409, %v409
      %v426 = vpack.c.b16 %v410, %v410
      %v427 = vpack.c.b16 %v411, %v411
      %v428 = vpack.c.b16 %v412, %v412
      %v429 = vpack.c.b16 %v413, %v413
      %v430 = vpack.c.b16 %v414, %v414
      %v431 = vpack.c.b16 %v415, %v415
      %v432 = vpack.c.b16 %v416, %v416
      %v433 = vpack.c.b16 %v417, %v417
      %434 = vrot.lane.b32.xlu0 %v418, 16
      %v435 = vpop.permute.xlu0 %434
      %436 = vrot.lane.b32.xlu0 %v419, 16
      %v437 = vpop.permute.xlu0 %436
      %438 = vrot.lane.b32.xlu0 %v420, 16
      %v439 = vpop.permute.xlu0 %438
      %440 = vrot.lane.b32.xlu0 %v421, 16
      %v441 = vpop.permute.xlu0 %440
      %442 = vrot.lane.b32.xlu0 %v422, 16
      %v443 = vpop.permute.xlu0 %442
      %444 = vrot.lane.b32.xlu0 %v423, 16
      %v445 = vpop.permute.xlu0 %444
      %446 = vrot.lane.b32.xlu0 %v424, 16
      %v447 = vpop.permute.xlu0 %446
      %448 = vrot.lane.b32.xlu0 %v425, 16
      %v449 = vpop.permute.xlu0 %448
      %450 = vrot.lane.b32.xlu0 %v426, 16
      %v451 = vpop.permute.xlu0 %450
      %452 = vrot.lane.b32.xlu0 %v427, 16
      %v453 = vpop.permute.xlu0 %452
      %454 = vrot.lane.b32.xlu0 %v428, 16
      %v455 = vpop.permute.xlu0 %454
      %456 = vrot.lane.b32.xlu0 %v429, 16
      %v457 = vpop.permute.xlu0 %456
      %458 = vrot.lane.b32.xlu0 %v430, 16
      %v459 = vpop.permute.xlu0 %458
      %460 = vrot.lane.b32.xlu0 %v431, 16
      %v461 = vpop.permute.xlu0 %460
      %462 = vrot.lane.b32.xlu0 %v432, 16
      %v463 = vpop.permute.xlu0 %462
      %464 = vrot.lane.b32.xlu0 %v433, 16
      %v465 = vpop.permute.xlu0 %464
      %v498 = vunpack.c.l.b16 %v238
      %v499 = vunpack.c.l.b16 %v270
      %v500 = vunpack.c.l.b16 %v239
      %v501 = vunpack.c.l.b16 %v271
      %v502 = vunpack.c.l.b16 %v240
      %v503 = vunpack.c.l.b16 %v272
      %v504 = vunpack.c.l.b16 %v241
      %v505 = vunpack.c.l.b16 %v273
      %v506 = vunpack.c.l.b16 %v242
      %v507 = vunpack.c.l.b16 %v274
      %v508 = vunpack.c.l.b16 %v243
      %v509 = vunpack.c.l.b16 %v275
      %v510 = vunpack.c.l.b16 %v244
      %v511 = vunpack.c.l.b16 %v276
      %v512 = vunpack.c.l.b16 %v245
      %v513 = vunpack.c.l.b16 %v277
      %v514 = vunpack.c.l.b16 %v246
      %v515 = vunpack.c.l.b16 %v278
      %v516 = vunpack.c.l.b16 %v247
      %v517 = vunpack.c.l.b16 %v279
      %v518 = vunpack.c.l.b16 %v248
      %v519 = vunpack.c.l.b16 %v280
      %v520 = vunpack.c.l.b16 %v249
      %v521 = vunpack.c.l.b16 %v281
      %v522 = vunpack.c.l.b16 %v250
      %v523 = vunpack.c.l.b16 %v282
      %v524 = vunpack.c.l.b16 %v251
      %v525 = vunpack.c.l.b16 %v283
      %v526 = vunpack.c.l.b16 %v252
      %v527 = vunpack.c.l.b16 %v284
      %v528 = vunpack.c.l.b16 %v253
      %v529 = vunpack.c.l.b16 %v285
      %v530 = vpack.c.b16 %v499, %v498
      %v531 = vpack.c.b16 %v501, %v500
      %v532 = vpack.c.b16 %v503, %v502
      %v533 = vpack.c.b16 %v505, %v504
      %v534 = vpack.c.b16 %v507, %v506
      %v535 = vpack.c.b16 %v509, %v508
      %v536 = vpack.c.b16 %v511, %v510
      %v537 = vpack.c.b16 %v513, %v512
      %v538 = vpack.c.b16 %v515, %v514
      %v539 = vpack.c.b16 %v517, %v516
      %v540 = vpack.c.b16 %v519, %v518
      %v541 = vpack.c.b16 %v521, %v520
      %v542 = vpack.c.b16 %v523, %v522
      %v543 = vpack.c.b16 %v525, %v524
      %v544 = vpack.c.b16 %v527, %v526
      %v545 = vpack.c.b16 %v529, %v528
      %v547 = vshrl.u32 %v530, 16
      %v549 = vshll.u32 %v530, 16
      %v551 = vrot.slane %v549, 1
      %v552 = vor.u32 %v547, %v551
      %v554 = vshrl.u32 %v531, 16
      %v556 = vshll.u32 %v531, 16
      %v558 = vrot.slane %v556, 1
      %v559 = vor.u32 %v554, %v558
      %v561 = vshrl.u32 %v532, 16
      %v563 = vshll.u32 %v532, 16
      %v565 = vrot.slane %v563, 1
      %v566 = vor.u32 %v561, %v565
      %v568 = vshrl.u32 %v533, 16
      %v570 = vshll.u32 %v533, 16
      %v572 = vrot.slane %v570, 1
      %v573 = vor.u32 %v568, %v572
      %v575 = vshrl.u32 %v534, 16
      %v577 = vshll.u32 %v534, 16
      %v579 = vrot.slane %v577, 1
      %v580 = vor.u32 %v575, %v579
      %v582 = vshrl.u32 %v535, 16
      %v584 = vshll.u32 %v535, 16
      %v586 = vrot.slane %v584, 1
      %v587 = vor.u32 %v582, %v586
      %v589 = vshrl.u32 %v536, 16
      %v591 = vshll.u32 %v536, 16
      %v593 = vrot.slane %v591, 1
      %v594 = vor.u32 %v589, %v593
      %v596 = vshrl.u32 %v537, 16
      %v598 = vshll.u32 %v537, 16
      %v600 = vrot.slane %v598, 1
      %v601 = vor.u32 %v596, %v600
      %v603 = vshrl.u32 %v538, 16
      %v605 = vshll.u32 %v538, 16
      %v607 = vrot.slane %v605, 1
      %v608 = vor.u32 %v603, %v607
      %v610 = vshrl.u32 %v539, 16
      %v612 = vshll.u32 %v539, 16
      %v614 = vrot.slane %v612, 1
      %v615 = vor.u32 %v610, %v614
      %v617 = vshrl.u32 %v540, 16
      %v619 = vshll.u32 %v540, 16
      %v621 = vrot.slane %v619, 1
      %v622 = vor.u32 %v617, %v621
      %v624 = vshrl.u32 %v541, 16
      %v626 = vshll.u32 %v541, 16
      %v628 = vrot.slane %v626, 1
      %v629 = vor.u32 %v624, %v628
      %v631 = vshrl.u32 %v542, 16
      %v633 = vshll.u32 %v542, 16
      %v635 = vrot.slane %v633, 1
      %v636 = vor.u32 %v631, %v635
      %v638 = vshrl.u32 %v543, 16
      %v640 = vshll.u32 %v543, 16
      %v642 = vrot.slane %v640, 1
      %v643 = vor.u32 %v638, %v642
      %v645 = vshrl.u32 %v544, 16
      %v647 = vshll.u32 %v544, 16
      %v649 = vrot.slane %v647, 1
      %v650 = vor.u32 %v645, %v649
      %v652 = vshrl.u32 %v545, 16
      %v654 = vshll.u32 %v545, 16
      %v656 = vrot.slane %v654, 1
      %v657 = vor.u32 %v652, %v656
      %658 = vrot.lane.b32.xlu0 %v552, 32
      %v659 = vpop.permute.xlu0 %658
      %660 = vrot.lane.b32.xlu0 %v559, 32
      %v661 = vpop.permute.xlu0 %660
      %662 = vrot.lane.b32.xlu0 %v566, 32
      %v663 = vpop.permute.xlu0 %662
      %664 = vrot.lane.b32.xlu0 %v573, 32
      %v665 = vpop.permute.xlu0 %664
      %666 = vrot.lane.b32.xlu0 %v580, 32
      %v667 = vpop.permute.xlu0 %666
      %668 = vrot.lane.b32.xlu0 %v587, 32
      %v669 = vpop.permute.xlu0 %668
      %670 = vrot.lane.b32.xlu0 %v594, 32
      %v671 = vpop.permute.xlu0 %670
      %672 = vrot.lane.b32.xlu0 %v601, 32
      %v673 = vpop.permute.xlu0 %672
      %674 = vrot.lane.b32.xlu0 %v608, 32
      %v675 = vpop.permute.xlu0 %674
      %676 = vrot.lane.b32.xlu0 %v615, 32
      %v677 = vpop.permute.xlu0 %676
      %678 = vrot.lane.b32.xlu0 %v622, 32
      %v679 = vpop.permute.xlu0 %678
      %680 = vrot.lane.b32.xlu0 %v629, 32
      %v681 = vpop.permute.xlu0 %680
      %682 = vrot.lane.b32.xlu0 %v636, 32
      %v683 = vpop.permute.xlu0 %682
      %684 = vrot.lane.b32.xlu0 %v643, 32
      %v685 = vpop.permute.xlu0 %684
      %686 = vrot.lane.b32.xlu0 %v650, 32
      %v687 = vpop.permute.xlu0 %686
      %688 = vrot.lane.b32.xlu0 %v657, 32
      %v689 = vpop.permute.xlu0 %688
      %v706 = vunpack.c.l.b16 %v287
      %v707 = vunpack.c.l.b16 %v288
      %v708 = vunpack.c.l.b16 %v289
      %v709 = vunpack.c.l.b16 %v290
      %v710 = vunpack.c.l.b16 %v291
      %v711 = vunpack.c.l.b16 %v292
      %v712 = vunpack.c.l.b16 %v293
      %v713 = vunpack.c.l.b16 %v294
      %v714 = vunpack.c.l.b16 %v295
      %v715 = vunpack.c.l.b16 %v296
      %v716 = vunpack.c.l.b16 %v297
      %v717 = vunpack.c.l.b16 %v298
      %v718 = vunpack.c.l.b16 %v299
      %v719 = vunpack.c.l.b16 %v300
      %v720 = vunpack.c.l.b16 %v301
      %v721 = vunpack.c.l.b16 %v302
      %v722 = vpack.c.b16 %v706, %v706
      %v723 = vpack.c.b16 %v707, %v707
      %v724 = vpack.c.b16 %v708, %v708
      %v725 = vpack.c.b16 %v709, %v709
      %v726 = vpack.c.b16 %v710, %v710
      %v727 = vpack.c.b16 %v711, %v711
      %v728 = vpack.c.b16 %v712, %v712
      %v729 = vpack.c.b16 %v713, %v713
      %v730 = vpack.c.b16 %v714, %v714
      %v731 = vpack.c.b16 %v715, %v715
      %v732 = vpack.c.b16 %v716, %v716
      %v733 = vpack.c.b16 %v717, %v717
      %v734 = vpack.c.b16 %v718, %v718
      %v735 = vpack.c.b16 %v719, %v719
      %v736 = vpack.c.b16 %v720, %v720
      %v737 = vpack.c.b16 %v721, %v721
      %738 = vrot.lane.b32.xlu0 %v722, 48
      %v739 = vpop.permute.xlu0 %738
      %740 = vrot.lane.b32.xlu0 %v723, 48
      %v741 = vpop.permute.xlu0 %740
      %742 = vrot.lane.b32.xlu0 %v724, 48
      %v743 = vpop.permute.xlu0 %742
      %744 = vrot.lane.b32.xlu0 %v725, 48
      %v745 = vpop.permute.xlu0 %744
      %746 = vrot.lane.b32.xlu0 %v726, 48
      %v747 = vpop.permute.xlu0 %746
      %748 = vrot.lane.b32.xlu0 %v727, 48
      %v749 = vpop.permute.xlu0 %748
      %750 = vrot.lane.b32.xlu0 %v728, 48
      %v751 = vpop.permute.xlu0 %750
      %752 = vrot.lane.b32.xlu0 %v729, 48
      %v753 = vpop.permute.xlu0 %752
      %754 = vrot.lane.b32.xlu0 %v730, 48
      %v755 = vpop.permute.xlu0 %754
      %756 = vrot.lane.b32.xlu0 %v731, 48
      %v757 = vpop.permute.xlu0 %756
      %758 = vrot.lane.b32.xlu0 %v732, 48
      %v759 = vpop.permute.xlu0 %758
      %760 = vrot.lane.b32.xlu0 %v733, 48
      %v761 = vpop.permute.xlu0 %760
      %762 = vrot.lane.b32.xlu0 %v734, 48
      %v763 = vpop.permute.xlu0 %762
      %764 = vrot.lane.b32.xlu0 %v735, 48
      %v765 = vpop.permute.xlu0 %764
      %766 = vrot.lane.b32.xlu0 %v736, 48
      %v767 = vpop.permute.xlu0 %766
      %768 = vrot.lane.b32.xlu0 %v737, 48
      %v769 = vpop.permute.xlu0 %768
      %v786 = vunpack.c.l.b16 %v304
      %v787 = vunpack.c.l.b16 %v305
      %v788 = vunpack.c.l.b16 %v306
      %v789 = vunpack.c.l.b16 %v307
      %v790 = vunpack.c.l.b16 %v308
      %v791 = vunpack.c.l.b16 %v309
      %v792 = vunpack.c.l.b16 %v310
      %v793 = vunpack.c.l.b16 %v311
      %v794 = vunpack.c.l.b16 %v312
      %v795 = vunpack.c.l.b16 %v313
      %v796 = vunpack.c.l.b16 %v314
      %v797 = vunpack.c.l.b16 %v315
      %v798 = vunpack.c.l.b16 %v316
      %v799 = vunpack.c.l.b16 %v317
      %v800 = vunpack.c.l.b16 %v318
      %v801 = vunpack.c.l.b16 %v319
      %v802 = vpack.c.b16 %v786, %v786
      %v803 = vpack.c.b16 %v787, %v787
      %v804 = vpack.c.b16 %v788, %v788
      %v805 = vpack.c.b16 %v789, %v789
      %v806 = vpack.c.b16 %v790, %v790
      %v807 = vpack.c.b16 %v791, %v791
      %v808 = vpack.c.b16 %v792, %v792
      %v809 = vpack.c.b16 %v793, %v793
      %v810 = vpack.c.b16 %v794, %v794
      %v811 = vpack.c.b16 %v795, %v795
      %v812 = vpack.c.b16 %v796, %v796
      %v813 = vpack.c.b16 %v797, %v797
      %v814 = vpack.c.b16 %v798, %v798
      %v815 = vpack.c.b16 %v799, %v799
      %v816 = vpack.c.b16 %v800, %v800
      %v817 = vpack.c.b16 %v801, %v801
      %818 = vrot.lane.b32.xlu0 %v802, 64
      %v819 = vpop.permute.xlu0 %818
      %820 = vrot.lane.b32.xlu0 %v803, 64
      %v821 = vpop.permute.xlu0 %820
      %822 = vrot.lane.b32.xlu0 %v804, 64
      %v823 = vpop.permute.xlu0 %822
      %824 = vrot.lane.b32.xlu0 %v805, 64
      %v825 = vpop.permute.xlu0 %824
      %826 = vrot.lane.b32.xlu0 %v806, 64
      %v827 = vpop.permute.xlu0 %826
      %828 = vrot.lane.b32.xlu0 %v807, 64
      %v829 = vpop.permute.xlu0 %828
      %830 = vrot.lane.b32.xlu0 %v808, 64
      %v831 = vpop.permute.xlu0 %830
      %832 = vrot.lane.b32.xlu0 %v809, 64
      %v833 = vpop.permute.xlu0 %832
      %834 = vrot.lane.b32.xlu0 %v810, 64
      %v835 = vpop.permute.xlu0 %834
      %836 = vrot.lane.b32.xlu0 %v811, 64
      %v837 = vpop.permute.xlu0 %836
      %838 = vrot.lane.b32.xlu0 %v812, 64
      %v839 = vpop.permute.xlu0 %838
      %840 = vrot.lane.b32.xlu0 %v813, 64
      %v841 = vpop.permute.xlu0 %840
      %842 = vrot.lane.b32.xlu0 %v814, 64
      %v843 = vpop.permute.xlu0 %842
      %844 = vrot.lane.b32.xlu0 %v815, 64
      %v845 = vpop.permute.xlu0 %844
      %846 = vrot.lane.b32.xlu0 %v816, 64
      %v847 = vpop.permute.xlu0 %846
      %848 = vrot.lane.b32.xlu0 %v817, 64
      %v849 = vpop.permute.xlu0 %848
      %v866 = vunpack.c.l.b16 %v320
      %v867 = vunpack.c.l.b16 %v321
      %v868 = vunpack.c.l.b16 %v322
      %v869 = vunpack.c.l.b16 %v323
      %v870 = vunpack.c.l.b16 %v324
      %v871 = vunpack.c.l.b16 %v325
      %v872 = vunpack.c.l.b16 %v326
      %v873 = vunpack.c.l.b16 %v327
      %v874 = vunpack.c.l.b16 %v328
      %v875 = vunpack.c.l.b16 %v329
      %v876 = vunpack.c.l.b16 %v330
      %v877 = vunpack.c.l.b16 %v331
      %v878 = vunpack.c.l.b16 %v332
      %v879 = vunpack.c.l.b16 %v333
      %v880 = vunpack.c.l.b16 %v334
      %v881 = vunpack.c.l.b16 %v335
      %v882 = vpack.c.b16 %v866, %v706
      %v883 = vpack.c.b16 %v867, %v707
      %v884 = vpack.c.b16 %v868, %v708
      %v885 = vpack.c.b16 %v869, %v709
      %v886 = vpack.c.b16 %v870, %v710
      %v887 = vpack.c.b16 %v871, %v711
      %v888 = vpack.c.b16 %v872, %v712
      %v889 = vpack.c.b16 %v873, %v713
      %v890 = vpack.c.b16 %v874, %v714
      %v891 = vpack.c.b16 %v875, %v715
      %v892 = vpack.c.b16 %v876, %v716
      %v893 = vpack.c.b16 %v877, %v717
      %v894 = vpack.c.b16 %v878, %v718
      %v895 = vpack.c.b16 %v879, %v719
      %v896 = vpack.c.b16 %v880, %v720
      %v897 = vpack.c.b16 %v881, %v721
      %v899 = vshrl.u32 %v882, 16
      %v901 = vshll.u32 %v882, 16
      %v903 = vrot.slane %v901, 1
      %v904 = vor.u32 %v899, %v903
      %v906 = vshrl.u32 %v883, 16
      %v908 = vshll.u32 %v883, 16
      %v910 = vrot.slane %v908, 1
      %v911 = vor.u32 %v906, %v910
      %v913 = vshrl.u32 %v884, 16
      %v915 = vshll.u32 %v884, 16
      %v917 = vrot.slane %v915, 1
      %v918 = vor.u32 %v913, %v917
      %v920 = vshrl.u32 %v885, 16
      %v922 = vshll.u32 %v885, 16
      %v924 = vrot.slane %v922, 1
      %v925 = vor.u32 %v920, %v924
      %v927 = vshrl.u32 %v886, 16
      %v929 = vshll.u32 %v886, 16
      %v931 = vrot.slane %v929, 1
      %v932 = vor.u32 %v927, %v931
      %v934 = vshrl.u32 %v887, 16
      %v936 = vshll.u32 %v887, 16
      %v938 = vrot.slane %v936, 1
      %v939 = vor.u32 %v934, %v938
      %v941 = vshrl.u32 %v888, 16
      %v943 = vshll.u32 %v888, 16
      %v945 = vrot.slane %v943, 1
      %v946 = vor.u32 %v941, %v945
      %v948 = vshrl.u32 %v889, 16
      %v950 = vshll.u32 %v889, 16
      %v952 = vrot.slane %v950, 1
      %v953 = vor.u32 %v948, %v952
      %v955 = vshrl.u32 %v890, 16
      %v957 = vshll.u32 %v890, 16
      %v959 = vrot.slane %v957, 1
      %v960 = vor.u32 %v955, %v959
      %v962 = vshrl.u32 %v891, 16
      %v964 = vshll.u32 %v891, 16
      %v966 = vrot.slane %v964, 1
      %v967 = vor.u32 %v962, %v966
      %v969 = vshrl.u32 %v892, 16
      %v971 = vshll.u32 %v892, 16
      %v973 = vrot.slane %v971, 1
      %v974 = vor.u32 %v969, %v973
      %v976 = vshrl.u32 %v893, 16
      %v978 = vshll.u32 %v893, 16
      %v980 = vrot.slane %v978, 1
      %v981 = vor.u32 %v976, %v980
      %v983 = vshrl.u32 %v894, 16
      %v985 = vshll.u32 %v894, 16
      %v987 = vrot.slane %v985, 1
      %v988 = vor.u32 %v983, %v987
      %v990 = vshrl.u32 %v895, 16
      %v992 = vshll.u32 %v895, 16
      %v994 = vrot.slane %v992, 1
      %v995 = vor.u32 %v990, %v994
      %v997 = vshrl.u32 %v896, 16
      %v999 = vshll.u32 %v896, 16
      %v1001 = vrot.slane %v999, 1
      %v1002 = vor.u32 %v997, %v1001
      %v1004 = vshrl.u32 %v897, 16
      %v1006 = vshll.u32 %v897, 16
      %v1008 = vrot.slane %v1006, 1
      %v1009 = vor.u32 %v1004, %v1008
      %1010 = vrot.lane.b32.xlu0 %v904, 80
      %v1011 = vpop.permute.xlu0 %1010
      %1012 = vrot.lane.b32.xlu0 %v911, 80
      %v1013 = vpop.permute.xlu0 %1012
      %1014 = vrot.lane.b32.xlu0 %v918, 80
      %v1015 = vpop.permute.xlu0 %1014
      %1016 = vrot.lane.b32.xlu0 %v925, 80
      %v1017 = vpop.permute.xlu0 %1016
      %1018 = vrot.lane.b32.xlu0 %v932, 80
      %v1019 = vpop.permute.xlu0 %1018
      %1020 = vrot.lane.b32.xlu0 %v939, 80
      %v1021 = vpop.permute.xlu0 %1020
      %1022 = vrot.lane.b32.xlu0 %v946, 80
      %v1023 = vpop.permute.xlu0 %1022
      %1024 = vrot.lane.b32.xlu0 %v953, 80
      %v1025 = vpop.permute.xlu0 %1024
      %1026 = vrot.lane.b32.xlu0 %v960, 80
      %v1027 = vpop.permute.xlu0 %1026
      %1028 = vrot.lane.b32.xlu0 %v967, 80
      %v1029 = vpop.permute.xlu0 %1028
      %1030 = vrot.lane.b32.xlu0 %v974, 80
      %v1031 = vpop.permute.xlu0 %1030
      %1032 = vrot.lane.b32.xlu0 %v981, 80
      %v1033 = vpop.permute.xlu0 %1032
      %1034 = vrot.lane.b32.xlu0 %v988, 80
      %v1035 = vpop.permute.xlu0 %1034
      %1036 = vrot.lane.b32.xlu0 %v995, 80
      %v1037 = vpop.permute.xlu0 %1036
      %1038 = vrot.lane.b32.xlu0 %v1002, 80
      %v1039 = vpop.permute.xlu0 %1038
      %1040 = vrot.lane.b32.xlu0 %v1009, 80
      %v1041 = vpop.permute.xlu0 %1040
      %v1058 = vunpack.c.l.b16 %v337
      %v1059 = vunpack.c.l.b16 %v338
      %v1060 = vunpack.c.l.b16 %v339
      %v1061 = vunpack.c.l.b16 %v340
      %v1062 = vunpack.c.l.b16 %v341
      %v1063 = vunpack.c.l.b16 %v342
      %v1064 = vunpack.c.l.b16 %v343
      %v1065 = vunpack.c.l.b16 %v344
      %v1066 = vunpack.c.l.b16 %v345
      %v1067 = vunpack.c.l.b16 %v346
      %v1068 = vunpack.c.l.b16 %v347
      %v1069 = vunpack.c.l.b16 %v348
      %v1070 = vunpack.c.l.b16 %v349
      %v1071 = vunpack.c.l.b16 %v350
      %v1072 = vunpack.c.l.b16 %v351
      %v1073 = vunpack.c.l.b16 %v352
      %v1074 = vpack.c.b16 %v1058, %v1058
      %v1075 = vpack.c.b16 %v1059, %v1059
      %v1076 = vpack.c.b16 %v1060, %v1060
      %v1077 = vpack.c.b16 %v1061, %v1061
      %v1078 = vpack.c.b16 %v1062, %v1062
      %v1079 = vpack.c.b16 %v1063, %v1063
      %v1080 = vpack.c.b16 %v1064, %v1064
      %v1081 = vpack.c.b16 %v1065, %v1065
      %v1082 = vpack.c.b16 %v1066, %v1066
      %v1083 = vpack.c.b16 %v1067, %v1067
      %v1084 = vpack.c.b16 %v1068, %v1068
      %v1085 = vpack.c.b16 %v1069, %v1069
      %v1086 = vpack.c.b16 %v1070, %v1070
      %v1087 = vpack.c.b16 %v1071, %v1071
      %v1088 = vpack.c.b16 %v1072, %v1072
      %v1089 = vpack.c.b16 %v1073, %v1073
      %1090 = vrot.lane.b32.xlu0 %v1074, 96
      %v1091 = vpop.permute.xlu0 %1090
      %1092 = vrot.lane.b32.xlu0 %v1075, 96
      %v1093 = vpop.permute.xlu0 %1092
      %1094 = vrot.lane.b32.xlu0 %v1076, 96
      %v1095 = vpop.permute.xlu0 %1094
      %1096 = vrot.lane.b32.xlu0 %v1077, 96
      %v1097 = vpop.permute.xlu0 %1096
      %1098 = vrot.lane.b32.xlu0 %v1078, 96
      %v1099 = vpop.permute.xlu0 %1098
      %1100 = vrot.lane.b32.xlu0 %v1079, 96
      %v1101 = vpop.permute.xlu0 %1100
      %1102 = vrot.lane.b32.xlu0 %v1080, 96
      %v1103 = vpop.permute.xlu0 %1102
      %1104 = vrot.lane.b32.xlu0 %v1081, 96
      %v1105 = vpop.permute.xlu0 %1104
      %1106 = vrot.lane.b32.xlu0 %v1082, 96
      %v1107 = vpop.permute.xlu0 %1106
      %1108 = vrot.lane.b32.xlu0 %v1083, 96
      %v1109 = vpop.permute.xlu0 %1108
      %1110 = vrot.lane.b32.xlu0 %v1084, 96
      %v1111 = vpop.permute.xlu0 %1110
      %1112 = vrot.lane.b32.xlu0 %v1085, 96
      %v1113 = vpop.permute.xlu0 %1112
      %1114 = vrot.lane.b32.xlu0 %v1086, 96
      %v1115 = vpop.permute.xlu0 %1114
      %1116 = vrot.lane.b32.xlu0 %v1087, 96
      %v1117 = vpop.permute.xlu0 %1116
      %1118 = vrot.lane.b32.xlu0 %v1088, 96
      %v1119 = vpop.permute.xlu0 %1118
      %1120 = vrot.lane.b32.xlu0 %v1089, 96
      %v1121 = vpop.permute.xlu0 %1120
      %v1138 = vunpack.c.l.b16 %v354
      %v1139 = vunpack.c.l.b16 %v355
      %v1140 = vunpack.c.l.b16 %v356
      %v1141 = vunpack.c.l.b16 %v357
      %v1142 = vunpack.c.l.b16 %v358
      %v1143 = vunpack.c.l.b16 %v359
      %v1144 = vunpack.c.l.b16 %v360
      %v1145 = vunpack.c.l.b16 %v361
      %v1146 = vunpack.c.l.b16 %v362
      %v1147 = vunpack.c.l.b16 %v363
      %v1148 = vunpack.c.l.b16 %v364
      %v1149 = vunpack.c.l.b16 %v365
      %v1150 = vunpack.c.l.b16 %v366
      %v1151 = vunpack.c.l.b16 %v367
      %v1152 = vunpack.c.l.b16 %v368
      %v1153 = vunpack.c.l.b16 %v369
      %v1154 = vpack.c.b16 %v1138, %v1138
      %v1155 = vpack.c.b16 %v1139, %v1139
      %v1156 = vpack.c.b16 %v1140, %v1140
      %v1157 = vpack.c.b16 %v1141, %v1141
      %v1158 = vpack.c.b16 %v1142, %v1142
      %v1159 = vpack.c.b16 %v1143, %v1143
      %v1160 = vpack.c.b16 %v1144, %v1144
      %v1161 = vpack.c.b16 %v1145, %v1145
      %v1162 = vpack.c.b16 %v1146, %v1146
      %v1163 = vpack.c.b16 %v1147, %v1147
      %v1164 = vpack.c.b16 %v1148, %v1148
      %v1165 = vpack.c.b16 %v1149, %v1149
      %v1166 = vpack.c.b16 %v1150, %v1150
      %v1167 = vpack.c.b16 %v1151, %v1151
      %v1168 = vpack.c.b16 %v1152, %v1152
      %v1169 = vpack.c.b16 %v1153, %v1153
      %1170 = vrot.lane.b32.xlu0 %v1154, 112
      %v1171 = vpop.permute.xlu0 %1170
      %1172 = vrot.lane.b32.xlu0 %v1155, 112
      %v1173 = vpop.permute.xlu0 %1172
      %1174 = vrot.lane.b32.xlu0 %v1156, 112
      %v1175 = vpop.permute.xlu0 %1174
      %1176 = vrot.lane.b32.xlu0 %v1157, 112
      %v1177 = vpop.permute.xlu0 %1176
      %1178 = vrot.lane.b32.xlu0 %v1158, 112
      %v1179 = vpop.permute.xlu0 %1178
      %1180 = vrot.lane.b32.xlu0 %v1159, 112
      %v1181 = vpop.permute.xlu0 %1180
      %1182 = vrot.lane.b32.xlu0 %v1160, 112
      %v1183 = vpop.permute.xlu0 %1182
      %1184 = vrot.lane.b32.xlu0 %v1161, 112
      %v1185 = vpop.permute.xlu0 %1184
      %1186 = vrot.lane.b32.xlu0 %v1162, 112
      %v1187 = vpop.permute.xlu0 %1186
      %1188 = vrot.lane.b32.xlu0 %v1163, 112
      %v1189 = vpop.permute.xlu0 %1188
      %1190 = vrot.lane.b32.xlu0 %v1164, 112
      %v1191 = vpop.permute.xlu0 %1190
      %1192 = vrot.lane.b32.xlu0 %v1165, 112
      %v1193 = vpop.permute.xlu0 %1192
      %1194 = vrot.lane.b32.xlu0 %v1166, 112
      %v1195 = vpop.permute.xlu0 %1194
      %1196 = vrot.lane.b32.xlu0 %v1167, 112
      %v1197 = vpop.permute.xlu0 %1196
      %1198 = vrot.lane.b32.xlu0 %v1168, 112
      %v1199 = vpop.permute.xlu0 %1198
      %1200 = vrot.lane.b32.xlu0 %v1169, 112
      %v1201 = vpop.permute.xlu0 %1200
      %v1218 = vunpack.c.l.b16 %v370
      %v1219 = vunpack.c.l.b16 %v371
      %v1220 = vunpack.c.l.b16 %v372
      %v1221 = vunpack.c.l.b16 %v373
      %v1222 = vunpack.c.l.b16 %v374
      %v1223 = vunpack.c.l.b16 %v375
      %v1224 = vunpack.c.l.b16 %v376
      %v1225 = vunpack.c.l.b16 %v377
      %v1226 = vunpack.c.l.b16 %v378
      %v1227 = vunpack.c.l.b16 %v379
      %v1228 = vunpack.c.l.b16 %v380
      %v1229 = vunpack.c.l.b16 %v381
      %v1230 = vunpack.c.l.b16 %v382
      %v1231 = vunpack.c.l.b16 %v383
      %v1232 = vunpack.c.l.b16 %v384
      %v1233 = vunpack.c.l.b16 %v385
      %v1234 = vpack.c.b16 %v1218, %v1058
      %v1235 = vpack.c.b16 %v1219, %v1059
      %v1236 = vpack.c.b16 %v1220, %v1060
      %v1237 = vpack.c.b16 %v1221, %v1061
      %v1238 = vpack.c.b16 %v1222, %v1062
      %v1239 = vpack.c.b16 %v1223, %v1063
      %v1240 = vpack.c.b16 %v1224, %v1064
      %v1241 = vpack.c.b16 %v1225, %v1065
      %v1242 = vpack.c.b16 %v1226, %v1066
      %v1243 = vpack.c.b16 %v1227, %v1067
      %v1244 = vpack.c.b16 %v1228, %v1068
      %v1245 = vpack.c.b16 %v1229, %v1069
      %v1246 = vpack.c.b16 %v1230, %v1070
      %v1247 = vpack.c.b16 %v1231, %v1071
      %v1248 = vpack.c.b16 %v1232, %v1072
      %v1249 = vpack.c.b16 %v1233, %v1073
      %v1251 = vshrl.u32 %v1234, 16
      %v1253 = vshll.u32 %v1234, 16
      %v1255 = vrot.slane %v1253, 1
      %v1256 = vor.u32 %v1251, %v1255
      %v1258 = vshrl.u32 %v1235, 16
      %v1260 = vshll.u32 %v1235, 16
      %v1262 = vrot.slane %v1260, 1
      %v1263 = vor.u32 %v1258, %v1262
      %v1265 = vshrl.u32 %v1236, 16
      %v1267 = vshll.u32 %v1236, 16
      %v1269 = vrot.slane %v1267, 1
      %v1270 = vor.u32 %v1265, %v1269
      %v1272 = vshrl.u32 %v1237, 16
      %v1274 = vshll.u32 %v1237, 16
      %v1276 = vrot.slane %v1274, 1
      %v1277 = vor.u32 %v1272, %v1276
      %v1279 = vshrl.u32 %v1238, 16
      %v1281 = vshll.u32 %v1238, 16
      %v1283 = vrot.slane %v1281, 1
      %v1284 = vor.u32 %v1279, %v1283
      %v1286 = vshrl.u32 %v1239, 16
      %v1288 = vshll.u32 %v1239, 16
      %v1290 = vrot.slane %v1288, 1
      %v1291 = vor.u32 %v1286, %v1290
      %v1293 = vshrl.u32 %v1240, 16
      %v1295 = vshll.u32 %v1240, 16
      %v1297 = vrot.slane %v1295, 1
      %v1298 = vor.u32 %v1293, %v1297
      %v1300 = vshrl.u32 %v1241, 16
      %v1302 = vshll.u32 %v1241, 16
      %v1304 = vrot.slane %v1302, 1
      %v1305 = vor.u32 %v1300, %v1304
      %v1307 = vshrl.u32 %v1242, 16
      %v1309 = vshll.u32 %v1242, 16
      %v1311 = vrot.slane %v1309, 1
      %v1312 = vor.u32 %v1307, %v1311
      %v1314 = vshrl.u32 %v1243, 16
      %v1316 = vshll.u32 %v1243, 16
      %v1318 = vrot.slane %v1316, 1
      %v1319 = vor.u32 %v1314, %v1318
      %v1321 = vshrl.u32 %v1244, 16
      %v1323 = vshll.u32 %v1244, 16
      %v1325 = vrot.slane %v1323, 1
      %v1326 = vor.u32 %v1321, %v1325
      %v1328 = vshrl.u32 %v1245, 16
      %v1330 = vshll.u32 %v1245, 16
      %v1332 = vrot.slane %v1330, 1
      %v1333 = vor.u32 %v1328, %v1332
      %v1335 = vshrl.u32 %v1246, 16
      %v1337 = vshll.u32 %v1246, 16
      %v1339 = vrot.slane %v1337, 1
      %v1340 = vor.u32 %v1335, %v1339
      %v1342 = vshrl.u32 %v1247, 16
      %v1344 = vshll.u32 %v1247, 16
      %v1346 = vrot.slane %v1344, 1
      %v1347 = vor.u32 %v1342, %v1346
      %v1349 = vshrl.u32 %v1248, 16
      %v1351 = vshll.u32 %v1248, 16
      %v1353 = vrot.slane %v1351, 1
      %v1354 = vor.u32 %v1349, %v1353
      %v1356 = vshrl.u32 %v1249, 16
      %v1358 = vshll.u32 %v1249, 16
      %v1360 = vrot.slane %v1358, 1
      %v1361 = vor.u32 %v1356, %v1360
      %vm1362 = vcmask 130048
      %v1365 = vsel %vm1362, %v238, %v435
      %v1368 = vsel %vm1362, %v239, %v437
      %v1371 = vsel %vm1362, %v240, %v439
      %v1374 = vsel %vm1362, %v241, %v441
      %v1377 = vsel %vm1362, %v242, %v443
      %v1380 = vsel %vm1362, %v243, %v445
      %v1383 = vsel %vm1362, %v244, %v447
      %v1386 = vsel %vm1362, %v245, %v449
      %v1389 = vsel %vm1362, %v246, %v451
      %v1392 = vsel %vm1362, %v247, %v453
      %v1395 = vsel %vm1362, %v248, %v455
      %v1398 = vsel %vm1362, %v249, %v457
      %v1401 = vsel %vm1362, %v250, %v459
      %v1404 = vsel %vm1362, %v251, %v461
      %v1407 = vsel %vm1362, %v252, %v463
      %v1410 = vsel %vm1362, %v253, %v465
      %vm1411 = vcmask 261120
      %v1413 = vsel %vm1411, %v1365, %v659
      %v1415 = vsel %vm1411, %v1368, %v661
      %v1417 = vsel %vm1411, %v1371, %v663
      %v1419 = vsel %vm1411, %v1374, %v665
      %v1421 = vsel %vm1411, %v1377, %v667
      %v1423 = vsel %vm1411, %v1380, %v669
      %v1425 = vsel %vm1411, %v1383, %v671
      %v1427 = vsel %vm1411, %v1386, %v673
      %v1429 = vsel %vm1411, %v1389, %v675
      %v1431 = vsel %vm1411, %v1392, %v677
      %v1433 = vsel %vm1411, %v1395, %v679
      %v1435 = vsel %vm1411, %v1398, %v681
      %v1437 = vsel %vm1411, %v1401, %v683
      %v1439 = vsel %vm1411, %v1404, %v685
      %v1441 = vsel %vm1411, %v1407, %v687
      %v1443 = vsel %vm1411, %v1410, %v689
      %vm1444 = vcmask 392192
      %v1446 = vsel %vm1444, %v1413, %v739
      %v1448 = vsel %vm1444, %v1415, %v741
      %v1450 = vsel %vm1444, %v1417, %v743
      %v1452 = vsel %vm1444, %v1419, %v745
      %v1454 = vsel %vm1444, %v1421, %v747
      %v1456 = vsel %vm1444, %v1423, %v749
      %v1458 = vsel %vm1444, %v1425, %v751
      %v1460 = vsel %vm1444, %v1427, %v753
      %v1462 = vsel %vm1444, %v1429, %v755
      %v1464 = vsel %vm1444, %v1431, %v757
      %v1466 = vsel %vm1444, %v1433, %v759
      %v1468 = vsel %vm1444, %v1435, %v761
      %v1470 = vsel %vm1444, %v1437, %v763
      %v1472 = vsel %vm1444, %v1439, %v765
      %v1474 = vsel %vm1444, %v1441, %v767
      %v1476 = vsel %vm1444, %v1443, %v769
      %vm1477 = vcmask 523264
      %v1479 = vsel %vm1477, %v1446, %v819
      %v1481 = vsel %vm1477, %v1448, %v821
      %v1483 = vsel %vm1477, %v1450, %v823
      %v1485 = vsel %vm1477, %v1452, %v825
      %v1487 = vsel %vm1477, %v1454, %v827
      %v1489 = vsel %vm1477, %v1456, %v829
      %v1491 = vsel %vm1477, %v1458, %v831
      %v1493 = vsel %vm1477, %v1460, %v833
      %v1495 = vsel %vm1477, %v1462, %v835
      %v1497 = vsel %vm1477, %v1464, %v837
      %v1499 = vsel %vm1477, %v1466, %v839
      %v1501 = vsel %vm1477, %v1468, %v841
      %v1503 = vsel %vm1477, %v1470, %v843
      %v1505 = vsel %vm1477, %v1472, %v845
      %v1507 = vsel %vm1477, %v1474, %v847
      %v1509 = vsel %vm1477, %v1476, %v849
      %vm1510 = vcmask 654336
      %v1512 = vsel %vm1510, %v1479, %v1011
      %v1514 = vsel %vm1510, %v1481, %v1013
      %v1516 = vsel %vm1510, %v1483, %v1015
      %v1518 = vsel %vm1510, %v1485, %v1017
      %v1520 = vsel %vm1510, %v1487, %v1019
      %v1522 = vsel %vm1510, %v1489, %v1021
      %v1524 = vsel %vm1510, %v1491, %v1023
      %v1526 = vsel %vm1510, %v1493, %v1025
      %v1528 = vsel %vm1510, %v1495, %v1027
      %v1530 = vsel %vm1510, %v1497, %v1029
      %v1532 = vsel %vm1510, %v1499, %v1031
      %v1534 = vsel %vm1510, %v1501, %v1033
      %v1536 = vsel %vm1510, %v1503, %v1035
      %v1538 = vsel %vm1510, %v1505, %v1037
      %v1540 = vsel %vm1510, %v1507, %v1039
      %v1542 = vsel %vm1510, %v1509, %v1041
      %vm1543 = vcmask 785408
      %v1545 = vsel %vm1543, %v1512, %v1091
      %v1547 = vsel %vm1543, %v1514, %v1093
      %v1549 = vsel %vm1543, %v1516, %v1095
      %v1551 = vsel %vm1543, %v1518, %v1097
      %v1553 = vsel %vm1543, %v1520, %v1099
      %v1555 = vsel %vm1543, %v1522, %v1101
      %v1557 = vsel %vm1543, %v1524, %v1103
      %v1559 = vsel %vm1543, %v1526, %v1105
      %v1561 = vsel %vm1543, %v1528, %v1107
      %v1563 = vsel %vm1543, %v1530, %v1109
      %v1565 = vsel %vm1543, %v1532, %v1111
      %v1567 = vsel %vm1543, %v1534, %v1113
      %v1569 = vsel %vm1543, %v1536, %v1115
      %v1571 = vsel %vm1543, %v1538, %v1117
      %v1573 = vsel %vm1543, %v1540, %v1119
      %v1575 = vsel %vm1543, %v1542, %v1121
      %vm1576 = vcmask 916480
      %v1578 = vsel %vm1576, %v1545, %v1171
      %v1580 = vsel %vm1576, %v1547, %v1173
      %v1582 = vsel %vm1576, %v1549, %v1175
      %v1584 = vsel %vm1576, %v1551, %v1177
      %v1586 = vsel %vm1576, %v1553, %v1179
      %v1588 = vsel %vm1576, %v1555, %v1181
      %v1590 = vsel %vm1576, %v1557, %v1183
      %v1592 = vsel %vm1576, %v1559, %v1185
      %v1594 = vsel %vm1576, %v1561, %v1187
      %v1596 = vsel %vm1576, %v1563, %v1189
      %v1598 = vsel %vm1576, %v1565, %v1191
      %v1600 = vsel %vm1576, %v1567, %v1193
      %v1602 = vsel %vm1576, %v1569, %v1195
      %v1604 = vsel %vm1576, %v1571, %v1197
      %v1606 = vsel %vm1576, %v1573, %v1199
      %v1608 = vsel %vm1576, %v1575, %v1201
      %v1625 = vunpack.c.l.b16 %v1578
      %v1626 = vunpack.c.l.b16 %v1256
      %v1627 = vunpack.c.l.b16 %v1580
      %v1628 = vunpack.c.l.b16 %v1263
      %v1629 = vunpack.c.l.b16 %v1582
      %v1630 = vunpack.c.l.b16 %v1270
      %v1631 = vunpack.c.l.b16 %v1584
      %v1632 = vunpack.c.l.b16 %v1277
      %v1633 = vunpack.c.l.b16 %v1586
      %v1634 = vunpack.c.l.b16 %v1284
      %v1635 = vunpack.c.l.b16 %v1588
      %v1636 = vunpack.c.l.b16 %v1291
      %v1637 = vunpack.c.l.b16 %v1590
      %v1638 = vunpack.c.l.b16 %v1298
      %v1639 = vunpack.c.l.b16 %v1592
      %v1640 = vunpack.c.l.b16 %v1305
      %v1641 = vunpack.c.l.b16 %v1594
      %v1642 = vunpack.c.l.b16 %v1312
      %v1643 = vunpack.c.l.b16 %v1596
      %v1644 = vunpack.c.l.b16 %v1319
      %v1645 = vunpack.c.l.b16 %v1598
      %v1646 = vunpack.c.l.b16 %v1326
      %v1647 = vunpack.c.l.b16 %v1600
      %v1648 = vunpack.c.l.b16 %v1333
      %v1649 = vunpack.c.l.b16 %v1602
      %v1650 = vunpack.c.l.b16 %v1340
      %v1651 = vunpack.c.l.b16 %v1604
      %v1652 = vunpack.c.l.b16 %v1347
      %v1653 = vunpack.c.l.b16 %v1606
      %v1654 = vunpack.c.l.b16 %v1354
      %v1655 = vunpack.c.l.b16 %v1608
      %v1656 = vunpack.c.l.b16 %v1361
      %v1658 = vperm.slane %v237, 0
      %v1660 = vpack.c.b16 %v1627, %v1625
      %v1661 = vpack.c.b16 %v1628, %v1626
      %v1662 = vpack.c.b16 %v1631, %v1629
      %v1663 = vpack.c.b16 %v1632, %v1630
      %v1664 = vpack.c.b16 %v1635, %v1633
      %v1665 = vpack.c.b16 %v1636, %v1634
      %v1666 = vpack.c.b16 %v1639, %v1637
      %v1667 = vpack.c.b16 %v1640, %v1638
      %v1668 = vpack.c.b16 %v1643, %v1641
      %v1669 = vpack.c.b16 %v1644, %v1642
      %v1670 = vpack.c.b16 %v1647, %v1645
      %v1671 = vpack.c.b16 %v1648, %v1646
      %v1672 = vpack.c.b16 %v1651, %v1649
      %v1673 = vpack.c.b16 %v1652, %v1650
      %v1674 = vpack.c.b16 %v1655, %v1653
      %v1675 = vpack.c.b16 %v1656, %v1654
      %v1702 = vunpack.c.l.b16 %v219
      %v1703 = vunpack.c.l.b16 %v220
      %v1704 = vunpack.c.l.b16 %v221
      %v1705 = vunpack.c.l.b16 %v222
      %v1706 = vunpack.c.l.b16 %v223
      %v1707 = vunpack.c.l.b16 %v224
      %v1708 = vunpack.c.l.b16 %v225
      %v1709 = vunpack.c.l.b16 %v226
      %v1710 = vunpack.c.l.b16 %v227
      %v1711 = vunpack.c.l.b16 %v228
      %v1712 = vunpack.c.l.b16 %v229
      %v1713 = vunpack.c.l.b16 %v230
      %v1714 = vunpack.c.l.b16 %v231
      %v1715 = vunpack.c.l.b16 %v232
      %v1716 = vunpack.c.l.b16 %v233
      %v1717 = vunpack.c.l.b16 %v234
      %v1718 = vunpack.c.l.b16 %v235
      %v1719 = vunpack.c.l.b16 %v236
      %v1720 = vpack.c.b16 %v1703, %v1702
      %v1721 = vpack.c.b16 %v1705, %v1704
      %v1722 = vpack.c.b16 %v1707, %v1706
      %v1723 = vpack.c.b16 %v1709, %v1708
      %v1724 = vpack.c.b16 %v1711, %v1710
      %v1725 = vpack.c.b16 %v1713, %v1712
      %v1726 = vpack.c.b16 %v1715, %v1714
      %v1727 = vpack.c.b16 %v1717, %v1716
      %v1728 = vpack.c.b16 %v1719, %v1718
      %v1739 = vsel %vm1362, %v1661, 0
      %v1742 = vsel %vm1362, %v1663, 0
      %v1745 = vsel %vm1362, %v1665, 0
      %v1748 = vsel %vm1362, %v1667, 0
      %v1751 = vsel %vm1362, %v1669, 0
      %v1754 = vsel %vm1362, %v1671, 0
      %v1757 = vsel %vm1362, %v1673, 0
      %v1760 = vsel %vm1362, %v1675, 0
      %1762 = vmatpush.bf16.msra.mxu0 %v1727
      %1763 = vmatpush.bf16.msra.mxu0 %v1726
      %1764 = vmatpush.bf16.msra.mxu0 %v1725
      %1765 = vmatpush.bf16.msra.mxu0 %v1724
      %1766 = vmatpush.bf16.msra.mxu0 %v1723
      %1767 = vmatpush.bf16.msra.mxu0 %v1722
      %1768 = vmatpush.bf16.msra.mxu0 %v1721
      %1769 = vmatpush.bf16.msra.mxu0 %v1720
      %1770 = vmatmul.bf16.gmra.mxu0 %v1660
      %v1771 = vpop.f32.mrf.mxu0
      %v1772 = vadd.f32 %v1658, %v1771
      %v1773 = vpop.f32.mrf.mxu0
      %v1774 = vadd.f32 %v1658, %v1773
      %1775 = vmatmul.bf16.gmra.mxu0 %v1662
      %v1776 = vpop.f32.mrf.mxu0
      %v1777 = vadd.f32 %v1658, %v1776
      %v1778 = vpop.f32.mrf.mxu0
      %v1779 = vadd.f32 %v1658, %v1778
      %1780 = vmatmul.bf16.gmra.mxu0 %v1664
      %v1781 = vpop.f32.mrf.mxu0
      %v1782 = vadd.f32 %v1658, %v1781
      %v1783 = vpop.f32.mrf.mxu0
      %v1784 = vadd.f32 %v1658, %v1783
      %1785 = vmatmul.bf16.gmra.mxu0 %v1666
      %v1786 = vpop.f32.mrf.mxu0
      %v1787 = vadd.f32 %v1658, %v1786
      %v1788 = vpop.f32.mrf.mxu0
      %v1789 = vadd.f32 %v1658, %v1788
      %1790 = vmatmul.bf16.gmra.mxu0 %v1668
      %v1791 = vpop.f32.mrf.mxu0
      %v1792 = vadd.f32 %v1658, %v1791
      %v1793 = vpop.f32.mrf.mxu0
      %v1794 = vadd.f32 %v1658, %v1793
      %1795 = vmatmul.bf16.gmra.mxu0 %v1670
      %v1796 = vpop.f32.mrf.mxu0
      %v1797 = vadd.f32 %v1658, %v1796
      %v1798 = vpop.f32.mrf.mxu0
      %v1799 = vadd.f32 %v1658, %v1798
      %1800 = vmatmul.bf16.gmra.mxu0 %v1672
      %v1801 = vpop.f32.mrf.mxu0
      %v1802 = vadd.f32 %v1658, %v1801
      %v1803 = vpop.f32.mrf.mxu0
      %v1804 = vadd.f32 %v1658, %v1803
      %1805 = vmatmul.bf16.gmra.mxu0 %v1674
      %v1806 = vpop.f32.mrf.mxu0
      %v1807 = vadd.f32 %v1658, %v1806
      %v1808 = vpop.f32.mrf.mxu0
      %v1809 = vadd.f32 %v1658, %v1808
      %1810 = vdwg.mxu0
      %1811 = vmatpush.bf16.msra.mxu0 0
      %1812 = vmatpush.bf16.msra.mxu0 0
      %1813 = vmatpush.bf16.msra.mxu0 0
      %1814 = vmatpush.bf16.msra.mxu0 0
      %1815 = vmatpush.bf16.msra.mxu0 0
      %1816 = vmatpush.bf16.msra.mxu0 0
      %1817 = vmatpush.bf16.msra.mxu0 0
      %1818 = vmatpush.bf16.msra.mxu0 %v1728
      %1819 = vmatmul.bf16.gmra.mxu0 %v1739
      %v1820 = vpop.f32.mrf.mxu0
      %v1821 = vadd.f32 %v1772, %v1820
      %v1822 = vpop.f32.mrf.mxu0
      %v1823 = vadd.f32 %v1774, %v1822
      %1824 = vmatmul.bf16.gmra.mxu0 %v1742
      %v1825 = vpop.f32.mrf.mxu0
      %v1826 = vadd.f32 %v1777, %v1825
      %v1827 = vpop.f32.mrf.mxu0
      %v1828 = vadd.f32 %v1779, %v1827
      %1829 = vmatmul.bf16.gmra.mxu0 %v1745
      %v1830 = vpop.f32.mrf.mxu0
      %v1831 = vadd.f32 %v1782, %v1830
      %v1832 = vpop.f32.mrf.mxu0
      %v1833 = vadd.f32 %v1784, %v1832
      %1834 = vmatmul.bf16.gmra.mxu0 %v1748
      %v1835 = vpop.f32.mrf.mxu0
      %v1836 = vadd.f32 %v1787, %v1835
      %v1837 = vpop.f32.mrf.mxu0
      %v1838 = vadd.f32 %v1789, %v1837
      %1839 = vmatmul.bf16.gmra.mxu0 %v1751
      %v1840 = vpop.f32.mrf.mxu0
      %v1841 = vadd.f32 %v1792, %v1840
      %v1842 = vpop.f32.mrf.mxu0
      %v1843 = vadd.f32 %v1794, %v1842
      %1844 = vmatmul.bf16.gmra.mxu0 %v1754
      %v1845 = vpop.f32.mrf.mxu0
      %v1846 = vadd.f32 %v1797, %v1845
      %v1847 = vpop.f32.mrf.mxu0
      %v1848 = vadd.f32 %v1799, %v1847
      %1849 = vmatmul.bf16.gmra.mxu0 %v1757
      %v1850 = vpop.f32.mrf.mxu0
      %v1851 = vadd.f32 %v1802, %v1850
      %v1852 = vpop.f32.mrf.mxu0
      %v1853 = vadd.f32 %v1804, %v1852
      %1854 = vmatmul.bf16.gmra.mxu0 %v1760
      %v1855 = vpop.f32.mrf.mxu0
      %v1856 = vadd.f32 %v1807, %v1855
      %v1857 = vpop.f32.mrf.mxu0
      %v1858 = vadd.f32 %v1809, %v1857
      %1859 = vdwg.mxu0
      %v1860 = vmax.f32 %v1821, 0.0
      %v1861 = vmax.f32 %v1823, 0.0
      %v1862 = vmax.f32 %v1826, 0.0
      %v1863 = vmax.f32 %v1828, 0.0
      %v1864 = vmax.f32 %v1831, 0.0
      %v1865 = vmax.f32 %v1833, 0.0
      %v1866 = vmax.f32 %v1836, 0.0
      %v1867 = vmax.f32 %v1838, 0.0
      %v1868 = vmax.f32 %v1841, 0.0
      %v1869 = vmax.f32 %v1843, 0.0
      %v1870 = vmax.f32 %v1846, 0.0
      %v1871 = vmax.f32 %v1848, 0.0
      %v1872 = vmax.f32 %v1851, 0.0
      %v1873 = vmax.f32 %v1853, 0.0
      %v1874 = vmax.f32 %v1856, 0.0
      %v1875 = vmax.f32 %v1858, 0.0
      %v1876 = vld [vmem:[%s212] sm:$0xf]
      %v1877 = vld [vmem:[%s212 + $0x4] sm:$0x1]
      %v1878 = vld [vmem:[%s212 + $0x8] sm:$0xf]
      %v1879 = vld [vmem:[%s212 + $0xc] sm:$0x1]
      %v1880 = vld [vmem:[%s212 + $0x10] sm:$0xf]
      %v1881 = vld [vmem:[%s212 + $0x14] sm:$0x1]
      %v1882 = vld [vmem:[%s212 + $0x18] sm:$0xf]
      %v1883 = vld [vmem:[%s212 + $0x1c] sm:$0x1]
      %v1884 = vld [vmem:[%s212 + $0x20] sm:$0xf]
      %v1885 = vld [vmem:[%s212 + $0x24] sm:$0x1]
      %v1886 = vld [vmem:[%s212 + $0x28] sm:$0xf]
      %v1887 = vld [vmem:[%s212 + $0x2c] sm:$0x1]
      %v1888 = vld [vmem:[%s212 + $0x30] sm:$0xf]
      %v1889 = vld [vmem:[%s212 + $0x34] sm:$0x1]
      %v1890 = vld [vmem:[%s212 + $0x38] sm:$0xf]
      %v1891 = vld [vmem:[%s212 + $0x3c] sm:$0x1]
      %v1892 = vld [vmem:[%s212 + $0x40] sm:$0xf]
      %v1893 = vld [vmem:[%s212 + $0x44] sm:$0x1]
      %v1894 = vld [vmem:[%s212 + $0x48] sm:$0xf]
      %v1895 = vld [vmem:[%s212 + $0x4c] sm:$0x1]
      %v1896 = vld [vmem:[%s212 + $0x50] sm:$0xf]
      %v1897 = vld [vmem:[%s212 + $0x54] sm:$0x1]
      %v1898 = vld [vmem:[%s212 + $0x58] sm:$0xf]
      %v1899 = vld [vmem:[%s212 + $0x5c] sm:$0x1]
      %v1900 = vld [vmem:[%s212 + $0x60] sm:$0xf]
      %v1901 = vld [vmem:[%s212 + $0x64] sm:$0x1]
      %v1902 = vld [vmem:[%s212 + $0x68] sm:$0xf]
      %v1903 = vld [vmem:[%s212 + $0x6c] sm:$0x1]
      %v1904 = vld [vmem:[%s212 + $0x70] sm:$0xf]
      %v1905 = vld [vmem:[%s212 + $0x74] sm:$0x1]
      %v1906 = vld [vmem:[%s212 + $0x78] sm:$0xf]
      %v1907 = vld [vmem:[%s212 + $0x7c] sm:$0x1]
      %v1908 = vld [vmem:[%s303] sm:$0xf]
      %v1909 = vld [vmem:[%s303 + $0x4] sm:$0x1]
      %v1910 = vld [vmem:[%s303 + $0x8] sm:$0xf]
      %v1911 = vld [vmem:[%s303 + $0xc] sm:$0x1]
      %v1912 = vld [vmem:[%s303 + $0x10] sm:$0xf]
      %v1913 = vld [vmem:[%s303 + $0x14] sm:$0x1]
      %v1914 = vld [vmem:[%s303 + $0x18] sm:$0xf]
      %v1915 = vld [vmem:[%s303 + $0x1c] sm:$0x1]
      %v1916 = vld [vmem:[%s303 + $0x20] sm:$0xf]
      %v1917 = vld [vmem:[%s303 + $0x24] sm:$0x1]
      %v1918 = vld [vmem:[%s303 + $0x28] sm:$0xf]
      %v1919 = vld [vmem:[%s303 + $0x2c] sm:$0x1]
      %v1920 = vld [vmem:[%s303 + $0x30] sm:$0xf]
      %v1921 = vld [vmem:[%s303 + $0x34] sm:$0x1]
      %v1922 = vld [vmem:[%s303 + $0x38] sm:$0xf]
      %v1923 = vld [vmem:[%s303 + $0x3c] sm:$0x1]
      %v1924 = vld [vmem:[%s303 + $0x40] sm:$0xf]
      %v1925 = vld [vmem:[%s303 + $0x44] sm:$0x1]
      %v1926 = vld [vmem:[%s303 + $0x48] sm:$0xf]
      %v1927 = vld [vmem:[%s303 + $0x4c] sm:$0x1]
      %v1928 = vld [vmem:[%s303 + $0x50] sm:$0xf]
      %v1929 = vld [vmem:[%s303 + $0x54] sm:$0x1]
      %v1930 = vld [vmem:[%s303 + $0x58] sm:$0xf]
      %v1931 = vld [vmem:[%s303 + $0x5c] sm:$0x1]
      %v1932 = vld [vmem:[%s303 + $0x60] sm:$0xf]
      %v1933 = vld [vmem:[%s303 + $0x64] sm:$0x1]
      %v1934 = vld [vmem:[%s303 + $0x68] sm:$0xf]
      %v1935 = vld [vmem:[%s303 + $0x6c] sm:$0x1]
      %v1936 = vld [vmem:[%s303 + $0x70] sm:$0xf]
      %v1937 = vld [vmem:[%s303 + $0x74] sm:$0x1]
      %v1938 = vld [vmem:[%s303 + $0x78] sm:$0xf]
      %v1939 = vld [vmem:[%s303 + $0x7c] sm:$0x1]
      %v1940 = vld [vmem:[%s353] sm:$0xf]
      %v1941 = vld [vmem:[%s353 + $0x4] sm:$0x1]
      %v1942 = vld [vmem:[%s353 + $0x8] sm:$0xf]
      %v1943 = vld [vmem:[%s353 + $0xc] sm:$0x1]
      %v1944 = vld [vmem:[%s353 + $0x10] sm:$0xf]
      %v1945 = vld [vmem:[%s353 + $0x14] sm:$0x1]
      %v1946 = vld [vmem:[%s353 + $0x18] sm:$0xf]
      %v1947 = vld [vmem:[%s353 + $0x1c] sm:$0x1]
      %v1948 = vld [vmem:[%s353 + $0x20] sm:$0xf]
      %v1949 = vld [vmem:[%s353 + $0x24] sm:$0x1]
      %v1950 = vld [vmem:[%s353 + $0x28] sm:$0xf]
      %v1951 = vld [vmem:[%s353 + $0x2c] sm:$0x1]
      %v1952 = vld [vmem:[%s353 + $0x30] sm:$0xf]
      %v1953 = vld [vmem:[%s353 + $0x34] sm:$0x1]
      %v1954 = vld [vmem:[%s353 + $0x38] sm:$0xf]
      %v1955 = vld [vmem:[%s353 + $0x3c] sm:$0x1]
      %v1956 = vld [vmem:[%s353 + $0x40] sm:$0xf]
      %v1957 = vld [vmem:[%s353 + $0x44] sm:$0x1]
      %v1958 = vld [vmem:[%s353 + $0x48] sm:$0xf]
      %v1959 = vld [vmem:[%s353 + $0x4c] sm:$0x1]
      %v1960 = vld [vmem:[%s353 + $0x50] sm:$0xf]
      %v1961 = vld [vmem:[%s353 + $0x54] sm:$0x1]
      %v1962 = vld [vmem:[%s353 + $0x58] sm:$0xf]
      %v1963 = vld [vmem:[%s353 + $0x5c] sm:$0x1]
      %v1964 = vld [vmem:[%s353 + $0x60] sm:$0xf]
      %v1965 = vld [vmem:[%s353 + $0x64] sm:$0x1]
      %v1966 = vld [vmem:[%s353 + $0x68] sm:$0xf]
      %v1967 = vld [vmem:[%s353 + $0x6c] sm:$0x1]
      %v1968 = vld [vmem:[%s353 + $0x70] sm:$0xf]
      %v1969 = vld [vmem:[%s353 + $0x74] sm:$0x1]
      %v1970 = vld [vmem:[%s353 + $0x78] sm:$0xf]
      %v1971 = vld [vmem:[%s353 + $0x7c] sm:$0x1]
      %1972 = vrot.lane.b32.xlu0 %v552, 16
      %v1973 = vpop.permute.xlu0 %1972
      %1974 = vrot.lane.b32.xlu0 %v559, 16
      %v1975 = vpop.permute.xlu0 %1974
      %1976 = vrot.lane.b32.xlu0 %v566, 16
      %v1977 = vpop.permute.xlu0 %1976
      %1978 = vrot.lane.b32.xlu0 %v573, 16
      %v1979 = vpop.permute.xlu0 %1978
      %1980 = vrot.lane.b32.xlu0 %v580, 16
      %v1981 = vpop.permute.xlu0 %1980
      %1982 = vrot.lane.b32.xlu0 %v587, 16
      %v1983 = vpop.permute.xlu0 %1982
      %1984 = vrot.lane.b32.xlu0 %v594, 16
      %v1985 = vpop.permute.xlu0 %1984
      %1986 = vrot.lane.b32.xlu0 %v601, 16
      %v1987 = vpop.permute.xlu0 %1986
      %1988 = vrot.lane.b32.xlu0 %v608, 16
      %v1989 = vpop.permute.xlu0 %1988
      %1990 = vrot.lane.b32.xlu0 %v615, 16
      %v1991 = vpop.permute.xlu0 %1990
      %1992 = vrot.lane.b32.xlu0 %v622, 16
      %v1993 = vpop.permute.xlu0 %1992
      %1994 = vrot.lane.b32.xlu0 %v629, 16
      %v1995 = vpop.permute.xlu0 %1994
      %1996 = vrot.lane.b32.xlu0 %v636, 16
      %v1997 = vpop.permute.xlu0 %1996
      %1998 = vrot.lane.b32.xlu0 %v643, 16
      %v1999 = vpop.permute.xlu0 %1998
      %2000 = vrot.lane.b32.xlu0 %v650, 16
      %v2001 = vpop.permute.xlu0 %2000
      %2002 = vrot.lane.b32.xlu0 %v657, 16
      %v2003 = vpop.permute.xlu0 %2002
      %v2036 = vunpack.c.l.b16 %v1876
      %v2037 = vunpack.c.l.b16 %v1877
      %v2038 = vunpack.c.l.b16 %v1878
      %v2039 = vunpack.c.l.b16 %v1879
      %v2040 = vunpack.c.l.b16 %v1880
      %v2041 = vunpack.c.l.b16 %v1881
      %v2042 = vunpack.c.l.b16 %v1882
      %v2043 = vunpack.c.l.b16 %v1883
      %v2044 = vunpack.c.l.b16 %v1884
      %v2045 = vunpack.c.l.b16 %v1885
      %v2046 = vunpack.c.l.b16 %v1886
      %v2047 = vunpack.c.l.b16 %v1887
      %v2048 = vunpack.c.l.b16 %v1888
      %v2049 = vunpack.c.l.b16 %v1889
      %v2050 = vunpack.c.l.b16 %v1890
      %v2051 = vunpack.c.l.b16 %v1891
      %v2052 = vunpack.c.l.b16 %v1892
      %v2053 = vunpack.c.l.b16 %v1893
      %v2054 = vunpack.c.l.b16 %v1894
      %v2055 = vunpack.c.l.b16 %v1895
      %v2056 = vunpack.c.l.b16 %v1896
      %v2057 = vunpack.c.l.b16 %v1897
      %v2058 = vunpack.c.l.b16 %v1898
      %v2059 = vunpack.c.l.b16 %v1899
      %v2060 = vunpack.c.l.b16 %v1900
      %v2061 = vunpack.c.l.b16 %v1901
      %v2062 = vunpack.c.l.b16 %v1902
      %v2063 = vunpack.c.l.b16 %v1903
      %v2064 = vunpack.c.l.b16 %v1904
      %v2065 = vunpack.c.l.b16 %v1905
      %v2066 = vunpack.c.l.b16 %v1906
      %v2067 = vunpack.c.l.b16 %v1907
      %v2068 = vpack.c.b16 %v2037, %v2036
      %v2069 = vpack.c.b16 %v2039, %v2038
      %v2070 = vpack.c.b16 %v2041, %v2040
      %v2071 = vpack.c.b16 %v2043, %v2042
      %v2072 = vpack.c.b16 %v2045, %v2044
      %v2073 = vpack.c.b16 %v2047, %v2046
      %v2074 = vpack.c.b16 %v2049, %v2048
      %v2075 = vpack.c.b16 %v2051, %v2050
      %v2076 = vpack.c.b16 %v2053, %v2052
      %v2077 = vpack.c.b16 %v2055, %v2054
      %v2078 = vpack.c.b16 %v2057, %v2056
      %v2079 = vpack.c.b16 %v2059, %v2058
      %v2080 = vpack.c.b16 %v2061, %v2060
      %v2081 = vpack.c.b16 %v2063, %v2062
      %v2082 = vpack.c.b16 %v2065, %v2064
      %v2083 = vpack.c.b16 %v2067, %v2066
      %v2085 = vshrl.u32 %v2068, 16
      %v2087 = vshll.u32 %v2068, 16
      %v2089 = vrot.slane %v2087, 1
      %v2090 = vor.u32 %v2085, %v2089
      %v2092 = vshrl.u32 %v2069, 16
      %v2094 = vshll.u32 %v2069, 16
      %v2096 = vrot.slane %v2094, 1
      %v2097 = vor.u32 %v2092, %v2096
      %v2099 = vshrl.u32 %v2070, 16
      %v2101 = vshll.u32 %v2070, 16
      %v2103 = vrot.slane %v2101, 1
      %v2104 = vor.u32 %v2099, %v2103
      %v2106 = vshrl.u32 %v2071, 16
      %v2108 = vshll.u32 %v2071, 16
      %v2110 = vrot.slane %v2108, 1
      %v2111 = vor.u32 %v2106, %v2110
      %v2113 = vshrl.u32 %v2072, 16
      %v2115 = vshll.u32 %v2072, 16
      %v2117 = vrot.slane %v2115, 1
      %v2118 = vor.u32 %v2113, %v2117
      %v2120 = vshrl.u32 %v2073, 16
      %v2122 = vshll.u32 %v2073, 16
      %v2124 = vrot.slane %v2122, 1
      %v2125 = vor.u32 %v2120, %v2124
      %v2127 = vshrl.u32 %v2074, 16
      %v2129 = vshll.u32 %v2074, 16
      %v2131 = vrot.slane %v2129, 1
      %v2132 = vor.u32 %v2127, %v2131
      %v2134 = vshrl.u32 %v2075, 16
      %v2136 = vshll.u32 %v2075, 16
      %v2138 = vrot.slane %v2136, 1
      %v2139 = vor.u32 %v2134, %v2138
      %v2141 = vshrl.u32 %v2076, 16
      %v2143 = vshll.u32 %v2076, 16
      %v2145 = vrot.slane %v2143, 1
      %v2146 = vor.u32 %v2141, %v2145
      %v2148 = vshrl.u32 %v2077, 16
      %v2150 = vshll.u32 %v2077, 16
      %v2152 = vrot.slane %v2150, 1
      %v2153 = vor.u32 %v2148, %v2152
      %v2155 = vshrl.u32 %v2078, 16
      %v2157 = vshll.u32 %v2078, 16
      %v2159 = vrot.slane %v2157, 1
      %v2160 = vor.u32 %v2155, %v2159
      %v2162 = vshrl.u32 %v2079, 16
      %v2164 = vshll.u32 %v2079, 16
      %v2166 = vrot.slane %v2164, 1
      %v2167 = vor.u32 %v2162, %v2166
      %v2169 = vshrl.u32 %v2080, 16
      %v2171 = vshll.u32 %v2080, 16
      %v2173 = vrot.slane %v2171, 1
      %v2174 = vor.u32 %v2169, %v2173
      %v2176 = vshrl.u32 %v2081, 16
      %v2178 = vshll.u32 %v2081, 16
      %v2180 = vrot.slane %v2178, 1
      %v2181 = vor.u32 %v2176, %v2180
      %v2183 = vshrl.u32 %v2082, 16
      %v2185 = vshll.u32 %v2082, 16
      %v2187 = vrot.slane %v2185, 1
      %v2188 = vor.u32 %v2183, %v2187
      %v2190 = vshrl.u32 %v2083, 16
      %v2192 = vshll.u32 %v2083, 16
      %v2194 = vrot.slane %v2192, 1
      %v2195 = vor.u32 %v2190, %v2194
      %2196 = vrot.lane.b32.xlu0 %v2090, 32
      %v2197 = vpop.permute.xlu0 %2196
      %2198 = vrot.lane.b32.xlu0 %v2097, 32
      %v2199 = vpop.permute.xlu0 %2198
      %2200 = vrot.lane.b32.xlu0 %v2104, 32
      %v2201 = vpop.permute.xlu0 %2200
      %2202 = vrot.lane.b32.xlu0 %v2111, 32
      %v2203 = vpop.permute.xlu0 %2202
      %2204 = vrot.lane.b32.xlu0 %v2118, 32
      %v2205 = vpop.permute.xlu0 %2204
      %2206 = vrot.lane.b32.xlu0 %v2125, 32
      %v2207 = vpop.permute.xlu0 %2206
      %2208 = vrot.lane.b32.xlu0 %v2132, 32
      %v2209 = vpop.permute.xlu0 %2208
      %2210 = vrot.lane.b32.xlu0 %v2139, 32
      %v2211 = vpop.permute.xlu0 %2210
      %2212 = vrot.lane.b32.xlu0 %v2146, 32
      %v2213 = vpop.permute.xlu0 %2212
      %2214 = vrot.lane.b32.xlu0 %v2153, 32
      %v2215 = vpop.permute.xlu0 %2214
      %2216 = vrot.lane.b32.xlu0 %v2160, 32
      %v2217 = vpop.permute.xlu0 %2216
      %2218 = vrot.lane.b32.xlu0 %v2167, 32
      %v2219 = vpop.permute.xlu0 %2218
      %2220 = vrot.lane.b32.xlu0 %v2174, 32
      %v2221 = vpop.permute.xlu0 %2220
      %2222 = vrot.lane.b32.xlu0 %v2181, 32
      %v2223 = vpop.permute.xlu0 %2222
      %2224 = vrot.lane.b32.xlu0 %v2188, 32
      %v2225 = vpop.permute.xlu0 %2224
      %2226 = vrot.lane.b32.xlu0 %v2195, 32
      %v2227 = vpop.permute.xlu0 %2226
      %2228 = vrot.lane.b32.xlu0 %v802, 48
      %v2229 = vpop.permute.xlu0 %2228
      %2230 = vrot.lane.b32.xlu0 %v803, 48
      %v2231 = vpop.permute.xlu0 %2230
      %2232 = vrot.lane.b32.xlu0 %v804, 48
      %v2233 = vpop.permute.xlu0 %2232
      %2234 = vrot.lane.b32.xlu0 %v805, 48
      %v2235 = vpop.permute.xlu0 %2234
      %2236 = vrot.lane.b32.xlu0 %v806, 48
      %v2237 = vpop.permute.xlu0 %2236
      %2238 = vrot.lane.b32.xlu0 %v807, 48
      %v2239 = vpop.permute.xlu0 %2238
      %2240 = vrot.lane.b32.xlu0 %v808, 48
      %v2241 = vpop.permute.xlu0 %2240
      %2242 = vrot.lane.b32.xlu0 %v809, 48
      %v2243 = vpop.permute.xlu0 %2242
      %2244 = vrot.lane.b32.xlu0 %v810, 48
      %v2245 = vpop.permute.xlu0 %2244
      %2246 = vrot.lane.b32.xlu0 %v811, 48
      %v2247 = vpop.permute.xlu0 %2246
      %2248 = vrot.lane.b32.xlu0 %v812, 48
      %v2249 = vpop.permute.xlu0 %2248
      %2250 = vrot.lane.b32.xlu0 %v813, 48
      %v2251 = vpop.permute.xlu0 %2250
      %2252 = vrot.lane.b32.xlu0 %v814, 48
      %v2253 = vpop.permute.xlu0 %2252
      %2254 = vrot.lane.b32.xlu0 %v815, 48
      %v2255 = vpop.permute.xlu0 %2254
      %2256 = vrot.lane.b32.xlu0 %v816, 48
      %v2257 = vpop.permute.xlu0 %2256
      %2258 = vrot.lane.b32.xlu0 %v817, 48
      %v2259 = vpop.permute.xlu0 %2258
      %2260 = vrot.lane.b32.xlu0 %v904, 64
      %v2261 = vpop.permute.xlu0 %2260
      %2262 = vrot.lane.b32.xlu0 %v911, 64
      %v2263 = vpop.permute.xlu0 %2262
      %2264 = vrot.lane.b32.xlu0 %v918, 64
      %v2265 = vpop.permute.xlu0 %2264
      %2266 = vrot.lane.b32.xlu0 %v925, 64
      %v2267 = vpop.permute.xlu0 %2266
      %2268 = vrot.lane.b32.xlu0 %v932, 64
      %v2269 = vpop.permute.xlu0 %2268
      %2270 = vrot.lane.b32.xlu0 %v939, 64
      %v2271 = vpop.permute.xlu0 %2270
      %2272 = vrot.lane.b32.xlu0 %v946, 64
      %v2273 = vpop.permute.xlu0 %2272
      %2274 = vrot.lane.b32.xlu0 %v953, 64
      %v2275 = vpop.permute.xlu0 %2274
      %2276 = vrot.lane.b32.xlu0 %v960, 64
      %v2277 = vpop.permute.xlu0 %2276
      %2278 = vrot.lane.b32.xlu0 %v967, 64
      %v2279 = vpop.permute.xlu0 %2278
      %2280 = vrot.lane.b32.xlu0 %v974, 64
      %v2281 = vpop.permute.xlu0 %2280
      %2282 = vrot.lane.b32.xlu0 %v981, 64
      %v2283 = vpop.permute.xlu0 %2282
      %2284 = vrot.lane.b32.xlu0 %v988, 64
      %v2285 = vpop.permute.xlu0 %2284
      %2286 = vrot.lane.b32.xlu0 %v995, 64
      %v2287 = vpop.permute.xlu0 %2286
      %2288 = vrot.lane.b32.xlu0 %v1002, 64
      %v2289 = vpop.permute.xlu0 %2288
      %2290 = vrot.lane.b32.xlu0 %v1009, 64
      %v2291 = vpop.permute.xlu0 %2290
      %v2324 = vunpack.c.l.b16 %v1908
      %v2325 = vunpack.c.l.b16 %v1909
      %v2326 = vunpack.c.l.b16 %v1910
      %v2327 = vunpack.c.l.b16 %v1911
      %v2328 = vunpack.c.l.b16 %v1912
      %v2329 = vunpack.c.l.b16 %v1913
      %v2330 = vunpack.c.l.b16 %v1914
      %v2331 = vunpack.c.l.b16 %v1915
      %v2332 = vunpack.c.l.b16 %v1916
      %v2333 = vunpack.c.l.b16 %v1917
      %v2334 = vunpack.c.l.b16 %v1918
      %v2335 = vunpack.c.l.b16 %v1919
      %v2336 = vunpack.c.l.b16 %v1920
      %v2337 = vunpack.c.l.b16 %v1921
      %v2338 = vunpack.c.l.b16 %v1922
      %v2339 = vunpack.c.l.b16 %v1923
      %v2340 = vunpack.c.l.b16 %v1924
      %v2341 = vunpack.c.l.b16 %v1925
      %v2342 = vunpack.c.l.b16 %v1926
      %v2343 = vunpack.c.l.b16 %v1927
      %v2344 = vunpack.c.l.b16 %v1928
      %v2345 = vunpack.c.l.b16 %v1929
      %v2346 = vunpack.c.l.b16 %v1930
      %v2347 = vunpack.c.l.b16 %v1931
      %v2348 = vunpack.c.l.b16 %v1932
      %v2349 = vunpack.c.l.b16 %v1933
      %v2350 = vunpack.c.l.b16 %v1934
      %v2351 = vunpack.c.l.b16 %v1935
      %v2352 = vunpack.c.l.b16 %v1936
      %v2353 = vunpack.c.l.b16 %v1937
      %v2354 = vunpack.c.l.b16 %v1938
      %v2355 = vunpack.c.l.b16 %v1939
      %v2356 = vpack.c.b16 %v2325, %v2324
      %v2357 = vpack.c.b16 %v2327, %v2326
      %v2358 = vpack.c.b16 %v2329, %v2328
      %v2359 = vpack.c.b16 %v2331, %v2330
      %v2360 = vpack.c.b16 %v2333, %v2332
      %v2361 = vpack.c.b16 %v2335, %v2334
      %v2362 = vpack.c.b16 %v2337, %v2336
      %v2363 = vpack.c.b16 %v2339, %v2338
      %v2364 = vpack.c.b16 %v2341, %v2340
      %v2365 = vpack.c.b16 %v2343, %v2342
      %v2366 = vpack.c.b16 %v2345, %v2344
      %v2367 = vpack.c.b16 %v2347, %v2346
      %v2368 = vpack.c.b16 %v2349, %v2348
      %v2369 = vpack.c.b16 %v2351, %v2350
      %v2370 = vpack.c.b16 %v2353, %v2352
      %v2371 = vpack.c.b16 %v2355, %v2354
      %v2373 = vshrl.u32 %v2356, 16
      %v2375 = vshll.u32 %v2356, 16
      %v2377 = vrot.slane %v2375, 1
      %v2378 = vor.u32 %v2373, %v2377
      %v2380 = vshrl.u32 %v2357, 16
      %v2382 = vshll.u32 %v2357, 16
      %v2384 = vrot.slane %v2382, 1
      %v2385 = vor.u32 %v2380, %v2384
      %v2387 = vshrl.u32 %v2358, 16
      %v2389 = vshll.u32 %v2358, 16
      %v2391 = vrot.slane %v2389, 1
      %v2392 = vor.u32 %v2387, %v2391
      %v2394 = vshrl.u32 %v2359, 16
      %v2396 = vshll.u32 %v2359, 16
      %v2398 = vrot.slane %v2396, 1
      %v2399 = vor.u32 %v2394, %v2398
      %v2401 = vshrl.u32 %v2360, 16
      %v2403 = vshll.u32 %v2360, 16
      %v2405 = vrot.slane %v2403, 1
      %v2406 = vor.u32 %v2401, %v2405
      %v2408 = vshrl.u32 %v2361, 16
      %v2410 = vshll.u32 %v2361, 16
      %v2412 = vrot.slane %v2410, 1
      %v2413 = vor.u32 %v2408, %v2412
      %v2415 = vshrl.u32 %v2362, 16
      %v2417 = vshll.u32 %v2362, 16
      %v2419 = vrot.slane %v2417, 1
      %v2420 = vor.u32 %v2415, %v2419
      %v2422 = vshrl.u32 %v2363, 16
      %v2424 = vshll.u32 %v2363, 16
      %v2426 = vrot.slane %v2424, 1
      %v2427 = vor.u32 %v2422, %v2426
      %v2429 = vshrl.u32 %v2364, 16
      %v2431 = vshll.u32 %v2364, 16
      %v2433 = vrot.slane %v2431, 1
      %v2434 = vor.u32 %v2429, %v2433
      %v2436 = vshrl.u32 %v2365, 16
      %v2438 = vshll.u32 %v2365, 16
      %v2440 = vrot.slane %v2438, 1
      %v2441 = vor.u32 %v2436, %v2440
      %v2443 = vshrl.u32 %v2366, 16
      %v2445 = vshll.u32 %v2366, 16
      %v2447 = vrot.slane %v2445, 1
      %v2448 = vor.u32 %v2443, %v2447
      %v2450 = vshrl.u32 %v2367, 16
      %v2452 = vshll.u32 %v2367, 16
      %v2454 = vrot.slane %v2452, 1
      %v2455 = vor.u32 %v2450, %v2454
      %v2457 = vshrl.u32 %v2368, 16
      %v2459 = vshll.u32 %v2368, 16
      %v2461 = vrot.slane %v2459, 1
      %v2462 = vor.u32 %v2457, %v2461
      %v2464 = vshrl.u32 %v2369, 16
      %v2466 = vshll.u32 %v2369, 16
      %v2468 = vrot.slane %v2466, 1
      %v2469 = vor.u32 %v2464, %v2468
      %v2471 = vshrl.u32 %v2370, 16
      %v2473 = vshll.u32 %v2370, 16
      %v2475 = vrot.slane %v2473, 1
      %v2476 = vor.u32 %v2471, %v2475
      %v2478 = vshrl.u32 %v2371, 16
      %v2480 = vshll.u32 %v2371, 16
      %v2482 = vrot.slane %v2480, 1
      %v2483 = vor.u32 %v2478, %v2482
      %2484 = vrot.lane.b32.xlu0 %v2378, 80
      %v2485 = vpop.permute.xlu0 %2484
      %2486 = vrot.lane.b32.xlu0 %v2385, 80
      %v2487 = vpop.permute.xlu0 %2486
      %2488 = vrot.lane.b32.xlu0 %v2392, 80
      %v2489 = vpop.permute.xlu0 %2488
      %2490 = vrot.lane.b32.xlu0 %v2399, 80
      %v2491 = vpop.permute.xlu0 %2490
      %2492 = vrot.lane.b32.xlu0 %v2406, 80
      %v2493 = vpop.permute.xlu0 %2492
      %2494 = vrot.lane.b32.xlu0 %v2413, 80
      %v2495 = vpop.permute.xlu0 %2494
      %2496 = vrot.lane.b32.xlu0 %v2420, 80
      %v2497 = vpop.permute.xlu0 %2496
      %2498 = vrot.lane.b32.xlu0 %v2427, 80
      %v2499 = vpop.permute.xlu0 %2498
      %2500 = vrot.lane.b32.xlu0 %v2434, 80
      %v2501 = vpop.permute.xlu0 %2500
      %2502 = vrot.lane.b32.xlu0 %v2441, 80
      %v2503 = vpop.permute.xlu0 %2502
      %2504 = vrot.lane.b32.xlu0 %v2448, 80
      %v2505 = vpop.permute.xlu0 %2504
      %2506 = vrot.lane.b32.xlu0 %v2455, 80
      %v2507 = vpop.permute.xlu0 %2506
      %2508 = vrot.lane.b32.xlu0 %v2462, 80
      %v2509 = vpop.permute.xlu0 %2508
      %2510 = vrot.lane.b32.xlu0 %v2469, 80
      %v2511 = vpop.permute.xlu0 %2510
      %2512 = vrot.lane.b32.xlu0 %v2476, 80
      %v2513 = vpop.permute.xlu0 %2512
      %2514 = vrot.lane.b32.xlu0 %v2483, 80
      %v2515 = vpop.permute.xlu0 %2514
      %2516 = vrot.lane.b32.xlu0 %v1154, 96
      %v2517 = vpop.permute.xlu0 %2516
      %2518 = vrot.lane.b32.xlu0 %v1155, 96
      %v2519 = vpop.permute.xlu0 %2518
      %2520 = vrot.lane.b32.xlu0 %v1156, 96
      %v2521 = vpop.permute.xlu0 %2520
      %2522 = vrot.lane.b32.xlu0 %v1157, 96
      %v2523 = vpop.permute.xlu0 %2522
      %2524 = vrot.lane.b32.xlu0 %v1158, 96
      %v2525 = vpop.permute.xlu0 %2524
      %2526 = vrot.lane.b32.xlu0 %v1159, 96
      %v2527 = vpop.permute.xlu0 %2526
      %2528 = vrot.lane.b32.xlu0 %v1160, 96
      %v2529 = vpop.permute.xlu0 %2528
      %2530 = vrot.lane.b32.xlu0 %v1161, 96
      %v2531 = vpop.permute.xlu0 %2530
      %2532 = vrot.lane.b32.xlu0 %v1162, 96
      %v2533 = vpop.permute.xlu0 %2532
      %2534 = vrot.lane.b32.xlu0 %v1163, 96
      %v2535 = vpop.permute.xlu0 %2534
      %2536 = vrot.lane.b32.xlu0 %v1164, 96
      %v2537 = vpop.permute.xlu0 %2536
      %2538 = vrot.lane.b32.xlu0 %v1165, 96
      %v2539 = vpop.permute.xlu0 %2538
      %2540 = vrot.lane.b32.xlu0 %v1166, 96
      %v2541 = vpop.permute.xlu0 %2540
      %2542 = vrot.lane.b32.xlu0 %v1167, 96
      %v2543 = vpop.permute.xlu0 %2542
      %2544 = vrot.lane.b32.xlu0 %v1168, 96
      %v2545 = vpop.permute.xlu0 %2544
      %2546 = vrot.lane.b32.xlu0 %v1169, 96
      %v2547 = vpop.permute.xlu0 %2546
      %2548 = vrot.lane.b32.xlu0 %v1256, 112
      %v2549 = vpop.permute.xlu0 %2548
      %2550 = vrot.lane.b32.xlu0 %v1263, 112
      %v2551 = vpop.permute.xlu0 %2550
      %2552 = vrot.lane.b32.xlu0 %v1270, 112
      %v2553 = vpop.permute.xlu0 %2552
      %2554 = vrot.lane.b32.xlu0 %v1277, 112
      %v2555 = vpop.permute.xlu0 %2554
      %2556 = vrot.lane.b32.xlu0 %v1284, 112
      %v2557 = vpop.permute.xlu0 %2556
      %2558 = vrot.lane.b32.xlu0 %v1291, 112
      %v2559 = vpop.permute.xlu0 %2558
      %2560 = vrot.lane.b32.xlu0 %v1298, 112
      %v2561 = vpop.permute.xlu0 %2560
      %2562 = vrot.lane.b32.xlu0 %v1305, 112
      %v2563 = vpop.permute.xlu0 %2562
      %2564 = vrot.lane.b32.xlu0 %v1312, 112
      %v2565 = vpop.permute.xlu0 %2564
      %2566 = vrot.lane.b32.xlu0 %v1319, 112
      %v2567 = vpop.permute.xlu0 %2566
      %2568 = vrot.lane.b32.xlu0 %v1326, 112
      %v2569 = vpop.permute.xlu0 %2568
      %2570 = vrot.lane.b32.xlu0 %v1333, 112
      %v2571 = vpop.permute.xlu0 %2570
      %2572 = vrot.lane.b32.xlu0 %v1340, 112
      %v2573 = vpop.permute.xlu0 %2572
      %2574 = vrot.lane.b32.xlu0 %v1347, 112
      %v2575 = vpop.permute.xlu0 %2574
      %2576 = vrot.lane.b32.xlu0 %v1354, 112
      %v2577 = vpop.permute.xlu0 %2576
      %2578 = vrot.lane.b32.xlu0 %v1361, 112
      %v2579 = vpop.permute.xlu0 %2578
      %v2612 = vunpack.c.l.b16 %v1940
      %v2613 = vunpack.c.l.b16 %v1941
      %v2614 = vunpack.c.l.b16 %v1942
      %v2615 = vunpack.c.l.b16 %v1943
      %v2616 = vunpack.c.l.b16 %v1944
      %v2617 = vunpack.c.l.b16 %v1945
      %v2618 = vunpack.c.l.b16 %v1946
      %v2619 = vunpack.c.l.b16 %v1947
      %v2620 = vunpack.c.l.b16 %v1948
      %v2621 = vunpack.c.l.b16 %v1949
      %v2622 = vunpack.c.l.b16 %v1950
      %v2623 = vunpack.c.l.b16 %v1951
      %v2624 = vunpack.c.l.b16 %v1952
      %v2625 = vunpack.c.l.b16 %v1953
      %v2626 = vunpack.c.l.b16 %v1954
      %v2627 = vunpack.c.l.b16 %v1955
      %v2628 = vunpack.c.l.b16 %v1956
      %v2629 = vunpack.c.l.b16 %v1957
      %v2630 = vunpack.c.l.b16 %v1958
      %v2631 = vunpack.c.l.b16 %v1959
      %v2632 = vunpack.c.l.b16 %v1960
      %v2633 = vunpack.c.l.b16 %v1961
      %v2634 = vunpack.c.l.b16 %v1962
      %v2635 = vunpack.c.l.b16 %v1963
      %v2636 = vunpack.c.l.b16 %v1964
      %v2637 = vunpack.c.l.b16 %v1965
      %v2638 = vunpack.c.l.b16 %v1966
      %v2639 = vunpack.c.l.b16 %v1967
      %v2640 = vunpack.c.l.b16 %v1968
      %v2641 = vunpack.c.l.b16 %v1969
      %v2642 = vunpack.c.l.b16 %v1970
      %v2643 = vunpack.c.l.b16 %v1971
      %v2644 = vpack.c.b16 %v2613, %v2612
      %v2645 = vpack.c.b16 %v2615, %v2614
      %v2646 = vpack.c.b16 %v2617, %v2616
      %v2647 = vpack.c.b16 %v2619, %v2618
      %v2648 = vpack.c.b16 %v2621, %v2620
      %v2649 = vpack.c.b16 %v2623, %v2622
      %v2650 = vpack.c.b16 %v2625, %v2624
      %v2651 = vpack.c.b16 %v2627, %v2626
      %v2652 = vpack.c.b16 %v2629, %v2628
      %v2653 = vpack.c.b16 %v2631, %v2630
      %v2654 = vpack.c.b16 %v2633, %v2632
      %v2655 = vpack.c.b16 %v2635, %v2634
      %v2656 = vpack.c.b16 %v2637, %v2636
      %v2657 = vpack.c.b16 %v2639, %v2638
      %v2658 = vpack.c.b16 %v2641, %v2640
      %v2659 = vpack.c.b16 %v2643, %v2642
      %v2661 = vshrl.u32 %v2644, 16
      %v2663 = vshll.u32 %v2644, 16
      %v2665 = vrot.slane %v2663, 1
      %v2666 = vor.u32 %v2661, %v2665
      %v2668 = vshrl.u32 %v2645, 16
      %v2670 = vshll.u32 %v2645, 16
      %v2672 = vrot.slane %v2670, 1
      %v2673 = vor.u32 %v2668, %v2672
      %v2675 = vshrl.u32 %v2646, 16
      %v2677 = vshll.u32 %v2646, 16
      %v2679 = vrot.slane %v2677, 1
      %v2680 = vor.u32 %v2675, %v2679
      %v2682 = vshrl.u32 %v2647, 16
      %v2684 = vshll.u32 %v2647, 16
      %v2686 = vrot.slane %v2684, 1
      %v2687 = vor.u32 %v2682, %v2686
      %v2689 = vshrl.u32 %v2648, 16
      %v2691 = vshll.u32 %v2648, 16
      %v2693 = vrot.slane %v2691, 1
      %v2694 = vor.u32 %v2689, %v2693
      %v2696 = vshrl.u32 %v2649, 16
      %v2698 = vshll.u32 %v2649, 16
      %v2700 = vrot.slane %v2698, 1
      %v2701 = vor.u32 %v2696, %v2700
      %v2703 = vshrl.u32 %v2650, 16
      %v2705 = vshll.u32 %v2650, 16
      %v2707 = vrot.slane %v2705, 1
      %v2708 = vor.u32 %v2703, %v2707
      %v2710 = vshrl.u32 %v2651, 16
      %v2712 = vshll.u32 %v2651, 16
      %v2714 = vrot.slane %v2712, 1
      %v2715 = vor.u32 %v2710, %v2714
      %v2717 = vshrl.u32 %v2652, 16
      %v2719 = vshll.u32 %v2652, 16
      %v2721 = vrot.slane %v2719, 1
      %v2722 = vor.u32 %v2717, %v2721
      %v2724 = vshrl.u32 %v2653, 16
      %v2726 = vshll.u32 %v2653, 16
      %v2728 = vrot.slane %v2726, 1
      %v2729 = vor.u32 %v2724, %v2728
      %v2731 = vshrl.u32 %v2654, 16
      %v2733 = vshll.u32 %v2654, 16
      %v2735 = vrot.slane %v2733, 1
      %v2736 = vor.u32 %v2731, %v2735
      %v2738 = vshrl.u32 %v2655, 16
      %v2740 = vshll.u32 %v2655, 16
      %v2742 = vrot.slane %v2740, 1
      %v2743 = vor.u32 %v2738, %v2742
      %v2745 = vshrl.u32 %v2656, 16
      %v2747 = vshll.u32 %v2656, 16
      %v2749 = vrot.slane %v2747, 1
      %v2750 = vor.u32 %v2745, %v2749
      %v2752 = vshrl.u32 %v2657, 16
      %v2754 = vshll.u32 %v2657, 16
      %v2756 = vrot.slane %v2754, 1
      %v2757 = vor.u32 %v2752, %v2756
      %v2759 = vshrl.u32 %v2658, 16
      %v2761 = vshll.u32 %v2658, 16
      %v2763 = vrot.slane %v2761, 1
      %v2764 = vor.u32 %v2759, %v2763
      %v2766 = vshrl.u32 %v2659, 16
      %v2768 = vshll.u32 %v2659, 16
      %v2770 = vrot.slane %v2768, 1
      %v2771 = vor.u32 %v2766, %v2770
      %v2774 = vsel %vm1362, %v254, %v1973
      %v2777 = vsel %vm1362, %v255, %v1975
      %v2780 = vsel %vm1362, %v256, %v1977
      %v2783 = vsel %vm1362, %v257, %v1979
      %v2786 = vsel %vm1362, %v258, %v1981
      %v2789 = vsel %vm1362, %v259, %v1983
      %v2792 = vsel %vm1362, %v260, %v1985
      %v2795 = vsel %vm1362, %v261, %v1987
      %v2798 = vsel %vm1362, %v262, %v1989
      %v2801 = vsel %vm1362, %v263, %v1991
      %v2804 = vsel %vm1362, %v264, %v1993
      %v2807 = vsel %vm1362, %v265, %v1995
      %v2810 = vsel %vm1362, %v266, %v1997
      %v2813 = vsel %vm1362, %v267, %v1999
      %v2816 = vsel %vm1362, %v268, %v2001
      %v2819 = vsel %vm1362, %v269, %v2003
      %v2821 = vsel %vm1411, %v2774, %v2197
      %v2823 = vsel %vm1411, %v2777, %v2199
      %v2825 = vsel %vm1411, %v2780, %v2201
      %v2827 = vsel %vm1411, %v2783, %v2203
      %v2829 = vsel %vm1411, %v2786, %v2205
      %v2831 = vsel %vm1411, %v2789, %v2207
      %v2833 = vsel %vm1411, %v2792, %v2209
      %v2835 = vsel %vm1411, %v2795, %v2211
      %v2837 = vsel %vm1411, %v2798, %v2213
      %v2839 = vsel %vm1411, %v2801, %v2215
      %v2841 = vsel %vm1411, %v2804, %v2217
      %v2843 = vsel %vm1411, %v2807, %v2219
      %v2845 = vsel %vm1411, %v2810, %v2221
      %v2847 = vsel %vm1411, %v2813, %v2223
      %v2849 = vsel %vm1411, %v2816, %v2225
      %v2851 = vsel %vm1411, %v2819, %v2227
      %v2853 = vsel %vm1444, %v2821, %v2229
      %v2855 = vsel %vm1444, %v2823, %v2231
      %v2857 = vsel %vm1444, %v2825, %v2233
      %v2859 = vsel %vm1444, %v2827, %v2235
      %v2861 = vsel %vm1444, %v2829, %v2237
      %v2863 = vsel %vm1444, %v2831, %v2239
      %v2865 = vsel %vm1444, %v2833, %v2241
      %v2867 = vsel %vm1444, %v2835, %v2243
      %v2869 = vsel %vm1444, %v2837, %v2245
      %v2871 = vsel %vm1444, %v2839, %v2247
      %v2873 = vsel %vm1444, %v2841, %v2249
      %v2875 = vsel %vm1444, %v2843, %v2251
      %v2877 = vsel %vm1444, %v2845, %v2253
      %v2879 = vsel %vm1444, %v2847, %v2255
      %v2881 = vsel %vm1444, %v2849, %v2257
      %v2883 = vsel %vm1444, %v2851, %v2259
      %v2885 = vsel %vm1477, %v2853, %v2261
      %v2887 = vsel %vm1477, %v2855, %v2263
      %v2889 = vsel %vm1477, %v2857, %v2265
      %v2891 = vsel %vm1477, %v2859, %v2267
      %v2893 = vsel %vm1477, %v2861, %v2269
      %v2895 = vsel %vm1477, %v2863, %v2271
      %v2897 = vsel %vm1477, %v2865, %v2273
      %v2899 = vsel %vm1477, %v2867, %v2275
      %v2901 = vsel %vm1477, %v2869, %v2277
      %v2903 = vsel %vm1477, %v2871, %v2279
      %v2905 = vsel %vm1477, %v2873, %v2281
      %v2907 = vsel %vm1477, %v2875, %v2283
      %v2909 = vsel %vm1477, %v2877, %v2285
      %v2911 = vsel %vm1477, %v2879, %v2287
      %v2913 = vsel %vm1477, %v2881, %v2289
      %v2915 = vsel %vm1477, %v2883, %v2291
      %v2917 = vsel %vm1510, %v2885, %v2485
      %v2919 = vsel %vm1510, %v2887, %v2487
      %v2921 = vsel %vm1510, %v2889, %v2489
      %v2923 = vsel %vm1510, %v2891, %v2491
      %v2925 = vsel %vm1510, %v2893, %v2493
      %v2927 = vsel %vm1510, %v2895, %v2495
      %v2929 = vsel %vm1510, %v2897, %v2497
      %v2931 = vsel %vm1510, %v2899, %v2499
      %v2933 = vsel %vm1510, %v2901, %v2501
      %v2935 = vsel %vm1510, %v2903, %v2503
      %v2937 = vsel %vm1510, %v2905, %v2505
      %v2939 = vsel %vm1510, %v2907, %v2507
      %v2941 = vsel %vm1510, %v2909, %v2509
      %v2943 = vsel %vm1510, %v2911, %v2511
      %v2945 = vsel %vm1510, %v2913, %v2513
      %v2947 = vsel %vm1510, %v2915, %v2515
      %v2949 = vsel %vm1543, %v2917, %v2517
      %v2951 = vsel %vm1543, %v2919, %v2519
      %v2953 = vsel %vm1543, %v2921, %v2521
      %v2955 = vsel %vm1543, %v2923, %v2523
      %v2957 = vsel %vm1543, %v2925, %v2525
      %v2959 = vsel %vm1543, %v2927, %v2527
      %v2961 = vsel %vm1543, %v2929, %v2529
      %v2963 = vsel %vm1543, %v2931, %v2531
      %v2965 = vsel %vm1543, %v2933, %v2533
      %v2967 = vsel %vm1543, %v2935, %v2535
      %v2969 = vsel %vm1543, %v2937, %v2537
      %v2971 = vsel %vm1543, %v2939, %v2539
      %v2973 = vsel %vm1543, %v2941, %v2541
      %v2975 = vsel %vm1543, %v2943, %v2543
      %v2977 = vsel %vm1543, %v2945, %v2545
      %v2979 = vsel %vm1543, %v2947, %v2547
      %v2981 = vsel %vm1576, %v2949, %v2549
      %v2983 = vsel %vm1576, %v2951, %v2551
      %v2985 = vsel %vm1576, %v2953, %v2553
      %v2987 = vsel %vm1576, %v2955, %v2555
      %v2989 = vsel %vm1576, %v2957, %v2557
      %v2991 = vsel %vm1576, %v2959, %v2559
      %v2993 = vsel %vm1576, %v2961, %v2561
      %v2995 = vsel %vm1576, %v2963, %v2563
      %v2997 = vsel %vm1576, %v2965, %v2565
      %v2999 = vsel %vm1576, %v2967, %v2567
      %v3001 = vsel %vm1576, %v2969, %v2569
      %v3003 = vsel %vm1576, %v2971, %v2571
      %v3005 = vsel %vm1576, %v2973, %v2573
      %v3007 = vsel %vm1576, %v2975, %v2575
      %v3009 = vsel %vm1576, %v2977, %v2577
      %v3011 = vsel %vm1576, %v2979, %v2579
      %v3028 = vunpack.c.l.b16 %v2981
      %v3029 = vunpack.c.l.b16 %v2666
      %v3030 = vunpack.c.l.b16 %v2983
      %v3031 = vunpack.c.l.b16 %v2673
      %v3032 = vunpack.c.l.b16 %v2985
      %v3033 = vunpack.c.l.b16 %v2680
      %v3034 = vunpack.c.l.b16 %v2987
      %v3035 = vunpack.c.l.b16 %v2687
      %v3036 = vunpack.c.l.b16 %v2989
      %v3037 = vunpack.c.l.b16 %v2694
      %v3038 = vunpack.c.l.b16 %v2991
      %v3039 = vunpack.c.l.b16 %v2701
      %v3040 = vunpack.c.l.b16 %v2993
      %v3041 = vunpack.c.l.b16 %v2708
      %v3042 = vunpack.c.l.b16 %v2995
      %v3043 = vunpack.c.l.b16 %v2715
      %v3044 = vunpack.c.l.b16 %v2997
      %v3045 = vunpack.c.l.b16 %v2722
      %v3046 = vunpack.c.l.b16 %v2999
      %v3047 = vunpack.c.l.b16 %v2729
      %v3048 = vunpack.c.l.b16 %v3001
      %v3049 = vunpack.c.l.b16 %v2736
      %v3050 = vunpack.c.l.b16 %v3003
      %v3051 = vunpack.c.l.b16 %v2743
      %v3052 = vunpack.c.l.b16 %v3005
      %v3053 = vunpack.c.l.b16 %v2750
      %v3054 = vunpack.c.l.b16 %v3007
      %v3055 = vunpack.c.l.b16 %v2757
      %v3056 = vunpack.c.l.b16 %v3009
      %v3057 = vunpack.c.l.b16 %v2764
      %v3058 = vunpack.c.l.b16 %v3011
      %v3059 = vunpack.c.l.b16 %v2771
      %v3060 = vpack.c.b16 %v3030, %v3028
      %v3061 = vpack.c.b16 %v3031, %v3029
      %v3062 = vpack.c.b16 %v3034, %v3032
      %v3063 = vpack.c.b16 %v3035, %v3033
      %v3064 = vpack.c.b16 %v3038, %v3036
      %v3065 = vpack.c.b16 %v3039, %v3037
      %v3066 = vpack.c.b16 %v3042, %v3040
      %v3067 = vpack.c.b16 %v3043, %v3041
      %v3068 = vpack.c.b16 %v3046, %v3044
      %v3069 = vpack.c.b16 %v3047, %v3045
      %v3070 = vpack.c.b16 %v3050, %v3048
      %v3071 = vpack.c.b16 %v3051, %v3049
      %v3072 = vpack.c.b16 %v3054, %v3052
      %v3073 = vpack.c.b16 %v3055, %v3053
      %v3074 = vpack.c.b16 %v3058, %v3056
      %v3075 = vpack.c.b16 %v3059, %v3057
      %v3085 = vsel %vm1362, %v3061, 0
      %v3088 = vsel %vm1362, %v3063, 0
      %v3091 = vsel %vm1362, %v3065, 0
      %v3094 = vsel %vm1362, %v3067, 0
      %v3097 = vsel %vm1362, %v3069, 0
      %v3100 = vsel %vm1362, %v3071, 0
      %v3103 = vsel %vm1362, %v3073, 0
      %v3106 = vsel %vm1362, %v3075, 0
      %3108 = vmatpush.bf16.msra.mxu0 %v1727
      %3109 = vmatpush.bf16.msra.mxu0 %v1726
      %3110 = vmatpush.bf16.msra.mxu0 %v1725
      %3111 = vmatpush.bf16.msra.mxu0 %v1724
      %3112 = vmatpush.bf16.msra.mxu0 %v1723
      %3113 = vmatpush.bf16.msra.mxu0 %v1722
      %3114 = vmatpush.bf16.msra.mxu0 %v1721
      %3115 = vmatpush.bf16.msra.mxu0 %v1720
      %3116 = vmatmul.bf16.gmra.mxu0 %v3060
      %v3117 = vpop.f32.mrf.mxu0
      %v3118 = vadd.f32 %v1658, %v3117
      %v3119 = vpop.f32.mrf.mxu0
      %v3120 = vadd.f32 %v1658, %v3119
      %3121 = vmatmul.bf16.gmra.mxu0 %v3062
      %v3122 = vpop.f32.mrf.mxu0
      %v3123 = vadd.f32 %v1658, %v3122
      %v3124 = vpop.f32.mrf.mxu0
      %v3125 = vadd.f32 %v1658, %v3124
      %3126 = vmatmul.bf16.gmra.mxu0 %v3064
      %v3127 = vpop.f32.mrf.mxu0
      %v3128 = vadd.f32 %v1658, %v3127
      %v3129 = vpop.f32.mrf.mxu0
      %v3130 = vadd.f32 %v1658, %v3129
      %3131 = vmatmul.bf16.gmra.mxu0 %v3066
      %v3132 = vpop.f32.mrf.mxu0
      %v3133 = vadd.f32 %v1658, %v3132
      %v3134 = vpop.f32.mrf.mxu0
      %v3135 = vadd.f32 %v1658, %v3134
      %3136 = vmatmul.bf16.gmra.mxu0 %v3068
      %v3137 = vpop.f32.mrf.mxu0
      %v3138 = vadd.f32 %v1658, %v3137
      %v3139 = vpop.f32.mrf.mxu0
      %v3140 = vadd.f32 %v1658, %v3139
      %3141 = vmatmul.bf16.gmra.mxu0 %v3070
      %v3142 = vpop.f32.mrf.mxu0
      %v3143 = vadd.f32 %v1658, %v3142
      %v3144 = vpop.f32.mrf.mxu0
      %v3145 = vadd.f32 %v1658, %v3144
      %3146 = vmatmul.bf16.gmra.mxu0 %v3072
      %v3147 = vpop.f32.mrf.mxu0
      %v3148 = vadd.f32 %v1658, %v3147
      %v3149 = vpop.f32.mrf.mxu0
      %v3150 = vadd.f32 %v1658, %v3149
      %3151 = vmatmul.bf16.gmra.mxu0 %v3074
      %v3152 = vpop.f32.mrf.mxu0
      %v3153 = vadd.f32 %v1658, %v3152
      %v3154 = vpop.f32.mrf.mxu0
      %v3155 = vadd.f32 %v1658, %v3154
      %3156 = vdwg.mxu0
      %3157 = vmatpush.bf16.msra.mxu0 0
      %3158 = vmatpush.bf16.msra.mxu0 0
      %3159 = vmatpush.bf16.msra.mxu0 0
      %3160 = vmatpush.bf16.msra.mxu0 0
      %3161 = vmatpush.bf16.msra.mxu0 0
      %3162 = vmatpush.bf16.msra.mxu0 0
      %3163 = vmatpush.bf16.msra.mxu0 0
      %3164 = vmatpush.bf16.msra.mxu0 %v1728
      %3165 = vmatmul.bf16.gmra.mxu0 %v3085
      %v3166 = vpop.f32.mrf.mxu0
      %v3167 = vadd.f32 %v3118, %v3166
      %v3168 = vpop.f32.mrf.mxu0
      %v3169 = vadd.f32 %v3120, %v3168
      %3170 = vmatmul.bf16.gmra.mxu0 %v3088
      %v3171 = vpop.f32.mrf.mxu0
      %v3172 = vadd.f32 %v3123, %v3171
      %v3173 = vpop.f32.mrf.mxu0
      %v3174 = vadd.f32 %v3125, %v3173
      %3175 = vmatmul.bf16.gmra.mxu0 %v3091
      %v3176 = vpop.f32.mrf.mxu0
      %v3177 = vadd.f32 %v3128, %v3176
      %v3178 = vpop.f32.mrf.mxu0
      %v3179 = vadd.f32 %v3130, %v3178
      %3180 = vmatmul.bf16.gmra.mxu0 %v3094
      %v3181 = vpop.f32.mrf.mxu0
      %v3182 = vadd.f32 %v3133, %v3181
      %v3183 = vpop.f32.mrf.mxu0
      %v3184 = vadd.f32 %v3135, %v3183
      %3185 = vmatmul.bf16.gmra.mxu0 %v3097
      %v3186 = vpop.f32.mrf.mxu0
      %v3187 = vadd.f32 %v3138, %v3186
      %v3188 = vpop.f32.mrf.mxu0
      %v3189 = vadd.f32 %v3140, %v3188
      %3190 = vmatmul.bf16.gmra.mxu0 %v3100
      %v3191 = vpop.f32.mrf.mxu0
      %v3192 = vadd.f32 %v3143, %v3191
      %v3193 = vpop.f32.mrf.mxu0
      %v3194 = vadd.f32 %v3145, %v3193
      %3195 = vmatmul.bf16.gmra.mxu0 %v3103
      %v3196 = vpop.f32.mrf.mxu0
      %v3197 = vadd.f32 %v3148, %v3196
      %v3198 = vpop.f32.mrf.mxu0
      %v3199 = vadd.f32 %v3150, %v3198
      %3200 = vmatmul.bf16.gmra.mxu0 %v3106
      %v3201 = vpop.f32.mrf.mxu0
      %v3202 = vadd.f32 %v3153, %v3201
      %v3203 = vpop.f32.mrf.mxu0
      %v3204 = vadd.f32 %v3155, %v3203
      %3205 = vdwg.mxu0
      %v3206 = vmax.f32 %v3167, 0.0
      %v3207 = vmax.f32 %v3169, 0.0
      %v3208 = vmax.f32 %v3172, 0.0
      %v3209 = vmax.f32 %v3174, 0.0
      %v3210 = vmax.f32 %v3177, 0.0
      %v3211 = vmax.f32 %v3179, 0.0
      %v3212 = vmax.f32 %v3182, 0.0
      %v3213 = vmax.f32 %v3184, 0.0
      %v3214 = vmax.f32 %v3187, 0.0
      %v3215 = vmax.f32 %v3189, 0.0
      %v3216 = vmax.f32 %v3192, 0.0
      %v3217 = vmax.f32 %v3194, 0.0
      %v3218 = vmax.f32 %v3197, 0.0
      %v3219 = vmax.f32 %v3199, 0.0
      %v3220 = vmax.f32 %v3202, 0.0
      %v3221 = vmax.f32 %v3204, 0.0
      %v3222 = vmax.f32 %v1860, %v3206
      %v3223 = vmax.f32 %v1861, %v3207
      %v3224 = vmax.f32 %v1862, %v3208
      %v3225 = vmax.f32 %v1863, %v3209
      %v3226 = vmax.f32 %v1864, %v3210
      %v3227 = vmax.f32 %v1865, %v3211
      %v3228 = vmax.f32 %v1866, %v3212
      %v3229 = vmax.f32 %v1867, %v3213
      %v3230 = vmax.f32 %v1868, %v3214
      %v3231 = vmax.f32 %v1869, %v3215
      %v3232 = vmax.f32 %v1870, %v3216
      %v3233 = vmax.f32 %v1871, %v3217
      %v3234 = vmax.f32 %v1872, %v3218
      %v3235 = vmax.f32 %v1873, %v3219
      %v3236 = vmax.f32 %v1874, %v3220
      %v3237 = vmax.f32 %v1875, %v3221
      %v3238 = vmax.f32 %v3222, %v3223
      %v3239 = vmax.f32 %v3224, %v3225
      %v3240 = vmax.f32 %v3226, %v3227
      %v3241 = vmax.f32 %v3228, %v3229
      %v3242 = vmax.f32 %v3230, %v3231
      %v3243 = vmax.f32 %v3232, %v3233
      %v3244 = vmax.f32 %v3234, %v3235
      %v3245 = vmax.f32 %v3236, %v3237
      %v3246 = vpack.c.bf16 %v3238, %v3238
      %v3247 = vpack.c.bf16 %v3239, %v3239
      %v3248 = vpack.c.bf16 %v3240, %v3240
      %v3249 = vpack.c.bf16 %v3241, %v3241
      %v3250 = vpack.c.bf16 %v3242, %v3242
      %v3251 = vpack.c.bf16 %v3243, %v3243
      %v3252 = vpack.c.bf16 %v3244, %v3244
      %v3253 = vpack.c.bf16 %v3245, %v3245
      %vm3254 = vcmask 257024
      %3255 = vst.msk [vmem:[%s217] sm:$0xf] %vm3254, %v3246
      %3256 = vst.msk [vmem:[%s217 + $0x4] sm:$0xf] %vm3254, %v3247
      %3257 = vst.msk [vmem:[%s217 + $0x8] sm:$0xf] %vm3254, %v3248
      %3258 = vst.msk [vmem:[%s217 + $0xc] sm:$0xf] %vm3254, %v3249
      %3259 = vst.msk [vmem:[%s217 + $0x10] sm:$0xf] %vm3254, %v3250
      %3260 = vst.msk [vmem:[%s217 + $0x14] sm:$0xf] %vm3254, %v3251
      %3261 = vst.msk [vmem:[%s217 + $0x18] sm:$0xf] %vm3254, %v3252
      %3262 = vst.msk [vmem:[%s217 + $0x1c] sm:$0xf] %vm3254, %v3253
      %p3263 = scmp.lt.s32.totalorder %s15, 1
      %s3264 = scalar_select %p3263, %s15, 1
      %s3265 = smul.addr %s3264, 8
      %s3266 = smul.addr %s3265, 4
      %s3267 = scalar_lea.vmem %s4, %s3266
      // Predicated region
      $region37: #{simple_cnn_forward.4} parent=35 // pred_check
        %p3268 = pneg %p127
      $region38: #{simple_cnn_forward.4} parent=35 // pred_check_branch
        %3270 = sbr.rel (%p3268) target = $region40
      $region39: #{simple_cnn_forward.4} parent=35 // pred_region
        _
      $region40: #{simple_cnn_forward.4} parent=35 // pred_fallthru
        _
    $region36: #{simple_cnn_forward.4} parent=5 // pred_fallthru
      _
    %p3271 = scmp.le.s32.totalorder 2, %s10
    // Predicated region
    $region41: #{simple_cnn_forward.4} parent=5 // pred_check
      %p3272 = pneg %p3271
    $region42: #{simple_cnn_forward.4} parent=5 // pred_check_branch
      %3274 = sbr.rel (%p3272) target = $region44
    $region43: #{simple_cnn_forward.4} parent=5 // pred_region
      %s3275 = ssub.s32 %s10, 2
      // Predicated region
      $region45: #{simple_cnn_forward.4} parent=43 // pred_check
        %p3276 = pneg %p133
      $region46: #{simple_cnn_forward.4} parent=43 // pred_check_branch
        %3278 = sbr.rel (%p3276) target = $region48
      $region47: #{simple_cnn_forward.4} parent=43 // pred_region
        %p3279 = scmp.lt.s32.totalorder %s16, 1
        %s3280 = scalar_select %p3279, %s16, 1
        %s3281 = smul.addr %s3280, 8
        %s3282 = smul.addr %s3281, 4
        %s3283 = scalar_lea.vmem %s4, %s3282
      $region48: #{simple_cnn_forward.4} parent=43 // pred_fallthru
        _
    $region44: #{simple_cnn_forward.4} parent=5 // pred_fallthru
      _
  $region6: #{simple_cnn_forward.4} parent=0 // loop_footer
    %s14 = sadd.s32 1, %s10
  $region7: #{simple_cnn_forward.4} parent=0 // loop_footer_branch
    %9 = sbr.rel target = $region3
  $region8: #{simple_cnn_forward.4} parent=0 // loop_exit
    _

// kernel: simple_cnn_forward.3
$region0: #{simple_cnn_forward.3}
  #allocation0 [shape = 'u32[]', space=smem, size = 0x4, offset = 0x4, fixed_abs, tag = 'smem constant byte address 0x4 - core index']
  #allocation1 [shape = 'u32[72,128]{1,0:T(1,128)}', space=vmem, size = 0x9000, scoped, tag = 'internal scratch']
  %s0 = inlined_call_operand.vmem [shape: bf16[2,34,17,3], index: 0, kind: input, shape index: {}]
  %s1 = inlined_call_operand.vmem [shape: bf16[2,34,17,3], index: 1, kind: input, shape index: {}]
  %s2 = inlined_call_operand.vmem [shape: bf16[27,16], index: 2, kind: input, shape index: {}]
  %s3 = inlined_call_operand.vmem [shape: f32[1,16], index: 3, kind: input, shape index: {}]
  %s4 = inlined_call_operand.vmem [shape: bf16[2,16,16,16], index: 4, kind: output, shape index: {}]
  %s5 = sld [smem:[#allocation0]]
  $region49: #{simple_cnn_forward.3} parent=0
    _
  %s7 = ssub.s32 1, %s5
  %s8 = scalar_select 0, %s7, %s5
  loop: start=0, step=1, limit=4
  $region2: #{simple_cnn_forward.3} parent=0 // loop_pre_header
    _
  $region3: #{simple_cnn_forward.3} parent=0 // loop_header
    %s10 = sphi 0, %s14
    %p11 = scmp.ge.s32.totalorder %s10, 4
    %s20 = sphi 0, %s22
    %s23 = sphi 0, %s20
    %s24 = sphi 0, %s23
    %s40 = sphi 0, %s24
    %s46 = sphi 0, %s48
    %s49 = sphi 0, %s46
    %s50 = sphi 0, %s49
    %s66 = sphi 0, %s50
    %s70 = sphi 0, %s70
    %s72 = sphi 0, %s70
    %s73 = sphi 0, %s72
    %s87 = sphi 0, %s73
    %s91 = sphi 0, %s91
    %s93 = sphi 0, %s91
    %s94 = sphi 0, %s93
    %s108 = sphi 0, %s94
    %s114 = sphi 0, %s116
    %s117 = sphi 0, %s114
    %s118 = sphi 0, %s117
    %s134 = sphi 0, %s118
  $region4: #{simple_cnn_forward.3} parent=0 // loop_header_branch
    %13 = sbr.rel (%p11) target = $region8
  $region5: #{simple_cnn_forward.3} parent=0 // loop_body
    %s15 = ssub.s32 %s10, 1
    %s16 = ssub.s32 %s10, 2
    %s17 = sadd.s32 %s10, 1
    %s18 = ssub.s32 %s10, %s17
    %p19 = scmp.eq.s32.totalorder %s18, 0
    %s21 = sadd.s32 %s20, 1
    %s22 = scalar_select %p19, %s20, %s21
    %p25 = pneg %p19
    %p26 = scmp.eq.s32.totalorder %s10, 1
    %p27 = por %p25, %p26
    %p28 = scmp.ne.s32.totalorder %s20, %s23
    %p29 = scmp.eq.s32.totalorder %s10, 0
    %p30 = por %p28, %p29
    %p31 = scmp.ne.s32.totalorder %s20, %s23
    %p32 = scmp.eq.s32.totalorder %s15, 1
    %p33 = por %p31, %p32
    %p34 = scmp.ne.s32.totalorder %s23, %s24
    %p35 = scmp.eq.s32.totalorder %s15, 0
    %p36 = por %p34, %p35
    %p37 = scmp.ne.s32.totalorder %s23, %s24
    %p38 = scmp.eq.s32.totalorder %s16, 1
    %p39 = por %p37, %p38
    %p41 = scmp.ne.s32.totalorder %s24, %s40
    %p42 = scmp.eq.s32.totalorder %s16, 0
    %p43 = por %p41, %p42
    %s44 = ssub.s32 %s10, %s17
    %p45 = scmp.eq.s32.totalorder %s44, 0
    %s47 = sadd.s32 %s46, 1
    %s48 = scalar_select %p45, %s46, %s47
    %p51 = pneg %p45
    %p52 = scmp.eq.s32.totalorder %s10, 1
    %p53 = por %p51, %p52
    %p54 = scmp.ne.s32.totalorder %s46, %s49
    %p55 = scmp.eq.s32.totalorder %s10, 0
    %p56 = por %p54, %p55
    %p57 = scmp.ne.s32.totalorder %s46, %s49
    %p58 = scmp.eq.s32.totalorder %s15, 1
    %p59 = por %p57, %p58
    %p60 = scmp.ne.s32.totalorder %s49, %s50
    %p61 = scmp.eq.s32.totalorder %s15, 0
    %p62 = por %p60, %p61
    %p63 = scmp.ne.s32.totalorder %s49, %s50
    %p64 = scmp.eq.s32.totalorder %s16, 1
    %p65 = por %p63, %p64
    %p67 = scmp.ne.s32.totalorder %s50, %s66
    %p68 = scmp.eq.s32.totalorder %s16, 0
    %p69 = por %p67, %p68
    %s71 = sadd.s32 %s70, 1
    %p74 = scmp.eq.s32.totalorder %s10, 1
    %p75 = scmp.ne.s32.totalorder %s70, %s72
    %p76 = scmp.eq.s32.totalorder %s10, 0
    %p77 = por %p75, %p76
    %p78 = scmp.ne.s32.totalorder %s70, %s72
    %p79 = scmp.eq.s32.totalorder %s15, 1
    %p80 = por %p78, %p79
    %p81 = scmp.ne.s32.totalorder %s72, %s73
    %p82 = scmp.eq.s32.totalorder %s15, 0
    %p83 = por %p81, %p82
    %p84 = scmp.ne.s32.totalorder %s72, %s73
    %p85 = scmp.eq.s32.totalorder %s16, 1
    %p86 = por %p84, %p85
    %p88 = scmp.ne.s32.totalorder %s73, %s87
    %p89 = scmp.eq.s32.totalorder %s16, 0
    %p90 = por %p88, %p89
    %s92 = sadd.s32 %s91, 1
    %p95 = scmp.eq.s32.totalorder %s10, 1
    %p96 = scmp.ne.s32.totalorder %s91, %s93
    %p97 = scmp.eq.s32.totalorder %s10, 0
    %p98 = por %p96, %p97
    %p99 = scmp.ne.s32.totalorder %s91, %s93
    %p100 = scmp.eq.s32.totalorder %s15, 1
    %p101 = por %p99, %p100
    %p102 = scmp.ne.s32.totalorder %s93, %s94
    %p103 = scmp.eq.s32.totalorder %s15, 0
    %p104 = por %p102, %p103
    %p105 = scmp.ne.s32.totalorder %s93, %s94
    %p106 = scmp.eq.s32.totalorder %s16, 1
    %p107 = por %p105, %p106
    %p109 = scmp.ne.s32.totalorder %s94, %s108
    %p110 = scmp.eq.s32.totalorder %s16, 0
    %p111 = por %p109, %p110
    %s112 = ssub.s32 %s10, %s17
    %p113 = scmp.eq.s32.totalorder %s112, 0
    %s115 = sadd.s32 %s114, 1
    %s116 = scalar_select %p113, %s114, %s115
    %p119 = pneg %p113
    %p120 = scmp.eq.s32.totalorder %s10, 1
    %p121 = por %p119, %p120
    %p122 = scmp.ne.s32.totalorder %s114, %s117
    %p123 = scmp.eq.s32.totalorder %s10, 0
    %p124 = por %p122, %p123
    %p125 = scmp.ne.s32.totalorder %s114, %s117
    %p126 = scmp.eq.s32.totalorder %s15, 1
    %p127 = por %p125, %p126
    %p128 = scmp.ne.s32.totalorder %s117, %s118
    %p129 = scmp.eq.s32.totalorder %s15, 0
    %p130 = por %p128, %p129
    %p131 = scmp.ne.s32.totalorder %s117, %s118
    %p132 = scmp.eq.s32.totalorder %s16, 1
    %p133 = por %p131, %p132
    %p135 = scmp.ne.s32.totalorder %s118, %s134
    %p136 = scmp.eq.s32.totalorder %s16, 0
    %p137 = por %p135, %p136
    %p138 = scmp.le.s32.totalorder 1, %s10
    %p139 = scmp.lt.s32.totalorder %s10, 3
    %p140 = pnand %p138, %p139
    %p141 = pneg %p140
    // Predicated region
    $region9: #{simple_cnn_forward.3} parent=5 // pred_check
      _
    $region10: #{simple_cnn_forward.3} parent=5 // pred_check_branch
      %143 = sbr.rel (%p140) target = $region12
    $region11: #{simple_cnn_forward.3} parent=5 // pred_region
      %s144 = ssub.s32 %s10, 1
      // Predicated region
      $region13: #{simple_cnn_forward.3} parent=11 // pred_check
        %p145 = pneg %p83
      $region14: #{simple_cnn_forward.3} parent=11 // pred_check_branch
        %147 = sbr.rel (%p145) target = $region16
      $region15: #{simple_cnn_forward.3} parent=11 // pred_region
        _
      $region16: #{simple_cnn_forward.3} parent=11 // pred_fallthru
        _
      // Predicated region
      $region17: #{simple_cnn_forward.3} parent=11 // pred_check
        %p148 = pneg %p104
      $region18: #{simple_cnn_forward.3} parent=11 // pred_check_branch
        %150 = sbr.rel (%p148) target = $region20
      $region19: #{simple_cnn_forward.3} parent=11 // pred_region
        _
      $region20: #{simple_cnn_forward.3} parent=11 // pred_fallthru
        _
    $region12: #{simple_cnn_forward.3} parent=5 // pred_fallthru
      _
    %p151 = scmp.lt.s32.totalorder %s10, 2
    // Predicated region
    $region21: #{simple_cnn_forward.3} parent=5 // pred_check
      %p152 = pneg %p151
    $region22: #{simple_cnn_forward.3} parent=5 // pred_check_branch
      %154 = sbr.rel (%p152) target = $region24
    $region23: #{simple_cnn_forward.3} parent=5 // pred_region
      // Predicated region
      $region25: #{simple_cnn_forward.3} parent=23 // pred_check
        %p155 = pneg %p30
      $region26: #{simple_cnn_forward.3} parent=23 // pred_check_branch
        %157 = sbr.rel (%p155) target = $region28
      $region27: #{simple_cnn_forward.3} parent=23 // pred_region
        %p158 = scmp.lt.s32.totalorder %s10, 1
        %s159 = scalar_select %p158, %s10, 1
        %s160 = smul.addr %s159, 102
        %s161 = smul.addr %s160, 4
        %s162 = scalar_lea.vmem %s0, %s161
      $region28: #{simple_cnn_forward.3} parent=23 // pred_fallthru
        _
      // Predicated region
      $region29: #{simple_cnn_forward.3} parent=23 // pred_check
        %p163 = pneg %p56
      $region30: #{simple_cnn_forward.3} parent=23 // pred_check_branch
        %165 = sbr.rel (%p163) target = $region32
      $region31: #{simple_cnn_forward.3} parent=23 // pred_region
        %p166 = scmp.lt.s32.totalorder %s10, 1
        %s167 = scalar_select %p166, %s10, 1
        %s168 = smul.addr %s167, 102
        %s169 = smul.addr %s168, 4
        %s170 = scalar_lea.vmem %s1, %s169
      $region32: #{simple_cnn_forward.3} parent=23 // pred_fallthru
        _
    $region24: #{simple_cnn_forward.3} parent=5 // pred_fallthru
      _
    %p171 = scmp.le.s32.totalorder 1, %s10
    %p172 = scmp.lt.s32.totalorder %s10, 3
    %p173 = pnand %p171, %p172
    %p174 = pneg %p173
    // Predicated region
    $region33: #{simple_cnn_forward.3} parent=5 // pred_check
      _
    $region34: #{simple_cnn_forward.3} parent=5 // pred_check_branch
      %176 = sbr.rel (%p173) target = $region36
    $region35: #{simple_cnn_forward.3} parent=5 // pred_region
      %s177 = ssub.s32 %s10, 1
      %p178 = scmp.lt.s32.totalorder %s15, 1
      %s179 = scalar_select %p178, %s15, 1
      %s180 = smul.addr %s179, 102
      %s181 = smul.addr %s180, 4
      %s182 = scalar_lea.vmem %s0, %s181
      %p183 = pneg %p36
      %p184 = pneg %p33
      %p185 = scmp.lt.s32.totalorder %s15, 1
      %s186 = scalar_select %p185, %s15, 1
      %s187 = smul.addr %s186, 102
      %s188 = smul.addr %s187, 4
      %s189 = scalar_lea.vmem %s1, %s188
      %p190 = pneg %p62
      %p191 = pneg %p59
      %p192 = pneg %p83
      %p193 = pneg %p80
      %p194 = pneg %p104
      %p195 = pneg %p101
      %p196 = pneg %p130
      %p197 = pneg %p127
      %p198 = scmp.lt.s32.totalorder %s15, 1
      %s199 = scalar_select %p198, %s15, 1
      %s200 = smul.addr %s199, 32
      %s201 = smul.addr %s200, 4
      %s202 = scalar_lea.vmem %s4, %s201
      %p203 = scmp.lt.s32.totalorder %s15, 1
      %s204 = scalar_select %p203, %s15, 1
      %s205 = smul.addr %s204, 102
      %s206 = smul.addr %s205, 4
      %s207 = scalar_lea.vmem %s0, %s206
      %p208 = scmp.lt.s32.totalorder %s15, 1
      %s209 = scalar_select %p208, %s15, 1
      %s210 = smul.addr %s209, 102
      %s211 = smul.addr %s210, 4
      %s212 = scalar_lea.vmem %s1, %s211
      %p213 = scmp.lt.s32.totalorder %s15, 1
      %s214 = scalar_select %p213, %s15, 1
      %s215 = smul.addr %s214, 32
      %s216 = smul.addr %s215, 4
      %s217 = scalar_lea.vmem %s4, %s216
      %v219 = vld [vmem:[%s2] sm:$0xf]
      %v220 = vld [vmem:[%s2 + $0x4] sm:$0xf]
      %v221 = vld [vmem:[%s2 + $0x8] sm:$0xf]
      %v222 = vld [vmem:[%s2 + $0xc] sm:$0x3]
      %v223 = vld [vmem:[%s3] sm:$0x1]
      %v224 = vld [vmem:[%s207] sm:$0xf]
      %v225 = vld [vmem:[%s207 + $0x4] sm:$0xf]
      %v226 = vld [vmem:[%s207 + $0xc] sm:$0xf]
      %v227 = vld [vmem:[%s207 + $0x10] sm:$0xf]
      %v228 = vld [vmem:[%s207 + $0x18] sm:$0xf]
      %v229 = vld [vmem:[%s207 + $0x1c] sm:$0xf]
      %v230 = vld [vmem:[%s207 + $0x24] sm:$0xf]
      %v231 = vld [vmem:[%s207 + $0x28] sm:$0xf]
      %v232 = vld [vmem:[%s207 + $0x30] sm:$0xf]
      %v233 = vld [vmem:[%s207 + $0x34] sm:$0xf]
      %v234 = vld [vmem:[%s207 + $0x3c] sm:$0xf]
      %v235 = vld [vmem:[%s207 + $0x40] sm:$0xf]
      %v236 = vld [vmem:[%s207 + $0x48] sm:$0xf]
      %v237 = vld [vmem:[%s207 + $0x4c] sm:$0xf]
      %v238 = vld [vmem:[%s207 + $0x54] sm:$0xf]
      %v239 = vld [vmem:[%s207 + $0x58] sm:$0xf]
      %v240 = vld [vmem:[%s207 + $0x60] sm:$0xf]
      %v241 = vld [vmem:[%s207 + $0x64] sm:$0xf]
      %v242 = vld [vmem:[%s207 + $0x6c] sm:$0xf]
      %v243 = vld [vmem:[%s207 + $0x70] sm:$0xf]
      %v244 = vld [vmem:[%s207 + $0x78] sm:$0xf]
      %v245 = vld [vmem:[%s207 + $0x7c] sm:$0xf]
      %v246 = vld [vmem:[%s207 + $0x84] sm:$0xf]
      %v247 = vld [vmem:[%s207 + $0x88] sm:$0xf]
      %v248 = vld [vmem:[%s207 + $0x90] sm:$0xf]
      %v249 = vld [vmem:[%s207 + $0x94] sm:$0xf]
      %v250 = vld [vmem:[%s207 + $0x9c] sm:$0xf]
      %v251 = vld [vmem:[%s207 + $0xa0] sm:$0xf]
      %v252 = vld [vmem:[%s207 + $0xa8] sm:$0xf]
      %v253 = vld [vmem:[%s207 + $0xac] sm:$0xf]
      %v254 = vld [vmem:[%s207 + $0xb4] sm:$0xf]
      %v255 = vld [vmem:[%s207 + $0xb8] sm:$0xf]
      %v256 = vld [vmem:[%s207 + $0xc0] sm:$0xf]
      %v257 = vld [vmem:[%s207 + $0xc4] sm:$0xf]
      %v258 = vld [vmem:[%s207 + $0xcc] sm:$0xf]
      %v259 = vld [vmem:[%s207 + $0xd0] sm:$0xf]
      %v260 = vld [vmem:[%s207 + $0xd8] sm:$0xf]
      %v261 = vld [vmem:[%s207 + $0xdc] sm:$0xf]
      %v262 = vld [vmem:[%s207 + $0xe4] sm:$0xf]
      %v263 = vld [vmem:[%s207 + $0xe8] sm:$0xf]
      %v264 = vld [vmem:[%s207 + $0xf0] sm:$0xf]
      %v265 = vld [vmem:[%s207 + $0xf4] sm:$0xf]
      %v266 = vld [vmem:[%s207 + $0xfc] sm:$0xf]
      %v267 = vld [vmem:[%s207 + $0x100] sm:$0xf]
      %v268 = vld [vmem:[%s207 + $0x108] sm:$0xf]
      %v269 = vld [vmem:[%s207 + $0x10c] sm:$0xf]
      %v270 = vld [vmem:[%s207 + $0x114] sm:$0xf]
      %v271 = vld [vmem:[%s207 + $0x118] sm:$0xf]
      %v272 = vld [vmem:[%s207 + $0x120] sm:$0xf]
      %v273 = vld [vmem:[%s207 + $0x124] sm:$0xf]
      %v274 = vld [vmem:[%s207 + $0x12c] sm:$0xf]
      %v275 = vld [vmem:[%s207 + $0x130] sm:$0xf]
      %v276 = vld [vmem:[%s207 + $0x138] sm:$0xf]
      %v277 = vld [vmem:[%s207 + $0x13c] sm:$0xf]
      %v278 = vld [vmem:[%s207 + $0x144] sm:$0xf]
      %v279 = vld [vmem:[%s207 + $0x148] sm:$0xf]
      %v280 = vld [vmem:[%s207 + $0x150] sm:$0xf]
      %v281 = vld [vmem:[%s207 + $0x154] sm:$0xf]
      %v282 = vld [vmem:[%s207 + $0x15c] sm:$0xf]
      %v283 = vld [vmem:[%s207 + $0x160] sm:$0xf]
      %v284 = vld [vmem:[%s207 + $0x168] sm:$0xf]
      %v285 = vld [vmem:[%s207 + $0x16c] sm:$0xf]
      %v286 = vld [vmem:[%s207 + $0x174] sm:$0xf]
      %v287 = vld [vmem:[%s207 + $0x178] sm:$0xf]
      %v288 = vld [vmem:[%s212] sm:$0xf]
      %v289 = vld [vmem:[%s212 + $0x4] sm:$0xf]
      %v290 = vld [vmem:[%s212 + $0xc] sm:$0xf]
      %v291 = vld [vmem:[%s212 + $0x10] sm:$0xf]
      %v292 = vld [vmem:[%s212 + $0x18] sm:$0xf]
      %v293 = vld [vmem:[%s212 + $0x1c] sm:$0xf]
      %v294 = vld [vmem:[%s212 + $0x24] sm:$0xf]
      %v295 = vld [vmem:[%s212 + $0x28] sm:$0xf]
      %v296 = vld [vmem:[%s212 + $0x30] sm:$0xf]
      %v297 = vld [vmem:[%s212 + $0x34] sm:$0xf]
      %v298 = vld [vmem:[%s212 + $0x3c] sm:$0xf]
      %v299 = vld [vmem:[%s212 + $0x40] sm:$0xf]
      %v300 = vld [vmem:[%s212 + $0x48] sm:$0xf]
      %v301 = vld [vmem:[%s212 + $0x4c] sm:$0xf]
      %v302 = vld [vmem:[%s212 + $0x54] sm:$0xf]
      %v303 = vld [vmem:[%s212 + $0x58] sm:$0xf]
      %v304 = vld [vmem:[%s212 + $0x60] sm:$0xf]
      %v305 = vld [vmem:[%s212 + $0x64] sm:$0xf]
      %v306 = vld [vmem:[%s212 + $0x6c] sm:$0xf]
      %v307 = vld [vmem:[%s212 + $0x70] sm:$0xf]
      %v308 = vld [vmem:[%s212 + $0x78] sm:$0xf]
      %v309 = vld [vmem:[%s212 + $0x7c] sm:$0xf]
      %v310 = vld [vmem:[%s212 + $0x84] sm:$0xf]
      %v311 = vld [vmem:[%s212 + $0x88] sm:$0xf]
      %v312 = vld [vmem:[%s212 + $0x90] sm:$0xf]
      %v313 = vld [vmem:[%s212 + $0x94] sm:$0xf]
      %v314 = vld [vmem:[%s212 + $0x9c] sm:$0xf]
      %v315 = vld [vmem:[%s212 + $0xa0] sm:$0xf]
      %v316 = vld [vmem:[%s212 + $0xa8] sm:$0xf]
      %v317 = vld [vmem:[%s212 + $0xac] sm:$0xf]
      %v318 = vld [vmem:[%s212 + $0xb4] sm:$0xf]
      %v319 = vld [vmem:[%s212 + $0xb8] sm:$0xf]
      %v320 = vld [vmem:[%s212 + $0xc0] sm:$0xf]
      %v321 = vld [vmem:[%s212 + $0xc4] sm:$0xf]
      %v322 = vld [vmem:[%s212 + $0xcc] sm:$0xf]
      %v323 = vld [vmem:[%s212 + $0xd0] sm:$0xf]
      %v324 = vld [vmem:[%s212 + $0xd8] sm:$0xf]
      %v325 = vld [vmem:[%s212 + $0xdc] sm:$0xf]
      %v326 = vld [vmem:[%s212 + $0xe4] sm:$0xf]
      %v327 = vld [vmem:[%s212 + $0xe8] sm:$0xf]
      %v328 = vld [vmem:[%s212 + $0xf0] sm:$0xf]
      %v329 = vld [vmem:[%s212 + $0xf4] sm:$0xf]
      %v330 = vld [vmem:[%s212 + $0xfc] sm:$0xf]
      %v331 = vld [vmem:[%s212 + $0x100] sm:$0xf]
      %v332 = vld [vmem:[%s212 + $0x108] sm:$0xf]
      %v333 = vld [vmem:[%s212 + $0x10c] sm:$0xf]
      %v334 = vld [vmem:[%s212 + $0x114] sm:$0xf]
      %v335 = vld [vmem:[%s212 + $0x118] sm:$0xf]
      %v336 = vld [vmem:[%s212 + $0x120] sm:$0xf]
      %v337 = vld [vmem:[%s212 + $0x124] sm:$0xf]
      %v338 = vld [vmem:[%s212 + $0x12c] sm:$0xf]
      %v339 = vld [vmem:[%s212 + $0x130] sm:$0xf]
      %v340 = vld [vmem:[%s212 + $0x138] sm:$0xf]
      %v341 = vld [vmem:[%s212 + $0x13c] sm:$0xf]
      %v342 = vld [vmem:[%s212 + $0x144] sm:$0xf]
      %v343 = vld [vmem:[%s212 + $0x148] sm:$0xf]
      %v344 = vld [vmem:[%s212 + $0x150] sm:$0xf]
      %v345 = vld [vmem:[%s212 + $0x154] sm:$0xf]
      %v346 = vld [vmem:[%s212 + $0x15c] sm:$0xf]
      %v347 = vld [vmem:[%s212 + $0x160] sm:$0xf]
      %v348 = vld [vmem:[%s212 + $0x168] sm:$0xf]
      %v349 = vld [vmem:[%s212 + $0x16c] sm:$0xf]
      %v350 = vld [vmem:[%s212 + $0x174] sm:$0xf]
      %v351 = vld [vmem:[%s212 + $0x178] sm:$0xf]
      %v352 = vld [vmem:[%s207 + $0x8] sm:$0x1]
      %v353 = vld [vmem:[%s207 + $0x14] sm:$0x1]
      %v354 = vld [vmem:[%s207 + $0x20] sm:$0x1]
      %v355 = vld [vmem:[%s207 + $0x2c] sm:$0x1]
      %v356 = vld [vmem:[%s207 + $0x38] sm:$0x1]
      %v357 = vld [vmem:[%s207 + $0x44] sm:$0x1]
      %v358 = vld [vmem:[%s207 + $0x50] sm:$0x1]
      %v359 = vld [vmem:[%s207 + $0x5c] sm:$0x1]
      %v360 = vld [vmem:[%s207 + $0x68] sm:$0x1]
      %v361 = vld [vmem:[%s207 + $0x74] sm:$0x1]
      %v362 = vld [vmem:[%s207 + $0x80] sm:$0x1]
      %v363 = vld [vmem:[%s207 + $0x8c] sm:$0x1]
      %v364 = vld [vmem:[%s207 + $0x98] sm:$0x1]
      %v365 = vld [vmem:[%s207 + $0xa4] sm:$0x1]
      %v366 = vld [vmem:[%s207 + $0xb0] sm:$0x1]
      %v367 = vld [vmem:[%s207 + $0xbc] sm:$0x1]
      %v368 = vld [vmem:[%s207 + $0xc8] sm:$0x1]
      %v369 = vld [vmem:[%s207 + $0xd4] sm:$0x1]
      %v370 = vld [vmem:[%s207 + $0xe0] sm:$0x1]
      %v371 = vld [vmem:[%s207 + $0xec] sm:$0x1]
      %v372 = vld [vmem:[%s207 + $0xf8] sm:$0x1]
      %v373 = vld [vmem:[%s207 + $0x104] sm:$0x1]
      %v374 = vld [vmem:[%s207 + $0x110] sm:$0x1]
      %v375 = vld [vmem:[%s207 + $0x11c] sm:$0x1]
      %v376 = vld [vmem:[%s207 + $0x128] sm:$0x1]
      %v377 = vld [vmem:[%s207 + $0x134] sm:$0x1]
      %v378 = vld [vmem:[%s207 + $0x140] sm:$0x1]
      %v379 = vld [vmem:[%s207 + $0x14c] sm:$0x1]
      %v380 = vld [vmem:[%s207 + $0x158] sm:$0x1]
      %v381 = vld [vmem:[%s207 + $0x164] sm:$0x1]
      %v382 = vld [vmem:[%s207 + $0x170] sm:$0x1]
      %v383 = vld [vmem:[%s207 + $0x17c] sm:$0x1]
      %s384 = scalar_lea.vmem %s207, 12
      %v385 = vld [vmem:[%s384] sm:$0xf]
      %v386 = vld [vmem:[%s384 + $0x4] sm:$0xf]
      %v387 = vld [vmem:[%s384 + $0xc] sm:$0xf]
      %v388 = vld [vmem:[%s384 + $0x10] sm:$0xf]
      %v389 = vld [vmem:[%s384 + $0x18] sm:$0xf]
      %v390 = vld [vmem:[%s384 + $0x1c] sm:$0xf]
      %v391 = vld [vmem:[%s384 + $0x24] sm:$0xf]
      %v392 = vld [vmem:[%s384 + $0x28] sm:$0xf]
      %v393 = vld [vmem:[%s384 + $0x30] sm:$0xf]
      %v394 = vld [vmem:[%s384 + $0x34] sm:$0xf]
      %v395 = vld [vmem:[%s384 + $0x3c] sm:$0xf]
      %v396 = vld [vmem:[%s384 + $0x40] sm:$0xf]
      %v397 = vld [vmem:[%s384 + $0x48] sm:$0xf]
      %v398 = vld [vmem:[%s384 + $0x4c] sm:$0xf]
      %v399 = vld [vmem:[%s384 + $0x54] sm:$0xf]
      %v400 = vld [vmem:[%s384 + $0x58] sm:$0xf]
      %v401 = vld [vmem:[%s384 + $0x60] sm:$0xf]
      %v402 = vld [vmem:[%s384 + $0x64] sm:$0xf]
      %v403 = vld [vmem:[%s384 + $0x6c] sm:$0xf]
      %v404 = vld [vmem:[%s384 + $0x70] sm:$0xf]
      %v405 = vld [vmem:[%s384 + $0x78] sm:$0xf]
      %v406 = vld [vmem:[%s384 + $0x7c] sm:$0xf]
      %v407 = vld [vmem:[%s384 + $0x84] sm:$0xf]
      %v408 = vld [vmem:[%s384 + $0x88] sm:$0xf]
      %v409 = vld [vmem:[%s384 + $0x90] sm:$0xf]
      %v410 = vld [vmem:[%s384 + $0x94] sm:$0xf]
      %v411 = vld [vmem:[%s384 + $0x9c] sm:$0xf]
      %v412 = vld [vmem:[%s384 + $0xa0] sm:$0xf]
      %v413 = vld [vmem:[%s384 + $0xa8] sm:$0xf]
      %v414 = vld [vmem:[%s384 + $0xac] sm:$0xf]
      %v415 = vld [vmem:[%s384 + $0xb4] sm:$0xf]
      %v416 = vld [vmem:[%s384 + $0xb8] sm:$0xf]
      %v417 = vld [vmem:[%s384 + $0xc0] sm:$0xf]
      %v418 = vld [vmem:[%s384 + $0xc4] sm:$0xf]
      %v419 = vld [vmem:[%s384 + $0xcc] sm:$0xf]
      %v420 = vld [vmem:[%s384 + $0xd0] sm:$0xf]
      %v421 = vld [vmem:[%s384 + $0xd8] sm:$0xf]
      %v422 = vld [vmem:[%s384 + $0xdc] sm:$0xf]
      %v423 = vld [vmem:[%s384 + $0xe4] sm:$0xf]
      %v424 = vld [vmem:[%s384 + $0xe8] sm:$0xf]
      %v425 = vld [vmem:[%s384 + $0xf0] sm:$0xf]
      %v426 = vld [vmem:[%s384 + $0xf4] sm:$0xf]
      %v427 = vld [vmem:[%s384 + $0xfc] sm:$0xf]
      %v428 = vld [vmem:[%s384 + $0x100] sm:$0xf]
      %v429 = vld [vmem:[%s384 + $0x108] sm:$0xf]
      %v430 = vld [vmem:[%s384 + $0x10c] sm:$0xf]
      %v431 = vld [vmem:[%s384 + $0x114] sm:$0xf]
      %v432 = vld [vmem:[%s384 + $0x118] sm:$0xf]
      %v433 = vld [vmem:[%s384 + $0x120] sm:$0xf]
      %v434 = vld [vmem:[%s384 + $0x124] sm:$0xf]
      %v435 = vld [vmem:[%s384 + $0x12c] sm:$0xf]
      %v436 = vld [vmem:[%s384 + $0x130] sm:$0xf]
      %v437 = vld [vmem:[%s384 + $0x138] sm:$0xf]
      %v438 = vld [vmem:[%s384 + $0x13c] sm:$0xf]
      %v439 = vld [vmem:[%s384 + $0x144] sm:$0xf]
      %v440 = vld [vmem:[%s384 + $0x148] sm:$0xf]
      %v441 = vld [vmem:[%s384 + $0x150] sm:$0xf]
      %v442 = vld [vmem:[%s384 + $0x154] sm:$0xf]
      %v443 = vld [vmem:[%s384 + $0x15c] sm:$0xf]
      %v444 = vld [vmem:[%s384 + $0x160] sm:$0xf]
      %v445 = vld [vmem:[%s384 + $0x168] sm:$0xf]
      %v446 = vld [vmem:[%s384 + $0x16c] sm:$0xf]
      %v447 = vld [vmem:[%s384 + $0x174] sm:$0xf]
      %v448 = vld [vmem:[%s384 + $0x178] sm:$0xf]
      %s449 = scalar_lea.vmem %s212, 12
      %v450 = vld [vmem:[%s449] sm:$0xf]
      %v451 = vld [vmem:[%s449 + $0x4] sm:$0xf]
      %v452 = vld [vmem:[%s449 + $0xc] sm:$0xf]
      %v453 = vld [vmem:[%s449 + $0x10] sm:$0xf]
      %v454 = vld [vmem:[%s449 + $0x18] sm:$0xf]
      %v455 = vld [vmem:[%s449 + $0x1c] sm:$0xf]
      %v456 = vld [vmem:[%s449 + $0x24] sm:$0xf]
      %v457 = vld [vmem:[%s449 + $0x28] sm:$0xf]
      %v458 = vld [vmem:[%s449 + $0x30] sm:$0xf]
      %v459 = vld [vmem:[%s449 + $0x34] sm:$0xf]
      %v460 = vld [vmem:[%s449 + $0x3c] sm:$0xf]
      %v461 = vld [vmem:[%s449 + $0x40] sm:$0xf]
      %v462 = vld [vmem:[%s449 + $0x48] sm:$0xf]
      %v463 = vld [vmem:[%s449 + $0x4c] sm:$0xf]
      %v464 = vld [vmem:[%s449 + $0x54] sm:$0xf]
      %v465 = vld [vmem:[%s449 + $0x58] sm:$0xf]
      %v466 = vld [vmem:[%s449 + $0x60] sm:$0xf]
      %v467 = vld [vmem:[%s449 + $0x64] sm:$0xf]
      %v468 = vld [vmem:[%s449 + $0x6c] sm:$0xf]
      %v469 = vld [vmem:[%s449 + $0x70] sm:$0xf]
      %v470 = vld [vmem:[%s449 + $0x78] sm:$0xf]
      %v471 = vld [vmem:[%s449 + $0x7c] sm:$0xf]
      %v472 = vld [vmem:[%s449 + $0x84] sm:$0xf]
      %v473 = vld [vmem:[%s449 + $0x88] sm:$0xf]
      %v474 = vld [vmem:[%s449 + $0x90] sm:$0xf]
      %v475 = vld [vmem:[%s449 + $0x94] sm:$0xf]
      %v476 = vld [vmem:[%s449 + $0x9c] sm:$0xf]
      %v477 = vld [vmem:[%s449 + $0xa0] sm:$0xf]
      %v478 = vld [vmem:[%s449 + $0xa8] sm:$0xf]
      %v479 = vld [vmem:[%s449 + $0xac] sm:$0xf]
      %v480 = vld [vmem:[%s449 + $0xb4] sm:$0xf]
      %v481 = vld [vmem:[%s449 + $0xb8] sm:$0xf]
      %v482 = vld [vmem:[%s449 + $0xc0] sm:$0xf]
      %v483 = vld [vmem:[%s449 + $0xc4] sm:$0xf]
      %v484 = vld [vmem:[%s449 + $0xcc] sm:$0xf]
      %v485 = vld [vmem:[%s449 + $0xd0] sm:$0xf]
      %v486 = vld [vmem:[%s449 + $0xd8] sm:$0xf]
      %v487 = vld [vmem:[%s449 + $0xdc] sm:$0xf]
      %v488 = vld [vmem:[%s449 + $0xe4] sm:$0xf]
      %v489 = vld [vmem:[%s449 + $0xe8] sm:$0xf]
      %v490 = vld [vmem:[%s449 + $0xf0] sm:$0xf]
      %v491 = vld [vmem:[%s449 + $0xf4] sm:$0xf]
      %v492 = vld [vmem:[%s449 + $0xfc] sm:$0xf]
      %v493 = vld [vmem:[%s449 + $0x100] sm:$0xf]
      %v494 = vld [vmem:[%s449 + $0x108] sm:$0xf]
      %v495 = vld [vmem:[%s449 + $0x10c] sm:$0xf]
      %v496 = vld [vmem:[%s449 + $0x114] sm:$0xf]
      %v497 = vld [vmem:[%s449 + $0x118] sm:$0xf]
      %v498 = vld [vmem:[%s449 + $0x120] sm:$0xf]
      %v499 = vld [vmem:[%s449 + $0x124] sm:$0xf]
      %v500 = vld [vmem:[%s449 + $0x12c] sm:$0xf]
      %v501 = vld [vmem:[%s449 + $0x130] sm:$0xf]
      %v502 = vld [vmem:[%s449 + $0x138] sm:$0xf]
      %v503 = vld [vmem:[%s449 + $0x13c] sm:$0xf]
      %v504 = vld [vmem:[%s449 + $0x144] sm:$0xf]
      %v505 = vld [vmem:[%s449 + $0x148] sm:$0xf]
      %v506 = vld [vmem:[%s449 + $0x150] sm:$0xf]
      %v507 = vld [vmem:[%s449 + $0x154] sm:$0xf]
      %v508 = vld [vmem:[%s449 + $0x15c] sm:$0xf]
      %v509 = vld [vmem:[%s449 + $0x160] sm:$0xf]
      %v510 = vld [vmem:[%s449 + $0x168] sm:$0xf]
      %v511 = vld [vmem:[%s449 + $0x16c] sm:$0xf]
      %v512 = vld [vmem:[%s449 + $0x174] sm:$0xf]
      %v513 = vld [vmem:[%s449 + $0x178] sm:$0xf]
      %v514 = vld [vmem:[%s384 + $0x8] sm:$0x1]
      %v515 = vld [vmem:[%s384 + $0x14] sm:$0x1]
      %v516 = vld [vmem:[%s384 + $0x20] sm:$0x1]
      %v517 = vld [vmem:[%s384 + $0x2c] sm:$0x1]
      %v518 = vld [vmem:[%s384 + $0x38] sm:$0x1]
      %v519 = vld [vmem:[%s384 + $0x44] sm:$0x1]
      %v520 = vld [vmem:[%s384 + $0x50] sm:$0x1]
      %v521 = vld [vmem:[%s384 + $0x5c] sm:$0x1]
      %v522 = vld [vmem:[%s384 + $0x68] sm:$0x1]
      %v523 = vld [vmem:[%s384 + $0x74] sm:$0x1]
      %v524 = vld [vmem:[%s384 + $0x80] sm:$0x1]
      %v525 = vld [vmem:[%s384 + $0x8c] sm:$0x1]
      %v526 = vld [vmem:[%s384 + $0x98] sm:$0x1]
      %v527 = vld [vmem:[%s384 + $0xa4] sm:$0x1]
      %v528 = vld [vmem:[%s384 + $0xb0] sm:$0x1]
      %v529 = vld [vmem:[%s384 + $0xbc] sm:$0x1]
      %v530 = vld [vmem:[%s384 + $0xc8] sm:$0x1]
      %v531 = vld [vmem:[%s384 + $0xd4] sm:$0x1]
      %v532 = vld [vmem:[%s384 + $0xe0] sm:$0x1]
      %v533 = vld [vmem:[%s384 + $0xec] sm:$0x1]
      %v534 = vld [vmem:[%s384 + $0xf8] sm:$0x1]
      %v535 = vld [vmem:[%s384 + $0x104] sm:$0x1]
      %v536 = vld [vmem:[%s384 + $0x110] sm:$0x1]
      %v537 = vld [vmem:[%s384 + $0x11c] sm:$0x1]
      %v538 = vld [vmem:[%s384 + $0x128] sm:$0x1]
      %v539 = vld [vmem:[%s384 + $0x134] sm:$0x1]
      %v540 = vld [vmem:[%s384 + $0x140] sm:$0x1]
      %v541 = vld [vmem:[%s384 + $0x14c] sm:$0x1]
      %v542 = vld [vmem:[%s384 + $0x158] sm:$0x1]
      %v543 = vld [vmem:[%s384 + $0x164] sm:$0x1]
      %v544 = vld [vmem:[%s384 + $0x170] sm:$0x1]
      %v545 = vld [vmem:[%s384 + $0x17c] sm:$0x1]
      %s546 = scalar_lea.vmem %s207, 24
      %v547 = vld [vmem:[%s546] sm:$0xf]
      %v548 = vld [vmem:[%s546 + $0x4] sm:$0xf]
      %v549 = vld [vmem:[%s546 + $0xc] sm:$0xf]
      %v550 = vld [vmem:[%s546 + $0x10] sm:$0xf]
      %v551 = vld [vmem:[%s546 + $0x18] sm:$0xf]
      %v552 = vld [vmem:[%s546 + $0x1c] sm:$0xf]
      %v553 = vld [vmem:[%s546 + $0x24] sm:$0xf]
      %v554 = vld [vmem:[%s546 + $0x28] sm:$0xf]
      %v555 = vld [vmem:[%s546 + $0x30] sm:$0xf]
      %v556 = vld [vmem:[%s546 + $0x34] sm:$0xf]
      %v557 = vld [vmem:[%s546 + $0x3c] sm:$0xf]
      %v558 = vld [vmem:[%s546 + $0x40] sm:$0xf]
      %v559 = vld [vmem:[%s546 + $0x48] sm:$0xf]
      %v560 = vld [vmem:[%s546 + $0x4c] sm:$0xf]
      %v561 = vld [vmem:[%s546 + $0x54] sm:$0xf]
      %v562 = vld [vmem:[%s546 + $0x58] sm:$0xf]
      %v563 = vld [vmem:[%s546 + $0x60] sm:$0xf]
      %v564 = vld [vmem:[%s546 + $0x64] sm:$0xf]
      %v565 = vld [vmem:[%s546 + $0x6c] sm:$0xf]
      %v566 = vld [vmem:[%s546 + $0x70] sm:$0xf]
      %v567 = vld [vmem:[%s546 + $0x78] sm:$0xf]
      %v568 = vld [vmem:[%s546 + $0x7c] sm:$0xf]
      %v569 = vld [vmem:[%s546 + $0x84] sm:$0xf]
      %v570 = vld [vmem:[%s546 + $0x88] sm:$0xf]
      %v571 = vld [vmem:[%s546 + $0x90] sm:$0xf]
      %v572 = vld [vmem:[%s546 + $0x94] sm:$0xf]
      %v573 = vld [vmem:[%s546 + $0x9c] sm:$0xf]
      %v574 = vld [vmem:[%s546 + $0xa0] sm:$0xf]
      %v575 = vld [vmem:[%s546 + $0xa8] sm:$0xf]
      %v576 = vld [vmem:[%s546 + $0xac] sm:$0xf]
      %v577 = vld [vmem:[%s546 + $0xb4] sm:$0xf]
      %v578 = vld [vmem:[%s546 + $0xb8] sm:$0xf]
      %v579 = vld [vmem:[%s546 + $0xc0] sm:$0xf]
      %v580 = vld [vmem:[%s546 + $0xc4] sm:$0xf]
      %v581 = vld [vmem:[%s546 + $0xcc] sm:$0xf]
      %v582 = vld [vmem:[%s546 + $0xd0] sm:$0xf]
      %v583 = vld [vmem:[%s546 + $0xd8] sm:$0xf]
      %v584 = vld [vmem:[%s546 + $0xdc] sm:$0xf]
      %v585 = vld [vmem:[%s546 + $0xe4] sm:$0xf]
      %v586 = vld [vmem:[%s546 + $0xe8] sm:$0xf]
      %v587 = vld [vmem:[%s546 + $0xf0] sm:$0xf]
      %v588 = vld [vmem:[%s546 + $0xf4] sm:$0xf]
      %v589 = vld [vmem:[%s546 + $0xfc] sm:$0xf]
      %v590 = vld [vmem:[%s546 + $0x100] sm:$0xf]
      %v591 = vld [vmem:[%s546 + $0x108] sm:$0xf]
      %v592 = vld [vmem:[%s546 + $0x10c] sm:$0xf]
      %v593 = vld [vmem:[%s546 + $0x114] sm:$0xf]
      %v594 = vld [vmem:[%s546 + $0x118] sm:$0xf]
      %v595 = vld [vmem:[%s546 + $0x120] sm:$0xf]
      %v596 = vld [vmem:[%s546 + $0x124] sm:$0xf]
      %v597 = vld [vmem:[%s546 + $0x12c] sm:$0xf]
      %v598 = vld [vmem:[%s546 + $0x130] sm:$0xf]
      %v599 = vld [vmem:[%s546 + $0x138] sm:$0xf]
      %v600 = vld [vmem:[%s546 + $0x13c] sm:$0xf]
      %v601 = vld [vmem:[%s546 + $0x144] sm:$0xf]
      %v602 = vld [vmem:[%s546 + $0x148] sm:$0xf]
      %v603 = vld [vmem:[%s546 + $0x150] sm:$0xf]
      %v604 = vld [vmem:[%s546 + $0x154] sm:$0xf]
      %v605 = vld [vmem:[%s546 + $0x15c] sm:$0xf]
      %v606 = vld [vmem:[%s546 + $0x160] sm:$0xf]
      %v607 = vld [vmem:[%s546 + $0x168] sm:$0xf]
      %v608 = vld [vmem:[%s546 + $0x16c] sm:$0xf]
      %v609 = vld [vmem:[%s546 + $0x174] sm:$0xf]
      %v610 = vld [vmem:[%s546 + $0x178] sm:$0xf]
      %s611 = scalar_lea.vmem %s212, 24
      %v612 = vld [vmem:[%s611] sm:$0xf]
      %v613 = vld [vmem:[%s611 + $0x4] sm:$0xf]
      %v614 = vld [vmem:[%s611 + $0xc] sm:$0xf]
      %v615 = vld [vmem:[%s611 + $0x10] sm:$0xf]
      %v616 = vld [vmem:[%s611 + $0x18] sm:$0xf]
      %v617 = vld [vmem:[%s611 + $0x1c] sm:$0xf]
      %v618 = vld [vmem:[%s611 + $0x24] sm:$0xf]
      %v619 = vld [vmem:[%s611 + $0x28] sm:$0xf]
      %v620 = vld [vmem:[%s611 + $0x30] sm:$0xf]
      %v621 = vld [vmem:[%s611 + $0x34] sm:$0xf]
      %v622 = vld [vmem:[%s611 + $0x3c] sm:$0xf]
      %v623 = vld [vmem:[%s611 + $0x40] sm:$0xf]
      %v624 = vld [vmem:[%s611 + $0x48] sm:$0xf]
      %v625 = vld [vmem:[%s611 + $0x4c] sm:$0xf]
      %v626 = vld [vmem:[%s611 + $0x54] sm:$0xf]
      %v627 = vld [vmem:[%s611 + $0x58] sm:$0xf]
      %v628 = vld [vmem:[%s611 + $0x60] sm:$0xf]
      %v629 = vld [vmem:[%s611 + $0x64] sm:$0xf]
      %v630 = vld [vmem:[%s611 + $0x6c] sm:$0xf]
      %v631 = vld [vmem:[%s611 + $0x70] sm:$0xf]
      %v632 = vld [vmem:[%s611 + $0x78] sm:$0xf]
      %v633 = vld [vmem:[%s611 + $0x7c] sm:$0xf]
      %v634 = vld [vmem:[%s611 + $0x84] sm:$0xf]
      %v635 = vld [vmem:[%s611 + $0x88] sm:$0xf]
      %v636 = vld [vmem:[%s611 + $0x90] sm:$0xf]
      %v637 = vld [vmem:[%s611 + $0x94] sm:$0xf]
      %v638 = vld [vmem:[%s611 + $0x9c] sm:$0xf]
      %v639 = vld [vmem:[%s611 + $0xa0] sm:$0xf]
      %v640 = vld [vmem:[%s611 + $0xa8] sm:$0xf]
      %v641 = vld [vmem:[%s611 + $0xac] sm:$0xf]
      %v642 = vld [vmem:[%s611 + $0xb4] sm:$0xf]
      %v643 = vld [vmem:[%s611 + $0xb8] sm:$0xf]
      %v644 = vld [vmem:[%s611 + $0xc0] sm:$0xf]
      %v645 = vld [vmem:[%s611 + $0xc4] sm:$0xf]
      %v646 = vld [vmem:[%s611 + $0xcc] sm:$0xf]
      %v647 = vld [vmem:[%s611 + $0xd0] sm:$0xf]
      %v648 = vld [vmem:[%s611 + $0xd8] sm:$0xf]
      %v649 = vld [vmem:[%s611 + $0xdc] sm:$0xf]
      %v650 = vld [vmem:[%s611 + $0xe4] sm:$0xf]
      %v651 = vld [vmem:[%s611 + $0xe8] sm:$0xf]
      %v652 = vld [vmem:[%s611 + $0xf0] sm:$0xf]
      %v653 = vld [vmem:[%s611 + $0xf4] sm:$0xf]
      %v654 = vld [vmem:[%s611 + $0xfc] sm:$0xf]
      %v655 = vld [vmem:[%s611 + $0x100] sm:$0xf]
      %v656 = vld [vmem:[%s611 + $0x108] sm:$0xf]
      %v657 = vld [vmem:[%s611 + $0x10c] sm:$0xf]
      %v658 = vld [vmem:[%s611 + $0x114] sm:$0xf]
      %v659 = vld [vmem:[%s611 + $0x118] sm:$0xf]
      %v660 = vld [vmem:[%s611 + $0x120] sm:$0xf]
      %v661 = vld [vmem:[%s611 + $0x124] sm:$0xf]
      %v662 = vld [vmem:[%s611 + $0x12c] sm:$0xf]
      %v663 = vld [vmem:[%s611 + $0x130] sm:$0xf]
      %v664 = vld [vmem:[%s611 + $0x138] sm:$0xf]
      %v665 = vld [vmem:[%s611 + $0x13c] sm:$0xf]
      %v666 = vld [vmem:[%s611 + $0x144] sm:$0xf]
      %v667 = vld [vmem:[%s611 + $0x148] sm:$0xf]
      %v668 = vld [vmem:[%s611 + $0x150] sm:$0xf]
      %v669 = vld [vmem:[%s611 + $0x154] sm:$0xf]
      %v670 = vld [vmem:[%s611 + $0x15c] sm:$0xf]
      %v671 = vld [vmem:[%s611 + $0x160] sm:$0xf]
      %v672 = vld [vmem:[%s611 + $0x168] sm:$0xf]
      %v673 = vld [vmem:[%s611 + $0x16c] sm:$0xf]
      %v674 = vld [vmem:[%s611 + $0x174] sm:$0xf]
      %v675 = vld [vmem:[%s611 + $0x178] sm:$0xf]
      %v676 = vld [vmem:[%s546 + $0x8] sm:$0x1]
      %v677 = vld [vmem:[%s546 + $0x14] sm:$0x1]
      %v678 = vld [vmem:[%s546 + $0x20] sm:$0x1]
      %v679 = vld [vmem:[%s546 + $0x2c] sm:$0x1]
      %v680 = vld [vmem:[%s546 + $0x38] sm:$0x1]
      %v681 = vld [vmem:[%s546 + $0x44] sm:$0x1]
      %v682 = vld [vmem:[%s546 + $0x50] sm:$0x1]
      %v683 = vld [vmem:[%s546 + $0x5c] sm:$0x1]
      %v684 = vld [vmem:[%s546 + $0x68] sm:$0x1]
      %v685 = vld [vmem:[%s546 + $0x74] sm:$0x1]
      %v686 = vld [vmem:[%s546 + $0x80] sm:$0x1]
      %v687 = vld [vmem:[%s546 + $0x8c] sm:$0x1]
      %v688 = vld [vmem:[%s546 + $0x98] sm:$0x1]
      %v689 = vld [vmem:[%s546 + $0xa4] sm:$0x1]
      %v690 = vld [vmem:[%s546 + $0xb0] sm:$0x1]
      %v691 = vld [vmem:[%s546 + $0xbc] sm:$0x1]
      %v692 = vld [vmem:[%s546 + $0xc8] sm:$0x1]
      %v693 = vld [vmem:[%s546 + $0xd4] sm:$0x1]
      %v694 = vld [vmem:[%s546 + $0xe0] sm:$0x1]
      %v695 = vld [vmem:[%s546 + $0xec] sm:$0x1]
      %v696 = vld [vmem:[%s546 + $0xf8] sm:$0x1]
      %v697 = vld [vmem:[%s546 + $0x104] sm:$0x1]
      %v698 = vld [vmem:[%s546 + $0x110] sm:$0x1]
      %v699 = vld [vmem:[%s546 + $0x11c] sm:$0x1]
      %v700 = vld [vmem:[%s546 + $0x128] sm:$0x1]
      %v701 = vld [vmem:[%s546 + $0x134] sm:$0x1]
      %v702 = vld [vmem:[%s546 + $0x140] sm:$0x1]
      %v703 = vld [vmem:[%s546 + $0x14c] sm:$0x1]
      %v704 = vld [vmem:[%s546 + $0x158] sm:$0x1]
      %v705 = vld [vmem:[%s546 + $0x164] sm:$0x1]
      %v706 = vld [vmem:[%s546 + $0x170] sm:$0x1]
      %v707 = vld [vmem:[%s546 + $0x17c] sm:$0x1]
      %v772 = vunpack.c.l.b16 %v224
      %v773 = vunpack.c.l.b16 %v225
      %v774 = vunpack.c.l.b16 %v226
      %v775 = vunpack.c.l.b16 %v227
      %v776 = vunpack.c.l.b16 %v228
      %v777 = vunpack.c.l.b16 %v229
      %v778 = vunpack.c.l.b16 %v230
      %v779 = vunpack.c.l.b16 %v231
      %v780 = vunpack.c.l.b16 %v232
      %v781 = vunpack.c.l.b16 %v233
      %v782 = vunpack.c.l.b16 %v234
      %v783 = vunpack.c.l.b16 %v235
      %v784 = vunpack.c.l.b16 %v236
      %v785 = vunpack.c.l.b16 %v237
      %v786 = vunpack.c.l.b16 %v238
      %v787 = vunpack.c.l.b16 %v239
      %v788 = vunpack.c.l.b16 %v240
      %v789 = vunpack.c.l.b16 %v241
      %v790 = vunpack.c.l.b16 %v242
      %v791 = vunpack.c.l.b16 %v243
      %v792 = vunpack.c.l.b16 %v244
      %v793 = vunpack.c.l.b16 %v245
      %v794 = vunpack.c.l.b16 %v246
      %v795 = vunpack.c.l.b16 %v247
      %v796 = vunpack.c.l.b16 %v248
      %v797 = vunpack.c.l.b16 %v249
      %v798 = vunpack.c.l.b16 %v250
      %v799 = vunpack.c.l.b16 %v251
      %v800 = vunpack.c.l.b16 %v252
      %v801 = vunpack.c.l.b16 %v253
      %v802 = vunpack.c.l.b16 %v254
      %v803 = vunpack.c.l.b16 %v255
      %v804 = vunpack.c.l.b16 %v256
      %v805 = vunpack.c.l.b16 %v257
      %v806 = vunpack.c.l.b16 %v258
      %v807 = vunpack.c.l.b16 %v259
      %v808 = vunpack.c.l.b16 %v260
      %v809 = vunpack.c.l.b16 %v261
      %v810 = vunpack.c.l.b16 %v262
      %v811 = vunpack.c.l.b16 %v263
      %v812 = vunpack.c.l.b16 %v264
      %v813 = vunpack.c.l.b16 %v265
      %v814 = vunpack.c.l.b16 %v266
      %v815 = vunpack.c.l.b16 %v267
      %v816 = vunpack.c.l.b16 %v268
      %v817 = vunpack.c.l.b16 %v269
      %v818 = vunpack.c.l.b16 %v270
      %v819 = vunpack.c.l.b16 %v271
      %v820 = vunpack.c.l.b16 %v272
      %v821 = vunpack.c.l.b16 %v273
      %v822 = vunpack.c.l.b16 %v274
      %v823 = vunpack.c.l.b16 %v275
      %v824 = vunpack.c.l.b16 %v276
      %v825 = vunpack.c.l.b16 %v277
      %v826 = vunpack.c.l.b16 %v278
      %v827 = vunpack.c.l.b16 %v279
      %v828 = vunpack.c.l.b16 %v280
      %v829 = vunpack.c.l.b16 %v281
      %v830 = vunpack.c.l.b16 %v282
      %v831 = vunpack.c.l.b16 %v283
      %v832 = vunpack.c.l.b16 %v284
      %v833 = vunpack.c.l.b16 %v285
      %v834 = vunpack.c.l.b16 %v286
      %v835 = vunpack.c.l.b16 %v287
      %v836 = vpack.c.b16 %v773, %v772
      %v837 = vpack.c.b16 %v775, %v774
      %v838 = vpack.c.b16 %v777, %v776
      %v839 = vpack.c.b16 %v779, %v778
      %v840 = vpack.c.b16 %v781, %v780
      %v841 = vpack.c.b16 %v783, %v782
      %v842 = vpack.c.b16 %v785, %v784
      %v843 = vpack.c.b16 %v787, %v786
      %v844 = vpack.c.b16 %v789, %v788
      %v845 = vpack.c.b16 %v791, %v790
      %v846 = vpack.c.b16 %v793, %v792
      %v847 = vpack.c.b16 %v795, %v794
      %v848 = vpack.c.b16 %v797, %v796
      %v849 = vpack.c.b16 %v799, %v798
      %v850 = vpack.c.b16 %v801, %v800
      %v851 = vpack.c.b16 %v803, %v802
      %v852 = vpack.c.b16 %v805, %v804
      %v853 = vpack.c.b16 %v807, %v806
      %v854 = vpack.c.b16 %v809, %v808
      %v855 = vpack.c.b16 %v811, %v810
      %v856 = vpack.c.b16 %v813, %v812
      %v857 = vpack.c.b16 %v815, %v814
      %v858 = vpack.c.b16 %v817, %v816
      %v859 = vpack.c.b16 %v819, %v818
      %v860 = vpack.c.b16 %v821, %v820
      %v861 = vpack.c.b16 %v823, %v822
      %v862 = vpack.c.b16 %v825, %v824
      %v863 = vpack.c.b16 %v827, %v826
      %v864 = vpack.c.b16 %v829, %v828
      %v865 = vpack.c.b16 %v831, %v830
      %v866 = vpack.c.b16 %v833, %v832
      %v867 = vpack.c.b16 %v835, %v834
      %v932 = vunpack.c.l.b16 %v288
      %v933 = vunpack.c.l.b16 %v289
      %v934 = vunpack.c.l.b16 %v290
      %v935 = vunpack.c.l.b16 %v291
      %v936 = vunpack.c.l.b16 %v292
      %v937 = vunpack.c.l.b16 %v293
      %v938 = vunpack.c.l.b16 %v294
      %v939 = vunpack.c.l.b16 %v295
      %v940 = vunpack.c.l.b16 %v296
      %v941 = vunpack.c.l.b16 %v297
      %v942 = vunpack.c.l.b16 %v298
      %v943 = vunpack.c.l.b16 %v299
      %v944 = vunpack.c.l.b16 %v300
      %v945 = vunpack.c.l.b16 %v301
      %v946 = vunpack.c.l.b16 %v302
      %v947 = vunpack.c.l.b16 %v303
      %v948 = vunpack.c.l.b16 %v304
      %v949 = vunpack.c.l.b16 %v305
      %v950 = vunpack.c.l.b16 %v306
      %v951 = vunpack.c.l.b16 %v307
      %v952 = vunpack.c.l.b16 %v308
      %v953 = vunpack.c.l.b16 %v309
      %v954 = vunpack.c.l.b16 %v310
      %v955 = vunpack.c.l.b16 %v311
      %v956 = vunpack.c.l.b16 %v312
      %v957 = vunpack.c.l.b16 %v313
      %v958 = vunpack.c.l.b16 %v314
      %v959 = vunpack.c.l.b16 %v315
      %v960 = vunpack.c.l.b16 %v316
      %v961 = vunpack.c.l.b16 %v317
      %v962 = vunpack.c.l.b16 %v318
      %v963 = vunpack.c.l.b16 %v319
      %v964 = vunpack.c.l.b16 %v320
      %v965 = vunpack.c.l.b16 %v321
      %v966 = vunpack.c.l.b16 %v322
      %v967 = vunpack.c.l.b16 %v323
      %v968 = vunpack.c.l.b16 %v324
      %v969 = vunpack.c.l.b16 %v325
      %v970 = vunpack.c.l.b16 %v326
      %v971 = vunpack.c.l.b16 %v327
      %v972 = vunpack.c.l.b16 %v328
      %v973 = vunpack.c.l.b16 %v329
      %v974 = vunpack.c.l.b16 %v330
      %v975 = vunpack.c.l.b16 %v331
      %v976 = vunpack.c.l.b16 %v332
      %v977 = vunpack.c.l.b16 %v333
      %v978 = vunpack.c.l.b16 %v334
      %v979 = vunpack.c.l.b16 %v335
      %v980 = vunpack.c.l.b16 %v336
      %v981 = vunpack.c.l.b16 %v337
      %v982 = vunpack.c.l.b16 %v338
      %v983 = vunpack.c.l.b16 %v339
      %v984 = vunpack.c.l.b16 %v340
      %v985 = vunpack.c.l.b16 %v341
      %v986 = vunpack.c.l.b16 %v342
      %v987 = vunpack.c.l.b16 %v343
      %v988 = vunpack.c.l.b16 %v344
      %v989 = vunpack.c.l.b16 %v345
      %v990 = vunpack.c.l.b16 %v346
      %v991 = vunpack.c.l.b16 %v347
      %v992 = vunpack.c.l.b16 %v348
      %v993 = vunpack.c.l.b16 %v349
      %v994 = vunpack.c.l.b16 %v350
      %v995 = vunpack.c.l.b16 %v351
      %v996 = vpack.c.b16 %v933, %v932
      %v997 = vpack.c.b16 %v935, %v934
      %v998 = vpack.c.b16 %v937, %v936
      %v999 = vpack.c.b16 %v939, %v938
      %v1000 = vpack.c.b16 %v941, %v940
      %v1001 = vpack.c.b16 %v943, %v942
      %v1002 = vpack.c.b16 %v945, %v944
      %v1003 = vpack.c.b16 %v947, %v946
      %v1004 = vpack.c.b16 %v949, %v948
      %v1005 = vpack.c.b16 %v951, %v950
      %v1006 = vpack.c.b16 %v953, %v952
      %v1007 = vpack.c.b16 %v955, %v954
      %v1008 = vpack.c.b16 %v957, %v956
      %v1009 = vpack.c.b16 %v959, %v958
      %v1010 = vpack.c.b16 %v961, %v960
      %v1011 = vpack.c.b16 %v963, %v962
      %v1012 = vpack.c.b16 %v965, %v964
      %v1013 = vpack.c.b16 %v967, %v966
      %v1014 = vpack.c.b16 %v969, %v968
      %v1015 = vpack.c.b16 %v971, %v970
      %v1016 = vpack.c.b16 %v973, %v972
      %v1017 = vpack.c.b16 %v975, %v974
      %v1018 = vpack.c.b16 %v977, %v976
      %v1019 = vpack.c.b16 %v979, %v978
      %v1020 = vpack.c.b16 %v981, %v980
      %v1021 = vpack.c.b16 %v983, %v982
      %v1022 = vpack.c.b16 %v985, %v984
      %v1023 = vpack.c.b16 %v987, %v986
      %v1024 = vpack.c.b16 %v989, %v988
      %v1025 = vpack.c.b16 %v991, %v990
      %v1026 = vpack.c.b16 %v993, %v992
      %v1027 = vpack.c.b16 %v995, %v994
      %1028 = vrot.lane.b32.xlu0 %v996, 3
      %v1029 = vpop.permute.xlu0 %1028
      %1030 = vrot.lane.b32.xlu0 %v997, 3
      %v1031 = vpop.permute.xlu0 %1030
      %1032 = vrot.lane.b32.xlu0 %v998, 3
      %v1033 = vpop.permute.xlu0 %1032
      %1034 = vrot.lane.b32.xlu0 %v999, 3
      %v1035 = vpop.permute.xlu0 %1034
      %1036 = vrot.lane.b32.xlu0 %v1000, 3
      %v1037 = vpop.permute.xlu0 %1036
      %1038 = vrot.lane.b32.xlu0 %v1001, 3
      %v1039 = vpop.permute.xlu0 %1038
      %1040 = vrot.lane.b32.xlu0 %v1002, 3
      %v1041 = vpop.permute.xlu0 %1040
      %1042 = vrot.lane.b32.xlu0 %v1003, 3
      %v1043 = vpop.permute.xlu0 %1042
      %1044 = vrot.lane.b32.xlu0 %v1004, 3
      %v1045 = vpop.permute.xlu0 %1044
      %1046 = vrot.lane.b32.xlu0 %v1005, 3
      %v1047 = vpop.permute.xlu0 %1046
      %1048 = vrot.lane.b32.xlu0 %v1006, 3
      %v1049 = vpop.permute.xlu0 %1048
      %1050 = vrot.lane.b32.xlu0 %v1007, 3
      %v1051 = vpop.permute.xlu0 %1050
      %1052 = vrot.lane.b32.xlu0 %v1008, 3
      %v1053 = vpop.permute.xlu0 %1052
      %1054 = vrot.lane.b32.xlu0 %v1009, 3
      %v1055 = vpop.permute.xlu0 %1054
      %1056 = vrot.lane.b32.xlu0 %v1010, 3
      %v1057 = vpop.permute.xlu0 %1056
      %1058 = vrot.lane.b32.xlu0 %v1011, 3
      %v1059 = vpop.permute.xlu0 %1058
      %1060 = vrot.lane.b32.xlu0 %v1012, 3
      %v1061 = vpop.permute.xlu0 %1060
      %1062 = vrot.lane.b32.xlu0 %v1013, 3
      %v1063 = vpop.permute.xlu0 %1062
      %1064 = vrot.lane.b32.xlu0 %v1014, 3
      %v1065 = vpop.permute.xlu0 %1064
      %1066 = vrot.lane.b32.xlu0 %v1015, 3
      %v1067 = vpop.permute.xlu0 %1066
      %1068 = vrot.lane.b32.xlu0 %v1016, 3
      %v1069 = vpop.permute.xlu0 %1068
      %1070 = vrot.lane.b32.xlu0 %v1017, 3
      %v1071 = vpop.permute.xlu0 %1070
      %1072 = vrot.lane.b32.xlu0 %v1018, 3
      %v1073 = vpop.permute.xlu0 %1072
      %1074 = vrot.lane.b32.xlu0 %v1019, 3
      %v1075 = vpop.permute.xlu0 %1074
      %1076 = vrot.lane.b32.xlu0 %v1020, 3
      %v1077 = vpop.permute.xlu0 %1076
      %1078 = vrot.lane.b32.xlu0 %v1021, 3
      %v1079 = vpop.permute.xlu0 %1078
      %1080 = vrot.lane.b32.xlu0 %v1022, 3
      %v1081 = vpop.permute.xlu0 %1080
      %1082 = vrot.lane.b32.xlu0 %v1023, 3
      %v1083 = vpop.permute.xlu0 %1082
      %1084 = vrot.lane.b32.xlu0 %v1024, 3
      %v1085 = vpop.permute.xlu0 %1084
      %1086 = vrot.lane.b32.xlu0 %v1025, 3
      %v1087 = vpop.permute.xlu0 %1086
      %1088 = vrot.lane.b32.xlu0 %v1026, 3
      %v1089 = vpop.permute.xlu0 %1088
      %1090 = vrot.lane.b32.xlu0 %v1027, 3
      %v1091 = vpop.permute.xlu0 %1090
      %v1124 = vunpack.c.l.b16 %v352
      %v1125 = vunpack.c.l.b16 %v353
      %v1126 = vunpack.c.l.b16 %v354
      %v1127 = vunpack.c.l.b16 %v355
      %v1128 = vunpack.c.l.b16 %v356
      %v1129 = vunpack.c.l.b16 %v357
      %v1130 = vunpack.c.l.b16 %v358
      %v1131 = vunpack.c.l.b16 %v359
      %v1132 = vunpack.c.l.b16 %v360
      %v1133 = vunpack.c.l.b16 %v361
      %v1134 = vunpack.c.l.b16 %v362
      %v1135 = vunpack.c.l.b16 %v363
      %v1136 = vunpack.c.l.b16 %v364
      %v1137 = vunpack.c.l.b16 %v365
      %v1138 = vunpack.c.l.b16 %v366
      %v1139 = vunpack.c.l.b16 %v367
      %v1140 = vunpack.c.l.b16 %v368
      %v1141 = vunpack.c.l.b16 %v369
      %v1142 = vunpack.c.l.b16 %v370
      %v1143 = vunpack.c.l.b16 %v371
      %v1144 = vunpack.c.l.b16 %v372
      %v1145 = vunpack.c.l.b16 %v373
      %v1146 = vunpack.c.l.b16 %v374
      %v1147 = vunpack.c.l.b16 %v375
      %v1148 = vunpack.c.l.b16 %v376
      %v1149 = vunpack.c.l.b16 %v377
      %v1150 = vunpack.c.l.b16 %v378
      %v1151 = vunpack.c.l.b16 %v379
      %v1152 = vunpack.c.l.b16 %v380
      %v1153 = vunpack.c.l.b16 %v381
      %v1154 = vunpack.c.l.b16 %v382
      %v1155 = vunpack.c.l.b16 %v383
      %v1156 = vpack.c.b16 %v1124, %v1124
      %v1157 = vpack.c.b16 %v1125, %v1125
      %v1158 = vpack.c.b16 %v1126, %v1126
      %v1159 = vpack.c.b16 %v1127, %v1127
      %v1160 = vpack.c.b16 %v1128, %v1128
      %v1161 = vpack.c.b16 %v1129, %v1129
      %v1162 = vpack.c.b16 %v1130, %v1130
      %v1163 = vpack.c.b16 %v1131, %v1131
      %v1164 = vpack.c.b16 %v1132, %v1132
      %v1165 = vpack.c.b16 %v1133, %v1133
      %v1166 = vpack.c.b16 %v1134, %v1134
      %v1167 = vpack.c.b16 %v1135, %v1135
      %v1168 = vpack.c.b16 %v1136, %v1136
      %v1169 = vpack.c.b16 %v1137, %v1137
      %v1170 = vpack.c.b16 %v1138, %v1138
      %v1171 = vpack.c.b16 %v1139, %v1139
      %v1172 = vpack.c.b16 %v1140, %v1140
      %v1173 = vpack.c.b16 %v1141, %v1141
      %v1174 = vpack.c.b16 %v1142, %v1142
      %v1175 = vpack.c.b16 %v1143, %v1143
      %v1176 = vpack.c.b16 %v1144, %v1144
      %v1177 = vpack.c.b16 %v1145, %v1145
      %v1178 = vpack.c.b16 %v1146, %v1146
      %v1179 = vpack.c.b16 %v1147, %v1147
      %v1180 = vpack.c.b16 %v1148, %v1148
      %v1181 = vpack.c.b16 %v1149, %v1149
      %v1182 = vpack.c.b16 %v1150, %v1150
      %v1183 = vpack.c.b16 %v1151, %v1151
      %v1184 = vpack.c.b16 %v1152, %v1152
      %v1185 = vpack.c.b16 %v1153, %v1153
      %v1186 = vpack.c.b16 %v1154, %v1154
      %v1187 = vpack.c.b16 %v1155, %v1155
      %vm1188 = vsmask.f32 7424
      %v1190 = vshrl.u32 %v836, 16
      %v1192 = vshll.u32 %v836, 16
      %v1194 = vrot.slane %v1192, 1
      %v1195 = vor.u32 %v1190, %v1194
      %v1197 = vshll.u32 %v1156, 16
      %v1199 = vrot.slane %v1197, 1
      %v1200 = vsel %vm1188, %v1195, %v1199
      %v1202 = vshrl.u32 %v837, 16
      %v1204 = vshll.u32 %v837, 16
      %v1206 = vrot.slane %v1204, 1
      %v1207 = vor.u32 %v1202, %v1206
      %v1209 = vshll.u32 %v1157, 16
      %v1211 = vrot.slane %v1209, 1
      %v1212 = vsel %vm1188, %v1207, %v1211
      %v1214 = vshrl.u32 %v838, 16
      %v1216 = vshll.u32 %v838, 16
      %v1218 = vrot.slane %v1216, 1
      %v1219 = vor.u32 %v1214, %v1218
      %v1221 = vshll.u32 %v1158, 16
      %v1223 = vrot.slane %v1221, 1
      %v1224 = vsel %vm1188, %v1219, %v1223
      %v1226 = vshrl.u32 %v839, 16
      %v1228 = vshll.u32 %v839, 16
      %v1230 = vrot.slane %v1228, 1
      %v1231 = vor.u32 %v1226, %v1230
      %v1233 = vshll.u32 %v1159, 16
      %v1235 = vrot.slane %v1233, 1
      %v1236 = vsel %vm1188, %v1231, %v1235
      %v1238 = vshrl.u32 %v840, 16
      %v1240 = vshll.u32 %v840, 16
      %v1242 = vrot.slane %v1240, 1
      %v1243 = vor.u32 %v1238, %v1242
      %v1245 = vshll.u32 %v1160, 16
      %v1247 = vrot.slane %v1245, 1
      %v1248 = vsel %vm1188, %v1243, %v1247
      %v1250 = vshrl.u32 %v841, 16
      %v1252 = vshll.u32 %v841, 16
      %v1254 = vrot.slane %v1252, 1
      %v1255 = vor.u32 %v1250, %v1254
      %v1257 = vshll.u32 %v1161, 16
      %v1259 = vrot.slane %v1257, 1
      %v1260 = vsel %vm1188, %v1255, %v1259
      %v1262 = vshrl.u32 %v842, 16
      %v1264 = vshll.u32 %v842, 16
      %v1266 = vrot.slane %v1264, 1
      %v1267 = vor.u32 %v1262, %v1266
      %v1269 = vshll.u32 %v1162, 16
      %v1271 = vrot.slane %v1269, 1
      %v1272 = vsel %vm1188, %v1267, %v1271
      %v1274 = vshrl.u32 %v843, 16
      %v1276 = vshll.u32 %v843, 16
      %v1278 = vrot.slane %v1276, 1
      %v1279 = vor.u32 %v1274, %v1278
      %v1281 = vshll.u32 %v1163, 16
      %v1283 = vrot.slane %v1281, 1
      %v1284 = vsel %vm1188, %v1279, %v1283
      %v1286 = vshrl.u32 %v844, 16
      %v1288 = vshll.u32 %v844, 16
      %v1290 = vrot.slane %v1288, 1
      %v1291 = vor.u32 %v1286, %v1290
      %v1293 = vshll.u32 %v1164, 16
      %v1295 = vrot.slane %v1293, 1
      %v1296 = vsel %vm1188, %v1291, %v1295
      %v1298 = vshrl.u32 %v845, 16
      %v1300 = vshll.u32 %v845, 16
      %v1302 = vrot.slane %v1300, 1
      %v1303 = vor.u32 %v1298, %v1302
      %v1305 = vshll.u32 %v1165, 16
      %v1307 = vrot.slane %v1305, 1
      %v1308 = vsel %vm1188, %v1303, %v1307
      %v1310 = vshrl.u32 %v846, 16
      %v1312 = vshll.u32 %v846, 16
      %v1314 = vrot.slane %v1312, 1
      %v1315 = vor.u32 %v1310, %v1314
      %v1317 = vshll.u32 %v1166, 16
      %v1319 = vrot.slane %v1317, 1
      %v1320 = vsel %vm1188, %v1315, %v1319
      %v1322 = vshrl.u32 %v847, 16
      %v1324 = vshll.u32 %v847, 16
      %v1326 = vrot.slane %v1324, 1
      %v1327 = vor.u32 %v1322, %v1326
      %v1329 = vshll.u32 %v1167, 16
      %v1331 = vrot.slane %v1329, 1
      %v1332 = vsel %vm1188, %v1327, %v1331
      %v1334 = vshrl.u32 %v848, 16
      %v1336 = vshll.u32 %v848, 16
      %v1338 = vrot.slane %v1336, 1
      %v1339 = vor.u32 %v1334, %v1338
      %v1341 = vshll.u32 %v1168, 16
      %v1343 = vrot.slane %v1341, 1
      %v1344 = vsel %vm1188, %v1339, %v1343
      %v1346 = vshrl.u32 %v849, 16
      %v1348 = vshll.u32 %v849, 16
      %v1350 = vrot.slane %v1348, 1
      %v1351 = vor.u32 %v1346, %v1350
      %v1353 = vshll.u32 %v1169, 16
      %v1355 = vrot.slane %v1353, 1
      %v1356 = vsel %vm1188, %v1351, %v1355
      %v1358 = vshrl.u32 %v850, 16
      %v1360 = vshll.u32 %v850, 16
      %v1362 = vrot.slane %v1360, 1
      %v1363 = vor.u32 %v1358, %v1362
      %v1365 = vshll.u32 %v1170, 16
      %v1367 = vrot.slane %v1365, 1
      %v1368 = vsel %vm1188, %v1363, %v1367
      %v1370 = vshrl.u32 %v851, 16
      %v1372 = vshll.u32 %v851, 16
      %v1374 = vrot.slane %v1372, 1
      %v1375 = vor.u32 %v1370, %v1374
      %v1377 = vshll.u32 %v1171, 16
      %v1379 = vrot.slane %v1377, 1
      %v1380 = vsel %vm1188, %v1375, %v1379
      %v1382 = vshrl.u32 %v852, 16
      %v1384 = vshll.u32 %v852, 16
      %v1386 = vrot.slane %v1384, 1
      %v1387 = vor.u32 %v1382, %v1386
      %v1389 = vshll.u32 %v1172, 16
      %v1391 = vrot.slane %v1389, 1
      %v1392 = vsel %vm1188, %v1387, %v1391
      %v1394 = vshrl.u32 %v853, 16
      %v1396 = vshll.u32 %v853, 16
      %v1398 = vrot.slane %v1396, 1
      %v1399 = vor.u32 %v1394, %v1398
      %v1401 = vshll.u32 %v1173, 16
      %v1403 = vrot.slane %v1401, 1
      %v1404 = vsel %vm1188, %v1399, %v1403
      %v1406 = vshrl.u32 %v854, 16
      %v1408 = vshll.u32 %v854, 16
      %v1410 = vrot.slane %v1408, 1
      %v1411 = vor.u32 %v1406, %v1410
      %v1413 = vshll.u32 %v1174, 16
      %v1415 = vrot.slane %v1413, 1
      %v1416 = vsel %vm1188, %v1411, %v1415
      %v1418 = vshrl.u32 %v855, 16
      %v1420 = vshll.u32 %v855, 16
      %v1422 = vrot.slane %v1420, 1
      %v1423 = vor.u32 %v1418, %v1422
      %v1425 = vshll.u32 %v1175, 16
      %v1427 = vrot.slane %v1425, 1
      %v1428 = vsel %vm1188, %v1423, %v1427
      %v1430 = vshrl.u32 %v856, 16
      %v1432 = vshll.u32 %v856, 16
      %v1434 = vrot.slane %v1432, 1
      %v1435 = vor.u32 %v1430, %v1434
      %v1437 = vshll.u32 %v1176, 16
      %v1439 = vrot.slane %v1437, 1
      %v1440 = vsel %vm1188, %v1435, %v1439
      %v1442 = vshrl.u32 %v857, 16
      %v1444 = vshll.u32 %v857, 16
      %v1446 = vrot.slane %v1444, 1
      %v1447 = vor.u32 %v1442, %v1446
      %v1449 = vshll.u32 %v1177, 16
      %v1451 = vrot.slane %v1449, 1
      %v1452 = vsel %vm1188, %v1447, %v1451
      %v1454 = vshrl.u32 %v858, 16
      %v1456 = vshll.u32 %v858, 16
      %v1458 = vrot.slane %v1456, 1
      %v1459 = vor.u32 %v1454, %v1458
      %v1461 = vshll.u32 %v1178, 16
      %v1463 = vrot.slane %v1461, 1
      %v1464 = vsel %vm1188, %v1459, %v1463
      %v1466 = vshrl.u32 %v859, 16
      %v1468 = vshll.u32 %v859, 16
      %v1470 = vrot.slane %v1468, 1
      %v1471 = vor.u32 %v1466, %v1470
      %v1473 = vshll.u32 %v1179, 16
      %v1475 = vrot.slane %v1473, 1
      %v1476 = vsel %vm1188, %v1471, %v1475
      %v1478 = vshrl.u32 %v860, 16
      %v1480 = vshll.u32 %v860, 16
      %v1482 = vrot.slane %v1480, 1
      %v1483 = vor.u32 %v1478, %v1482
      %v1485 = vshll.u32 %v1180, 16
      %v1487 = vrot.slane %v1485, 1
      %v1488 = vsel %vm1188, %v1483, %v1487
      %v1490 = vshrl.u32 %v861, 16
      %v1492 = vshll.u32 %v861, 16
      %v1494 = vrot.slane %v1492, 1
      %v1495 = vor.u32 %v1490, %v1494
      %v1497 = vshll.u32 %v1181, 16
      %v1499 = vrot.slane %v1497, 1
      %v1500 = vsel %vm1188, %v1495, %v1499
      %v1502 = vshrl.u32 %v862, 16
      %v1504 = vshll.u32 %v862, 16
      %v1506 = vrot.slane %v1504, 1
      %v1507 = vor.u32 %v1502, %v1506
      %v1509 = vshll.u32 %v1182, 16
      %v1511 = vrot.slane %v1509, 1
      %v1512 = vsel %vm1188, %v1507, %v1511
      %v1514 = vshrl.u32 %v863, 16
      %v1516 = vshll.u32 %v863, 16
      %v1518 = vrot.slane %v1516, 1
      %v1519 = vor.u32 %v1514, %v1518
      %v1521 = vshll.u32 %v1183, 16
      %v1523 = vrot.slane %v1521, 1
      %v1524 = vsel %vm1188, %v1519, %v1523
      %v1526 = vshrl.u32 %v864, 16
      %v1528 = vshll.u32 %v864, 16
      %v1530 = vrot.slane %v1528, 1
      %v1531 = vor.u32 %v1526, %v1530
      %v1533 = vshll.u32 %v1184, 16
      %v1535 = vrot.slane %v1533, 1
      %v1536 = vsel %vm1188, %v1531, %v1535
      %v1538 = vshrl.u32 %v865, 16
      %v1540 = vshll.u32 %v865, 16
      %v1542 = vrot.slane %v1540, 1
      %v1543 = vor.u32 %v1538, %v1542
      %v1545 = vshll.u32 %v1185, 16
      %v1547 = vrot.slane %v1545, 1
      %v1548 = vsel %vm1188, %v1543, %v1547
      %v1550 = vshrl.u32 %v866, 16
      %v1552 = vshll.u32 %v866, 16
      %v1554 = vrot.slane %v1552, 1
      %v1555 = vor.u32 %v1550, %v1554
      %v1557 = vshll.u32 %v1186, 16
      %v1559 = vrot.slane %v1557, 1
      %v1560 = vsel %vm1188, %v1555, %v1559
      %v1562 = vshrl.u32 %v867, 16
      %v1564 = vshll.u32 %v867, 16
      %v1566 = vrot.slane %v1564, 1
      %v1567 = vor.u32 %v1562, %v1566
      %v1569 = vshll.u32 %v1187, 16
      %v1571 = vrot.slane %v1569, 1
      %v1572 = vsel %vm1188, %v1567, %v1571
      %1573 = vrot.lane.b32.xlu0 %v1200, 6
      %v1574 = vpop.permute.xlu0 %1573
      %1575 = vrot.lane.b32.xlu0 %v1212, 6
      %v1576 = vpop.permute.xlu0 %1575
      %1577 = vrot.lane.b32.xlu0 %v1224, 6
      %v1578 = vpop.permute.xlu0 %1577
      %1579 = vrot.lane.b32.xlu0 %v1236, 6
      %v1580 = vpop.permute.xlu0 %1579
      %1581 = vrot.lane.b32.xlu0 %v1248, 6
      %v1582 = vpop.permute.xlu0 %1581
      %1583 = vrot.lane.b32.xlu0 %v1260, 6
      %v1584 = vpop.permute.xlu0 %1583
      %1585 = vrot.lane.b32.xlu0 %v1272, 6
      %v1586 = vpop.permute.xlu0 %1585
      %1587 = vrot.lane.b32.xlu0 %v1284, 6
      %v1588 = vpop.permute.xlu0 %1587
      %1589 = vrot.lane.b32.xlu0 %v1296, 6
      %v1590 = vpop.permute.xlu0 %1589
      %1591 = vrot.lane.b32.xlu0 %v1308, 6
      %v1592 = vpop.permute.xlu0 %1591
      %1593 = vrot.lane.b32.xlu0 %v1320, 6
      %v1594 = vpop.permute.xlu0 %1593
      %1595 = vrot.lane.b32.xlu0 %v1332, 6
      %v1596 = vpop.permute.xlu0 %1595
      %1597 = vrot.lane.b32.xlu0 %v1344, 6
      %v1598 = vpop.permute.xlu0 %1597
      %1599 = vrot.lane.b32.xlu0 %v1356, 6
      %v1600 = vpop.permute.xlu0 %1599
      %1601 = vrot.lane.b32.xlu0 %v1368, 6
      %v1602 = vpop.permute.xlu0 %1601
      %1603 = vrot.lane.b32.xlu0 %v1380, 6
      %v1604 = vpop.permute.xlu0 %1603
      %1605 = vrot.lane.b32.xlu0 %v1392, 6
      %v1606 = vpop.permute.xlu0 %1605
      %1607 = vrot.lane.b32.xlu0 %v1404, 6
      %v1608 = vpop.permute.xlu0 %1607
      %1609 = vrot.lane.b32.xlu0 %v1416, 6
      %v1610 = vpop.permute.xlu0 %1609
      %1611 = vrot.lane.b32.xlu0 %v1428, 6
      %v1612 = vpop.permute.xlu0 %1611
      %1613 = vrot.lane.b32.xlu0 %v1440, 6
      %v1614 = vpop.permute.xlu0 %1613
      %1615 = vrot.lane.b32.xlu0 %v1452, 6
      %v1616 = vpop.permute.xlu0 %1615
      %1617 = vrot.lane.b32.xlu0 %v1464, 6
      %v1618 = vpop.permute.xlu0 %1617
      %1619 = vrot.lane.b32.xlu0 %v1476, 6
      %v1620 = vpop.permute.xlu0 %1619
      %1621 = vrot.lane.b32.xlu0 %v1488, 6
      %v1622 = vpop.permute.xlu0 %1621
      %1623 = vrot.lane.b32.xlu0 %v1500, 6
      %v1624 = vpop.permute.xlu0 %1623
      %1625 = vrot.lane.b32.xlu0 %v1512, 6
      %v1626 = vpop.permute.xlu0 %1625
      %1627 = vrot.lane.b32.xlu0 %v1524, 6
      %v1628 = vpop.permute.xlu0 %1627
      %1629 = vrot.lane.b32.xlu0 %v1536, 6
      %v1630 = vpop.permute.xlu0 %1629
      %1631 = vrot.lane.b32.xlu0 %v1548, 6
      %v1632 = vpop.permute.xlu0 %1631
      %1633 = vrot.lane.b32.xlu0 %v1560, 6
      %v1634 = vpop.permute.xlu0 %1633
      %1635 = vrot.lane.b32.xlu0 %v1572, 6
      %v1636 = vpop.permute.xlu0 %1635
      %v1701 = vunpack.c.l.b16 %v385
      %v1702 = vunpack.c.l.b16 %v386
      %v1703 = vunpack.c.l.b16 %v387
      %v1704 = vunpack.c.l.b16 %v388
      %v1705 = vunpack.c.l.b16 %v389
      %v1706 = vunpack.c.l.b16 %v390
      %v1707 = vunpack.c.l.b16 %v391
      %v1708 = vunpack.c.l.b16 %v392
      %v1709 = vunpack.c.l.b16 %v393
      %v1710 = vunpack.c.l.b16 %v394
      %v1711 = vunpack.c.l.b16 %v395
      %v1712 = vunpack.c.l.b16 %v396
      %v1713 = vunpack.c.l.b16 %v397
      %v1714 = vunpack.c.l.b16 %v398
      %v1715 = vunpack.c.l.b16 %v399
      %v1716 = vunpack.c.l.b16 %v400
      %v1717 = vunpack.c.l.b16 %v401
      %v1718 = vunpack.c.l.b16 %v402
      %v1719 = vunpack.c.l.b16 %v403
      %v1720 = vunpack.c.l.b16 %v404
      %v1721 = vunpack.c.l.b16 %v405
      %v1722 = vunpack.c.l.b16 %v406
      %v1723 = vunpack.c.l.b16 %v407
      %v1724 = vunpack.c.l.b16 %v408
      %v1725 = vunpack.c.l.b16 %v409
      %v1726 = vunpack.c.l.b16 %v410
      %v1727 = vunpack.c.l.b16 %v411
      %v1728 = vunpack.c.l.b16 %v412
      %v1729 = vunpack.c.l.b16 %v413
      %v1730 = vunpack.c.l.b16 %v414
      %v1731 = vunpack.c.l.b16 %v415
      %v1732 = vunpack.c.l.b16 %v416
      %v1733 = vunpack.c.l.b16 %v417
      %v1734 = vunpack.c.l.b16 %v418
      %v1735 = vunpack.c.l.b16 %v419
      %v1736 = vunpack.c.l.b16 %v420
      %v1737 = vunpack.c.l.b16 %v421
      %v1738 = vunpack.c.l.b16 %v422
      %v1739 = vunpack.c.l.b16 %v423
      %v1740 = vunpack.c.l.b16 %v424
      %v1741 = vunpack.c.l.b16 %v425
      %v1742 = vunpack.c.l.b16 %v426
      %v1743 = vunpack.c.l.b16 %v427
      %v1744 = vunpack.c.l.b16 %v428
      %v1745 = vunpack.c.l.b16 %v429
      %v1746 = vunpack.c.l.b16 %v430
      %v1747 = vunpack.c.l.b16 %v431
      %v1748 = vunpack.c.l.b16 %v432
      %v1749 = vunpack.c.l.b16 %v433
      %v1750 = vunpack.c.l.b16 %v434
      %v1751 = vunpack.c.l.b16 %v435
      %v1752 = vunpack.c.l.b16 %v436
      %v1753 = vunpack.c.l.b16 %v437
      %v1754 = vunpack.c.l.b16 %v438
      %v1755 = vunpack.c.l.b16 %v439
      %v1756 = vunpack.c.l.b16 %v440
      %v1757 = vunpack.c.l.b16 %v441
      %v1758 = vunpack.c.l.b16 %v442
      %v1759 = vunpack.c.l.b16 %v443
      %v1760 = vunpack.c.l.b16 %v444
      %v1761 = vunpack.c.l.b16 %v445
      %v1762 = vunpack.c.l.b16 %v446
      %v1763 = vunpack.c.l.b16 %v447
      %v1764 = vunpack.c.l.b16 %v448
      %v1765 = vpack.c.b16 %v1702, %v1701
      %v1766 = vpack.c.b16 %v1704, %v1703
      %v1767 = vpack.c.b16 %v1706, %v1705
      %v1768 = vpack.c.b16 %v1708, %v1707
      %v1769 = vpack.c.b16 %v1710, %v1709
      %v1770 = vpack.c.b16 %v1712, %v1711
      %v1771 = vpack.c.b16 %v1714, %v1713
      %v1772 = vpack.c.b16 %v1716, %v1715
      %v1773 = vpack.c.b16 %v1718, %v1717
      %v1774 = vpack.c.b16 %v1720, %v1719
      %v1775 = vpack.c.b16 %v1722, %v1721
      %v1776 = vpack.c.b16 %v1724, %v1723
      %v1777 = vpack.c.b16 %v1726, %v1725
      %v1778 = vpack.c.b16 %v1728, %v1727
      %v1779 = vpack.c.b16 %v1730, %v1729
      %v1780 = vpack.c.b16 %v1732, %v1731
      %v1781 = vpack.c.b16 %v1734, %v1733
      %v1782 = vpack.c.b16 %v1736, %v1735
      %v1783 = vpack.c.b16 %v1738, %v1737
      %v1784 = vpack.c.b16 %v1740, %v1739
      %v1785 = vpack.c.b16 %v1742, %v1741
      %v1786 = vpack.c.b16 %v1744, %v1743
      %v1787 = vpack.c.b16 %v1746, %v1745
      %v1788 = vpack.c.b16 %v1748, %v1747
      %v1789 = vpack.c.b16 %v1750, %v1749
      %v1790 = vpack.c.b16 %v1752, %v1751
      %v1791 = vpack.c.b16 %v1754, %v1753
      %v1792 = vpack.c.b16 %v1756, %v1755
      %v1793 = vpack.c.b16 %v1758, %v1757
      %v1794 = vpack.c.b16 %v1760, %v1759
      %v1795 = vpack.c.b16 %v1762, %v1761
      %v1796 = vpack.c.b16 %v1764, %v1763
      %1797 = vrot.lane.b32.xlu0 %v1765, 9
      %v1798 = vpop.permute.xlu0 %1797
      %1799 = vrot.lane.b32.xlu0 %v1766, 9
      %v1800 = vpop.permute.xlu0 %1799
      %1801 = vrot.lane.b32.xlu0 %v1767, 9
      %v1802 = vpop.permute.xlu0 %1801
      %1803 = vrot.lane.b32.xlu0 %v1768, 9
      %v1804 = vpop.permute.xlu0 %1803
      %1805 = vrot.lane.b32.xlu0 %v1769, 9
      %v1806 = vpop.permute.xlu0 %1805
      %1807 = vrot.lane.b32.xlu0 %v1770, 9
      %v1808 = vpop.permute.xlu0 %1807
      %1809 = vrot.lane.b32.xlu0 %v1771, 9
      %v1810 = vpop.permute.xlu0 %1809
      %1811 = vrot.lane.b32.xlu0 %v1772, 9
      %v1812 = vpop.permute.xlu0 %1811
      %1813 = vrot.lane.b32.xlu0 %v1773, 9
      %v1814 = vpop.permute.xlu0 %1813
      %1815 = vrot.lane.b32.xlu0 %v1774, 9
      %v1816 = vpop.permute.xlu0 %1815
      %1817 = vrot.lane.b32.xlu0 %v1775, 9
      %v1818 = vpop.permute.xlu0 %1817
      %1819 = vrot.lane.b32.xlu0 %v1776, 9
      %v1820 = vpop.permute.xlu0 %1819
      %1821 = vrot.lane.b32.xlu0 %v1777, 9
      %v1822 = vpop.permute.xlu0 %1821
      %1823 = vrot.lane.b32.xlu0 %v1778, 9
      %v1824 = vpop.permute.xlu0 %1823
      %1825 = vrot.lane.b32.xlu0 %v1779, 9
      %v1826 = vpop.permute.xlu0 %1825
      %1827 = vrot.lane.b32.xlu0 %v1780, 9
      %v1828 = vpop.permute.xlu0 %1827
      %1829 = vrot.lane.b32.xlu0 %v1781, 9
      %v1830 = vpop.permute.xlu0 %1829
      %1831 = vrot.lane.b32.xlu0 %v1782, 9
      %v1832 = vpop.permute.xlu0 %1831
      %1833 = vrot.lane.b32.xlu0 %v1783, 9
      %v1834 = vpop.permute.xlu0 %1833
      %1835 = vrot.lane.b32.xlu0 %v1784, 9
      %v1836 = vpop.permute.xlu0 %1835
      %1837 = vrot.lane.b32.xlu0 %v1785, 9
      %v1838 = vpop.permute.xlu0 %1837
      %1839 = vrot.lane.b32.xlu0 %v1786, 9
      %v1840 = vpop.permute.xlu0 %1839
      %1841 = vrot.lane.b32.xlu0 %v1787, 9
      %v1842 = vpop.permute.xlu0 %1841
      %1843 = vrot.lane.b32.xlu0 %v1788, 9
      %v1844 = vpop.permute.xlu0 %1843
      %1845 = vrot.lane.b32.xlu0 %v1789, 9
      %v1846 = vpop.permute.xlu0 %1845
      %1847 = vrot.lane.b32.xlu0 %v1790, 9
      %v1848 = vpop.permute.xlu0 %1847
      %1849 = vrot.lane.b32.xlu0 %v1791, 9
      %v1850 = vpop.permute.xlu0 %1849
      %1851 = vrot.lane.b32.xlu0 %v1792, 9
      %v1852 = vpop.permute.xlu0 %1851
      %1853 = vrot.lane.b32.xlu0 %v1793, 9
      %v1854 = vpop.permute.xlu0 %1853
      %1855 = vrot.lane.b32.xlu0 %v1794, 9
      %v1856 = vpop.permute.xlu0 %1855
      %1857 = vrot.lane.b32.xlu0 %v1795, 9
      %v1858 = vpop.permute.xlu0 %1857
      %1859 = vrot.lane.b32.xlu0 %v1796, 9
      %v1860 = vpop.permute.xlu0 %1859
      %v1925 = vunpack.c.l.b16 %v450
      %v1926 = vunpack.c.l.b16 %v451
      %v1927 = vunpack.c.l.b16 %v452
      %v1928 = vunpack.c.l.b16 %v453
      %v1929 = vunpack.c.l.b16 %v454
      %v1930 = vunpack.c.l.b16 %v455
      %v1931 = vunpack.c.l.b16 %v456
      %v1932 = vunpack.c.l.b16 %v457
      %v1933 = vunpack.c.l.b16 %v458
      %v1934 = vunpack.c.l.b16 %v459
      %v1935 = vunpack.c.l.b16 %v460
      %v1936 = vunpack.c.l.b16 %v461
      %v1937 = vunpack.c.l.b16 %v462
      %v1938 = vunpack.c.l.b16 %v463
      %v1939 = vunpack.c.l.b16 %v464
      %v1940 = vunpack.c.l.b16 %v465
      %v1941 = vunpack.c.l.b16 %v466
      %v1942 = vunpack.c.l.b16 %v467
      %v1943 = vunpack.c.l.b16 %v468
      %v1944 = vunpack.c.l.b16 %v469
      %v1945 = vunpack.c.l.b16 %v470
      %v1946 = vunpack.c.l.b16 %v471
      %v1947 = vunpack.c.l.b16 %v472
      %v1948 = vunpack.c.l.b16 %v473
      %v1949 = vunpack.c.l.b16 %v474
      %v1950 = vunpack.c.l.b16 %v475
      %v1951 = vunpack.c.l.b16 %v476
      %v1952 = vunpack.c.l.b16 %v477
      %v1953 = vunpack.c.l.b16 %v478
      %v1954 = vunpack.c.l.b16 %v479
      %v1955 = vunpack.c.l.b16 %v480
      %v1956 = vunpack.c.l.b16 %v481
      %v1957 = vunpack.c.l.b16 %v482
      %v1958 = vunpack.c.l.b16 %v483
      %v1959 = vunpack.c.l.b16 %v484
      %v1960 = vunpack.c.l.b16 %v485
      %v1961 = vunpack.c.l.b16 %v486
      %v1962 = vunpack.c.l.b16 %v487
      %v1963 = vunpack.c.l.b16 %v488
      %v1964 = vunpack.c.l.b16 %v489
      %v1965 = vunpack.c.l.b16 %v490
      %v1966 = vunpack.c.l.b16 %v491
      %v1967 = vunpack.c.l.b16 %v492
      %v1968 = vunpack.c.l.b16 %v493
      %v1969 = vunpack.c.l.b16 %v494
      %v1970 = vunpack.c.l.b16 %v495
      %v1971 = vunpack.c.l.b16 %v496
      %v1972 = vunpack.c.l.b16 %v497
      %v1973 = vunpack.c.l.b16 %v498
      %v1974 = vunpack.c.l.b16 %v499
      %v1975 = vunpack.c.l.b16 %v500
      %v1976 = vunpack.c.l.b16 %v501
      %v1977 = vunpack.c.l.b16 %v502
      %v1978 = vunpack.c.l.b16 %v503
      %v1979 = vunpack.c.l.b16 %v504
      %v1980 = vunpack.c.l.b16 %v505
      %v1981 = vunpack.c.l.b16 %v506
      %v1982 = vunpack.c.l.b16 %v507
      %v1983 = vunpack.c.l.b16 %v508
      %v1984 = vunpack.c.l.b16 %v509
      %v1985 = vunpack.c.l.b16 %v510
      %v1986 = vunpack.c.l.b16 %v511
      %v1987 = vunpack.c.l.b16 %v512
      %v1988 = vunpack.c.l.b16 %v513
      %v1989 = vpack.c.b16 %v1926, %v1925
      %v1990 = vpack.c.b16 %v1928, %v1927
      %v1991 = vpack.c.b16 %v1930, %v1929
      %v1992 = vpack.c.b16 %v1932, %v1931
      %v1993 = vpack.c.b16 %v1934, %v1933
      %v1994 = vpack.c.b16 %v1936, %v1935
      %v1995 = vpack.c.b16 %v1938, %v1937
      %v1996 = vpack.c.b16 %v1940, %v1939
      %v1997 = vpack.c.b16 %v1942, %v1941
      %v1998 = vpack.c.b16 %v1944, %v1943
      %v1999 = vpack.c.b16 %v1946, %v1945
      %v2000 = vpack.c.b16 %v1948, %v1947
      %v2001 = vpack.c.b16 %v1950, %v1949
      %v2002 = vpack.c.b16 %v1952, %v1951
      %v2003 = vpack.c.b16 %v1954, %v1953
      %v2004 = vpack.c.b16 %v1956, %v1955
      %v2005 = vpack.c.b16 %v1958, %v1957
      %v2006 = vpack.c.b16 %v1960, %v1959
      %v2007 = vpack.c.b16 %v1962, %v1961
      %v2008 = vpack.c.b16 %v1964, %v1963
      %v2009 = vpack.c.b16 %v1966, %v1965
      %v2010 = vpack.c.b16 %v1968, %v1967
      %v2011 = vpack.c.b16 %v1970, %v1969
      %v2012 = vpack.c.b16 %v1972, %v1971
      %v2013 = vpack.c.b16 %v1974, %v1973
      %v2014 = vpack.c.b16 %v1976, %v1975
      %v2015 = vpack.c.b16 %v1978, %v1977
      %v2016 = vpack.c.b16 %v1980, %v1979
      %v2017 = vpack.c.b16 %v1982, %v1981
      %v2018 = vpack.c.b16 %v1984, %v1983
      %v2019 = vpack.c.b16 %v1986, %v1985
      %v2020 = vpack.c.b16 %v1988, %v1987
      %2021 = vrot.lane.b32.xlu0 %v1989, 12
      %v2022 = vpop.permute.xlu0 %2021
      %2023 = vrot.lane.b32.xlu0 %v1990, 12
      %v2024 = vpop.permute.xlu0 %2023
      %2025 = vrot.lane.b32.xlu0 %v1991, 12
      %v2026 = vpop.permute.xlu0 %2025
      %2027 = vrot.lane.b32.xlu0 %v1992, 12
      %v2028 = vpop.permute.xlu0 %2027
      %2029 = vrot.lane.b32.xlu0 %v1993, 12
      %v2030 = vpop.permute.xlu0 %2029
      %2031 = vrot.lane.b32.xlu0 %v1994, 12
      %v2032 = vpop.permute.xlu0 %2031
      %2033 = vrot.lane.b32.xlu0 %v1995, 12
      %v2034 = vpop.permute.xlu0 %2033
      %2035 = vrot.lane.b32.xlu0 %v1996, 12
      %v2036 = vpop.permute.xlu0 %2035
      %2037 = vrot.lane.b32.xlu0 %v1997, 12
      %v2038 = vpop.permute.xlu0 %2037
      %2039 = vrot.lane.b32.xlu0 %v1998, 12
      %v2040 = vpop.permute.xlu0 %2039
      %2041 = vrot.lane.b32.xlu0 %v1999, 12
      %v2042 = vpop.permute.xlu0 %2041
      %2043 = vrot.lane.b32.xlu0 %v2000, 12
      %v2044 = vpop.permute.xlu0 %2043
      %2045 = vrot.lane.b32.xlu0 %v2001, 12
      %v2046 = vpop.permute.xlu0 %2045
      %2047 = vrot.lane.b32.xlu0 %v2002, 12
      %v2048 = vpop.permute.xlu0 %2047
      %2049 = vrot.lane.b32.xlu0 %v2003, 12
      %v2050 = vpop.permute.xlu0 %2049
      %2051 = vrot.lane.b32.xlu0 %v2004, 12
      %v2052 = vpop.permute.xlu0 %2051
      %2053 = vrot.lane.b32.xlu0 %v2005, 12
      %v2054 = vpop.permute.xlu0 %2053
      %2055 = vrot.lane.b32.xlu0 %v2006, 12
      %v2056 = vpop.permute.xlu0 %2055
      %2057 = vrot.lane.b32.xlu0 %v2007, 12
      %v2058 = vpop.permute.xlu0 %2057
      %2059 = vrot.lane.b32.xlu0 %v2008, 12
      %v2060 = vpop.permute.xlu0 %2059
      %2061 = vrot.lane.b32.xlu0 %v2009, 12
      %v2062 = vpop.permute.xlu0 %2061
      %2063 = vrot.lane.b32.xlu0 %v2010, 12
      %v2064 = vpop.permute.xlu0 %2063
      %2065 = vrot.lane.b32.xlu0 %v2011, 12
      %v2066 = vpop.permute.xlu0 %2065
      %2067 = vrot.lane.b32.xlu0 %v2012, 12
      %v2068 = vpop.permute.xlu0 %2067
      %2069 = vrot.lane.b32.xlu0 %v2013, 12
      %v2070 = vpop.permute.xlu0 %2069
      %2071 = vrot.lane.b32.xlu0 %v2014, 12
      %v2072 = vpop.permute.xlu0 %2071
      %2073 = vrot.lane.b32.xlu0 %v2015, 12
      %v2074 = vpop.permute.xlu0 %2073
      %2075 = vrot.lane.b32.xlu0 %v2016, 12
      %v2076 = vpop.permute.xlu0 %2075
      %2077 = vrot.lane.b32.xlu0 %v2017, 12
      %v2078 = vpop.permute.xlu0 %2077
      %2079 = vrot.lane.b32.xlu0 %v2018, 12
      %v2080 = vpop.permute.xlu0 %2079
      %2081 = vrot.lane.b32.xlu0 %v2019, 12
      %v2082 = vpop.permute.xlu0 %2081
      %2083 = vrot.lane.b32.xlu0 %v2020, 12
      %v2084 = vpop.permute.xlu0 %2083
      %v2117 = vunpack.c.l.b16 %v514
      %v2118 = vunpack.c.l.b16 %v515
      %v2119 = vunpack.c.l.b16 %v516
      %v2120 = vunpack.c.l.b16 %v517
      %v2121 = vunpack.c.l.b16 %v518
      %v2122 = vunpack.c.l.b16 %v519
      %v2123 = vunpack.c.l.b16 %v520
      %v2124 = vunpack.c.l.b16 %v521
      %v2125 = vunpack.c.l.b16 %v522
      %v2126 = vunpack.c.l.b16 %v523
      %v2127 = vunpack.c.l.b16 %v524
      %v2128 = vunpack.c.l.b16 %v525
      %v2129 = vunpack.c.l.b16 %v526
      %v2130 = vunpack.c.l.b16 %v527
      %v2131 = vunpack.c.l.b16 %v528
      %v2132 = vunpack.c.l.b16 %v529
      %v2133 = vunpack.c.l.b16 %v530
      %v2134 = vunpack.c.l.b16 %v531
      %v2135 = vunpack.c.l.b16 %v532
      %v2136 = vunpack.c.l.b16 %v533
      %v2137 = vunpack.c.l.b16 %v534
      %v2138 = vunpack.c.l.b16 %v535
      %v2139 = vunpack.c.l.b16 %v536
      %v2140 = vunpack.c.l.b16 %v537
      %v2141 = vunpack.c.l.b16 %v538
      %v2142 = vunpack.c.l.b16 %v539
      %v2143 = vunpack.c.l.b16 %v540
      %v2144 = vunpack.c.l.b16 %v541
      %v2145 = vunpack.c.l.b16 %v542
      %v2146 = vunpack.c.l.b16 %v543
      %v2147 = vunpack.c.l.b16 %v544
      %v2148 = vunpack.c.l.b16 %v545
      %v2149 = vpack.c.b16 %v2117, %v2117
      %v2150 = vpack.c.b16 %v2118, %v2118
      %v2151 = vpack.c.b16 %v2119, %v2119
      %v2152 = vpack.c.b16 %v2120, %v2120
      %v2153 = vpack.c.b16 %v2121, %v2121
      %v2154 = vpack.c.b16 %v2122, %v2122
      %v2155 = vpack.c.b16 %v2123, %v2123
      %v2156 = vpack.c.b16 %v2124, %v2124
      %v2157 = vpack.c.b16 %v2125, %v2125
      %v2158 = vpack.c.b16 %v2126, %v2126
      %v2159 = vpack.c.b16 %v2127, %v2127
      %v2160 = vpack.c.b16 %v2128, %v2128
      %v2161 = vpack.c.b16 %v2129, %v2129
      %v2162 = vpack.c.b16 %v2130, %v2130
      %v2163 = vpack.c.b16 %v2131, %v2131
      %v2164 = vpack.c.b16 %v2132, %v2132
      %v2165 = vpack.c.b16 %v2133, %v2133
      %v2166 = vpack.c.b16 %v2134, %v2134
      %v2167 = vpack.c.b16 %v2135, %v2135
      %v2168 = vpack.c.b16 %v2136, %v2136
      %v2169 = vpack.c.b16 %v2137, %v2137
      %v2170 = vpack.c.b16 %v2138, %v2138
      %v2171 = vpack.c.b16 %v2139, %v2139
      %v2172 = vpack.c.b16 %v2140, %v2140
      %v2173 = vpack.c.b16 %v2141, %v2141
      %v2174 = vpack.c.b16 %v2142, %v2142
      %v2175 = vpack.c.b16 %v2143, %v2143
      %v2176 = vpack.c.b16 %v2144, %v2144
      %v2177 = vpack.c.b16 %v2145, %v2145
      %v2178 = vpack.c.b16 %v2146, %v2146
      %v2179 = vpack.c.b16 %v2147, %v2147
      %v2180 = vpack.c.b16 %v2148, %v2148
      %v2182 = vshrl.u32 %v1765, 16
      %v2184 = vshll.u32 %v1765, 16
      %v2186 = vrot.slane %v2184, 1
      %v2187 = vor.u32 %v2182, %v2186
      %v2189 = vshll.u32 %v2149, 16
      %v2191 = vrot.slane %v2189, 1
      %v2192 = vsel %vm1188, %v2187, %v2191
      %v2194 = vshrl.u32 %v1766, 16
      %v2196 = vshll.u32 %v1766, 16
      %v2198 = vrot.slane %v2196, 1
      %v2199 = vor.u32 %v2194, %v2198
      %v2201 = vshll.u32 %v2150, 16
      %v2203 = vrot.slane %v2201, 1
      %v2204 = vsel %vm1188, %v2199, %v2203
      %v2206 = vshrl.u32 %v1767, 16
      %v2208 = vshll.u32 %v1767, 16
      %v2210 = vrot.slane %v2208, 1
      %v2211 = vor.u32 %v2206, %v2210
      %v2213 = vshll.u32 %v2151, 16
      %v2215 = vrot.slane %v2213, 1
      %v2216 = vsel %vm1188, %v2211, %v2215
      %v2218 = vshrl.u32 %v1768, 16
      %v2220 = vshll.u32 %v1768, 16
      %v2222 = vrot.slane %v2220, 1
      %v2223 = vor.u32 %v2218, %v2222
      %v2225 = vshll.u32 %v2152, 16
      %v2227 = vrot.slane %v2225, 1
      %v2228 = vsel %vm1188, %v2223, %v2227
      %v2230 = vshrl.u32 %v1769, 16
      %v2232 = vshll.u32 %v1769, 16
      %v2234 = vrot.slane %v2232, 1
      %v2235 = vor.u32 %v2230, %v2234
      %v2237 = vshll.u32 %v2153, 16
      %v2239 = vrot.slane %v2237, 1
      %v2240 = vsel %vm1188, %v2235, %v2239
      %v2242 = vshrl.u32 %v1770, 16
      %v2244 = vshll.u32 %v1770, 16
      %v2246 = vrot.slane %v2244, 1
      %v2247 = vor.u32 %v2242, %v2246
      %v2249 = vshll.u32 %v2154, 16
      %v2251 = vrot.slane %v2249, 1
      %v2252 = vsel %vm1188, %v2247, %v2251
      %v2254 = vshrl.u32 %v1771, 16
      %v2256 = vshll.u32 %v1771, 16
      %v2258 = vrot.slane %v2256, 1
      %v2259 = vor.u32 %v2254, %v2258
      %v2261 = vshll.u32 %v2155, 16
      %v2263 = vrot.slane %v2261, 1
      %v2264 = vsel %vm1188, %v2259, %v2263
      %v2266 = vshrl.u32 %v1772, 16
      %v2268 = vshll.u32 %v1772, 16
      %v2270 = vrot.slane %v2268, 1
      %v2271 = vor.u32 %v2266, %v2270
      %v2273 = vshll.u32 %v2156, 16
      %v2275 = vrot.slane %v2273, 1
      %v2276 = vsel %vm1188, %v2271, %v2275
      %v2278 = vshrl.u32 %v1773, 16
      %v2280 = vshll.u32 %v1773, 16
      %v2282 = vrot.slane %v2280, 1
      %v2283 = vor.u32 %v2278, %v2282
      %v2285 = vshll.u32 %v2157, 16
      %v2287 = vrot.slane %v2285, 1
      %v2288 = vsel %vm1188, %v2283, %v2287
      %v2290 = vshrl.u32 %v1774, 16
      %v2292 = vshll.u32 %v1774, 16
      %v2294 = vrot.slane %v2292, 1
      %v2295 = vor.u32 %v2290, %v2294
      %v2297 = vshll.u32 %v2158, 16
      %v2299 = vrot.slane %v2297, 1
      %v2300 = vsel %vm1188, %v2295, %v2299
      %v2302 = vshrl.u32 %v1775, 16
      %v2304 = vshll.u32 %v1775, 16
      %v2306 = vrot.slane %v2304, 1
      %v2307 = vor.u32 %v2302, %v2306
      %v2309 = vshll.u32 %v2159, 16
      %v2311 = vrot.slane %v2309, 1
      %v2312 = vsel %vm1188, %v2307, %v2311
      %v2314 = vshrl.u32 %v1776, 16
      %v2316 = vshll.u32 %v1776, 16
      %v2318 = vrot.slane %v2316, 1
      %v2319 = vor.u32 %v2314, %v2318
      %v2321 = vshll.u32 %v2160, 16
      %v2323 = vrot.slane %v2321, 1
      %v2324 = vsel %vm1188, %v2319, %v2323
      %v2326 = vshrl.u32 %v1777, 16
      %v2328 = vshll.u32 %v1777, 16
      %v2330 = vrot.slane %v2328, 1
      %v2331 = vor.u32 %v2326, %v2330
      %v2333 = vshll.u32 %v2161, 16
      %v2335 = vrot.slane %v2333, 1
      %v2336 = vsel %vm1188, %v2331, %v2335
      %v2338 = vshrl.u32 %v1778, 16
      %v2340 = vshll.u32 %v1778, 16
      %v2342 = vrot.slane %v2340, 1
      %v2343 = vor.u32 %v2338, %v2342
      %v2345 = vshll.u32 %v2162, 16
      %v2347 = vrot.slane %v2345, 1
      %v2348 = vsel %vm1188, %v2343, %v2347
      %v2350 = vshrl.u32 %v1779, 16
      %v2352 = vshll.u32 %v1779, 16
      %v2354 = vrot.slane %v2352, 1
      %v2355 = vor.u32 %v2350, %v2354
      %v2357 = vshll.u32 %v2163, 16
      %v2359 = vrot.slane %v2357, 1
      %v2360 = vsel %vm1188, %v2355, %v2359
      %v2362 = vshrl.u32 %v1780, 16
      %v2364 = vshll.u32 %v1780, 16
      %v2366 = vrot.slane %v2364, 1
      %v2367 = vor.u32 %v2362, %v2366
      %v2369 = vshll.u32 %v2164, 16
      %v2371 = vrot.slane %v2369, 1
      %v2372 = vsel %vm1188, %v2367, %v2371
      %v2374 = vshrl.u32 %v1781, 16
      %v2376 = vshll.u32 %v1781, 16
      %v2378 = vrot.slane %v2376, 1
      %v2379 = vor.u32 %v2374, %v2378
      %v2381 = vshll.u32 %v2165, 16
      %v2383 = vrot.slane %v2381, 1
      %v2384 = vsel %vm1188, %v2379, %v2383
      %v2386 = vshrl.u32 %v1782, 16
      %v2388 = vshll.u32 %v1782, 16
      %v2390 = vrot.slane %v2388, 1
      %v2391 = vor.u32 %v2386, %v2390
      %v2393 = vshll.u32 %v2166, 16
      %v2395 = vrot.slane %v2393, 1
      %v2396 = vsel %vm1188, %v2391, %v2395
      %v2398 = vshrl.u32 %v1783, 16
      %v2400 = vshll.u32 %v1783, 16
      %v2402 = vrot.slane %v2400, 1
      %v2403 = vor.u32 %v2398, %v2402
      %v2405 = vshll.u32 %v2167, 16
      %v2407 = vrot.slane %v2405, 1
      %v2408 = vsel %vm1188, %v2403, %v2407
      %v2410 = vshrl.u32 %v1784, 16
      %v2412 = vshll.u32 %v1784, 16
      %v2414 = vrot.slane %v2412, 1
      %v2415 = vor.u32 %v2410, %v2414
      %v2417 = vshll.u32 %v2168, 16
      %v2419 = vrot.slane %v2417, 1
      %v2420 = vsel %vm1188, %v2415, %v2419
      %v2422 = vshrl.u32 %v1785, 16
      %v2424 = vshll.u32 %v1785, 16
      %v2426 = vrot.slane %v2424, 1
      %v2427 = vor.u32 %v2422, %v2426
      %v2429 = vshll.u32 %v2169, 16
      %v2431 = vrot.slane %v2429, 1
      %v2432 = vsel %vm1188, %v2427, %v2431
      %v2434 = vshrl.u32 %v1786, 16
      %v2436 = vshll.u32 %v1786, 16
      %v2438 = vrot.slane %v2436, 1
      %v2439 = vor.u32 %v2434, %v2438
      %v2441 = vshll.u32 %v2170, 16
      %v2443 = vrot.slane %v2441, 1
      %v2444 = vsel %vm1188, %v2439, %v2443
      %v2446 = vshrl.u32 %v1787, 16
      %v2448 = vshll.u32 %v1787, 16
      %v2450 = vrot.slane %v2448, 1
      %v2451 = vor.u32 %v2446, %v2450
      %v2453 = vshll.u32 %v2171, 16
      %v2455 = vrot.slane %v2453, 1
      %v2456 = vsel %vm1188, %v2451, %v2455
      %v2458 = vshrl.u32 %v1788, 16
      %v2460 = vshll.u32 %v1788, 16
      %v2462 = vrot.slane %v2460, 1
      %v2463 = vor.u32 %v2458, %v2462
      %v2465 = vshll.u32 %v2172, 16
      %v2467 = vrot.slane %v2465, 1
      %v2468 = vsel %vm1188, %v2463, %v2467
      %v2470 = vshrl.u32 %v1789, 16
      %v2472 = vshll.u32 %v1789, 16
      %v2474 = vrot.slane %v2472, 1
      %v2475 = vor.u32 %v2470, %v2474
      %v2477 = vshll.u32 %v2173, 16
      %v2479 = vrot.slane %v2477, 1
      %v2480 = vsel %vm1188, %v2475, %v2479
      %v2482 = vshrl.u32 %v1790, 16
      %v2484 = vshll.u32 %v1790, 16
      %v2486 = vrot.slane %v2484, 1
      %v2487 = vor.u32 %v2482, %v2486
      %v2489 = vshll.u32 %v2174, 16
      %v2491 = vrot.slane %v2489, 1
      %v2492 = vsel %vm1188, %v2487, %v2491
      %v2494 = vshrl.u32 %v1791, 16
      %v2496 = vshll.u32 %v1791, 16
      %v2498 = vrot.slane %v2496, 1
      %v2499 = vor.u32 %v2494, %v2498
      %v2501 = vshll.u32 %v2175, 16
      %v2503 = vrot.slane %v2501, 1
      %v2504 = vsel %vm1188, %v2499, %v2503
      %v2506 = vshrl.u32 %v1792, 16
      %v2508 = vshll.u32 %v1792, 16
      %v2510 = vrot.slane %v2508, 1
      %v2511 = vor.u32 %v2506, %v2510
      %v2513 = vshll.u32 %v2176, 16
      %v2515 = vrot.slane %v2513, 1
      %v2516 = vsel %vm1188, %v2511, %v2515
      %v2518 = vshrl.u32 %v1793, 16
      %v2520 = vshll.u32 %v1793, 16
      %v2522 = vrot.slane %v2520, 1
      %v2523 = vor.u32 %v2518, %v2522
      %v2525 = vshll.u32 %v2177, 16
      %v2527 = vrot.slane %v2525, 1
      %v2528 = vsel %vm1188, %v2523, %v2527
      %v2530 = vshrl.u32 %v1794, 16
      %v2532 = vshll.u32 %v1794, 16
      %v2534 = vrot.slane %v2532, 1
      %v2535 = vor.u32 %v2530, %v2534
      %v2537 = vshll.u32 %v2178, 16
      %v2539 = vrot.slane %v2537, 1
      %v2540 = vsel %vm1188, %v2535, %v2539
      %v2542 = vshrl.u32 %v1795, 16
      %v2544 = vshll.u32 %v1795, 16
      %v2546 = vrot.slane %v2544, 1
      %v2547 = vor.u32 %v2542, %v2546
      %v2549 = vshll.u32 %v2179, 16
      %v2551 = vrot.slane %v2549, 1
      %v2552 = vsel %vm1188, %v2547, %v2551
      %v2554 = vshrl.u32 %v1796, 16
      %v2556 = vshll.u32 %v1796, 16
      %v2558 = vrot.slane %v2556, 1
      %v2559 = vor.u32 %v2554, %v2558
      %v2561 = vshll.u32 %v2180, 16
      %v2563 = vrot.slane %v2561, 1
      %v2564 = vsel %vm1188, %v2559, %v2563
      %2565 = vrot.lane.b32.xlu0 %v2192, 15
      %v2566 = vpop.permute.xlu0 %2565
      %2567 = vrot.lane.b32.xlu0 %v2204, 15
      %v2568 = vpop.permute.xlu0 %2567
      %2569 = vrot.lane.b32.xlu0 %v2216, 15
      %v2570 = vpop.permute.xlu0 %2569
      %2571 = vrot.lane.b32.xlu0 %v2228, 15
      %v2572 = vpop.permute.xlu0 %2571
      %2573 = vrot.lane.b32.xlu0 %v2240, 15
      %v2574 = vpop.permute.xlu0 %2573
      %2575 = vrot.lane.b32.xlu0 %v2252, 15
      %v2576 = vpop.permute.xlu0 %2575
      %2577 = vrot.lane.b32.xlu0 %v2264, 15
      %v2578 = vpop.permute.xlu0 %2577
      %2579 = vrot.lane.b32.xlu0 %v2276, 15
      %v2580 = vpop.permute.xlu0 %2579
      %2581 = vrot.lane.b32.xlu0 %v2288, 15
      %v2582 = vpop.permute.xlu0 %2581
      %2583 = vrot.lane.b32.xlu0 %v2300, 15
      %v2584 = vpop.permute.xlu0 %2583
      %2585 = vrot.lane.b32.xlu0 %v2312, 15
      %v2586 = vpop.permute.xlu0 %2585
      %2587 = vrot.lane.b32.xlu0 %v2324, 15
      %v2588 = vpop.permute.xlu0 %2587
      %2589 = vrot.lane.b32.xlu0 %v2336, 15
      %v2590 = vpop.permute.xlu0 %2589
      %2591 = vrot.lane.b32.xlu0 %v2348, 15
      %v2592 = vpop.permute.xlu0 %2591
      %2593 = vrot.lane.b32.xlu0 %v2360, 15
      %v2594 = vpop.permute.xlu0 %2593
      %2595 = vrot.lane.b32.xlu0 %v2372, 15
      %v2596 = vpop.permute.xlu0 %2595
      %2597 = vrot.lane.b32.xlu0 %v2384, 15
      %v2598 = vpop.permute.xlu0 %2597
      %2599 = vrot.lane.b32.xlu0 %v2396, 15
      %v2600 = vpop.permute.xlu0 %2599
      %2601 = vrot.lane.b32.xlu0 %v2408, 15
      %v2602 = vpop.permute.xlu0 %2601
      %2603 = vrot.lane.b32.xlu0 %v2420, 15
      %v2604 = vpop.permute.xlu0 %2603
      %2605 = vrot.lane.b32.xlu0 %v2432, 15
      %v2606 = vpop.permute.xlu0 %2605
      %2607 = vrot.lane.b32.xlu0 %v2444, 15
      %v2608 = vpop.permute.xlu0 %2607
      %2609 = vrot.lane.b32.xlu0 %v2456, 15
      %v2610 = vpop.permute.xlu0 %2609
      %2611 = vrot.lane.b32.xlu0 %v2468, 15
      %v2612 = vpop.permute.xlu0 %2611
      %2613 = vrot.lane.b32.xlu0 %v2480, 15
      %v2614 = vpop.permute.xlu0 %2613
      %2615 = vrot.lane.b32.xlu0 %v2492, 15
      %v2616 = vpop.permute.xlu0 %2615
      %2617 = vrot.lane.b32.xlu0 %v2504, 15
      %v2618 = vpop.permute.xlu0 %2617
      %2619 = vrot.lane.b32.xlu0 %v2516, 15
      %v2620 = vpop.permute.xlu0 %2619
      %2621 = vrot.lane.b32.xlu0 %v2528, 15
      %v2622 = vpop.permute.xlu0 %2621
      %2623 = vrot.lane.b32.xlu0 %v2540, 15
      %v2624 = vpop.permute.xlu0 %2623
      %2625 = vrot.lane.b32.xlu0 %v2552, 15
      %v2626 = vpop.permute.xlu0 %2625
      %2627 = vrot.lane.b32.xlu0 %v2564, 15
      %v2628 = vpop.permute.xlu0 %2627
      %v2693 = vunpack.c.l.b16 %v547
      %v2694 = vunpack.c.l.b16 %v548
      %v2695 = vunpack.c.l.b16 %v549
      %v2696 = vunpack.c.l.b16 %v550
      %v2697 = vunpack.c.l.b16 %v551
      %v2698 = vunpack.c.l.b16 %v552
      %v2699 = vunpack.c.l.b16 %v553
      %v2700 = vunpack.c.l.b16 %v554
      %v2701 = vunpack.c.l.b16 %v555
      %v2702 = vunpack.c.l.b16 %v556
      %v2703 = vunpack.c.l.b16 %v557
      %v2704 = vunpack.c.l.b16 %v558
      %v2705 = vunpack.c.l.b16 %v559
      %v2706 = vunpack.c.l.b16 %v560
      %v2707 = vunpack.c.l.b16 %v561
      %v2708 = vunpack.c.l.b16 %v562
      %v2709 = vunpack.c.l.b16 %v563
      %v2710 = vunpack.c.l.b16 %v564
      %v2711 = vunpack.c.l.b16 %v565
      %v2712 = vunpack.c.l.b16 %v566
      %v2713 = vunpack.c.l.b16 %v567
      %v2714 = vunpack.c.l.b16 %v568
      %v2715 = vunpack.c.l.b16 %v569
      %v2716 = vunpack.c.l.b16 %v570
      %v2717 = vunpack.c.l.b16 %v571
      %v2718 = vunpack.c.l.b16 %v572
      %v2719 = vunpack.c.l.b16 %v573
      %v2720 = vunpack.c.l.b16 %v574
      %v2721 = vunpack.c.l.b16 %v575
      %v2722 = vunpack.c.l.b16 %v576
      %v2723 = vunpack.c.l.b16 %v577
      %v2724 = vunpack.c.l.b16 %v578
      %v2725 = vunpack.c.l.b16 %v579
      %v2726 = vunpack.c.l.b16 %v580
      %v2727 = vunpack.c.l.b16 %v581
      %v2728 = vunpack.c.l.b16 %v582
      %v2729 = vunpack.c.l.b16 %v583
      %v2730 = vunpack.c.l.b16 %v584
      %v2731 = vunpack.c.l.b16 %v585
      %v2732 = vunpack.c.l.b16 %v586
      %v2733 = vunpack.c.l.b16 %v587
      %v2734 = vunpack.c.l.b16 %v588
      %v2735 = vunpack.c.l.b16 %v589
      %v2736 = vunpack.c.l.b16 %v590
      %v2737 = vunpack.c.l.b16 %v591
      %v2738 = vunpack.c.l.b16 %v592
      %v2739 = vunpack.c.l.b16 %v593
      %v2740 = vunpack.c.l.b16 %v594
      %v2741 = vunpack.c.l.b16 %v595
      %v2742 = vunpack.c.l.b16 %v596
      %v2743 = vunpack.c.l.b16 %v597
      %v2744 = vunpack.c.l.b16 %v598
      %v2745 = vunpack.c.l.b16 %v599
      %v2746 = vunpack.c.l.b16 %v600
      %v2747 = vunpack.c.l.b16 %v601
      %v2748 = vunpack.c.l.b16 %v602
      %v2749 = vunpack.c.l.b16 %v603
      %v2750 = vunpack.c.l.b16 %v604
      %v2751 = vunpack.c.l.b16 %v605
      %v2752 = vunpack.c.l.b16 %v606
      %v2753 = vunpack.c.l.b16 %v607
      %v2754 = vunpack.c.l.b16 %v608
      %v2755 = vunpack.c.l.b16 %v609
      %v2756 = vunpack.c.l.b16 %v610
      %v2757 = vpack.c.b16 %v2694, %v2693
      %v2758 = vpack.c.b16 %v2696, %v2695
      %v2759 = vpack.c.b16 %v2698, %v2697
      %v2760 = vpack.c.b16 %v2700, %v2699
      %v2761 = vpack.c.b16 %v2702, %v2701
      %v2762 = vpack.c.b16 %v2704, %v2703
      %v2763 = vpack.c.b16 %v2706, %v2705
      %v2764 = vpack.c.b16 %v2708, %v2707
      %v2765 = vpack.c.b16 %v2710, %v2709
      %v2766 = vpack.c.b16 %v2712, %v2711
      %v2767 = vpack.c.b16 %v2714, %v2713
      %v2768 = vpack.c.b16 %v2716, %v2715
      %v2769 = vpack.c.b16 %v2718, %v2717
      %v2770 = vpack.c.b16 %v2720, %v2719
      %v2771 = vpack.c.b16 %v2722, %v2721
      %v2772 = vpack.c.b16 %v2724, %v2723
      %v2773 = vpack.c.b16 %v2726, %v2725
      %v2774 = vpack.c.b16 %v2728, %v2727
      %v2775 = vpack.c.b16 %v2730, %v2729
      %v2776 = vpack.c.b16 %v2732, %v2731
      %v2777 = vpack.c.b16 %v2734, %v2733
      %v2778 = vpack.c.b16 %v2736, %v2735
      %v2779 = vpack.c.b16 %v2738, %v2737
      %v2780 = vpack.c.b16 %v2740, %v2739
      %v2781 = vpack.c.b16 %v2742, %v2741
      %v2782 = vpack.c.b16 %v2744, %v2743
      %v2783 = vpack.c.b16 %v2746, %v2745
      %v2784 = vpack.c.b16 %v2748, %v2747
      %v2785 = vpack.c.b16 %v2750, %v2749
      %v2786 = vpack.c.b16 %v2752, %v2751
      %v2787 = vpack.c.b16 %v2754, %v2753
      %v2788 = vpack.c.b16 %v2756, %v2755
      %2789 = vrot.lane.b32.xlu0 %v2757, 18
      %v2790 = vpop.permute.xlu0 %2789
      %2791 = vrot.lane.b32.xlu0 %v2758, 18
      %v2792 = vpop.permute.xlu0 %2791
      %2793 = vrot.lane.b32.xlu0 %v2759, 18
      %v2794 = vpop.permute.xlu0 %2793
      %2795 = vrot.lane.b32.xlu0 %v2760, 18
      %v2796 = vpop.permute.xlu0 %2795
      %2797 = vrot.lane.b32.xlu0 %v2761, 18
      %v2798 = vpop.permute.xlu0 %2797
      %2799 = vrot.lane.b32.xlu0 %v2762, 18
      %v2800 = vpop.permute.xlu0 %2799
      %2801 = vrot.lane.b32.xlu0 %v2763, 18
      %v2802 = vpop.permute.xlu0 %2801
      %2803 = vrot.lane.b32.xlu0 %v2764, 18
      %v2804 = vpop.permute.xlu0 %2803
      %2805 = vrot.lane.b32.xlu0 %v2765, 18
      %v2806 = vpop.permute.xlu0 %2805
      %2807 = vrot.lane.b32.xlu0 %v2766, 18
      %v2808 = vpop.permute.xlu0 %2807
      %2809 = vrot.lane.b32.xlu0 %v2767, 18
      %v2810 = vpop.permute.xlu0 %2809
      %2811 = vrot.lane.b32.xlu0 %v2768, 18
      %v2812 = vpop.permute.xlu0 %2811
      %2813 = vrot.lane.b32.xlu0 %v2769, 18
      %v2814 = vpop.permute.xlu0 %2813
      %2815 = vrot.lane.b32.xlu0 %v2770, 18
      %v2816 = vpop.permute.xlu0 %2815
      %2817 = vrot.lane.b32.xlu0 %v2771, 18
      %v2818 = vpop.permute.xlu0 %2817
      %2819 = vrot.lane.b32.xlu0 %v2772, 18
      %v2820 = vpop.permute.xlu0 %2819
      %2821 = vrot.lane.b32.xlu0 %v2773, 18
      %v2822 = vpop.permute.xlu0 %2821
      %2823 = vrot.lane.b32.xlu0 %v2774, 18
      %v2824 = vpop.permute.xlu0 %2823
      %2825 = vrot.lane.b32.xlu0 %v2775, 18
      %v2826 = vpop.permute.xlu0 %2825
      %2827 = vrot.lane.b32.xlu0 %v2776, 18
      %v2828 = vpop.permute.xlu0 %2827
      %2829 = vrot.lane.b32.xlu0 %v2777, 18
      %v2830 = vpop.permute.xlu0 %2829
      %2831 = vrot.lane.b32.xlu0 %v2778, 18
      %v2832 = vpop.permute.xlu0 %2831
      %2833 = vrot.lane.b32.xlu0 %v2779, 18
      %v2834 = vpop.permute.xlu0 %2833
      %2835 = vrot.lane.b32.xlu0 %v2780, 18
      %v2836 = vpop.permute.xlu0 %2835
      %2837 = vrot.lane.b32.xlu0 %v2781, 18
      %v2838 = vpop.permute.xlu0 %2837
      %2839 = vrot.lane.b32.xlu0 %v2782, 18
      %v2840 = vpop.permute.xlu0 %2839
      %2841 = vrot.lane.b32.xlu0 %v2783, 18
      %v2842 = vpop.permute.xlu0 %2841
      %2843 = vrot.lane.b32.xlu0 %v2784, 18
      %v2844 = vpop.permute.xlu0 %2843
      %2845 = vrot.lane.b32.xlu0 %v2785, 18
      %v2846 = vpop.permute.xlu0 %2845
      %2847 = vrot.lane.b32.xlu0 %v2786, 18
      %v2848 = vpop.permute.xlu0 %2847
      %2849 = vrot.lane.b32.xlu0 %v2787, 18
      %v2850 = vpop.permute.xlu0 %2849
      %2851 = vrot.lane.b32.xlu0 %v2788, 18
      %v2852 = vpop.permute.xlu0 %2851
      %v2917 = vunpack.c.l.b16 %v612
      %v2918 = vunpack.c.l.b16 %v613
      %v2919 = vunpack.c.l.b16 %v614
      %v2920 = vunpack.c.l.b16 %v615
      %v2921 = vunpack.c.l.b16 %v616
      %v2922 = vunpack.c.l.b16 %v617
      %v2923 = vunpack.c.l.b16 %v618
      %v2924 = vunpack.c.l.b16 %v619
      %v2925 = vunpack.c.l.b16 %v620
      %v2926 = vunpack.c.l.b16 %v621
      %v2927 = vunpack.c.l.b16 %v622
      %v2928 = vunpack.c.l.b16 %v623
      %v2929 = vunpack.c.l.b16 %v624
      %v2930 = vunpack.c.l.b16 %v625
      %v2931 = vunpack.c.l.b16 %v626
      %v2932 = vunpack.c.l.b16 %v627
      %v2933 = vunpack.c.l.b16 %v628
      %v2934 = vunpack.c.l.b16 %v629
      %v2935 = vunpack.c.l.b16 %v630
      %v2936 = vunpack.c.l.b16 %v631
      %v2937 = vunpack.c.l.b16 %v632
      %v2938 = vunpack.c.l.b16 %v633
      %v2939 = vunpack.c.l.b16 %v634
      %v2940 = vunpack.c.l.b16 %v635
      %v2941 = vunpack.c.l.b16 %v636
      %v2942 = vunpack.c.l.b16 %v637
      %v2943 = vunpack.c.l.b16 %v638
      %v2944 = vunpack.c.l.b16 %v639
      %v2945 = vunpack.c.l.b16 %v640
      %v2946 = vunpack.c.l.b16 %v641
      %v2947 = vunpack.c.l.b16 %v642
      %v2948 = vunpack.c.l.b16 %v643
      %v2949 = vunpack.c.l.b16 %v644
      %v2950 = vunpack.c.l.b16 %v645
      %v2951 = vunpack.c.l.b16 %v646
      %v2952 = vunpack.c.l.b16 %v647
      %v2953 = vunpack.c.l.b16 %v648
      %v2954 = vunpack.c.l.b16 %v649
      %v2955 = vunpack.c.l.b16 %v650
      %v2956 = vunpack.c.l.b16 %v651
      %v2957 = vunpack.c.l.b16 %v652
      %v2958 = vunpack.c.l.b16 %v653
      %v2959 = vunpack.c.l.b16 %v654
      %v2960 = vunpack.c.l.b16 %v655
      %v2961 = vunpack.c.l.b16 %v656
      %v2962 = vunpack.c.l.b16 %v657
      %v2963 = vunpack.c.l.b16 %v658
      %v2964 = vunpack.c.l.b16 %v659
      %v2965 = vunpack.c.l.b16 %v660
      %v2966 = vunpack.c.l.b16 %v661
      %v2967 = vunpack.c.l.b16 %v662
      %v2968 = vunpack.c.l.b16 %v663
      %v2969 = vunpack.c.l.b16 %v664
      %v2970 = vunpack.c.l.b16 %v665
      %v2971 = vunpack.c.l.b16 %v666
      %v2972 = vunpack.c.l.b16 %v667
      %v2973 = vunpack.c.l.b16 %v668
      %v2974 = vunpack.c.l.b16 %v669
      %v2975 = vunpack.c.l.b16 %v670
      %v2976 = vunpack.c.l.b16 %v671
      %v2977 = vunpack.c.l.b16 %v672
      %v2978 = vunpack.c.l.b16 %v673
      %v2979 = vunpack.c.l.b16 %v674
      %v2980 = vunpack.c.l.b16 %v675
      %v2981 = vpack.c.b16 %v2918, %v2917
      %v2982 = vpack.c.b16 %v2920, %v2919
      %v2983 = vpack.c.b16 %v2922, %v2921
      %v2984 = vpack.c.b16 %v2924, %v2923
      %v2985 = vpack.c.b16 %v2926, %v2925
      %v2986 = vpack.c.b16 %v2928, %v2927
      %v2987 = vpack.c.b16 %v2930, %v2929
      %v2988 = vpack.c.b16 %v2932, %v2931
      %v2989 = vpack.c.b16 %v2934, %v2933
      %v2990 = vpack.c.b16 %v2936, %v2935
      %v2991 = vpack.c.b16 %v2938, %v2937
      %v2992 = vpack.c.b16 %v2940, %v2939
      %v2993 = vpack.c.b16 %v2942, %v2941
      %v2994 = vpack.c.b16 %v2944, %v2943
      %v2995 = vpack.c.b16 %v2946, %v2945
      %v2996 = vpack.c.b16 %v2948, %v2947
      %v2997 = vpack.c.b16 %v2950, %v2949
      %v2998 = vpack.c.b16 %v2952, %v2951
      %v2999 = vpack.c.b16 %v2954, %v2953
      %v3000 = vpack.c.b16 %v2956, %v2955
      %v3001 = vpack.c.b16 %v2958, %v2957
      %v3002 = vpack.c.b16 %v2960, %v2959
      %v3003 = vpack.c.b16 %v2962, %v2961
      %v3004 = vpack.c.b16 %v2964, %v2963
      %v3005 = vpack.c.b16 %v2966, %v2965
      %v3006 = vpack.c.b16 %v2968, %v2967
      %v3007 = vpack.c.b16 %v2970, %v2969
      %v3008 = vpack.c.b16 %v2972, %v2971
      %v3009 = vpack.c.b16 %v2974, %v2973
      %v3010 = vpack.c.b16 %v2976, %v2975
      %v3011 = vpack.c.b16 %v2978, %v2977
      %v3012 = vpack.c.b16 %v2980, %v2979
      %3013 = vrot.lane.b32.xlu0 %v2981, 21
      %v3014 = vpop.permute.xlu0 %3013
      %3015 = vrot.lane.b32.xlu0 %v2982, 21
      %v3016 = vpop.permute.xlu0 %3015
      %3017 = vrot.lane.b32.xlu0 %v2983, 21
      %v3018 = vpop.permute.xlu0 %3017
      %3019 = vrot.lane.b32.xlu0 %v2984, 21
      %v3020 = vpop.permute.xlu0 %3019
      %3021 = vrot.lane.b32.xlu0 %v2985, 21
      %v3022 = vpop.permute.xlu0 %3021
      %3023 = vrot.lane.b32.xlu0 %v2986, 21
      %v3024 = vpop.permute.xlu0 %3023
      %3025 = vrot.lane.b32.xlu0 %v2987, 21
      %v3026 = vpop.permute.xlu0 %3025
      %3027 = vrot.lane.b32.xlu0 %v2988, 21
      %v3028 = vpop.permute.xlu0 %3027
      %3029 = vrot.lane.b32.xlu0 %v2989, 21
      %v3030 = vpop.permute.xlu0 %3029
      %3031 = vrot.lane.b32.xlu0 %v2990, 21
      %v3032 = vpop.permute.xlu0 %3031
      %3033 = vrot.lane.b32.xlu0 %v2991, 21
      %v3034 = vpop.permute.xlu0 %3033
      %3035 = vrot.lane.b32.xlu0 %v2992, 21
      %v3036 = vpop.permute.xlu0 %3035
      %3037 = vrot.lane.b32.xlu0 %v2993, 21
      %v3038 = vpop.permute.xlu0 %3037
      %3039 = vrot.lane.b32.xlu0 %v2994, 21
      %v3040 = vpop.permute.xlu0 %3039
      %3041 = vrot.lane.b32.xlu0 %v2995, 21
      %v3042 = vpop.permute.xlu0 %3041
      %3043 = vrot.lane.b32.xlu0 %v2996, 21
      %v3044 = vpop.permute.xlu0 %3043
      %3045 = vrot.lane.b32.xlu0 %v2997, 21
      %v3046 = vpop.permute.xlu0 %3045
      %3047 = vrot.lane.b32.xlu0 %v2998, 21
      %v3048 = vpop.permute.xlu0 %3047
      %3049 = vrot.lane.b32.xlu0 %v2999, 21
      %v3050 = vpop.permute.xlu0 %3049
      %3051 = vrot.lane.b32.xlu0 %v3000, 21
      %v3052 = vpop.permute.xlu0 %3051
      %3053 = vrot.lane.b32.xlu0 %v3001, 21
      %v3054 = vpop.permute.xlu0 %3053
      %3055 = vrot.lane.b32.xlu0 %v3002, 21
      %v3056 = vpop.permute.xlu0 %3055
      %3057 = vrot.lane.b32.xlu0 %v3003, 21
      %v3058 = vpop.permute.xlu0 %3057
      %3059 = vrot.lane.b32.xlu0 %v3004, 21
      %v3060 = vpop.permute.xlu0 %3059
      %3061 = vrot.lane.b32.xlu0 %v3005, 21
      %v3062 = vpop.permute.xlu0 %3061
      %3063 = vrot.lane.b32.xlu0 %v3006, 21
      %v3064 = vpop.permute.xlu0 %3063
      %3065 = vrot.lane.b32.xlu0 %v3007, 21
      %v3066 = vpop.permute.xlu0 %3065
      %3067 = vrot.lane.b32.xlu0 %v3008, 21
      %v3068 = vpop.permute.xlu0 %3067
      %3069 = vrot.lane.b32.xlu0 %v3009, 21
      %v3070 = vpop.permute.xlu0 %3069
      %3071 = vrot.lane.b32.xlu0 %v3010, 21
      %v3072 = vpop.permute.xlu0 %3071
      %3073 = vrot.lane.b32.xlu0 %v3011, 21
      %v3074 = vpop.permute.xlu0 %3073
      %3075 = vrot.lane.b32.xlu0 %v3012, 21
      %v3076 = vpop.permute.xlu0 %3075
      %v3109 = vunpack.c.l.b16 %v676
      %v3110 = vunpack.c.l.b16 %v677
      %v3111 = vunpack.c.l.b16 %v678
      %v3112 = vunpack.c.l.b16 %v679
      %v3113 = vunpack.c.l.b16 %v680
      %v3114 = vunpack.c.l.b16 %v681
      %v3115 = vunpack.c.l.b16 %v682
      %v3116 = vunpack.c.l.b16 %v683
      %v3117 = vunpack.c.l.b16 %v684
      %v3118 = vunpack.c.l.b16 %v685
      %v3119 = vunpack.c.l.b16 %v686
      %v3120 = vunpack.c.l.b16 %v687
      %v3121 = vunpack.c.l.b16 %v688
      %v3122 = vunpack.c.l.b16 %v689
      %v3123 = vunpack.c.l.b16 %v690
      %v3124 = vunpack.c.l.b16 %v691
      %v3125 = vunpack.c.l.b16 %v692
      %v3126 = vunpack.c.l.b16 %v693
      %v3127 = vunpack.c.l.b16 %v694
      %v3128 = vunpack.c.l.b16 %v695
      %v3129 = vunpack.c.l.b16 %v696
      %v3130 = vunpack.c.l.b16 %v697
      %v3131 = vunpack.c.l.b16 %v698
      %v3132 = vunpack.c.l.b16 %v699
      %v3133 = vunpack.c.l.b16 %v700
      %v3134 = vunpack.c.l.b16 %v701
      %v3135 = vunpack.c.l.b16 %v702
      %v3136 = vunpack.c.l.b16 %v703
      %v3137 = vunpack.c.l.b16 %v704
      %v3138 = vunpack.c.l.b16 %v705
      %v3139 = vunpack.c.l.b16 %v706
      %v3140 = vunpack.c.l.b16 %v707
      %v3141 = vpack.c.b16 %v3109, %v3109
      %v3142 = vpack.c.b16 %v3110, %v3110
      %v3143 = vpack.c.b16 %v3111, %v3111
      %v3144 = vpack.c.b16 %v3112, %v3112
      %v3145 = vpack.c.b16 %v3113, %v3113
      %v3146 = vpack.c.b16 %v3114, %v3114
      %v3147 = vpack.c.b16 %v3115, %v3115
      %v3148 = vpack.c.b16 %v3116, %v3116
      %v3149 = vpack.c.b16 %v3117, %v3117
      %v3150 = vpack.c.b16 %v3118, %v3118
      %v3151 = vpack.c.b16 %v3119, %v3119
      %v3152 = vpack.c.b16 %v3120, %v3120
      %v3153 = vpack.c.b16 %v3121, %v3121
      %v3154 = vpack.c.b16 %v3122, %v3122
      %v3155 = vpack.c.b16 %v3123, %v3123
      %v3156 = vpack.c.b16 %v3124, %v3124
      %v3157 = vpack.c.b16 %v3125, %v3125
      %v3158 = vpack.c.b16 %v3126, %v3126
      %v3159 = vpack.c.b16 %v3127, %v3127
      %v3160 = vpack.c.b16 %v3128, %v3128
      %v3161 = vpack.c.b16 %v3129, %v3129
      %v3162 = vpack.c.b16 %v3130, %v3130
      %v3163 = vpack.c.b16 %v3131, %v3131
      %v3164 = vpack.c.b16 %v3132, %v3132
      %v3165 = vpack.c.b16 %v3133, %v3133
      %v3166 = vpack.c.b16 %v3134, %v3134
      %v3167 = vpack.c.b16 %v3135, %v3135
      %v3168 = vpack.c.b16 %v3136, %v3136
      %v3169 = vpack.c.b16 %v3137, %v3137
      %v3170 = vpack.c.b16 %v3138, %v3138
      %v3171 = vpack.c.b16 %v3139, %v3139
      %v3172 = vpack.c.b16 %v3140, %v3140
      %v3174 = vshrl.u32 %v2757, 16
      %v3176 = vshll.u32 %v2757, 16
      %v3178 = vrot.slane %v3176, 1
      %v3179 = vor.u32 %v3174, %v3178
      %v3181 = vshll.u32 %v3141, 16
      %v3183 = vrot.slane %v3181, 1
      %v3184 = vsel %vm1188, %v3179, %v3183
      %v3186 = vshrl.u32 %v2758, 16
      %v3188 = vshll.u32 %v2758, 16
      %v3190 = vrot.slane %v3188, 1
      %v3191 = vor.u32 %v3186, %v3190
      %v3193 = vshll.u32 %v3142, 16
      %v3195 = vrot.slane %v3193, 1
      %v3196 = vsel %vm1188, %v3191, %v3195
      %v3198 = vshrl.u32 %v2759, 16
      %v3200 = vshll.u32 %v2759, 16
      %v3202 = vrot.slane %v3200, 1
      %v3203 = vor.u32 %v3198, %v3202
      %v3205 = vshll.u32 %v3143, 16
      %v3207 = vrot.slane %v3205, 1
      %v3208 = vsel %vm1188, %v3203, %v3207
      %v3210 = vshrl.u32 %v2760, 16
      %v3212 = vshll.u32 %v2760, 16
      %v3214 = vrot.slane %v3212, 1
      %v3215 = vor.u32 %v3210, %v3214
      %v3217 = vshll.u32 %v3144, 16
      %v3219 = vrot.slane %v3217, 1
      %v3220 = vsel %vm1188, %v3215, %v3219
      %v3222 = vshrl.u32 %v2761, 16
      %v3224 = vshll.u32 %v2761, 16
      %v3226 = vrot.slane %v3224, 1
      %v3227 = vor.u32 %v3222, %v3226
      %v3229 = vshll.u32 %v3145, 16
      %v3231 = vrot.slane %v3229, 1
      %v3232 = vsel %vm1188, %v3227, %v3231
      %v3234 = vshrl.u32 %v2762, 16
      %v3236 = vshll.u32 %v2762, 16
      %v3238 = vrot.slane %v3236, 1
      %v3239 = vor.u32 %v3234, %v3238
      %v3241 = vshll.u32 %v3146, 16
      %v3243 = vrot.slane %v3241, 1
      %v3244 = vsel %vm1188, %v3239, %v3243
      %v3246 = vshrl.u32 %v2763, 16
      %v3248 = vshll.u32 %v2763, 16
      %v3250 = vrot.slane %v3248, 1
      %v3251 = vor.u32 %v3246, %v3250
      %v3253 = vshll.u32 %v3147, 16
      %v3255 = vrot.slane %v3253, 1
      %v3256 = vsel %vm1188, %v3251, %v3255
      %v3258 = vshrl.u32 %v2764, 16
      %v3260 = vshll.u32 %v2764, 16
      %v3262 = vrot.slane %v3260, 1
      %v3263 = vor.u32 %v3258, %v3262
      %v3265 = vshll.u32 %v3148, 16
      %v3267 = vrot.slane %v3265, 1
      %v3268 = vsel %vm1188, %v3263, %v3267
      %v3270 = vshrl.u32 %v2765, 16
      %v3272 = vshll.u32 %v2765, 16
      %v3274 = vrot.slane %v3272, 1
      %v3275 = vor.u32 %v3270, %v3274
      %v3277 = vshll.u32 %v3149, 16
      %v3279 = vrot.slane %v3277, 1
      %v3280 = vsel %vm1188, %v3275, %v3279
      %v3282 = vshrl.u32 %v2766, 16
      %v3284 = vshll.u32 %v2766, 16
      %v3286 = vrot.slane %v3284, 1
      %v3287 = vor.u32 %v3282, %v3286
      %v3289 = vshll.u32 %v3150, 16
      %v3291 = vrot.slane %v3289, 1
      %v3292 = vsel %vm1188, %v3287, %v3291
      %v3294 = vshrl.u32 %v2767, 16
      %v3296 = vshll.u32 %v2767, 16
      %v3298 = vrot.slane %v3296, 1
      %v3299 = vor.u32 %v3294, %v3298
      %v3301 = vshll.u32 %v3151, 16
      %v3303 = vrot.slane %v3301, 1
      %v3304 = vsel %vm1188, %v3299, %v3303
      %v3306 = vshrl.u32 %v2768, 16
      %v3308 = vshll.u32 %v2768, 16
      %v3310 = vrot.slane %v3308, 1
      %v3311 = vor.u32 %v3306, %v3310
      %v3313 = vshll.u32 %v3152, 16
      %v3315 = vrot.slane %v3313, 1
      %v3316 = vsel %vm1188, %v3311, %v3315
      %v3318 = vshrl.u32 %v2769, 16
      %v3320 = vshll.u32 %v2769, 16
      %v3322 = vrot.slane %v3320, 1
      %v3323 = vor.u32 %v3318, %v3322
      %v3325 = vshll.u32 %v3153, 16
      %v3327 = vrot.slane %v3325, 1
      %v3328 = vsel %vm1188, %v3323, %v3327
      %v3330 = vshrl.u32 %v2770, 16
      %v3332 = vshll.u32 %v2770, 16
      %v3334 = vrot.slane %v3332, 1
      %v3335 = vor.u32 %v3330, %v3334
      %v3337 = vshll.u32 %v3154, 16
      %v3339 = vrot.slane %v3337, 1
      %v3340 = vsel %vm1188, %v3335, %v3339
      %v3342 = vshrl.u32 %v2771, 16
      %v3344 = vshll.u32 %v2771, 16
      %v3346 = vrot.slane %v3344, 1
      %v3347 = vor.u32 %v3342, %v3346
      %v3349 = vshll.u32 %v3155, 16
      %v3351 = vrot.slane %v3349, 1
      %v3352 = vsel %vm1188, %v3347, %v3351
      %v3354 = vshrl.u32 %v2772, 16
      %v3356 = vshll.u32 %v2772, 16
      %v3358 = vrot.slane %v3356, 1
      %v3359 = vor.u32 %v3354, %v3358
      %v3361 = vshll.u32 %v3156, 16
      %v3363 = vrot.slane %v3361, 1
      %v3364 = vsel %vm1188, %v3359, %v3363
      %v3366 = vshrl.u32 %v2773, 16
      %v3368 = vshll.u32 %v2773, 16
      %v3370 = vrot.slane %v3368, 1
      %v3371 = vor.u32 %v3366, %v3370
      %v3373 = vshll.u32 %v3157, 16
      %v3375 = vrot.slane %v3373, 1
      %v3376 = vsel %vm1188, %v3371, %v3375
      %v3378 = vshrl.u32 %v2774, 16
      %v3380 = vshll.u32 %v2774, 16
      %v3382 = vrot.slane %v3380, 1
      %v3383 = vor.u32 %v3378, %v3382
      %v3385 = vshll.u32 %v3158, 16
      %v3387 = vrot.slane %v3385, 1
      %v3388 = vsel %vm1188, %v3383, %v3387
      %v3390 = vshrl.u32 %v2775, 16
      %v3392 = vshll.u32 %v2775, 16
      %v3394 = vrot.slane %v3392, 1
      %v3395 = vor.u32 %v3390, %v3394
      %v3397 = vshll.u32 %v3159, 16
      %v3399 = vrot.slane %v3397, 1
      %v3400 = vsel %vm1188, %v3395, %v3399
      %v3402 = vshrl.u32 %v2776, 16
      %v3404 = vshll.u32 %v2776, 16
      %v3406 = vrot.slane %v3404, 1
      %v3407 = vor.u32 %v3402, %v3406
      %v3409 = vshll.u32 %v3160, 16
      %v3411 = vrot.slane %v3409, 1
      %v3412 = vsel %vm1188, %v3407, %v3411
      %v3414 = vshrl.u32 %v2777, 16
      %v3416 = vshll.u32 %v2777, 16
      %v3418 = vrot.slane %v3416, 1
      %v3419 = vor.u32 %v3414, %v3418
      %v3421 = vshll.u32 %v3161, 16
      %v3423 = vrot.slane %v3421, 1
      %v3424 = vsel %vm1188, %v3419, %v3423
      %v3426 = vshrl.u32 %v2778, 16
      %v3428 = vshll.u32 %v2778, 16
      %v3430 = vrot.slane %v3428, 1
      %v3431 = vor.u32 %v3426, %v3430
      %v3433 = vshll.u32 %v3162, 16
      %v3435 = vrot.slane %v3433, 1
      %v3436 = vsel %vm1188, %v3431, %v3435
      %v3438 = vshrl.u32 %v2779, 16
      %v3440 = vshll.u32 %v2779, 16
      %v3442 = vrot.slane %v3440, 1
      %v3443 = vor.u32 %v3438, %v3442
      %v3445 = vshll.u32 %v3163, 16
      %v3447 = vrot.slane %v3445, 1
      %v3448 = vsel %vm1188, %v3443, %v3447
      %v3450 = vshrl.u32 %v2780, 16
      %v3452 = vshll.u32 %v2780, 16
      %v3454 = vrot.slane %v3452, 1
      %v3455 = vor.u32 %v3450, %v3454
      %v3457 = vshll.u32 %v3164, 16
      %v3459 = vrot.slane %v3457, 1
      %v3460 = vsel %vm1188, %v3455, %v3459
      %v3462 = vshrl.u32 %v2781, 16
      %v3464 = vshll.u32 %v2781, 16
      %v3466 = vrot.slane %v3464, 1
      %v3467 = vor.u32 %v3462, %v3466
      %v3469 = vshll.u32 %v3165, 16
      %v3471 = vrot.slane %v3469, 1
      %v3472 = vsel %vm1188, %v3467, %v3471
      %v3474 = vshrl.u32 %v2782, 16
      %v3476 = vshll.u32 %v2782, 16
      %v3478 = vrot.slane %v3476, 1
      %v3479 = vor.u32 %v3474, %v3478
      %v3481 = vshll.u32 %v3166, 16
      %v3483 = vrot.slane %v3481, 1
      %v3484 = vsel %vm1188, %v3479, %v3483
      %v3486 = vshrl.u32 %v2783, 16
      %v3488 = vshll.u32 %v2783, 16
      %v3490 = vrot.slane %v3488, 1
      %v3491 = vor.u32 %v3486, %v3490
      %v3493 = vshll.u32 %v3167, 16
      %v3495 = vrot.slane %v3493, 1
      %v3496 = vsel %vm1188, %v3491, %v3495
      %v3498 = vshrl.u32 %v2784, 16
      %v3500 = vshll.u32 %v2784, 16
      %v3502 = vrot.slane %v3500, 1
      %v3503 = vor.u32 %v3498, %v3502
      %v3505 = vshll.u32 %v3168, 16
      %v3507 = vrot.slane %v3505, 1
      %v3508 = vsel %vm1188, %v3503, %v3507
      %v3510 = vshrl.u32 %v2785, 16
      %v3512 = vshll.u32 %v2785, 16
      %v3514 = vrot.slane %v3512, 1
      %v3515 = vor.u32 %v3510, %v3514
      %v3517 = vshll.u32 %v3169, 16
      %v3519 = vrot.slane %v3517, 1
      %v3520 = vsel %vm1188, %v3515, %v3519
      %v3522 = vshrl.u32 %v2786, 16
      %v3524 = vshll.u32 %v2786, 16
      %v3526 = vrot.slane %v3524, 1
      %v3527 = vor.u32 %v3522, %v3526
      %v3529 = vshll.u32 %v3170, 16
      %v3531 = vrot.slane %v3529, 1
      %v3532 = vsel %vm1188, %v3527, %v3531
      %v3534 = vshrl.u32 %v2787, 16
      %v3536 = vshll.u32 %v2787, 16
      %v3538 = vrot.slane %v3536, 1
      %v3539 = vor.u32 %v3534, %v3538
      %v3541 = vshll.u32 %v3171, 16
      %v3543 = vrot.slane %v3541, 1
      %v3544 = vsel %vm1188, %v3539, %v3543
      %v3546 = vshrl.u32 %v2788, 16
      %v3548 = vshll.u32 %v2788, 16
      %v3550 = vrot.slane %v3548, 1
      %v3551 = vor.u32 %v3546, %v3550
      %v3553 = vshll.u32 %v3172, 16
      %v3555 = vrot.slane %v3553, 1
      %v3556 = vsel %vm1188, %v3551, %v3555
      %3557 = vrot.lane.b32.xlu0 %v3184, 24
      %v3558 = vpop.permute.xlu0 %3557
      %3559 = vrot.lane.b32.xlu0 %v3196, 24
      %v3560 = vpop.permute.xlu0 %3559
      %3561 = vrot.lane.b32.xlu0 %v3208, 24
      %v3562 = vpop.permute.xlu0 %3561
      %3563 = vrot.lane.b32.xlu0 %v3220, 24
      %v3564 = vpop.permute.xlu0 %3563
      %3565 = vrot.lane.b32.xlu0 %v3232, 24
      %v3566 = vpop.permute.xlu0 %3565
      %3567 = vrot.lane.b32.xlu0 %v3244, 24
      %v3568 = vpop.permute.xlu0 %3567
      %3569 = vrot.lane.b32.xlu0 %v3256, 24
      %v3570 = vpop.permute.xlu0 %3569
      %3571 = vrot.lane.b32.xlu0 %v3268, 24
      %v3572 = vpop.permute.xlu0 %3571
      %3573 = vrot.lane.b32.xlu0 %v3280, 24
      %v3574 = vpop.permute.xlu0 %3573
      %3575 = vrot.lane.b32.xlu0 %v3292, 24
      %v3576 = vpop.permute.xlu0 %3575
      %3577 = vrot.lane.b32.xlu0 %v3304, 24
      %v3578 = vpop.permute.xlu0 %3577
      %3579 = vrot.lane.b32.xlu0 %v3316, 24
      %v3580 = vpop.permute.xlu0 %3579
      %3581 = vrot.lane.b32.xlu0 %v3328, 24
      %v3582 = vpop.permute.xlu0 %3581
      %3583 = vrot.lane.b32.xlu0 %v3340, 24
      %v3584 = vpop.permute.xlu0 %3583
      %3585 = vrot.lane.b32.xlu0 %v3352, 24
      %v3586 = vpop.permute.xlu0 %3585
      %3587 = vrot.lane.b32.xlu0 %v3364, 24
      %v3588 = vpop.permute.xlu0 %3587
      %3589 = vrot.lane.b32.xlu0 %v3376, 24
      %v3590 = vpop.permute.xlu0 %3589
      %3591 = vrot.lane.b32.xlu0 %v3388, 24
      %v3592 = vpop.permute.xlu0 %3591
      %3593 = vrot.lane.b32.xlu0 %v3400, 24
      %v3594 = vpop.permute.xlu0 %3593
      %3595 = vrot.lane.b32.xlu0 %v3412, 24
      %v3596 = vpop.permute.xlu0 %3595
      %3597 = vrot.lane.b32.xlu0 %v3424, 24
      %v3598 = vpop.permute.xlu0 %3597
      %3599 = vrot.lane.b32.xlu0 %v3436, 24
      %v3600 = vpop.permute.xlu0 %3599
      %3601 = vrot.lane.b32.xlu0 %v3448, 24
      %v3602 = vpop.permute.xlu0 %3601
      %3603 = vrot.lane.b32.xlu0 %v3460, 24
      %v3604 = vpop.permute.xlu0 %3603
      %3605 = vrot.lane.b32.xlu0 %v3472, 24
      %v3606 = vpop.permute.xlu0 %3605
      %3607 = vrot.lane.b32.xlu0 %v3484, 24
      %v3608 = vpop.permute.xlu0 %3607
      %3609 = vrot.lane.b32.xlu0 %v3496, 24
      %v3610 = vpop.permute.xlu0 %3609
      %3611 = vrot.lane.b32.xlu0 %v3508, 24
      %v3612 = vpop.permute.xlu0 %3611
      %3613 = vrot.lane.b32.xlu0 %v3520, 24
      %v3614 = vpop.permute.xlu0 %3613
      %3615 = vrot.lane.b32.xlu0 %v3532, 24
      %v3616 = vpop.permute.xlu0 %3615
      %3617 = vrot.lane.b32.xlu0 %v3544, 24
      %v3618 = vpop.permute.xlu0 %3617
      %3619 = vrot.lane.b32.xlu0 %v3556, 24
      %v3620 = vpop.permute.xlu0 %3619
      %vm3621 = vcmask 23552
      %v3623 = vsel %vm3621, %v836, %v1029
      %v3625 = vsel %vm3621, %v837, %v1031
      %v3627 = vsel %vm3621, %v838, %v1033
      %v3629 = vsel %vm3621, %v839, %v1035
      %v3631 = vsel %vm3621, %v840, %v1037
      %v3633 = vsel %vm3621, %v841, %v1039
      %v3635 = vsel %vm3621, %v842, %v1041
      %v3637 = vsel %vm3621, %v843, %v1043
      %v3639 = vsel %vm3621, %v844, %v1045
      %v3641 = vsel %vm3621, %v845, %v1047
      %v3643 = vsel %vm3621, %v846, %v1049
      %v3645 = vsel %vm3621, %v847, %v1051
      %v3647 = vsel %vm3621, %v848, %v1053
      %v3649 = vsel %vm3621, %v849, %v1055
      %v3651 = vsel %vm3621, %v850, %v1057
      %v3653 = vsel %vm3621, %v851, %v1059
      %v3655 = vsel %vm3621, %v852, %v1061
      %v3657 = vsel %vm3621, %v853, %v1063
      %v3659 = vsel %vm3621, %v854, %v1065
      %v3661 = vsel %vm3621, %v855, %v1067
      %v3663 = vsel %vm3621, %v856, %v1069
      %v3665 = vsel %vm3621, %v857, %v1071
      %v3667 = vsel %vm3621, %v858, %v1073
      %v3669 = vsel %vm3621, %v859, %v1075
      %v3671 = vsel %vm3621, %v860, %v1077
      %v3673 = vsel %vm3621, %v861, %v1079
      %v3675 = vsel %vm3621, %v862, %v1081
      %v3677 = vsel %vm3621, %v863, %v1083
      %v3679 = vsel %vm3621, %v864, %v1085
      %v3681 = vsel %vm3621, %v865, %v1087
      %v3683 = vsel %vm3621, %v866, %v1089
      %v3685 = vsel %vm3621, %v867, %v1091
      %vm3686 = vcmask 48128
      %v3688 = vsel %vm3686, %v3623, %v1574
      %v3690 = vsel %vm3686, %v3625, %v1576
      %v3692 = vsel %vm3686, %v3627, %v1578
      %v3694 = vsel %vm3686, %v3629, %v1580
      %v3696 = vsel %vm3686, %v3631, %v1582
      %v3698 = vsel %vm3686, %v3633, %v1584
      %v3700 = vsel %vm3686, %v3635, %v1586
      %v3702 = vsel %vm3686, %v3637, %v1588
      %v3704 = vsel %vm3686, %v3639, %v1590
      %v3706 = vsel %vm3686, %v3641, %v1592
      %v3708 = vsel %vm3686, %v3643, %v1594
      %v3710 = vsel %vm3686, %v3645, %v1596
      %v3712 = vsel %vm3686, %v3647, %v1598
      %v3714 = vsel %vm3686, %v3649, %v1600
      %v3716 = vsel %vm3686, %v3651, %v1602
      %v3718 = vsel %vm3686, %v3653, %v1604
      %v3720 = vsel %vm3686, %v3655, %v1606
      %v3722 = vsel %vm3686, %v3657, %v1608
      %v3724 = vsel %vm3686, %v3659, %v1610
      %v3726 = vsel %vm3686, %v3661, %v1612
      %v3728 = vsel %vm3686, %v3663, %v1614
      %v3730 = vsel %vm3686, %v3665, %v1616
      %v3732 = vsel %vm3686, %v3667, %v1618
      %v3734 = vsel %vm3686, %v3669, %v1620
      %v3736 = vsel %vm3686, %v3671, %v1622
      %v3738 = vsel %vm3686, %v3673, %v1624
      %v3740 = vsel %vm3686, %v3675, %v1626
      %v3742 = vsel %vm3686, %v3677, %v1628
      %v3744 = vsel %vm3686, %v3679, %v1630
      %v3746 = vsel %vm3686, %v3681, %v1632
      %v3748 = vsel %vm3686, %v3683, %v1634
      %v3750 = vsel %vm3686, %v3685, %v1636
      %vm3751 = vcmask 72704
      %v3753 = vsel %vm3751, %v3688, %v1798
      %v3755 = vsel %vm3751, %v3690, %v1800
      %v3757 = vsel %vm3751, %v3692, %v1802
      %v3759 = vsel %vm3751, %v3694, %v1804
      %v3761 = vsel %vm3751, %v3696, %v1806
      %v3763 = vsel %vm3751, %v3698, %v1808
      %v3765 = vsel %vm3751, %v3700, %v1810
      %v3767 = vsel %vm3751, %v3702, %v1812
      %v3769 = vsel %vm3751, %v3704, %v1814
      %v3771 = vsel %vm3751, %v3706, %v1816
      %v3773 = vsel %vm3751, %v3708, %v1818
      %v3775 = vsel %vm3751, %v3710, %v1820
      %v3777 = vsel %vm3751, %v3712, %v1822
      %v3779 = vsel %vm3751, %v3714, %v1824
      %v3781 = vsel %vm3751, %v3716, %v1826
      %v3783 = vsel %vm3751, %v3718, %v1828
      %v3785 = vsel %vm3751, %v3720, %v1830
      %v3787 = vsel %vm3751, %v3722, %v1832
      %v3789 = vsel %vm3751, %v3724, %v1834
      %v3791 = vsel %vm3751, %v3726, %v1836
      %v3793 = vsel %vm3751, %v3728, %v1838
      %v3795 = vsel %vm3751, %v3730, %v1840
      %v3797 = vsel %vm3751, %v3732, %v1842
      %v3799 = vsel %vm3751, %v3734, %v1844
      %v3801 = vsel %vm3751, %v3736, %v1846
      %v3803 = vsel %vm3751, %v3738, %v1848
      %v3805 = vsel %vm3751, %v3740, %v1850
      %v3807 = vsel %vm3751, %v3742, %v1852
      %v3809 = vsel %vm3751, %v3744, %v1854
      %v3811 = vsel %vm3751, %v3746, %v1856
      %v3813 = vsel %vm3751, %v3748, %v1858
      %v3815 = vsel %vm3751, %v3750, %v1860
      %vm3816 = vcmask 97280
      %v3818 = vsel %vm3816, %v3753, %v2022
      %v3820 = vsel %vm3816, %v3755, %v2024
      %v3822 = vsel %vm3816, %v3757, %v2026
      %v3824 = vsel %vm3816, %v3759, %v2028
      %v3826 = vsel %vm3816, %v3761, %v2030
      %v3828 = vsel %vm3816, %v3763, %v2032
      %v3830 = vsel %vm3816, %v3765, %v2034
      %v3832 = vsel %vm3816, %v3767, %v2036
      %v3834 = vsel %vm3816, %v3769, %v2038
      %v3836 = vsel %vm3816, %v3771, %v2040
      %v3838 = vsel %vm3816, %v3773, %v2042
      %v3840 = vsel %vm3816, %v3775, %v2044
      %v3842 = vsel %vm3816, %v3777, %v2046
      %v3844 = vsel %vm3816, %v3779, %v2048
      %v3846 = vsel %vm3816, %v3781, %v2050
      %v3848 = vsel %vm3816, %v3783, %v2052
      %v3850 = vsel %vm3816, %v3785, %v2054
      %v3852 = vsel %vm3816, %v3787, %v2056
      %v3854 = vsel %vm3816, %v3789, %v2058
      %v3856 = vsel %vm3816, %v3791, %v2060
      %v3858 = vsel %vm3816, %v3793, %v2062
      %v3860 = vsel %vm3816, %v3795, %v2064
      %v3862 = vsel %vm3816, %v3797, %v2066
      %v3864 = vsel %vm3816, %v3799, %v2068
      %v3866 = vsel %vm3816, %v3801, %v2070
      %v3868 = vsel %vm3816, %v3803, %v2072
      %v3870 = vsel %vm3816, %v3805, %v2074
      %v3872 = vsel %vm3816, %v3807, %v2076
      %v3874 = vsel %vm3816, %v3809, %v2078
      %v3876 = vsel %vm3816, %v3811, %v2080
      %v3878 = vsel %vm3816, %v3813, %v2082
      %v3880 = vsel %vm3816, %v3815, %v2084
      %vm3881 = vcmask 121856
      %v3883 = vsel %vm3881, %v3818, %v2566
      %v3885 = vsel %vm3881, %v3820, %v2568
      %v3887 = vsel %vm3881, %v3822, %v2570
      %v3889 = vsel %vm3881, %v3824, %v2572
      %v3891 = vsel %vm3881, %v3826, %v2574
      %v3893 = vsel %vm3881, %v3828, %v2576
      %v3895 = vsel %vm3881, %v3830, %v2578
      %v3897 = vsel %vm3881, %v3832, %v2580
      %v3899 = vsel %vm3881, %v3834, %v2582
      %v3901 = vsel %vm3881, %v3836, %v2584
      %v3903 = vsel %vm3881, %v3838, %v2586
      %v3905 = vsel %vm3881, %v3840, %v2588
      %v3907 = vsel %vm3881, %v3842, %v2590
      %v3909 = vsel %vm3881, %v3844, %v2592
      %v3911 = vsel %vm3881, %v3846, %v2594
      %v3913 = vsel %vm3881, %v3848, %v2596
      %v3915 = vsel %vm3881, %v3850, %v2598
      %v3917 = vsel %vm3881, %v3852, %v2600
      %v3919 = vsel %vm3881, %v3854, %v2602
      %v3921 = vsel %vm3881, %v3856, %v2604
      %v3923 = vsel %vm3881, %v3858, %v2606
      %v3925 = vsel %vm3881, %v3860, %v2608
      %v3927 = vsel %vm3881, %v3862, %v2610
      %v3929 = vsel %vm3881, %v3864, %v2612
      %v3931 = vsel %vm3881, %v3866, %v2614
      %v3933 = vsel %vm3881, %v3868, %v2616
      %v3935 = vsel %vm3881, %v3870, %v2618
      %v3937 = vsel %vm3881, %v3872, %v2620
      %v3939 = vsel %vm3881, %v3874, %v2622
      %v3941 = vsel %vm3881, %v3876, %v2624
      %v3943 = vsel %vm3881, %v3878, %v2626
      %v3945 = vsel %vm3881, %v3880, %v2628
      %vm3946 = vcmask 146432
      %v3948 = vsel %vm3946, %v3883, %v2790
      %v3950 = vsel %vm3946, %v3885, %v2792
      %v3952 = vsel %vm3946, %v3887, %v2794
      %v3954 = vsel %vm3946, %v3889, %v2796
      %v3956 = vsel %vm3946, %v3891, %v2798
      %v3958 = vsel %vm3946, %v3893, %v2800
      %v3960 = vsel %vm3946, %v3895, %v2802
      %v3962 = vsel %vm3946, %v3897, %v2804
      %v3964 = vsel %vm3946, %v3899, %v2806
      %v3966 = vsel %vm3946, %v3901, %v2808
      %v3968 = vsel %vm3946, %v3903, %v2810
      %v3970 = vsel %vm3946, %v3905, %v2812
      %v3972 = vsel %vm3946, %v3907, %v2814
      %v3974 = vsel %vm3946, %v3909, %v2816
      %v3976 = vsel %vm3946, %v3911, %v2818
      %v3978 = vsel %vm3946, %v3913, %v2820
      %v3980 = vsel %vm3946, %v3915, %v2822
      %v3982 = vsel %vm3946, %v3917, %v2824
      %v3984 = vsel %vm3946, %v3919, %v2826
      %v3986 = vsel %vm3946, %v3921, %v2828
      %v3988 = vsel %vm3946, %v3923, %v2830
      %v3990 = vsel %vm3946, %v3925, %v2832
      %v3992 = vsel %vm3946, %v3927, %v2834
      %v3994 = vsel %vm3946, %v3929, %v2836
      %v3996 = vsel %vm3946, %v3931, %v2838
      %v3998 = vsel %vm3946, %v3933, %v2840
      %v4000 = vsel %vm3946, %v3935, %v2842
      %v4002 = vsel %vm3946, %v3937, %v2844
      %v4004 = vsel %vm3946, %v3939, %v2846
      %v4006 = vsel %vm3946, %v3941, %v2848
      %v4008 = vsel %vm3946, %v3943, %v2850
      %v4010 = vsel %vm3946, %v3945, %v2852
      %vm4011 = vcmask 171008
      %v4013 = vsel %vm4011, %v3948, %v3014
      %v4015 = vsel %vm4011, %v3950, %v3016
      %v4017 = vsel %vm4011, %v3952, %v3018
      %v4019 = vsel %vm4011, %v3954, %v3020
      %v4021 = vsel %vm4011, %v3956, %v3022
      %v4023 = vsel %vm4011, %v3958, %v3024
      %v4025 = vsel %vm4011, %v3960, %v3026
      %v4027 = vsel %vm4011, %v3962, %v3028
      %v4029 = vsel %vm4011, %v3964, %v3030
      %v4031 = vsel %vm4011, %v3966, %v3032
      %v4033 = vsel %vm4011, %v3968, %v3034
      %v4035 = vsel %vm4011, %v3970, %v3036
      %v4037 = vsel %vm4011, %v3972, %v3038
      %v4039 = vsel %vm4011, %v3974, %v3040
      %v4041 = vsel %vm4011, %v3976, %v3042
      %v4043 = vsel %vm4011, %v3978, %v3044
      %v4045 = vsel %vm4011, %v3980, %v3046
      %v4047 = vsel %vm4011, %v3982, %v3048
      %v4049 = vsel %vm4011, %v3984, %v3050
      %v4051 = vsel %vm4011, %v3986, %v3052
      %v4053 = vsel %vm4011, %v3988, %v3054
      %v4055 = vsel %vm4011, %v3990, %v3056
      %v4057 = vsel %vm4011, %v3992, %v3058
      %v4059 = vsel %vm4011, %v3994, %v3060
      %v4061 = vsel %vm4011, %v3996, %v3062
      %v4063 = vsel %vm4011, %v3998, %v3064
      %v4065 = vsel %vm4011, %v4000, %v3066
      %v4067 = vsel %vm4011, %v4002, %v3068
      %v4069 = vsel %vm4011, %v4004, %v3070
      %v4071 = vsel %vm4011, %v4006, %v3072
      %v4073 = vsel %vm4011, %v4008, %v3074
      %v4075 = vsel %vm4011, %v4010, %v3076
      %vm4076 = vcmask 195584
      %v4078 = vsel %vm4076, %v4013, %v3558
      %v4080 = vsel %vm4076, %v4015, %v3560
      %v4082 = vsel %vm4076, %v4017, %v3562
      %v4084 = vsel %vm4076, %v4019, %v3564
      %v4086 = vsel %vm4076, %v4021, %v3566
      %v4088 = vsel %vm4076, %v4023, %v3568
      %v4090 = vsel %vm4076, %v4025, %v3570
      %v4092 = vsel %vm4076, %v4027, %v3572
      %v4094 = vsel %vm4076, %v4029, %v3574
      %v4096 = vsel %vm4076, %v4031, %v3576
      %v4098 = vsel %vm4076, %v4033, %v3578
      %v4100 = vsel %vm4076, %v4035, %v3580
      %v4102 = vsel %vm4076, %v4037, %v3582
      %v4104 = vsel %vm4076, %v4039, %v3584
      %v4106 = vsel %vm4076, %v4041, %v3586
      %v4108 = vsel %vm4076, %v4043, %v3588
      %v4110 = vsel %vm4076, %v4045, %v3590
      %v4112 = vsel %vm4076, %v4047, %v3592
      %v4114 = vsel %vm4076, %v4049, %v3594
      %v4116 = vsel %vm4076, %v4051, %v3596
      %v4118 = vsel %vm4076, %v4053, %v3598
      %v4120 = vsel %vm4076, %v4055, %v3600
      %v4122 = vsel %vm4076, %v4057, %v3602
      %v4124 = vsel %vm4076, %v4059, %v3604
      %v4126 = vsel %vm4076, %v4061, %v3606
      %v4128 = vsel %vm4076, %v4063, %v3608
      %v4130 = vsel %vm4076, %v4065, %v3610
      %v4132 = vsel %vm4076, %v4067, %v3612
      %v4134 = vsel %vm4076, %v4069, %v3614
      %v4136 = vsel %vm4076, %v4071, %v3616
      %v4138 = vsel %vm4076, %v4073, %v3618
      %v4140 = vsel %vm4076, %v4075, %v3620
      %v4142 = vperm.slane %v223, 0
      %v4148 = vunpack.c.l.b16 %v219
      %v4149 = vunpack.c.l.b16 %v220
      %v4150 = vunpack.c.l.b16 %v221
      %v4151 = vunpack.c.l.b16 %v222
      %v4152 = vpack.c.b16 %v4149, %v4148
      %v4153 = vpack.c.b16 %v4151, %v4150
      %vm4155 = vcmask 220160
      %v4156 = vsel %vm4155, %v4078, 0
      %v4158 = vsel %vm4155, %v4080, 0
      %v4160 = vsel %vm4155, %v4082, 0
      %v4162 = vsel %vm4155, %v4084, 0
      %v4164 = vsel %vm4155, %v4086, 0
      %v4166 = vsel %vm4155, %v4088, 0
      %v4168 = vsel %vm4155, %v4090, 0
      %v4170 = vsel %vm4155, %v4092, 0
      %v4172 = vsel %vm4155, %v4094, 0
      %v4174 = vsel %vm4155, %v4096, 0
      %v4176 = vsel %vm4155, %v4098, 0
      %v4178 = vsel %vm4155, %v4100, 0
      %v4180 = vsel %vm4155, %v4102, 0
      %v4182 = vsel %vm4155, %v4104, 0
      %v4184 = vsel %vm4155, %v4106, 0
      %v4186 = vsel %vm4155, %v4108, 0
      %v4188 = vsel %vm4155, %v4110, 0
      %v4190 = vsel %vm4155, %v4112, 0
      %v4192 = vsel %vm4155, %v4114, 0
      %v4194 = vsel %vm4155, %v4116, 0
      %v4196 = vsel %vm4155, %v4118, 0
      %v4198 = vsel %vm4155, %v4120, 0
      %v4200 = vsel %vm4155, %v4122, 0
      %v4202 = vsel %vm4155, %v4124, 0
      %v4204 = vsel %vm4155, %v4126, 0
      %v4206 = vsel %vm4155, %v4128, 0
      %v4208 = vsel %vm4155, %v4130, 0
      %v4210 = vsel %vm4155, %v4132, 0
      %v4212 = vsel %vm4155, %v4134, 0
      %v4214 = vsel %vm4155, %v4136, 0
      %v4216 = vsel %vm4155, %v4138, 0
      %v4218 = vsel %vm4155, %v4140, 0
      %vm4220 = vcmask 1044480
      %vm4221 = vcmask 1045504
      %v4222 = vsel %vm4220, 4294967295, 65535
      %v4223 = vsel %vm4221, %v4222, 0
      %v4225 = vand.u32 %v4153, %v4223
      %4227 = vmatpush.bf16.msra.mxu0 0
      %4228 = vmatpush.bf16.msra.mxu0 0
      %4229 = vmatpush.bf16.msra.mxu0 0
      %4230 = vmatpush.bf16.msra.mxu0 0
      %4231 = vmatpush.bf16.msra.mxu0 0
      %4232 = vmatpush.bf16.msra.mxu0 0
      %4233 = vmatpush.bf16.msra.mxu0 %v4225
      %4234 = vmatpush.bf16.msra.mxu0 %v4152
      %4235 = vmatmul.bf16.gmra.mxu0 %v4156
      %v4236 = vpop.f32.mrf.mxu0
      %v4237 = vadd.f32 %v4142, %v4236
      %v4238 = vpop.f32.mrf.mxu0
      %v4239 = vadd.f32 %v4142, %v4238
      %4240 = vmatmul.bf16.gmra.mxu0 %v4158
      %v4241 = vpop.f32.mrf.mxu0
      %v4242 = vadd.f32 %v4142, %v4241
      %v4243 = vpop.f32.mrf.mxu0
      %v4244 = vadd.f32 %v4142, %v4243
      %4245 = vmatmul.bf16.gmra.mxu0 %v4160
      %v4246 = vpop.f32.mrf.mxu0
      %v4247 = vadd.f32 %v4142, %v4246
      %v4248 = vpop.f32.mrf.mxu0
      %v4249 = vadd.f32 %v4142, %v4248
      %4250 = vmatmul.bf16.gmra.mxu0 %v4162
      %v4251 = vpop.f32.mrf.mxu0
      %v4252 = vadd.f32 %v4142, %v4251
      %v4253 = vpop.f32.mrf.mxu0
      %v4254 = vadd.f32 %v4142, %v4253
      %4255 = vmatmul.bf16.gmra.mxu0 %v4164
      %v4256 = vpop.f32.mrf.mxu0
      %v4257 = vadd.f32 %v4142, %v4256
      %v4258 = vpop.f32.mrf.mxu0
      %v4259 = vadd.f32 %v4142, %v4258
      %4260 = vmatmul.bf16.gmra.mxu0 %v4166
      %v4261 = vpop.f32.mrf.mxu0
      %v4262 = vadd.f32 %v4142, %v4261
      %v4263 = vpop.f32.mrf.mxu0
      %v4264 = vadd.f32 %v4142, %v4263
      %4265 = vmatmul.bf16.gmra.mxu0 %v4168
      %v4266 = vpop.f32.mrf.mxu0
      %v4267 = vadd.f32 %v4142, %v4266
      %v4268 = vpop.f32.mrf.mxu0
      %v4269 = vadd.f32 %v4142, %v4268
      %4270 = vmatmul.bf16.gmra.mxu0 %v4170
      %v4271 = vpop.f32.mrf.mxu0
      %v4272 = vadd.f32 %v4142, %v4271
      %v4273 = vpop.f32.mrf.mxu0
      %v4274 = vadd.f32 %v4142, %v4273
      %4275 = vmatmul.bf16.gmra.mxu0 %v4172
      %v4276 = vpop.f32.mrf.mxu0
      %v4277 = vadd.f32 %v4142, %v4276
      %v4278 = vpop.f32.mrf.mxu0
      %v4279 = vadd.f32 %v4142, %v4278
      %4280 = vmatmul.bf16.gmra.mxu0 %v4174
      %v4281 = vpop.f32.mrf.mxu0
      %v4282 = vadd.f32 %v4142, %v4281
      %v4283 = vpop.f32.mrf.mxu0
      %v4284 = vadd.f32 %v4142, %v4283
      %4285 = vmatmul.bf16.gmra.mxu0 %v4176
      %v4286 = vpop.f32.mrf.mxu0
      %v4287 = vadd.f32 %v4142, %v4286
      %v4288 = vpop.f32.mrf.mxu0
      %v4289 = vadd.f32 %v4142, %v4288
      %4290 = vmatmul.bf16.gmra.mxu0 %v4178
      %v4291 = vpop.f32.mrf.mxu0
      %v4292 = vadd.f32 %v4142, %v4291
      %v4293 = vpop.f32.mrf.mxu0
      %v4294 = vadd.f32 %v4142, %v4293
      %4295 = vmatmul.bf16.gmra.mxu0 %v4180
      %v4296 = vpop.f32.mrf.mxu0
      %v4297 = vadd.f32 %v4142, %v4296
      %v4298 = vpop.f32.mrf.mxu0
      %v4299 = vadd.f32 %v4142, %v4298
      %4300 = vmatmul.bf16.gmra.mxu0 %v4182
      %v4301 = vpop.f32.mrf.mxu0
      %v4302 = vadd.f32 %v4142, %v4301
      %v4303 = vpop.f32.mrf.mxu0
      %v4304 = vadd.f32 %v4142, %v4303
      %4305 = vmatmul.bf16.gmra.mxu0 %v4184
      %v4306 = vpop.f32.mrf.mxu0
      %v4307 = vadd.f32 %v4142, %v4306
      %v4308 = vpop.f32.mrf.mxu0
      %v4309 = vadd.f32 %v4142, %v4308
      %4310 = vmatmul.bf16.gmra.mxu0 %v4186
      %v4311 = vpop.f32.mrf.mxu0
      %v4312 = vadd.f32 %v4142, %v4311
      %v4313 = vpop.f32.mrf.mxu0
      %v4314 = vadd.f32 %v4142, %v4313
      %4315 = vmatmul.bf16.gmra.mxu0 %v4188
      %v4316 = vpop.f32.mrf.mxu0
      %v4317 = vadd.f32 %v4142, %v4316
      %v4318 = vpop.f32.mrf.mxu0
      %v4319 = vadd.f32 %v4142, %v4318
      %4320 = vmatmul.bf16.gmra.mxu0 %v4190
      %v4321 = vpop.f32.mrf.mxu0
      %v4322 = vadd.f32 %v4142, %v4321
      %v4323 = vpop.f32.mrf.mxu0
      %v4324 = vadd.f32 %v4142, %v4323
      %4325 = vmatmul.bf16.gmra.mxu0 %v4192
      %v4326 = vpop.f32.mrf.mxu0
      %v4327 = vadd.f32 %v4142, %v4326
      %v4328 = vpop.f32.mrf.mxu0
      %v4329 = vadd.f32 %v4142, %v4328
      %4330 = vmatmul.bf16.gmra.mxu0 %v4194
      %v4331 = vpop.f32.mrf.mxu0
      %v4332 = vadd.f32 %v4142, %v4331
      %v4333 = vpop.f32.mrf.mxu0
      %v4334 = vadd.f32 %v4142, %v4333
      %4335 = vmatmul.bf16.gmra.mxu0 %v4196
      %v4336 = vpop.f32.mrf.mxu0
      %v4337 = vadd.f32 %v4142, %v4336
      %v4338 = vpop.f32.mrf.mxu0
      %v4339 = vadd.f32 %v4142, %v4338
      %4340 = vmatmul.bf16.gmra.mxu0 %v4198
      %v4341 = vpop.f32.mrf.mxu0
      %v4342 = vadd.f32 %v4142, %v4341
      %v4343 = vpop.f32.mrf.mxu0
      %v4344 = vadd.f32 %v4142, %v4343
      %4345 = vmatmul.bf16.gmra.mxu0 %v4200
      %v4346 = vpop.f32.mrf.mxu0
      %v4347 = vadd.f32 %v4142, %v4346
      %v4348 = vpop.f32.mrf.mxu0
      %v4349 = vadd.f32 %v4142, %v4348
      %4350 = vmatmul.bf16.gmra.mxu0 %v4202
      %v4351 = vpop.f32.mrf.mxu0
      %v4352 = vadd.f32 %v4142, %v4351
      %v4353 = vpop.f32.mrf.mxu0
      %v4354 = vadd.f32 %v4142, %v4353
      %4355 = vmatmul.bf16.gmra.mxu0 %v4204
      %v4356 = vpop.f32.mrf.mxu0
      %v4357 = vadd.f32 %v4142, %v4356
      %v4358 = vpop.f32.mrf.mxu0
      %v4359 = vadd.f32 %v4142, %v4358
      %4360 = vmatmul.bf16.gmra.mxu0 %v4206
      %v4361 = vpop.f32.mrf.mxu0
      %v4362 = vadd.f32 %v4142, %v4361
      %v4363 = vpop.f32.mrf.mxu0
      %v4364 = vadd.f32 %v4142, %v4363
      %4365 = vmatmul.bf16.gmra.mxu0 %v4208
      %v4366 = vpop.f32.mrf.mxu0
      %v4367 = vadd.f32 %v4142, %v4366
      %v4368 = vpop.f32.mrf.mxu0
      %v4369 = vadd.f32 %v4142, %v4368
      %4370 = vmatmul.bf16.gmra.mxu0 %v4210
      %v4371 = vpop.f32.mrf.mxu0
      %v4372 = vadd.f32 %v4142, %v4371
      %v4373 = vpop.f32.mrf.mxu0
      %v4374 = vadd.f32 %v4142, %v4373
      %4375 = vmatmul.bf16.gmra.mxu0 %v4212
      %v4376 = vpop.f32.mrf.mxu0
      %v4377 = vadd.f32 %v4142, %v4376
      %v4378 = vpop.f32.mrf.mxu0
      %v4379 = vadd.f32 %v4142, %v4378
      %4380 = vmatmul.bf16.gmra.mxu0 %v4214
      %v4381 = vpop.f32.mrf.mxu0
      %v4382 = vadd.f32 %v4142, %v4381
      %v4383 = vpop.f32.mrf.mxu0
      %v4384 = vadd.f32 %v4142, %v4383
      %4385 = vmatmul.bf16.gmra.mxu0 %v4216
      %v4386 = vpop.f32.mrf.mxu0
      %v4387 = vadd.f32 %v4142, %v4386
      %v4388 = vpop.f32.mrf.mxu0
      %v4389 = vadd.f32 %v4142, %v4388
      %4390 = vmatmul.bf16.gmra.mxu0 %v4218
      %v4391 = vpop.f32.mrf.mxu0
      %v4392 = vadd.f32 %v4142, %v4391
      %v4393 = vpop.f32.mrf.mxu0
      %v4394 = vadd.f32 %v4142, %v4393
      %4395 = vdwg.mxu0
      %v4396 = vmax.f32 %v4237, 0.0
      %v4397 = vmax.f32 %v4239, 0.0
      %v4398 = vmax.f32 %v4242, 0.0
      %v4399 = vmax.f32 %v4244, 0.0
      %v4400 = vmax.f32 %v4247, 0.0
      %v4401 = vmax.f32 %v4249, 0.0
      %v4402 = vmax.f32 %v4252, 0.0
      %v4403 = vmax.f32 %v4254, 0.0
      %v4404 = vmax.f32 %v4257, 0.0
      %v4405 = vmax.f32 %v4259, 0.0
      %v4406 = vmax.f32 %v4262, 0.0
      %v4407 = vmax.f32 %v4264, 0.0
      %v4408 = vmax.f32 %v4267, 0.0
      %v4409 = vmax.f32 %v4269, 0.0
      %v4410 = vmax.f32 %v4272, 0.0
      %v4411 = vmax.f32 %v4274, 0.0
      %v4412 = vmax.f32 %v4277, 0.0
      %v4413 = vmax.f32 %v4279, 0.0
      %v4414 = vmax.f32 %v4282, 0.0
      %v4415 = vmax.f32 %v4284, 0.0
      %v4416 = vmax.f32 %v4287, 0.0
      %v4417 = vmax.f32 %v4289, 0.0
      %v4418 = vmax.f32 %v4292, 0.0
      %v4419 = vmax.f32 %v4294, 0.0
      %v4420 = vmax.f32 %v4297, 0.0
      %v4421 = vmax.f32 %v4299, 0.0
      %v4422 = vmax.f32 %v4302, 0.0
      %v4423 = vmax.f32 %v4304, 0.0
      %v4424 = vmax.f32 %v4307, 0.0
      %v4425 = vmax.f32 %v4309, 0.0
      %v4426 = vmax.f32 %v4312, 0.0
      %v4427 = vmax.f32 %v4314, 0.0
      %v4428 = vmax.f32 %v4317, 0.0
      %v4429 = vmax.f32 %v4319, 0.0
      %v4430 = vmax.f32 %v4322, 0.0
      %v4431 = vmax.f32 %v4324, 0.0
      %v4432 = vmax.f32 %v4327, 0.0
      %v4433 = vmax.f32 %v4329, 0.0
      %v4434 = vmax.f32 %v4332, 0.0
      %v4435 = vmax.f32 %v4334, 0.0
      %v4436 = vmax.f32 %v4337, 0.0
      %v4437 = vmax.f32 %v4339, 0.0
      %v4438 = vmax.f32 %v4342, 0.0
      %v4439 = vmax.f32 %v4344, 0.0
      %v4440 = vmax.f32 %v4347, 0.0
      %v4441 = vmax.f32 %v4349, 0.0
      %v4442 = vmax.f32 %v4352, 0.0
      %v4443 = vmax.f32 %v4354, 0.0
      %v4444 = vmax.f32 %v4357, 0.0
      %v4445 = vmax.f32 %v4359, 0.0
      %v4446 = vmax.f32 %v4362, 0.0
      %v4447 = vmax.f32 %v4364, 0.0
      %v4448 = vmax.f32 %v4367, 0.0
      %v4449 = vmax.f32 %v4369, 0.0
      %v4450 = vmax.f32 %v4372, 0.0
      %v4451 = vmax.f32 %v4374, 0.0
      %v4452 = vmax.f32 %v4377, 0.0
      %v4453 = vmax.f32 %v4379, 0.0
      %v4454 = vmax.f32 %v4382, 0.0
      %v4455 = vmax.f32 %v4384, 0.0
      %v4456 = vmax.f32 %v4387, 0.0
      %v4457 = vmax.f32 %v4389, 0.0
      %v4458 = vmax.f32 %v4392, 0.0
      %v4459 = vmax.f32 %v4394, 0.0
      %v4460 = vld [vmem:[%s212] sm:$0xf]
      %v4461 = vld [vmem:[%s212 + $0x4] sm:$0xf]
      %v4462 = vld [vmem:[%s212 + $0x8] sm:$0x1]
      %v4463 = vld [vmem:[%s212 + $0xc] sm:$0xf]
      %v4464 = vld [vmem:[%s212 + $0x10] sm:$0xf]
      %v4465 = vld [vmem:[%s212 + $0x14] sm:$0x1]
      %v4466 = vld [vmem:[%s212 + $0x18] sm:$0xf]
      %v4467 = vld [vmem:[%s212 + $0x1c] sm:$0xf]
      %v4468 = vld [vmem:[%s212 + $0x20] sm:$0x1]
      %v4469 = vld [vmem:[%s212 + $0x24] sm:$0xf]
      %v4470 = vld [vmem:[%s212 + $0x28] sm:$0xf]
      %v4471 = vld [vmem:[%s212 + $0x2c] sm:$0x1]
      %v4472 = vld [vmem:[%s212 + $0x30] sm:$0xf]
      %v4473 = vld [vmem:[%s212 + $0x34] sm:$0xf]
      %v4474 = vld [vmem:[%s212 + $0x38] sm:$0x1]
      %v4475 = vld [vmem:[%s212 + $0x3c] sm:$0xf]
      %v4476 = vld [vmem:[%s212 + $0x40] sm:$0xf]
      %v4477 = vld [vmem:[%s212 + $0x44] sm:$0x1]
      %v4478 = vld [vmem:[%s212 + $0x48] sm:$0xf]
      %v4479 = vld [vmem:[%s212 + $0x4c] sm:$0xf]
      %v4480 = vld [vmem:[%s212 + $0x50] sm:$0x1]
      %v4481 = vld [vmem:[%s212 + $0x54] sm:$0xf]
      %v4482 = vld [vmem:[%s212 + $0x58] sm:$0xf]
      %v4483 = vld [vmem:[%s212 + $0x5c] sm:$0x1]
      %v4484 = vld [vmem:[%s212 + $0x60] sm:$0xf]
      %v4485 = vld [vmem:[%s212 + $0x64] sm:$0xf]
      %v4486 = vld [vmem:[%s212 + $0x68] sm:$0x1]
      %v4487 = vld [vmem:[%s212 + $0x6c] sm:$0xf]
      %v4488 = vld [vmem:[%s212 + $0x70] sm:$0xf]
      %v4489 = vld [vmem:[%s212 + $0x74] sm:$0x1]
      %v4490 = vld [vmem:[%s212 + $0x78] sm:$0xf]
      %v4491 = vld [vmem:[%s212 + $0x7c] sm:$0xf]
      %v4492 = vld [vmem:[%s212 + $0x80] sm:$0x1]
      %v4493 = vld [vmem:[%s212 + $0x84] sm:$0xf]
      %v4494 = vld [vmem:[%s212 + $0x88] sm:$0xf]
      %v4495 = vld [vmem:[%s212 + $0x8c] sm:$0x1]
      %v4496 = vld [vmem:[%s212 + $0x90] sm:$0xf]
      %v4497 = vld [vmem:[%s212 + $0x94] sm:$0xf]
      %v4498 = vld [vmem:[%s212 + $0x98] sm:$0x1]
      %v4499 = vld [vmem:[%s212 + $0x9c] sm:$0xf]
      %v4500 = vld [vmem:[%s212 + $0xa0] sm:$0xf]
      %v4501 = vld [vmem:[%s212 + $0xa4] sm:$0x1]
      %v4502 = vld [vmem:[%s212 + $0xa8] sm:$0xf]
      %v4503 = vld [vmem:[%s212 + $0xac] sm:$0xf]
      %v4504 = vld [vmem:[%s212 + $0xb0] sm:$0x1]
      %v4505 = vld [vmem:[%s212 + $0xb4] sm:$0xf]
      %v4506 = vld [vmem:[%s212 + $0xb8] sm:$0xf]
      %v4507 = vld [vmem:[%s212 + $0xbc] sm:$0x1]
      %v4508 = vld [vmem:[%s212 + $0xc0] sm:$0xf]
      %v4509 = vld [vmem:[%s212 + $0xc4] sm:$0xf]
      %v4510 = vld [vmem:[%s212 + $0xc8] sm:$0x1]
      %v4511 = vld [vmem:[%s212 + $0xcc] sm:$0xf]
      %v4512 = vld [vmem:[%s212 + $0xd0] sm:$0xf]
      %v4513 = vld [vmem:[%s212 + $0xd4] sm:$0x1]
      %v4514 = vld [vmem:[%s212 + $0xd8] sm:$0xf]
      %v4515 = vld [vmem:[%s212 + $0xdc] sm:$0xf]
      %v4516 = vld [vmem:[%s212 + $0xe0] sm:$0x1]
      %v4517 = vld [vmem:[%s212 + $0xe4] sm:$0xf]
      %v4518 = vld [vmem:[%s212 + $0xe8] sm:$0xf]
      %v4519 = vld [vmem:[%s212 + $0xec] sm:$0x1]
      %v4520 = vld [vmem:[%s212 + $0xf0] sm:$0xf]
      %v4521 = vld [vmem:[%s212 + $0xf4] sm:$0xf]
      %v4522 = vld [vmem:[%s212 + $0xf8] sm:$0x1]
      %v4523 = vld [vmem:[%s212 + $0xfc] sm:$0xf]
      %v4524 = vld [vmem:[%s212 + $0x100] sm:$0xf]
      %v4525 = vld [vmem:[%s212 + $0x104] sm:$0x1]
      %v4526 = vld [vmem:[%s212 + $0x108] sm:$0xf]
      %v4527 = vld [vmem:[%s212 + $0x10c] sm:$0xf]
      %v4528 = vld [vmem:[%s212 + $0x110] sm:$0x1]
      %v4529 = vld [vmem:[%s212 + $0x114] sm:$0xf]
      %v4530 = vld [vmem:[%s212 + $0x118] sm:$0xf]
      %v4531 = vld [vmem:[%s212 + $0x11c] sm:$0x1]
      %v4532 = vld [vmem:[%s212 + $0x120] sm:$0xf]
      %v4533 = vld [vmem:[%s212 + $0x124] sm:$0xf]
      %v4534 = vld [vmem:[%s212 + $0x128] sm:$0x1]
      %v4535 = vld [vmem:[%s212 + $0x12c] sm:$0xf]
      %v4536 = vld [vmem:[%s212 + $0x130] sm:$0xf]
      %v4537 = vld [vmem:[%s212 + $0x134] sm:$0x1]
      %v4538 = vld [vmem:[%s212 + $0x138] sm:$0xf]
      %v4539 = vld [vmem:[%s212 + $0x13c] sm:$0xf]
      %v4540 = vld [vmem:[%s212 + $0x140] sm:$0x1]
      %v4541 = vld [vmem:[%s212 + $0x144] sm:$0xf]
      %v4542 = vld [vmem:[%s212 + $0x148] sm:$0xf]
      %v4543 = vld [vmem:[%s212 + $0x14c] sm:$0x1]
      %v4544 = vld [vmem:[%s212 + $0x150] sm:$0xf]
      %v4545 = vld [vmem:[%s212 + $0x154] sm:$0xf]
      %v4546 = vld [vmem:[%s212 + $0x158] sm:$0x1]
      %v4547 = vld [vmem:[%s212 + $0x15c] sm:$0xf]
      %v4548 = vld [vmem:[%s212 + $0x160] sm:$0xf]
      %v4549 = vld [vmem:[%s212 + $0x164] sm:$0x1]
      %v4550 = vld [vmem:[%s212 + $0x168] sm:$0xf]
      %v4551 = vld [vmem:[%s212 + $0x16c] sm:$0xf]
      %v4552 = vld [vmem:[%s212 + $0x170] sm:$0x1]
      %v4553 = vld [vmem:[%s212 + $0x174] sm:$0xf]
      %v4554 = vld [vmem:[%s212 + $0x178] sm:$0xf]
      %v4555 = vld [vmem:[%s212 + $0x17c] sm:$0x1]
      %v4556 = vld [vmem:[%s449] sm:$0xf]
      %v4557 = vld [vmem:[%s449 + $0x4] sm:$0xf]
      %v4558 = vld [vmem:[%s449 + $0x8] sm:$0x1]
      %v4559 = vld [vmem:[%s449 + $0xc] sm:$0xf]
      %v4560 = vld [vmem:[%s449 + $0x10] sm:$0xf]
      %v4561 = vld [vmem:[%s449 + $0x14] sm:$0x1]
      %v4562 = vld [vmem:[%s449 + $0x18] sm:$0xf]
      %v4563 = vld [vmem:[%s449 + $0x1c] sm:$0xf]
      %v4564 = vld [vmem:[%s449 + $0x20] sm:$0x1]
      %v4565 = vld [vmem:[%s449 + $0x24] sm:$0xf]
      %v4566 = vld [vmem:[%s449 + $0x28] sm:$0xf]
      %v4567 = vld [vmem:[%s449 + $0x2c] sm:$0x1]
      %v4568 = vld [vmem:[%s449 + $0x30] sm:$0xf]
      %v4569 = vld [vmem:[%s449 + $0x34] sm:$0xf]
      %v4570 = vld [vmem:[%s449 + $0x38] sm:$0x1]
      %v4571 = vld [vmem:[%s449 + $0x3c] sm:$0xf]
      %v4572 = vld [vmem:[%s449 + $0x40] sm:$0xf]
      %v4573 = vld [vmem:[%s449 + $0x44] sm:$0x1]
      %v4574 = vld [vmem:[%s449 + $0x48] sm:$0xf]
      %v4575 = vld [vmem:[%s449 + $0x4c] sm:$0xf]
      %v4576 = vld [vmem:[%s449 + $0x50] sm:$0x1]
      %v4577 = vld [vmem:[%s449 + $0x54] sm:$0xf]
      %v4578 = vld [vmem:[%s449 + $0x58] sm:$0xf]
      %v4579 = vld [vmem:[%s449 + $0x5c] sm:$0x1]
      %v4580 = vld [vmem:[%s449 + $0x60] sm:$0xf]
      %v4581 = vld [vmem:[%s449 + $0x64] sm:$0xf]
      %v4582 = vld [vmem:[%s449 + $0x68] sm:$0x1]
      %v4583 = vld [vmem:[%s449 + $0x6c] sm:$0xf]
      %v4584 = vld [vmem:[%s449 + $0x70] sm:$0xf]
      %v4585 = vld [vmem:[%s449 + $0x74] sm:$0x1]
      %v4586 = vld [vmem:[%s449 + $0x78] sm:$0xf]
      %v4587 = vld [vmem:[%s449 + $0x7c] sm:$0xf]
      %v4588 = vld [vmem:[%s449 + $0x80] sm:$0x1]
      %v4589 = vld [vmem:[%s449 + $0x84] sm:$0xf]
      %v4590 = vld [vmem:[%s449 + $0x88] sm:$0xf]
      %v4591 = vld [vmem:[%s449 + $0x8c] sm:$0x1]
      %v4592 = vld [vmem:[%s449 + $0x90] sm:$0xf]
      %v4593 = vld [vmem:[%s449 + $0x94] sm:$0xf]
      %v4594 = vld [vmem:[%s449 + $0x98] sm:$0x1]
      %v4595 = vld [vmem:[%s449 + $0x9c] sm:$0xf]
      %v4596 = vld [vmem:[%s449 + $0xa0] sm:$0xf]
      %v4597 = vld [vmem:[%s449 + $0xa4] sm:$0x1]
      %v4598 = vld [vmem:[%s449 + $0xa8] sm:$0xf]
      %v4599 = vld [vmem:[%s449 + $0xac] sm:$0xf]
      %v4600 = vld [vmem:[%s449 + $0xb0] sm:$0x1]
      %v4601 = vld [vmem:[%s449 + $0xb4] sm:$0xf]
      %v4602 = vld [vmem:[%s449 + $0xb8] sm:$0xf]
      %v4603 = vld [vmem:[%s449 + $0xbc] sm:$0x1]
      %v4604 = vld [vmem:[%s449 + $0xc0] sm:$0xf]
      %v4605 = vld [vmem:[%s449 + $0xc4] sm:$0xf]
      %v4606 = vld [vmem:[%s449 + $0xc8] sm:$0x1]
      %v4607 = vld [vmem:[%s449 + $0xcc] sm:$0xf]
      %v4608 = vld [vmem:[%s449 + $0xd0] sm:$0xf]
      %v4609 = vld [vmem:[%s449 + $0xd4] sm:$0x1]
      %v4610 = vld [vmem:[%s449 + $0xd8] sm:$0xf]
      %v4611 = vld [vmem:[%s449 + $0xdc] sm:$0xf]
      %v4612 = vld [vmem:[%s449 + $0xe0] sm:$0x1]
      %v4613 = vld [vmem:[%s449 + $0xe4] sm:$0xf]
      %v4614 = vld [vmem:[%s449 + $0xe8] sm:$0xf]
      %v4615 = vld [vmem:[%s449 + $0xec] sm:$0x1]
      %v4616 = vld [vmem:[%s449 + $0xf0] sm:$0xf]
      %v4617 = vld [vmem:[%s449 + $0xf4] sm:$0xf]
      %v4618 = vld [vmem:[%s449 + $0xf8] sm:$0x1]
      %v4619 = vld [vmem:[%s449 + $0xfc] sm:$0xf]
      %v4620 = vld [vmem:[%s449 + $0x100] sm:$0xf]
      %v4621 = vld [vmem:[%s449 + $0x104] sm:$0x1]
      %v4622 = vld [vmem:[%s449 + $0x108] sm:$0xf]
      %v4623 = vld [vmem:[%s449 + $0x10c] sm:$0xf]
      %v4624 = vld [vmem:[%s449 + $0x110] sm:$0x1]
      %v4625 = vld [vmem:[%s449 + $0x114] sm:$0xf]
      %v4626 = vld [vmem:[%s449 + $0x118] sm:$0xf]
      %v4627 = vld [vmem:[%s449 + $0x11c] sm:$0x1]
      %v4628 = vld [vmem:[%s449 + $0x120] sm:$0xf]
      %v4629 = vld [vmem:[%s449 + $0x124] sm:$0xf]
      %v4630 = vld [vmem:[%s449 + $0x128] sm:$0x1]
      %v4631 = vld [vmem:[%s449 + $0x12c] sm:$0xf]
      %v4632 = vld [vmem:[%s449 + $0x130] sm:$0xf]
      %v4633 = vld [vmem:[%s449 + $0x134] sm:$0x1]
      %v4634 = vld [vmem:[%s449 + $0x138] sm:$0xf]
      %v4635 = vld [vmem:[%s449 + $0x13c] sm:$0xf]
      %v4636 = vld [vmem:[%s449 + $0x140] sm:$0x1]
      %v4637 = vld [vmem:[%s449 + $0x144] sm:$0xf]
      %v4638 = vld [vmem:[%s449 + $0x148] sm:$0xf]
      %v4639 = vld [vmem:[%s449 + $0x14c] sm:$0x1]
      %v4640 = vld [vmem:[%s449 + $0x150] sm:$0xf]
      %v4641 = vld [vmem:[%s449 + $0x154] sm:$0xf]
      %v4642 = vld [vmem:[%s449 + $0x158] sm:$0x1]
      %v4643 = vld [vmem:[%s449 + $0x15c] sm:$0xf]
      %v4644 = vld [vmem:[%s449 + $0x160] sm:$0xf]
      %v4645 = vld [vmem:[%s449 + $0x164] sm:$0x1]
      %v4646 = vld [vmem:[%s449 + $0x168] sm:$0xf]
      %v4647 = vld [vmem:[%s449 + $0x16c] sm:$0xf]
      %v4648 = vld [vmem:[%s449 + $0x170] sm:$0x1]
      %v4649 = vld [vmem:[%s449 + $0x174] sm:$0xf]
      %v4650 = vld [vmem:[%s449 + $0x178] sm:$0xf]
      %v4651 = vld [vmem:[%s449 + $0x17c] sm:$0x1]
      %v4652 = vld [vmem:[%s611] sm:$0xf]
      %v4653 = vld [vmem:[%s611 + $0x4] sm:$0xf]
      %v4654 = vld [vmem:[%s611 + $0x8] sm:$0x1]
      %v4655 = vld [vmem:[%s611 + $0xc] sm:$0xf]
      %v4656 = vld [vmem:[%s611 + $0x10] sm:$0xf]
      %v4657 = vld [vmem:[%s611 + $0x14] sm:$0x1]
      %v4658 = vld [vmem:[%s611 + $0x18] sm:$0xf]
      %v4659 = vld [vmem:[%s611 + $0x1c] sm:$0xf]
      %v4660 = vld [vmem:[%s611 + $0x20] sm:$0x1]
      %v4661 = vld [vmem:[%s611 + $0x24] sm:$0xf]
      %v4662 = vld [vmem:[%s611 + $0x28] sm:$0xf]
      %v4663 = vld [vmem:[%s611 + $0x2c] sm:$0x1]
      %v4664 = vld [vmem:[%s611 + $0x30] sm:$0xf]
      %v4665 = vld [vmem:[%s611 + $0x34] sm:$0xf]
      %v4666 = vld [vmem:[%s611 + $0x38] sm:$0x1]
      %v4667 = vld [vmem:[%s611 + $0x3c] sm:$0xf]
      %v4668 = vld [vmem:[%s611 + $0x40] sm:$0xf]
      %v4669 = vld [vmem:[%s611 + $0x44] sm:$0x1]
      %v4670 = vld [vmem:[%s611 + $0x48] sm:$0xf]
      %v4671 = vld [vmem:[%s611 + $0x4c] sm:$0xf]
      %v4672 = vld [vmem:[%s611 + $0x50] sm:$0x1]
      %v4673 = vld [vmem:[%s611 + $0x54] sm:$0xf]
      %v4674 = vld [vmem:[%s611 + $0x58] sm:$0xf]
      %v4675 = vld [vmem:[%s611 + $0x5c] sm:$0x1]
      %v4676 = vld [vmem:[%s611 + $0x60] sm:$0xf]
      %v4677 = vld [vmem:[%s611 + $0x64] sm:$0xf]
      %v4678 = vld [vmem:[%s611 + $0x68] sm:$0x1]
      %v4679 = vld [vmem:[%s611 + $0x6c] sm:$0xf]
      %v4680 = vld [vmem:[%s611 + $0x70] sm:$0xf]
      %v4681 = vld [vmem:[%s611 + $0x74] sm:$0x1]
      %v4682 = vld [vmem:[%s611 + $0x78] sm:$0xf]
      %v4683 = vld [vmem:[%s611 + $0x7c] sm:$0xf]
      %v4684 = vld [vmem:[%s611 + $0x80] sm:$0x1]
      %v4685 = vld [vmem:[%s611 + $0x84] sm:$0xf]
      %v4686 = vld [vmem:[%s611 + $0x88] sm:$0xf]
      %v4687 = vld [vmem:[%s611 + $0x8c] sm:$0x1]
      %v4688 = vld [vmem:[%s611 + $0x90] sm:$0xf]
      %v4689 = vld [vmem:[%s611 + $0x94] sm:$0xf]
      %v4690 = vld [vmem:[%s611 + $0x98] sm:$0x1]
      %v4691 = vld [vmem:[%s611 + $0x9c] sm:$0xf]
      %v4692 = vld [vmem:[%s611 + $0xa0] sm:$0xf]
      %v4693 = vld [vmem:[%s611 + $0xa4] sm:$0x1]
      %v4694 = vld [vmem:[%s611 + $0xa8] sm:$0xf]
      %v4695 = vld [vmem:[%s611 + $0xac] sm:$0xf]
      %v4696 = vld [vmem:[%s611 + $0xb0] sm:$0x1]
      %v4697 = vld [vmem:[%s611 + $0xb4] sm:$0xf]
      %v4698 = vld [vmem:[%s611 + $0xb8] sm:$0xf]
      %v4699 = vld [vmem:[%s611 + $0xbc] sm:$0x1]
      %v4700 = vld [vmem:[%s611 + $0xc0] sm:$0xf]
      %v4701 = vld [vmem:[%s611 + $0xc4] sm:$0xf]
      %v4702 = vld [vmem:[%s611 + $0xc8] sm:$0x1]
      %v4703 = vld [vmem:[%s611 + $0xcc] sm:$0xf]
      %v4704 = vld [vmem:[%s611 + $0xd0] sm:$0xf]
      %v4705 = vld [vmem:[%s611 + $0xd4] sm:$0x1]
      %v4706 = vld [vmem:[%s611 + $0xd8] sm:$0xf]
      %v4707 = vld [vmem:[%s611 + $0xdc] sm:$0xf]
      %v4708 = vld [vmem:[%s611 + $0xe0] sm:$0x1]
      %v4709 = vld [vmem:[%s611 + $0xe4] sm:$0xf]
      %v4710 = vld [vmem:[%s611 + $0xe8] sm:$0xf]
      %v4711 = vld [vmem:[%s611 + $0xec] sm:$0x1]
      %v4712 = vld [vmem:[%s611 + $0xf0] sm:$0xf]
      %v4713 = vld [vmem:[%s611 + $0xf4] sm:$0xf]
      %v4714 = vld [vmem:[%s611 + $0xf8] sm:$0x1]
      %v4715 = vld [vmem:[%s611 + $0xfc] sm:$0xf]
      %v4716 = vld [vmem:[%s611 + $0x100] sm:$0xf]
      %v4717 = vld [vmem:[%s611 + $0x104] sm:$0x1]
      %v4718 = vld [vmem:[%s611 + $0x108] sm:$0xf]
      %v4719 = vld [vmem:[%s611 + $0x10c] sm:$0xf]
      %v4720 = vld [vmem:[%s611 + $0x110] sm:$0x1]
      %v4721 = vld [vmem:[%s611 + $0x114] sm:$0xf]
      %v4722 = vld [vmem:[%s611 + $0x118] sm:$0xf]
      %v4723 = vld [vmem:[%s611 + $0x11c] sm:$0x1]
      %v4724 = vld [vmem:[%s611 + $0x120] sm:$0xf]
      %v4725 = vld [vmem:[%s611 + $0x124] sm:$0xf]
      %v4726 = vld [vmem:[%s611 + $0x128] sm:$0x1]
      %v4727 = vld [vmem:[%s611 + $0x12c] sm:$0xf]
      %v4728 = vld [vmem:[%s611 + $0x130] sm:$0xf]
      %v4729 = vld [vmem:[%s611 + $0x134] sm:$0x1]
      %v4730 = vld [vmem:[%s611 + $0x138] sm:$0xf]
      %v4731 = vld [vmem:[%s611 + $0x13c] sm:$0xf]
      %v4732 = vld [vmem:[%s611 + $0x140] sm:$0x1]
      %v4733 = vld [vmem:[%s611 + $0x144] sm:$0xf]
      %v4734 = vld [vmem:[%s611 + $0x148] sm:$0xf]
      %v4735 = vld [vmem:[%s611 + $0x14c] sm:$0x1]
      %v4736 = vld [vmem:[%s611 + $0x150] sm:$0xf]
      %v4737 = vld [vmem:[%s611 + $0x154] sm:$0xf]
      %v4738 = vld [vmem:[%s611 + $0x158] sm:$0x1]
      %v4739 = vld [vmem:[%s611 + $0x15c] sm:$0xf]
      %v4740 = vld [vmem:[%s611 + $0x160] sm:$0xf]
      %v4741 = vld [vmem:[%s611 + $0x164] sm:$0x1]
      %v4742 = vld [vmem:[%s611 + $0x168] sm:$0xf]
      %v4743 = vld [vmem:[%s611 + $0x16c] sm:$0xf]
      %v4744 = vld [vmem:[%s611 + $0x170] sm:$0x1]
      %v4745 = vld [vmem:[%s611 + $0x174] sm:$0xf]
      %v4746 = vld [vmem:[%s611 + $0x178] sm:$0xf]
      %v4747 = vld [vmem:[%s611 + $0x17c] sm:$0x1]
      %4748 = vrot.lane.b32.xlu0 %v1200, 3
      %v4749 = vpop.permute.xlu0 %4748
      %4750 = vrot.lane.b32.xlu0 %v1212, 3
      %v4751 = vpop.permute.xlu0 %4750
      %4752 = vrot.lane.b32.xlu0 %v1224, 3
      %v4753 = vpop.permute.xlu0 %4752
      %4754 = vrot.lane.b32.xlu0 %v1236, 3
      %v4755 = vpop.permute.xlu0 %4754
      %4756 = vrot.lane.b32.xlu0 %v1248, 3
      %v4757 = vpop.permute.xlu0 %4756
      %4758 = vrot.lane.b32.xlu0 %v1260, 3
      %v4759 = vpop.permute.xlu0 %4758
      %4760 = vrot.lane.b32.xlu0 %v1272, 3
      %v4761 = vpop.permute.xlu0 %4760
      %4762 = vrot.lane.b32.xlu0 %v1284, 3
      %v4763 = vpop.permute.xlu0 %4762
      %4764 = vrot.lane.b32.xlu0 %v1296, 3
      %v4765 = vpop.permute.xlu0 %4764
      %4766 = vrot.lane.b32.xlu0 %v1308, 3
      %v4767 = vpop.permute.xlu0 %4766
      %4768 = vrot.lane.b32.xlu0 %v1320, 3
      %v4769 = vpop.permute.xlu0 %4768
      %4770 = vrot.lane.b32.xlu0 %v1332, 3
      %v4771 = vpop.permute.xlu0 %4770
      %4772 = vrot.lane.b32.xlu0 %v1344, 3
      %v4773 = vpop.permute.xlu0 %4772
      %4774 = vrot.lane.b32.xlu0 %v1356, 3
      %v4775 = vpop.permute.xlu0 %4774
      %4776 = vrot.lane.b32.xlu0 %v1368, 3
      %v4777 = vpop.permute.xlu0 %4776
      %4778 = vrot.lane.b32.xlu0 %v1380, 3
      %v4779 = vpop.permute.xlu0 %4778
      %4780 = vrot.lane.b32.xlu0 %v1392, 3
      %v4781 = vpop.permute.xlu0 %4780
      %4782 = vrot.lane.b32.xlu0 %v1404, 3
      %v4783 = vpop.permute.xlu0 %4782
      %4784 = vrot.lane.b32.xlu0 %v1416, 3
      %v4785 = vpop.permute.xlu0 %4784
      %4786 = vrot.lane.b32.xlu0 %v1428, 3
      %v4787 = vpop.permute.xlu0 %4786
      %4788 = vrot.lane.b32.xlu0 %v1440, 3
      %v4789 = vpop.permute.xlu0 %4788
      %4790 = vrot.lane.b32.xlu0 %v1452, 3
      %v4791 = vpop.permute.xlu0 %4790
      %4792 = vrot.lane.b32.xlu0 %v1464, 3
      %v4793 = vpop.permute.xlu0 %4792
      %4794 = vrot.lane.b32.xlu0 %v1476, 3
      %v4795 = vpop.permute.xlu0 %4794
      %4796 = vrot.lane.b32.xlu0 %v1488, 3
      %v4797 = vpop.permute.xlu0 %4796
      %4798 = vrot.lane.b32.xlu0 %v1500, 3
      %v4799 = vpop.permute.xlu0 %4798
      %4800 = vrot.lane.b32.xlu0 %v1512, 3
      %v4801 = vpop.permute.xlu0 %4800
      %4802 = vrot.lane.b32.xlu0 %v1524, 3
      %v4803 = vpop.permute.xlu0 %4802
      %4804 = vrot.lane.b32.xlu0 %v1536, 3
      %v4805 = vpop.permute.xlu0 %4804
      %4806 = vrot.lane.b32.xlu0 %v1548, 3
      %v4807 = vpop.permute.xlu0 %4806
      %4808 = vrot.lane.b32.xlu0 %v1560, 3
      %v4809 = vpop.permute.xlu0 %4808
      %4810 = vrot.lane.b32.xlu0 %v1572, 3
      %v4811 = vpop.permute.xlu0 %4810
      %v4908 = vunpack.c.l.b16 %v4460
      %v4909 = vunpack.c.l.b16 %v4461
      %v4910 = vunpack.c.l.b16 %v4462
      %v4911 = vunpack.c.l.b16 %v4463
      %v4912 = vunpack.c.l.b16 %v4464
      %v4913 = vunpack.c.l.b16 %v4465
      %v4914 = vunpack.c.l.b16 %v4466
      %v4915 = vunpack.c.l.b16 %v4467
      %v4916 = vunpack.c.l.b16 %v4468
      %v4917 = vunpack.c.l.b16 %v4469
      %v4918 = vunpack.c.l.b16 %v4470
      %v4919 = vunpack.c.l.b16 %v4471
      %v4920 = vunpack.c.l.b16 %v4472
      %v4921 = vunpack.c.l.b16 %v4473
      %v4922 = vunpack.c.l.b16 %v4474
      %v4923 = vunpack.c.l.b16 %v4475
      %v4924 = vunpack.c.l.b16 %v4476
      %v4925 = vunpack.c.l.b16 %v4477
      %v4926 = vunpack.c.l.b16 %v4478
      %v4927 = vunpack.c.l.b16 %v4479
      %v4928 = vunpack.c.l.b16 %v4480
      %v4929 = vunpack.c.l.b16 %v4481
      %v4930 = vunpack.c.l.b16 %v4482
      %v4931 = vunpack.c.l.b16 %v4483
      %v4932 = vunpack.c.l.b16 %v4484
      %v4933 = vunpack.c.l.b16 %v4485
      %v4934 = vunpack.c.l.b16 %v4486
      %v4935 = vunpack.c.l.b16 %v4487
      %v4936 = vunpack.c.l.b16 %v4488
      %v4937 = vunpack.c.l.b16 %v4489
      %v4938 = vunpack.c.l.b16 %v4490
      %v4939 = vunpack.c.l.b16 %v4491
      %v4940 = vunpack.c.l.b16 %v4492
      %v4941 = vunpack.c.l.b16 %v4493
      %v4942 = vunpack.c.l.b16 %v4494
      %v4943 = vunpack.c.l.b16 %v4495
      %v4944 = vunpack.c.l.b16 %v4496
      %v4945 = vunpack.c.l.b16 %v4497
      %v4946 = vunpack.c.l.b16 %v4498
      %v4947 = vunpack.c.l.b16 %v4499
      %v4948 = vunpack.c.l.b16 %v4500
      %v4949 = vunpack.c.l.b16 %v4501
      %v4950 = vunpack.c.l.b16 %v4502
      %v4951 = vunpack.c.l.b16 %v4503
      %v4952 = vunpack.c.l.b16 %v4504
      %v4953 = vunpack.c.l.b16 %v4505
      %v4954 = vunpack.c.l.b16 %v4506
      %v4955 = vunpack.c.l.b16 %v4507
      %v4956 = vunpack.c.l.b16 %v4508
      %v4957 = vunpack.c.l.b16 %v4509
      %v4958 = vunpack.c.l.b16 %v4510
      %v4959 = vunpack.c.l.b16 %v4511
      %v4960 = vunpack.c.l.b16 %v4512
      %v4961 = vunpack.c.l.b16 %v4513
      %v4962 = vunpack.c.l.b16 %v4514
      %v4963 = vunpack.c.l.b16 %v4515
      %v4964 = vunpack.c.l.b16 %v4516
      %v4965 = vunpack.c.l.b16 %v4517
      %v4966 = vunpack.c.l.b16 %v4518
      %v4967 = vunpack.c.l.b16 %v4519
      %v4968 = vunpack.c.l.b16 %v4520
      %v4969 = vunpack.c.l.b16 %v4521
      %v4970 = vunpack.c.l.b16 %v4522
      %v4971 = vunpack.c.l.b16 %v4523
      %v4972 = vunpack.c.l.b16 %v4524
      %v4973 = vunpack.c.l.b16 %v4525
      %v4974 = vunpack.c.l.b16 %v4526
      %v4975 = vunpack.c.l.b16 %v4527
      %v4976 = vunpack.c.l.b16 %v4528
      %v4977 = vunpack.c.l.b16 %v4529
      %v4978 = vunpack.c.l.b16 %v4530
      %v4979 = vunpack.c.l.b16 %v4531
      %v4980 = vunpack.c.l.b16 %v4532
      %v4981 = vunpack.c.l.b16 %v4533
      %v4982 = vunpack.c.l.b16 %v4534
      %v4983 = vunpack.c.l.b16 %v4535
      %v4984 = vunpack.c.l.b16 %v4536
      %v4985 = vunpack.c.l.b16 %v4537
      %v4986 = vunpack.c.l.b16 %v4538
      %v4987 = vunpack.c.l.b16 %v4539
      %v4988 = vunpack.c.l.b16 %v4540
      %v4989 = vunpack.c.l.b16 %v4541
      %v4990 = vunpack.c.l.b16 %v4542
      %v4991 = vunpack.c.l.b16 %v4543
      %v4992 = vunpack.c.l.b16 %v4544
      %v4993 = vunpack.c.l.b16 %v4545
      %v4994 = vunpack.c.l.b16 %v4546
      %v4995 = vunpack.c.l.b16 %v4547
      %v4996 = vunpack.c.l.b16 %v4548
      %v4997 = vunpack.c.l.b16 %v4549
      %v4998 = vunpack.c.l.b16 %v4550
      %v4999 = vunpack.c.l.b16 %v4551
      %v5000 = vunpack.c.l.b16 %v4552
      %v5001 = vunpack.c.l.b16 %v4553
      %v5002 = vunpack.c.l.b16 %v4554
      %v5003 = vunpack.c.l.b16 %v4555
      %v5004 = vpack.c.b16 %v4909, %v4908
      %v5005 = vpack.c.b16 %v4910, %v4910
      %v5006 = vpack.c.b16 %v4912, %v4911
      %v5007 = vpack.c.b16 %v4913, %v4913
      %v5008 = vpack.c.b16 %v4915, %v4914
      %v5009 = vpack.c.b16 %v4916, %v4916
      %v5010 = vpack.c.b16 %v4918, %v4917
      %v5011 = vpack.c.b16 %v4919, %v4919
      %v5012 = vpack.c.b16 %v4921, %v4920
      %v5013 = vpack.c.b16 %v4922, %v4922
      %v5014 = vpack.c.b16 %v4924, %v4923
      %v5015 = vpack.c.b16 %v4925, %v4925
      %v5016 = vpack.c.b16 %v4927, %v4926
      %v5017 = vpack.c.b16 %v4928, %v4928
      %v5018 = vpack.c.b16 %v4930, %v4929
      %v5019 = vpack.c.b16 %v4931, %v4931
      %v5020 = vpack.c.b16 %v4933, %v4932
      %v5021 = vpack.c.b16 %v4934, %v4934
      %v5022 = vpack.c.b16 %v4936, %v4935
      %v5023 = vpack.c.b16 %v4937, %v4937
      %v5024 = vpack.c.b16 %v4939, %v4938
      %v5025 = vpack.c.b16 %v4940, %v4940
      %v5026 = vpack.c.b16 %v4942, %v4941
      %v5027 = vpack.c.b16 %v4943, %v4943
      %v5028 = vpack.c.b16 %v4945, %v4944
      %v5029 = vpack.c.b16 %v4946, %v4946
      %v5030 = vpack.c.b16 %v4948, %v4947
      %v5031 = vpack.c.b16 %v4949, %v4949
      %v5032 = vpack.c.b16 %v4951, %v4950
      %v5033 = vpack.c.b16 %v4952, %v4952
      %v5034 = vpack.c.b16 %v4954, %v4953
      %v5035 = vpack.c.b16 %v4955, %v4955
      %v5036 = vpack.c.b16 %v4957, %v4956
      %v5037 = vpack.c.b16 %v4958, %v4958
      %v5038 = vpack.c.b16 %v4960, %v4959
      %v5039 = vpack.c.b16 %v4961, %v4961
      %v5040 = vpack.c.b16 %v4963, %v4962
      %v5041 = vpack.c.b16 %v4964, %v4964
      %v5042 = vpack.c.b16 %v4966, %v4965
      %v5043 = vpack.c.b16 %v4967, %v4967
      %v5044 = vpack.c.b16 %v4969, %v4968
      %v5045 = vpack.c.b16 %v4970, %v4970
      %v5046 = vpack.c.b16 %v4972, %v4971
      %v5047 = vpack.c.b16 %v4973, %v4973
      %v5048 = vpack.c.b16 %v4975, %v4974
      %v5049 = vpack.c.b16 %v4976, %v4976
      %v5050 = vpack.c.b16 %v4978, %v4977
      %v5051 = vpack.c.b16 %v4979, %v4979
      %v5052 = vpack.c.b16 %v4981, %v4980
      %v5053 = vpack.c.b16 %v4982, %v4982
      %v5054 = vpack.c.b16 %v4984, %v4983
      %v5055 = vpack.c.b16 %v4985, %v4985
      %v5056 = vpack.c.b16 %v4987, %v4986
      %v5057 = vpack.c.b16 %v4988, %v4988
      %v5058 = vpack.c.b16 %v4990, %v4989
      %v5059 = vpack.c.b16 %v4991, %v4991
      %v5060 = vpack.c.b16 %v4993, %v4992
      %v5061 = vpack.c.b16 %v4994, %v4994
      %v5062 = vpack.c.b16 %v4996, %v4995
      %v5063 = vpack.c.b16 %v4997, %v4997
      %v5064 = vpack.c.b16 %v4999, %v4998
      %v5065 = vpack.c.b16 %v5000, %v5000
      %v5066 = vpack.c.b16 %v5002, %v5001
      %v5067 = vpack.c.b16 %v5003, %v5003
      %v5069 = vshrl.u32 %v5004, 16
      %v5071 = vshll.u32 %v5004, 16
      %v5073 = vrot.slane %v5071, 1
      %v5074 = vor.u32 %v5069, %v5073
      %v5076 = vshll.u32 %v5005, 16
      %v5078 = vrot.slane %v5076, 1
      %v5079 = vsel %vm1188, %v5074, %v5078
      %v5081 = vshrl.u32 %v5006, 16
      %v5083 = vshll.u32 %v5006, 16
      %v5085 = vrot.slane %v5083, 1
      %v5086 = vor.u32 %v5081, %v5085
      %v5088 = vshll.u32 %v5007, 16
      %v5090 = vrot.slane %v5088, 1
      %v5091 = vsel %vm1188, %v5086, %v5090
      %v5093 = vshrl.u32 %v5008, 16
      %v5095 = vshll.u32 %v5008, 16
      %v5097 = vrot.slane %v5095, 1
      %v5098 = vor.u32 %v5093, %v5097
      %v5100 = vshll.u32 %v5009, 16
      %v5102 = vrot.slane %v5100, 1
      %v5103 = vsel %vm1188, %v5098, %v5102
      %v5105 = vshrl.u32 %v5010, 16
      %v5107 = vshll.u32 %v5010, 16
      %v5109 = vrot.slane %v5107, 1
      %v5110 = vor.u32 %v5105, %v5109
      %v5112 = vshll.u32 %v5011, 16
      %v5114 = vrot.slane %v5112, 1
      %v5115 = vsel %vm1188, %v5110, %v5114
      %v5117 = vshrl.u32 %v5012, 16
      %v5119 = vshll.u32 %v5012, 16
      %v5121 = vrot.slane %v5119, 1
      %v5122 = vor.u32 %v5117, %v5121
      %v5124 = vshll.u32 %v5013, 16
      %v5126 = vrot.slane %v5124, 1
      %v5127 = vsel %vm1188, %v5122, %v5126
      %v5129 = vshrl.u32 %v5014, 16
      %v5131 = vshll.u32 %v5014, 16
      %v5133 = vrot.slane %v5131, 1
      %v5134 = vor.u32 %v5129, %v5133
      %v5136 = vshll.u32 %v5015, 16
      %v5138 = vrot.slane %v5136, 1
      %v5139 = vsel %vm1188, %v5134, %v5138
      %v5141 = vshrl.u32 %v5016, 16
      %v5143 = vshll.u32 %v5016, 16
      %v5145 = vrot.slane %v5143, 1
      %v5146 = vor.u32 %v5141, %v5145
      %v5148 = vshll.u32 %v5017, 16
      %v5150 = vrot.slane %v5148, 1
      %v5151 = vsel %vm1188, %v5146, %v5150
      %v5153 = vshrl.u32 %v5018, 16
      %v5155 = vshll.u32 %v5018, 16
      %v5157 = vrot.slane %v5155, 1
      %v5158 = vor.u32 %v5153, %v5157
      %v5160 = vshll.u32 %v5019, 16
      %v5162 = vrot.slane %v5160, 1
      %v5163 = vsel %vm1188, %v5158, %v5162
      %v5165 = vshrl.u32 %v5020, 16
      %v5167 = vshll.u32 %v5020, 16
      %v5169 = vrot.slane %v5167, 1
      %v5170 = vor.u32 %v5165, %v5169
      %v5172 = vshll.u32 %v5021, 16
      %v5174 = vrot.slane %v5172, 1
      %v5175 = vsel %vm1188, %v5170, %v5174
      %v5177 = vshrl.u32 %v5022, 16
      %v5179 = vshll.u32 %v5022, 16
      %v5181 = vrot.slane %v5179, 1
      %v5182 = vor.u32 %v5177, %v5181
      %v5184 = vshll.u32 %v5023, 16
      %v5186 = vrot.slane %v5184, 1
      %v5187 = vsel %vm1188, %v5182, %v5186
      %v5189 = vshrl.u32 %v5024, 16
      %v5191 = vshll.u32 %v5024, 16
      %v5193 = vrot.slane %v5191, 1
      %v5194 = vor.u32 %v5189, %v5193
      %v5196 = vshll.u32 %v5025, 16
      %v5198 = vrot.slane %v5196, 1
      %v5199 = vsel %vm1188, %v5194, %v5198
      %v5201 = vshrl.u32 %v5026, 16
      %v5203 = vshll.u32 %v5026, 16
      %v5205 = vrot.slane %v5203, 1
      %v5206 = vor.u32 %v5201, %v5205
      %v5208 = vshll.u32 %v5027, 16
      %v5210 = vrot.slane %v5208, 1
      %v5211 = vsel %vm1188, %v5206, %v5210
      %v5213 = vshrl.u32 %v5028, 16
      %v5215 = vshll.u32 %v5028, 16
      %v5217 = vrot.slane %v5215, 1
      %v5218 = vor.u32 %v5213, %v5217
      %v5220 = vshll.u32 %v5029, 16
      %v5222 = vrot.slane %v5220, 1
      %v5223 = vsel %vm1188, %v5218, %v5222
      %v5225 = vshrl.u32 %v5030, 16
      %v5227 = vshll.u32 %v5030, 16
      %v5229 = vrot.slane %v5227, 1
      %v5230 = vor.u32 %v5225, %v5229
      %v5232 = vshll.u32 %v5031, 16
      %v5234 = vrot.slane %v5232, 1
      %v5235 = vsel %vm1188, %v5230, %v5234
      %v5237 = vshrl.u32 %v5032, 16
      %v5239 = vshll.u32 %v5032, 16
      %v5241 = vrot.slane %v5239, 1
      %v5242 = vor.u32 %v5237, %v5241
      %v5244 = vshll.u32 %v5033, 16
      %v5246 = vrot.slane %v5244, 1
      %v5247 = vsel %vm1188, %v5242, %v5246
      %v5249 = vshrl.u32 %v5034, 16
      %v5251 = vshll.u32 %v5034, 16
      %v5253 = vrot.slane %v5251, 1
      %v5254 = vor.u32 %v5249, %v5253
      %v5256 = vshll.u32 %v5035, 16
      %v5258 = vrot.slane %v5256, 1
      %v5259 = vsel %vm1188, %v5254, %v5258
      %v5261 = vshrl.u32 %v5036, 16
      %v5263 = vshll.u32 %v5036, 16
      %v5265 = vrot.slane %v5263, 1
      %v5266 = vor.u32 %v5261, %v5265
      %v5268 = vshll.u32 %v5037, 16
      %v5270 = vrot.slane %v5268, 1
      %v5271 = vsel %vm1188, %v5266, %v5270
      %v5273 = vshrl.u32 %v5038, 16
      %v5275 = vshll.u32 %v5038, 16
      %v5277 = vrot.slane %v5275, 1
      %v5278 = vor.u32 %v5273, %v5277
      %v5280 = vshll.u32 %v5039, 16
      %v5282 = vrot.slane %v5280, 1
      %v5283 = vsel %vm1188, %v5278, %v5282
      %v5285 = vshrl.u32 %v5040, 16
      %v5287 = vshll.u32 %v5040, 16
      %v5289 = vrot.slane %v5287, 1
      %v5290 = vor.u32 %v5285, %v5289
      %v5292 = vshll.u32 %v5041, 16
      %v5294 = vrot.slane %v5292, 1
      %v5295 = vsel %vm1188, %v5290, %v5294
      %v5297 = vshrl.u32 %v5042, 16
      %v5299 = vshll.u32 %v5042, 16
      %v5301 = vrot.slane %v5299, 1
      %v5302 = vor.u32 %v5297, %v5301
      %v5304 = vshll.u32 %v5043, 16
      %v5306 = vrot.slane %v5304, 1
      %v5307 = vsel %vm1188, %v5302, %v5306
      %v5309 = vshrl.u32 %v5044, 16
      %v5311 = vshll.u32 %v5044, 16
      %v5313 = vrot.slane %v5311, 1
      %v5314 = vor.u32 %v5309, %v5313
      %v5316 = vshll.u32 %v5045, 16
      %v5318 = vrot.slane %v5316, 1
      %v5319 = vsel %vm1188, %v5314, %v5318
      %v5321 = vshrl.u32 %v5046, 16
      %v5323 = vshll.u32 %v5046, 16
      %v5325 = vrot.slane %v5323, 1
      %v5326 = vor.u32 %v5321, %v5325
      %v5328 = vshll.u32 %v5047, 16
      %v5330 = vrot.slane %v5328, 1
      %v5331 = vsel %vm1188, %v5326, %v5330
      %v5333 = vshrl.u32 %v5048, 16
      %v5335 = vshll.u32 %v5048, 16
      %v5337 = vrot.slane %v5335, 1
      %v5338 = vor.u32 %v5333, %v5337
      %v5340 = vshll.u32 %v5049, 16
      %v5342 = vrot.slane %v5340, 1
      %v5343 = vsel %vm1188, %v5338, %v5342
      %v5345 = vshrl.u32 %v5050, 16
      %v5347 = vshll.u32 %v5050, 16
      %v5349 = vrot.slane %v5347, 1
      %v5350 = vor.u32 %v5345, %v5349
      %v5352 = vshll.u32 %v5051, 16
      %v5354 = vrot.slane %v5352, 1
      %v5355 = vsel %vm1188, %v5350, %v5354
      %v5357 = vshrl.u32 %v5052, 16
      %v5359 = vshll.u32 %v5052, 16
      %v5361 = vrot.slane %v5359, 1
      %v5362 = vor.u32 %v5357, %v5361
      %v5364 = vshll.u32 %v5053, 16
      %v5366 = vrot.slane %v5364, 1
      %v5367 = vsel %vm1188, %v5362, %v5366
      %v5369 = vshrl.u32 %v5054, 16
      %v5371 = vshll.u32 %v5054, 16
      %v5373 = vrot.slane %v5371, 1
      %v5374 = vor.u32 %v5369, %v5373
      %v5376 = vshll.u32 %v5055, 16
      %v5378 = vrot.slane %v5376, 1
      %v5379 = vsel %vm1188, %v5374, %v5378
      %v5381 = vshrl.u32 %v5056, 16
      %v5383 = vshll.u32 %v5056, 16
      %v5385 = vrot.slane %v5383, 1
      %v5386 = vor.u32 %v5381, %v5385
      %v5388 = vshll.u32 %v5057, 16
      %v5390 = vrot.slane %v5388, 1
      %v5391 = vsel %vm1188, %v5386, %v5390
      %v5393 = vshrl.u32 %v5058, 16
      %v5395 = vshll.u32 %v5058, 16
      %v5397 = vrot.slane %v5395, 1
      %v5398 = vor.u32 %v5393, %v5397
      %v5400 = vshll.u32 %v5059, 16
      %v5402 = vrot.slane %v5400, 1
      %v5403 = vsel %vm1188, %v5398, %v5402
      %v5405 = vshrl.u32 %v5060, 16
      %v5407 = vshll.u32 %v5060, 16
      %v5409 = vrot.slane %v5407, 1
      %v5410 = vor.u32 %v5405, %v5409
      %v5412 = vshll.u32 %v5061, 16
      %v5414 = vrot.slane %v5412, 1
      %v5415 = vsel %vm1188, %v5410, %v5414
      %v5417 = vshrl.u32 %v5062, 16
      %v5419 = vshll.u32 %v5062, 16
      %v5421 = vrot.slane %v5419, 1
      %v5422 = vor.u32 %v5417, %v5421
      %v5424 = vshll.u32 %v5063, 16
      %v5426 = vrot.slane %v5424, 1
      %v5427 = vsel %vm1188, %v5422, %v5426
      %v5429 = vshrl.u32 %v5064, 16
      %v5431 = vshll.u32 %v5064, 16
      %v5433 = vrot.slane %v5431, 1
      %v5434 = vor.u32 %v5429, %v5433
      %v5436 = vshll.u32 %v5065, 16
      %v5438 = vrot.slane %v5436, 1
      %v5439 = vsel %vm1188, %v5434, %v5438
      %v5441 = vshrl.u32 %v5066, 16
      %v5443 = vshll.u32 %v5066, 16
      %v5445 = vrot.slane %v5443, 1
      %v5446 = vor.u32 %v5441, %v5445
      %v5448 = vshll.u32 %v5067, 16
      %v5450 = vrot.slane %v5448, 1
      %v5451 = vsel %vm1188, %v5446, %v5450
      %5452 = vrot.lane.b32.xlu0 %v5079, 6
      %v5453 = vpop.permute.xlu0 %5452
      %5454 = vrot.lane.b32.xlu0 %v5091, 6
      %v5455 = vpop.permute.xlu0 %5454
      %5456 = vrot.lane.b32.xlu0 %v5103, 6
      %v5457 = vpop.permute.xlu0 %5456
      %5458 = vrot.lane.b32.xlu0 %v5115, 6
      %v5459 = vpop.permute.xlu0 %5458
      %5460 = vrot.lane.b32.xlu0 %v5127, 6
      %v5461 = vpop.permute.xlu0 %5460
      %5462 = vrot.lane.b32.xlu0 %v5139, 6
      %v5463 = vpop.permute.xlu0 %5462
      %5464 = vrot.lane.b32.xlu0 %v5151, 6
      %v5465 = vpop.permute.xlu0 %5464
      %5466 = vrot.lane.b32.xlu0 %v5163, 6
      %v5467 = vpop.permute.xlu0 %5466
      %5468 = vrot.lane.b32.xlu0 %v5175, 6
      %v5469 = vpop.permute.xlu0 %5468
      %5470 = vrot.lane.b32.xlu0 %v5187, 6
      %v5471 = vpop.permute.xlu0 %5470
      %5472 = vrot.lane.b32.xlu0 %v5199, 6
      %v5473 = vpop.permute.xlu0 %5472
      %5474 = vrot.lane.b32.xlu0 %v5211, 6
      %v5475 = vpop.permute.xlu0 %5474
      %5476 = vrot.lane.b32.xlu0 %v5223, 6
      %v5477 = vpop.permute.xlu0 %5476
      %5478 = vrot.lane.b32.xlu0 %v5235, 6
      %v5479 = vpop.permute.xlu0 %5478
      %5480 = vrot.lane.b32.xlu0 %v5247, 6
      %v5481 = vpop.permute.xlu0 %5480
      %5482 = vrot.lane.b32.xlu0 %v5259, 6
      %v5483 = vpop.permute.xlu0 %5482
      %5484 = vrot.lane.b32.xlu0 %v5271, 6
      %v5485 = vpop.permute.xlu0 %5484
      %5486 = vrot.lane.b32.xlu0 %v5283, 6
      %v5487 = vpop.permute.xlu0 %5486
      %5488 = vrot.lane.b32.xlu0 %v5295, 6
      %v5489 = vpop.permute.xlu0 %5488
      %5490 = vrot.lane.b32.xlu0 %v5307, 6
      %v5491 = vpop.permute.xlu0 %5490
      %5492 = vrot.lane.b32.xlu0 %v5319, 6
      %v5493 = vpop.permute.xlu0 %5492
      %5494 = vrot.lane.b32.xlu0 %v5331, 6
      %v5495 = vpop.permute.xlu0 %5494
      %5496 = vrot.lane.b32.xlu0 %v5343, 6
      %v5497 = vpop.permute.xlu0 %5496
      %5498 = vrot.lane.b32.xlu0 %v5355, 6
      %v5499 = vpop.permute.xlu0 %5498
      %5500 = vrot.lane.b32.xlu0 %v5367, 6
      %v5501 = vpop.permute.xlu0 %5500
      %5502 = vrot.lane.b32.xlu0 %v5379, 6
      %v5503 = vpop.permute.xlu0 %5502
      %5504 = vrot.lane.b32.xlu0 %v5391, 6
      %v5505 = vpop.permute.xlu0 %5504
      %5506 = vrot.lane.b32.xlu0 %v5403, 6
      %v5507 = vpop.permute.xlu0 %5506
      %5508 = vrot.lane.b32.xlu0 %v5415, 6
      %v5509 = vpop.permute.xlu0 %5508
      %5510 = vrot.lane.b32.xlu0 %v5427, 6
      %v5511 = vpop.permute.xlu0 %5510
      %5512 = vrot.lane.b32.xlu0 %v5439, 6
      %v5513 = vpop.permute.xlu0 %5512
      %5514 = vrot.lane.b32.xlu0 %v5451, 6
      %v5515 = vpop.permute.xlu0 %5514
      %5516 = vrot.lane.b32.xlu0 %v1989, 9
      %v5517 = vpop.permute.xlu0 %5516
      %5518 = vrot.lane.b32.xlu0 %v1990, 9
      %v5519 = vpop.permute.xlu0 %5518
      %5520 = vrot.lane.b32.xlu0 %v1991, 9
      %v5521 = vpop.permute.xlu0 %5520
      %5522 = vrot.lane.b32.xlu0 %v1992, 9
      %v5523 = vpop.permute.xlu0 %5522
      %5524 = vrot.lane.b32.xlu0 %v1993, 9
      %v5525 = vpop.permute.xlu0 %5524
      %5526 = vrot.lane.b32.xlu0 %v1994, 9
      %v5527 = vpop.permute.xlu0 %5526
      %5528 = vrot.lane.b32.xlu0 %v1995, 9
      %v5529 = vpop.permute.xlu0 %5528
      %5530 = vrot.lane.b32.xlu0 %v1996, 9
      %v5531 = vpop.permute.xlu0 %5530
      %5532 = vrot.lane.b32.xlu0 %v1997, 9
      %v5533 = vpop.permute.xlu0 %5532
      %5534 = vrot.lane.b32.xlu0 %v1998, 9
      %v5535 = vpop.permute.xlu0 %5534
      %5536 = vrot.lane.b32.xlu0 %v1999, 9
      %v5537 = vpop.permute.xlu0 %5536
      %5538 = vrot.lane.b32.xlu0 %v2000, 9
      %v5539 = vpop.permute.xlu0 %5538
      %5540 = vrot.lane.b32.xlu0 %v2001, 9
      %v5541 = vpop.permute.xlu0 %5540
      %5542 = vrot.lane.b32.xlu0 %v2002, 9
      %v5543 = vpop.permute.xlu0 %5542
      %5544 = vrot.lane.b32.xlu0 %v2003, 9
      %v5545 = vpop.permute.xlu0 %5544
      %5546 = vrot.lane.b32.xlu0 %v2004, 9
      %v5547 = vpop.permute.xlu0 %5546
      %5548 = vrot.lane.b32.xlu0 %v2005, 9
      %v5549 = vpop.permute.xlu0 %5548
      %5550 = vrot.lane.b32.xlu0 %v2006, 9
      %v5551 = vpop.permute.xlu0 %5550
      %5552 = vrot.lane.b32.xlu0 %v2007, 9
      %v5553 = vpop.permute.xlu0 %5552
      %5554 = vrot.lane.b32.xlu0 %v2008, 9
      %v5555 = vpop.permute.xlu0 %5554
      %5556 = vrot.lane.b32.xlu0 %v2009, 9
      %v5557 = vpop.permute.xlu0 %5556
      %5558 = vrot.lane.b32.xlu0 %v2010, 9
      %v5559 = vpop.permute.xlu0 %5558
      %5560 = vrot.lane.b32.xlu0 %v2011, 9
      %v5561 = vpop.permute.xlu0 %5560
      %5562 = vrot.lane.b32.xlu0 %v2012, 9
      %v5563 = vpop.permute.xlu0 %5562
      %5564 = vrot.lane.b32.xlu0 %v2013, 9
      %v5565 = vpop.permute.xlu0 %5564
      %5566 = vrot.lane.b32.xlu0 %v2014, 9
      %v5567 = vpop.permute.xlu0 %5566
      %5568 = vrot.lane.b32.xlu0 %v2015, 9
      %v5569 = vpop.permute.xlu0 %5568
      %5570 = vrot.lane.b32.xlu0 %v2016, 9
      %v5571 = vpop.permute.xlu0 %5570
      %5572 = vrot.lane.b32.xlu0 %v2017, 9
      %v5573 = vpop.permute.xlu0 %5572
      %5574 = vrot.lane.b32.xlu0 %v2018, 9
      %v5575 = vpop.permute.xlu0 %5574
      %5576 = vrot.lane.b32.xlu0 %v2019, 9
      %v5577 = vpop.permute.xlu0 %5576
      %5578 = vrot.lane.b32.xlu0 %v2020, 9
      %v5579 = vpop.permute.xlu0 %5578
      %5580 = vrot.lane.b32.xlu0 %v2192, 12
      %v5581 = vpop.permute.xlu0 %5580
      %5582 = vrot.lane.b32.xlu0 %v2204, 12
      %v5583 = vpop.permute.xlu0 %5582
      %5584 = vrot.lane.b32.xlu0 %v2216, 12
      %v5585 = vpop.permute.xlu0 %5584
      %5586 = vrot.lane.b32.xlu0 %v2228, 12
      %v5587 = vpop.permute.xlu0 %5586
      %5588 = vrot.lane.b32.xlu0 %v2240, 12
      %v5589 = vpop.permute.xlu0 %5588
      %5590 = vrot.lane.b32.xlu0 %v2252, 12
      %v5591 = vpop.permute.xlu0 %5590
      %5592 = vrot.lane.b32.xlu0 %v2264, 12
      %v5593 = vpop.permute.xlu0 %5592
      %5594 = vrot.lane.b32.xlu0 %v2276, 12
      %v5595 = vpop.permute.xlu0 %5594
      %5596 = vrot.lane.b32.xlu0 %v2288, 12
      %v5597 = vpop.permute.xlu0 %5596
      %5598 = vrot.lane.b32.xlu0 %v2300, 12
      %v5599 = vpop.permute.xlu0 %5598
      %5600 = vrot.lane.b32.xlu0 %v2312, 12
      %v5601 = vpop.permute.xlu0 %5600
      %5602 = vrot.lane.b32.xlu0 %v2324, 12
      %v5603 = vpop.permute.xlu0 %5602
      %5604 = vrot.lane.b32.xlu0 %v2336, 12
      %v5605 = vpop.permute.xlu0 %5604
      %5606 = vrot.lane.b32.xlu0 %v2348, 12
      %v5607 = vpop.permute.xlu0 %5606
      %5608 = vrot.lane.b32.xlu0 %v2360, 12
      %v5609 = vpop.permute.xlu0 %5608
      %5610 = vrot.lane.b32.xlu0 %v2372, 12
      %v5611 = vpop.permute.xlu0 %5610
      %5612 = vrot.lane.b32.xlu0 %v2384, 12
      %v5613 = vpop.permute.xlu0 %5612
      %5614 = vrot.lane.b32.xlu0 %v2396, 12
      %v5615 = vpop.permute.xlu0 %5614
      %5616 = vrot.lane.b32.xlu0 %v2408, 12
      %v5617 = vpop.permute.xlu0 %5616
      %5618 = vrot.lane.b32.xlu0 %v2420, 12
      %v5619 = vpop.permute.xlu0 %5618
      %5620 = vrot.lane.b32.xlu0 %v2432, 12
      %v5621 = vpop.permute.xlu0 %5620
      %5622 = vrot.lane.b32.xlu0 %v2444, 12
      %v5623 = vpop.permute.xlu0 %5622
      %5624 = vrot.lane.b32.xlu0 %v2456, 12
      %v5625 = vpop.permute.xlu0 %5624
      %5626 = vrot.lane.b32.xlu0 %v2468, 12
      %v5627 = vpop.permute.xlu0 %5626
      %5628 = vrot.lane.b32.xlu0 %v2480, 12
      %v5629 = vpop.permute.xlu0 %5628
      %5630 = vrot.lane.b32.xlu0 %v2492, 12
      %v5631 = vpop.permute.xlu0 %5630
      %5632 = vrot.lane.b32.xlu0 %v2504, 12
      %v5633 = vpop.permute.xlu0 %5632
      %5634 = vrot.lane.b32.xlu0 %v2516, 12
      %v5635 = vpop.permute.xlu0 %5634
      %5636 = vrot.lane.b32.xlu0 %v2528, 12
      %v5637 = vpop.permute.xlu0 %5636
      %5638 = vrot.lane.b32.xlu0 %v2540, 12
      %v5639 = vpop.permute.xlu0 %5638
      %5640 = vrot.lane.b32.xlu0 %v2552, 12
      %v5641 = vpop.permute.xlu0 %5640
      %5642 = vrot.lane.b32.xlu0 %v2564, 12
      %v5643 = vpop.permute.xlu0 %5642
      %v5740 = vunpack.c.l.b16 %v4556
      %v5741 = vunpack.c.l.b16 %v4557
      %v5742 = vunpack.c.l.b16 %v4558
      %v5743 = vunpack.c.l.b16 %v4559
      %v5744 = vunpack.c.l.b16 %v4560
      %v5745 = vunpack.c.l.b16 %v4561
      %v5746 = vunpack.c.l.b16 %v4562
      %v5747 = vunpack.c.l.b16 %v4563
      %v5748 = vunpack.c.l.b16 %v4564
      %v5749 = vunpack.c.l.b16 %v4565
      %v5750 = vunpack.c.l.b16 %v4566
      %v5751 = vunpack.c.l.b16 %v4567
      %v5752 = vunpack.c.l.b16 %v4568
      %v5753 = vunpack.c.l.b16 %v4569
      %v5754 = vunpack.c.l.b16 %v4570
      %v5755 = vunpack.c.l.b16 %v4571
      %v5756 = vunpack.c.l.b16 %v4572
      %v5757 = vunpack.c.l.b16 %v4573
      %v5758 = vunpack.c.l.b16 %v4574
      %v5759 = vunpack.c.l.b16 %v4575
      %v5760 = vunpack.c.l.b16 %v4576
      %v5761 = vunpack.c.l.b16 %v4577
      %v5762 = vunpack.c.l.b16 %v4578
      %v5763 = vunpack.c.l.b16 %v4579
      %v5764 = vunpack.c.l.b16 %v4580
      %v5765 = vunpack.c.l.b16 %v4581
      %v5766 = vunpack.c.l.b16 %v4582
      %v5767 = vunpack.c.l.b16 %v4583
      %v5768 = vunpack.c.l.b16 %v4584
      %v5769 = vunpack.c.l.b16 %v4585
      %v5770 = vunpack.c.l.b16 %v4586
      %v5771 = vunpack.c.l.b16 %v4587
      %v5772 = vunpack.c.l.b16 %v4588
      %v5773 = vunpack.c.l.b16 %v4589
      %v5774 = vunpack.c.l.b16 %v4590
      %v5775 = vunpack.c.l.b16 %v4591
      %v5776 = vunpack.c.l.b16 %v4592
      %v5777 = vunpack.c.l.b16 %v4593
      %v5778 = vunpack.c.l.b16 %v4594
      %v5779 = vunpack.c.l.b16 %v4595
      %v5780 = vunpack.c.l.b16 %v4596
      %v5781 = vunpack.c.l.b16 %v4597
      %v5782 = vunpack.c.l.b16 %v4598
      %v5783 = vunpack.c.l.b16 %v4599
      %v5784 = vunpack.c.l.b16 %v4600
      %v5785 = vunpack.c.l.b16 %v4601
      %v5786 = vunpack.c.l.b16 %v4602
      %v5787 = vunpack.c.l.b16 %v4603
      %v5788 = vunpack.c.l.b16 %v4604
      %v5789 = vunpack.c.l.b16 %v4605
      %v5790 = vunpack.c.l.b16 %v4606
      %v5791 = vunpack.c.l.b16 %v4607
      %v5792 = vunpack.c.l.b16 %v4608
      %v5793 = vunpack.c.l.b16 %v4609
      %v5794 = vunpack.c.l.b16 %v4610
      %v5795 = vunpack.c.l.b16 %v4611
      %v5796 = vunpack.c.l.b16 %v4612
      %v5797 = vunpack.c.l.b16 %v4613
      %v5798 = vunpack.c.l.b16 %v4614
      %v5799 = vunpack.c.l.b16 %v4615
      %v5800 = vunpack.c.l.b16 %v4616
      %v5801 = vunpack.c.l.b16 %v4617
      %v5802 = vunpack.c.l.b16 %v4618
      %v5803 = vunpack.c.l.b16 %v4619
      %v5804 = vunpack.c.l.b16 %v4620
      %v5805 = vunpack.c.l.b16 %v4621
      %v5806 = vunpack.c.l.b16 %v4622
      %v5807 = vunpack.c.l.b16 %v4623
      %v5808 = vunpack.c.l.b16 %v4624
      %v5809 = vunpack.c.l.b16 %v4625
      %v5810 = vunpack.c.l.b16 %v4626
      %v5811 = vunpack.c.l.b16 %v4627
      %v5812 = vunpack.c.l.b16 %v4628
      %v5813 = vunpack.c.l.b16 %v4629
      %v5814 = vunpack.c.l.b16 %v4630
      %v5815 = vunpack.c.l.b16 %v4631
      %v5816 = vunpack.c.l.b16 %v4632
      %v5817 = vunpack.c.l.b16 %v4633
      %v5818 = vunpack.c.l.b16 %v4634
      %v5819 = vunpack.c.l.b16 %v4635
      %v5820 = vunpack.c.l.b16 %v4636
      %v5821 = vunpack.c.l.b16 %v4637
      %v5822 = vunpack.c.l.b16 %v4638
      %v5823 = vunpack.c.l.b16 %v4639
      %v5824 = vunpack.c.l.b16 %v4640
      %v5825 = vunpack.c.l.b16 %v4641
      %v5826 = vunpack.c.l.b16 %v4642
      %v5827 = vunpack.c.l.b16 %v4643
      %v5828 = vunpack.c.l.b16 %v4644
      %v5829 = vunpack.c.l.b16 %v4645
      %v5830 = vunpack.c.l.b16 %v4646
      %v5831 = vunpack.c.l.b16 %v4647
      %v5832 = vunpack.c.l.b16 %v4648
      %v5833 = vunpack.c.l.b16 %v4649
      %v5834 = vunpack.c.l.b16 %v4650
      %v5835 = vunpack.c.l.b16 %v4651
      %v5836 = vpack.c.b16 %v5741, %v5740
      %v5837 = vpack.c.b16 %v5742, %v5742
      %v5838 = vpack.c.b16 %v5744, %v5743
      %v5839 = vpack.c.b16 %v5745, %v5745
      %v5840 = vpack.c.b16 %v5747, %v5746
      %v5841 = vpack.c.b16 %v5748, %v5748
      %v5842 = vpack.c.b16 %v5750, %v5749
      %v5843 = vpack.c.b16 %v5751, %v5751
      %v5844 = vpack.c.b16 %v5753, %v5752
      %v5845 = vpack.c.b16 %v5754, %v5754
      %v5846 = vpack.c.b16 %v5756, %v5755
      %v5847 = vpack.c.b16 %v5757, %v5757
      %v5848 = vpack.c.b16 %v5759, %v5758
      %v5849 = vpack.c.b16 %v5760, %v5760
      %v5850 = vpack.c.b16 %v5762, %v5761
      %v5851 = vpack.c.b16 %v5763, %v5763
      %v5852 = vpack.c.b16 %v5765, %v5764
      %v5853 = vpack.c.b16 %v5766, %v5766
      %v5854 = vpack.c.b16 %v5768, %v5767
      %v5855 = vpack.c.b16 %v5769, %v5769
      %v5856 = vpack.c.b16 %v5771, %v5770
      %v5857 = vpack.c.b16 %v5772, %v5772
      %v5858 = vpack.c.b16 %v5774, %v5773
      %v5859 = vpack.c.b16 %v5775, %v5775
      %v5860 = vpack.c.b16 %v5777, %v5776
      %v5861 = vpack.c.b16 %v5778, %v5778
      %v5862 = vpack.c.b16 %v5780, %v5779
      %v5863 = vpack.c.b16 %v5781, %v5781
      %v5864 = vpack.c.b16 %v5783, %v5782
      %v5865 = vpack.c.b16 %v5784, %v5784
      %v5866 = vpack.c.b16 %v5786, %v5785
      %v5867 = vpack.c.b16 %v5787, %v5787
      %v5868 = vpack.c.b16 %v5789, %v5788
      %v5869 = vpack.c.b16 %v5790, %v5790
      %v5870 = vpack.c.b16 %v5792, %v5791
      %v5871 = vpack.c.b16 %v5793, %v5793
      %v5872 = vpack.c.b16 %v5795, %v5794
      %v5873 = vpack.c.b16 %v5796, %v5796
      %v5874 = vpack.c.b16 %v5798, %v5797
      %v5875 = vpack.c.b16 %v5799, %v5799
      %v5876 = vpack.c.b16 %v5801, %v5800
      %v5877 = vpack.c.b16 %v5802, %v5802
      %v5878 = vpack.c.b16 %v5804, %v5803
      %v5879 = vpack.c.b16 %v5805, %v5805
      %v5880 = vpack.c.b16 %v5807, %v5806
      %v5881 = vpack.c.b16 %v5808, %v5808
      %v5882 = vpack.c.b16 %v5810, %v5809
      %v5883 = vpack.c.b16 %v5811, %v5811
      %v5884 = vpack.c.b16 %v5813, %v5812
      %v5885 = vpack.c.b16 %v5814, %v5814
      %v5886 = vpack.c.b16 %v5816, %v5815
      %v5887 = vpack.c.b16 %v5817, %v5817
      %v5888 = vpack.c.b16 %v5819, %v5818
      %v5889 = vpack.c.b16 %v5820, %v5820
      %v5890 = vpack.c.b16 %v5822, %v5821
      %v5891 = vpack.c.b16 %v5823, %v5823
      %v5892 = vpack.c.b16 %v5825, %v5824
      %v5893 = vpack.c.b16 %v5826, %v5826
      %v5894 = vpack.c.b16 %v5828, %v5827
      %v5895 = vpack.c.b16 %v5829, %v5829
      %v5896 = vpack.c.b16 %v5831, %v5830
      %v5897 = vpack.c.b16 %v5832, %v5832
      %v5898 = vpack.c.b16 %v5834, %v5833
      %v5899 = vpack.c.b16 %v5835, %v5835
      %v5901 = vshrl.u32 %v5836, 16
      %v5903 = vshll.u32 %v5836, 16
      %v5905 = vrot.slane %v5903, 1
      %v5906 = vor.u32 %v5901, %v5905
      %v5908 = vshll.u32 %v5837, 16
      %v5910 = vrot.slane %v5908, 1
      %v5911 = vsel %vm1188, %v5906, %v5910
      %v5913 = vshrl.u32 %v5838, 16
      %v5915 = vshll.u32 %v5838, 16
      %v5917 = vrot.slane %v5915, 1
      %v5918 = vor.u32 %v5913, %v5917
      %v5920 = vshll.u32 %v5839, 16
      %v5922 = vrot.slane %v5920, 1
      %v5923 = vsel %vm1188, %v5918, %v5922
      %v5925 = vshrl.u32 %v5840, 16
      %v5927 = vshll.u32 %v5840, 16
      %v5929 = vrot.slane %v5927, 1
      %v5930 = vor.u32 %v5925, %v5929
      %v5932 = vshll.u32 %v5841, 16
      %v5934 = vrot.slane %v5932, 1
      %v5935 = vsel %vm1188, %v5930, %v5934
      %v5937 = vshrl.u32 %v5842, 16
      %v5939 = vshll.u32 %v5842, 16
      %v5941 = vrot.slane %v5939, 1
      %v5942 = vor.u32 %v5937, %v5941
      %v5944 = vshll.u32 %v5843, 16
      %v5946 = vrot.slane %v5944, 1
      %v5947 = vsel %vm1188, %v5942, %v5946
      %v5949 = vshrl.u32 %v5844, 16
      %v5951 = vshll.u32 %v5844, 16
      %v5953 = vrot.slane %v5951, 1
      %v5954 = vor.u32 %v5949, %v5953
      %v5956 = vshll.u32 %v5845, 16
      %v5958 = vrot.slane %v5956, 1
      %v5959 = vsel %vm1188, %v5954, %v5958
      %v5961 = vshrl.u32 %v5846, 16
      %v5963 = vshll.u32 %v5846, 16
      %v5965 = vrot.slane %v5963, 1
      %v5966 = vor.u32 %v5961, %v5965
      %v5968 = vshll.u32 %v5847, 16
      %v5970 = vrot.slane %v5968, 1
      %v5971 = vsel %vm1188, %v5966, %v5970
      %v5973 = vshrl.u32 %v5848, 16
      %v5975 = vshll.u32 %v5848, 16
      %v5977 = vrot.slane %v5975, 1
      %v5978 = vor.u32 %v5973, %v5977
      %v5980 = vshll.u32 %v5849, 16
      %v5982 = vrot.slane %v5980, 1
      %v5983 = vsel %vm1188, %v5978, %v5982
      %v5985 = vshrl.u32 %v5850, 16
      %v5987 = vshll.u32 %v5850, 16
      %v5989 = vrot.slane %v5987, 1
      %v5990 = vor.u32 %v5985, %v5989
      %v5992 = vshll.u32 %v5851, 16
      %v5994 = vrot.slane %v5992, 1
      %v5995 = vsel %vm1188, %v5990, %v5994
      %v5997 = vshrl.u32 %v5852, 16
      %v5999 = vshll.u32 %v5852, 16
      %v6001 = vrot.slane %v5999, 1
      %v6002 = vor.u32 %v5997, %v6001
      %v6004 = vshll.u32 %v5853, 16
      %v6006 = vrot.slane %v6004, 1
      %v6007 = vsel %vm1188, %v6002, %v6006
      %v6009 = vshrl.u32 %v5854, 16
      %v6011 = vshll.u32 %v5854, 16
      %v6013 = vrot.slane %v6011, 1
      %v6014 = vor.u32 %v6009, %v6013
      %v6016 = vshll.u32 %v5855, 16
      %v6018 = vrot.slane %v6016, 1
      %v6019 = vsel %vm1188, %v6014, %v6018
      %v6021 = vshrl.u32 %v5856, 16
      %v6023 = vshll.u32 %v5856, 16
      %v6025 = vrot.slane %v6023, 1
      %v6026 = vor.u32 %v6021, %v6025
      %v6028 = vshll.u32 %v5857, 16
      %v6030 = vrot.slane %v6028, 1
      %v6031 = vsel %vm1188, %v6026, %v6030
      %v6033 = vshrl.u32 %v5858, 16
      %v6035 = vshll.u32 %v5858, 16
      %v6037 = vrot.slane %v6035, 1
      %v6038 = vor.u32 %v6033, %v6037
      %v6040 = vshll.u32 %v5859, 16
      %v6042 = vrot.slane %v6040, 1
      %v6043 = vsel %vm1188, %v6038, %v6042
      %v6045 = vshrl.u32 %v5860, 16
      %v6047 = vshll.u32 %v5860, 16
      %v6049 = vrot.slane %v6047, 1
      %v6050 = vor.u32 %v6045, %v6049
      %v6052 = vshll.u32 %v5861, 16
      %v6054 = vrot.slane %v6052, 1
      %v6055 = vsel %vm1188, %v6050, %v6054
      %v6057 = vshrl.u32 %v5862, 16
      %v6059 = vshll.u32 %v5862, 16
      %v6061 = vrot.slane %v6059, 1
      %v6062 = vor.u32 %v6057, %v6061
      %v6064 = vshll.u32 %v5863, 16
      %v6066 = vrot.slane %v6064, 1
      %v6067 = vsel %vm1188, %v6062, %v6066
      %v6069 = vshrl.u32 %v5864, 16
      %v6071 = vshll.u32 %v5864, 16
      %v6073 = vrot.slane %v6071, 1
      %v6074 = vor.u32 %v6069, %v6073
      %v6076 = vshll.u32 %v5865, 16
      %v6078 = vrot.slane %v6076, 1
      %v6079 = vsel %vm1188, %v6074, %v6078
      %v6081 = vshrl.u32 %v5866, 16
      %v6083 = vshll.u32 %v5866, 16
      %v6085 = vrot.slane %v6083, 1
      %v6086 = vor.u32 %v6081, %v6085
      %v6088 = vshll.u32 %v5867, 16
      %v6090 = vrot.slane %v6088, 1
      %v6091 = vsel %vm1188, %v6086, %v6090
      %v6093 = vshrl.u32 %v5868, 16
      %v6095 = vshll.u32 %v5868, 16
      %v6097 = vrot.slane %v6095, 1
      %v6098 = vor.u32 %v6093, %v6097
      %v6100 = vshll.u32 %v5869, 16
      %v6102 = vrot.slane %v6100, 1
      %v6103 = vsel %vm1188, %v6098, %v6102
      %v6105 = vshrl.u32 %v5870, 16
      %v6107 = vshll.u32 %v5870, 16
      %v6109 = vrot.slane %v6107, 1
      %v6110 = vor.u32 %v6105, %v6109
      %v6112 = vshll.u32 %v5871, 16
      %v6114 = vrot.slane %v6112, 1
      %v6115 = vsel %vm1188, %v6110, %v6114
      %v6117 = vshrl.u32 %v5872, 16
      %v6119 = vshll.u32 %v5872, 16
      %v6121 = vrot.slane %v6119, 1
      %v6122 = vor.u32 %v6117, %v6121
      %v6124 = vshll.u32 %v5873, 16
      %v6126 = vrot.slane %v6124, 1
      %v6127 = vsel %vm1188, %v6122, %v6126
      %v6129 = vshrl.u32 %v5874, 16
      %v6131 = vshll.u32 %v5874, 16
      %v6133 = vrot.slane %v6131, 1
      %v6134 = vor.u32 %v6129, %v6133
      %v6136 = vshll.u32 %v5875, 16
      %v6138 = vrot.slane %v6136, 1
      %v6139 = vsel %vm1188, %v6134, %v6138
      %v6141 = vshrl.u32 %v5876, 16
      %v6143 = vshll.u32 %v5876, 16
      %v6145 = vrot.slane %v6143, 1
      %v6146 = vor.u32 %v6141, %v6145
      %v6148 = vshll.u32 %v5877, 16
      %v6150 = vrot.slane %v6148, 1
      %v6151 = vsel %vm1188, %v6146, %v6150
      %v6153 = vshrl.u32 %v5878, 16
      %v6155 = vshll.u32 %v5878, 16
      %v6157 = vrot.slane %v6155, 1
      %v6158 = vor.u32 %v6153, %v6157
      %v6160 = vshll.u32 %v5879, 16
      %v6162 = vrot.slane %v6160, 1
      %v6163 = vsel %vm1188, %v6158, %v6162
      %v6165 = vshrl.u32 %v5880, 16
      %v6167 = vshll.u32 %v5880, 16
      %v6169 = vrot.slane %v6167, 1
      %v6170 = vor.u32 %v6165, %v6169
      %v6172 = vshll.u32 %v5881, 16
      %v6174 = vrot.slane %v6172, 1
      %v6175 = vsel %vm1188, %v6170, %v6174
      %v6177 = vshrl.u32 %v5882, 16
      %v6179 = vshll.u32 %v5882, 16
      %v6181 = vrot.slane %v6179, 1
      %v6182 = vor.u32 %v6177, %v6181
      %v6184 = vshll.u32 %v5883, 16
      %v6186 = vrot.slane %v6184, 1
      %v6187 = vsel %vm1188, %v6182, %v6186
      %v6189 = vshrl.u32 %v5884, 16
      %v6191 = vshll.u32 %v5884, 16
      %v6193 = vrot.slane %v6191, 1
      %v6194 = vor.u32 %v6189, %v6193
      %v6196 = vshll.u32 %v5885, 16
      %v6198 = vrot.slane %v6196, 1
      %v6199 = vsel %vm1188, %v6194, %v6198
      %v6201 = vshrl.u32 %v5886, 16
      %v6203 = vshll.u32 %v5886, 16
      %v6205 = vrot.slane %v6203, 1
      %v6206 = vor.u32 %v6201, %v6205
      %v6208 = vshll.u32 %v5887, 16
      %v6210 = vrot.slane %v6208, 1
      %v6211 = vsel %vm1188, %v6206, %v6210
      %v6213 = vshrl.u32 %v5888, 16
      %v6215 = vshll.u32 %v5888, 16
      %v6217 = vrot.slane %v6215, 1
      %v6218 = vor.u32 %v6213, %v6217
      %v6220 = vshll.u32 %v5889, 16
      %v6222 = vrot.slane %v6220, 1
      %v6223 = vsel %vm1188, %v6218, %v6222
      %v6225 = vshrl.u32 %v5890, 16
      %v6227 = vshll.u32 %v5890, 16
      %v6229 = vrot.slane %v6227, 1
      %v6230 = vor.u32 %v6225, %v6229
      %v6232 = vshll.u32 %v5891, 16
      %v6234 = vrot.slane %v6232, 1
      %v6235 = vsel %vm1188, %v6230, %v6234
      %v6237 = vshrl.u32 %v5892, 16
      %v6239 = vshll.u32 %v5892, 16
      %v6241 = vrot.slane %v6239, 1
      %v6242 = vor.u32 %v6237, %v6241
      %v6244 = vshll.u32 %v5893, 16
      %v6246 = vrot.slane %v6244, 1
      %v6247 = vsel %vm1188, %v6242, %v6246
      %v6249 = vshrl.u32 %v5894, 16
      %v6251 = vshll.u32 %v5894, 16
      %v6253 = vrot.slane %v6251, 1
      %v6254 = vor.u32 %v6249, %v6253
      %v6256 = vshll.u32 %v5895, 16
      %v6258 = vrot.slane %v6256, 1
      %v6259 = vsel %vm1188, %v6254, %v6258
      %v6261 = vshrl.u32 %v5896, 16
      %v6263 = vshll.u32 %v5896, 16
      %v6265 = vrot.slane %v6263, 1
      %v6266 = vor.u32 %v6261, %v6265
      %v6268 = vshll.u32 %v5897, 16
      %v6270 = vrot.slane %v6268, 1
      %v6271 = vsel %vm1188, %v6266, %v6270
      %v6273 = vshrl.u32 %v5898, 16
      %v6275 = vshll.u32 %v5898, 16
      %v6277 = vrot.slane %v6275, 1
      %v6278 = vor.u32 %v6273, %v6277
      %v6280 = vshll.u32 %v5899, 16
      %v6282 = vrot.slane %v6280, 1
      %v6283 = vsel %vm1188, %v6278, %v6282
      %6284 = vrot.lane.b32.xlu0 %v5911, 15
      %v6285 = vpop.permute.xlu0 %6284
      %6286 = vrot.lane.b32.xlu0 %v5923, 15
      %v6287 = vpop.permute.xlu0 %6286
      %6288 = vrot.lane.b32.xlu0 %v5935, 15
      %v6289 = vpop.permute.xlu0 %6288
      %6290 = vrot.lane.b32.xlu0 %v5947, 15
      %v6291 = vpop.permute.xlu0 %6290
      %6292 = vrot.lane.b32.xlu0 %v5959, 15
      %v6293 = vpop.permute.xlu0 %6292
      %6294 = vrot.lane.b32.xlu0 %v5971, 15
      %v6295 = vpop.permute.xlu0 %6294
      %6296 = vrot.lane.b32.xlu0 %v5983, 15
      %v6297 = vpop.permute.xlu0 %6296
      %6298 = vrot.lane.b32.xlu0 %v5995, 15
      %v6299 = vpop.permute.xlu0 %6298
      %6300 = vrot.lane.b32.xlu0 %v6007, 15
      %v6301 = vpop.permute.xlu0 %6300
      %6302 = vrot.lane.b32.xlu0 %v6019, 15
      %v6303 = vpop.permute.xlu0 %6302
      %6304 = vrot.lane.b32.xlu0 %v6031, 15
      %v6305 = vpop.permute.xlu0 %6304
      %6306 = vrot.lane.b32.xlu0 %v6043, 15
      %v6307 = vpop.permute.xlu0 %6306
      %6308 = vrot.lane.b32.xlu0 %v6055, 15
      %v6309 = vpop.permute.xlu0 %6308
      %6310 = vrot.lane.b32.xlu0 %v6067, 15
      %v6311 = vpop.permute.xlu0 %6310
      %6312 = vrot.lane.b32.xlu0 %v6079, 15
      %v6313 = vpop.permute.xlu0 %6312
      %6314 = vrot.lane.b32.xlu0 %v6091, 15
      %v6315 = vpop.permute.xlu0 %6314
      %6316 = vrot.lane.b32.xlu0 %v6103, 15
      %v6317 = vpop.permute.xlu0 %6316
      %6318 = vrot.lane.b32.xlu0 %v6115, 15
      %v6319 = vpop.permute.xlu0 %6318
      %6320 = vrot.lane.b32.xlu0 %v6127, 15
      %v6321 = vpop.permute.xlu0 %6320
      %6322 = vrot.lane.b32.xlu0 %v6139, 15
      %v6323 = vpop.permute.xlu0 %6322
      %6324 = vrot.lane.b32.xlu0 %v6151, 15
      %v6325 = vpop.permute.xlu0 %6324
      %6326 = vrot.lane.b32.xlu0 %v6163, 15
      %v6327 = vpop.permute.xlu0 %6326
      %6328 = vrot.lane.b32.xlu0 %v6175, 15
      %v6329 = vpop.permute.xlu0 %6328
      %6330 = vrot.lane.b32.xlu0 %v6187, 15
      %v6331 = vpop.permute.xlu0 %6330
      %6332 = vrot.lane.b32.xlu0 %v6199, 15
      %v6333 = vpop.permute.xlu0 %6332
      %6334 = vrot.lane.b32.xlu0 %v6211, 15
      %v6335 = vpop.permute.xlu0 %6334
      %6336 = vrot.lane.b32.xlu0 %v6223, 15
      %v6337 = vpop.permute.xlu0 %6336
      %6338 = vrot.lane.b32.xlu0 %v6235, 15
      %v6339 = vpop.permute.xlu0 %6338
      %6340 = vrot.lane.b32.xlu0 %v6247, 15
      %v6341 = vpop.permute.xlu0 %6340
      %6342 = vrot.lane.b32.xlu0 %v6259, 15
      %v6343 = vpop.permute.xlu0 %6342
      %6344 = vrot.lane.b32.xlu0 %v6271, 15
      %v6345 = vpop.permute.xlu0 %6344
      %6346 = vrot.lane.b32.xlu0 %v6283, 15
      %v6347 = vpop.permute.xlu0 %6346
      %6348 = vrot.lane.b32.xlu0 %v2981, 18
      %v6349 = vpop.permute.xlu0 %6348
      %6350 = vrot.lane.b32.xlu0 %v2982, 18
      %v6351 = vpop.permute.xlu0 %6350
      %6352 = vrot.lane.b32.xlu0 %v2983, 18
      %v6353 = vpop.permute.xlu0 %6352
      %6354 = vrot.lane.b32.xlu0 %v2984, 18
      %v6355 = vpop.permute.xlu0 %6354
      %6356 = vrot.lane.b32.xlu0 %v2985, 18
      %v6357 = vpop.permute.xlu0 %6356
      %6358 = vrot.lane.b32.xlu0 %v2986, 18
      %v6359 = vpop.permute.xlu0 %6358
      %6360 = vrot.lane.b32.xlu0 %v2987, 18
      %v6361 = vpop.permute.xlu0 %6360
      %6362 = vrot.lane.b32.xlu0 %v2988, 18
      %v6363 = vpop.permute.xlu0 %6362
      %6364 = vrot.lane.b32.xlu0 %v2989, 18
      %v6365 = vpop.permute.xlu0 %6364
      %6366 = vrot.lane.b32.xlu0 %v2990, 18
      %v6367 = vpop.permute.xlu0 %6366
      %6368 = vrot.lane.b32.xlu0 %v2991, 18
      %v6369 = vpop.permute.xlu0 %6368
      %6370 = vrot.lane.b32.xlu0 %v2992, 18
      %v6371 = vpop.permute.xlu0 %6370
      %6372 = vrot.lane.b32.xlu0 %v2993, 18
      %v6373 = vpop.permute.xlu0 %6372
      %6374 = vrot.lane.b32.xlu0 %v2994, 18
      %v6375 = vpop.permute.xlu0 %6374
      %6376 = vrot.lane.b32.xlu0 %v2995, 18
      %v6377 = vpop.permute.xlu0 %6376
      %6378 = vrot.lane.b32.xlu0 %v2996, 18
      %v6379 = vpop.permute.xlu0 %6378
      %6380 = vrot.lane.b32.xlu0 %v2997, 18
      %v6381 = vpop.permute.xlu0 %6380
      %6382 = vrot.lane.b32.xlu0 %v2998, 18
      %v6383 = vpop.permute.xlu0 %6382
      %6384 = vrot.lane.b32.xlu0 %v2999, 18
      %v6385 = vpop.permute.xlu0 %6384
      %6386 = vrot.lane.b32.xlu0 %v3000, 18
      %v6387 = vpop.permute.xlu0 %6386
      %6388 = vrot.lane.b32.xlu0 %v3001, 18
      %v6389 = vpop.permute.xlu0 %6388
      %6390 = vrot.lane.b32.xlu0 %v3002, 18
      %v6391 = vpop.permute.xlu0 %6390
      %6392 = vrot.lane.b32.xlu0 %v3003, 18
      %v6393 = vpop.permute.xlu0 %6392
      %6394 = vrot.lane.b32.xlu0 %v3004, 18
      %v6395 = vpop.permute.xlu0 %6394
      %6396 = vrot.lane.b32.xlu0 %v3005, 18
      %v6397 = vpop.permute.xlu0 %6396
      %6398 = vrot.lane.b32.xlu0 %v3006, 18
      %v6399 = vpop.permute.xlu0 %6398
      %6400 = vrot.lane.b32.xlu0 %v3007, 18
      %v6401 = vpop.permute.xlu0 %6400
      %6402 = vrot.lane.b32.xlu0 %v3008, 18
      %v6403 = vpop.permute.xlu0 %6402
      %6404 = vrot.lane.b32.xlu0 %v3009, 18
      %v6405 = vpop.permute.xlu0 %6404
      %6406 = vrot.lane.b32.xlu0 %v3010, 18
      %v6407 = vpop.permute.xlu0 %6406
      %6408 = vrot.lane.b32.xlu0 %v3011, 18
      %v6409 = vpop.permute.xlu0 %6408
      %6410 = vrot.lane.b32.xlu0 %v3012, 18
      %v6411 = vpop.permute.xlu0 %6410
      %6412 = vrot.lane.b32.xlu0 %v3184, 21
      %v6413 = vpop.permute.xlu0 %6412
      %6414 = vrot.lane.b32.xlu0 %v3196, 21
      %v6415 = vpop.permute.xlu0 %6414
      %6416 = vrot.lane.b32.xlu0 %v3208, 21
      %v6417 = vpop.permute.xlu0 %6416
      %6418 = vrot.lane.b32.xlu0 %v3220, 21
      %v6419 = vpop.permute.xlu0 %6418
      %6420 = vrot.lane.b32.xlu0 %v3232, 21
      %v6421 = vpop.permute.xlu0 %6420
      %6422 = vrot.lane.b32.xlu0 %v3244, 21
      %v6423 = vpop.permute.xlu0 %6422
      %6424 = vrot.lane.b32.xlu0 %v3256, 21
      %v6425 = vpop.permute.xlu0 %6424
      %6426 = vrot.lane.b32.xlu0 %v3268, 21
      %v6427 = vpop.permute.xlu0 %6426
      %6428 = vrot.lane.b32.xlu0 %v3280, 21
      %v6429 = vpop.permute.xlu0 %6428
      %6430 = vrot.lane.b32.xlu0 %v3292, 21
      %v6431 = vpop.permute.xlu0 %6430
      %6432 = vrot.lane.b32.xlu0 %v3304, 21
      %v6433 = vpop.permute.xlu0 %6432
      %6434 = vrot.lane.b32.xlu0 %v3316, 21
      %v6435 = vpop.permute.xlu0 %6434
      %6436 = vrot.lane.b32.xlu0 %v3328, 21
      %v6437 = vpop.permute.xlu0 %6436
      %6438 = vrot.lane.b32.xlu0 %v3340, 21
      %v6439 = vpop.permute.xlu0 %6438
      %6440 = vrot.lane.b32.xlu0 %v3352, 21
      %v6441 = vpop.permute.xlu0 %6440
      %6442 = vrot.lane.b32.xlu0 %v3364, 21
      %v6443 = vpop.permute.xlu0 %6442
      %6444 = vrot.lane.b32.xlu0 %v3376, 21
      %v6445 = vpop.permute.xlu0 %6444
      %6446 = vrot.lane.b32.xlu0 %v3388, 21
      %v6447 = vpop.permute.xlu0 %6446
      %6448 = vrot.lane.b32.xlu0 %v3400, 21
      %v6449 = vpop.permute.xlu0 %6448
      %6450 = vrot.lane.b32.xlu0 %v3412, 21
      %v6451 = vpop.permute.xlu0 %6450
      %6452 = vrot.lane.b32.xlu0 %v3424, 21
      %v6453 = vpop.permute.xlu0 %6452
      %6454 = vrot.lane.b32.xlu0 %v3436, 21
      %v6455 = vpop.permute.xlu0 %6454
      %6456 = vrot.lane.b32.xlu0 %v3448, 21
      %v6457 = vpop.permute.xlu0 %6456
      %6458 = vrot.lane.b32.xlu0 %v3460, 21
      %v6459 = vpop.permute.xlu0 %6458
      %6460 = vrot.lane.b32.xlu0 %v3472, 21
      %v6461 = vpop.permute.xlu0 %6460
      %6462 = vrot.lane.b32.xlu0 %v3484, 21
      %v6463 = vpop.permute.xlu0 %6462
      %6464 = vrot.lane.b32.xlu0 %v3496, 21
      %v6465 = vpop.permute.xlu0 %6464
      %6466 = vrot.lane.b32.xlu0 %v3508, 21
      %v6467 = vpop.permute.xlu0 %6466
      %6468 = vrot.lane.b32.xlu0 %v3520, 21
      %v6469 = vpop.permute.xlu0 %6468
      %6470 = vrot.lane.b32.xlu0 %v3532, 21
      %v6471 = vpop.permute.xlu0 %6470
      %6472 = vrot.lane.b32.xlu0 %v3544, 21
      %v6473 = vpop.permute.xlu0 %6472
      %6474 = vrot.lane.b32.xlu0 %v3556, 21
      %v6475 = vpop.permute.xlu0 %6474
      %v6572 = vunpack.c.l.b16 %v4652
      %v6573 = vunpack.c.l.b16 %v4653
      %v6574 = vunpack.c.l.b16 %v4654
      %v6575 = vunpack.c.l.b16 %v4655
      %v6576 = vunpack.c.l.b16 %v4656
      %v6577 = vunpack.c.l.b16 %v4657
      %v6578 = vunpack.c.l.b16 %v4658
      %v6579 = vunpack.c.l.b16 %v4659
      %v6580 = vunpack.c.l.b16 %v4660
      %v6581 = vunpack.c.l.b16 %v4661
      %v6582 = vunpack.c.l.b16 %v4662
      %v6583 = vunpack.c.l.b16 %v4663
      %v6584 = vunpack.c.l.b16 %v4664
      %v6585 = vunpack.c.l.b16 %v4665
      %v6586 = vunpack.c.l.b16 %v4666
      %v6587 = vunpack.c.l.b16 %v4667
      %v6588 = vunpack.c.l.b16 %v4668
      %v6589 = vunpack.c.l.b16 %v4669
      %v6590 = vunpack.c.l.b16 %v4670
      %v6591 = vunpack.c.l.b16 %v4671
      %v6592 = vunpack.c.l.b16 %v4672
      %v6593 = vunpack.c.l.b16 %v4673
      %v6594 = vunpack.c.l.b16 %v4674
      %v6595 = vunpack.c.l.b16 %v4675
      %v6596 = vunpack.c.l.b16 %v4676
      %v6597 = vunpack.c.l.b16 %v4677
      %v6598 = vunpack.c.l.b16 %v4678
      %v6599 = vunpack.c.l.b16 %v4679
      %v6600 = vunpack.c.l.b16 %v4680
      %v6601 = vunpack.c.l.b16 %v4681
      %v6602 = vunpack.c.l.b16 %v4682
      %v6603 = vunpack.c.l.b16 %v4683
      %v6604 = vunpack.c.l.b16 %v4684
      %v6605 = vunpack.c.l.b16 %v4685
      %v6606 = vunpack.c.l.b16 %v4686
      %v6607 = vunpack.c.l.b16 %v4687
      %v6608 = vunpack.c.l.b16 %v4688
      %v6609 = vunpack.c.l.b16 %v4689
      %v6610 = vunpack.c.l.b16 %v4690
      %v6611 = vunpack.c.l.b16 %v4691
      %v6612 = vunpack.c.l.b16 %v4692
      %v6613 = vunpack.c.l.b16 %v4693
      %v6614 = vunpack.c.l.b16 %v4694
      %v6615 = vunpack.c.l.b16 %v4695
      %v6616 = vunpack.c.l.b16 %v4696
      %v6617 = vunpack.c.l.b16 %v4697
      %v6618 = vunpack.c.l.b16 %v4698
      %v6619 = vunpack.c.l.b16 %v4699
      %v6620 = vunpack.c.l.b16 %v4700
      %v6621 = vunpack.c.l.b16 %v4701
      %v6622 = vunpack.c.l.b16 %v4702
      %v6623 = vunpack.c.l.b16 %v4703
      %v6624 = vunpack.c.l.b16 %v4704
      %v6625 = vunpack.c.l.b16 %v4705
      %v6626 = vunpack.c.l.b16 %v4706
      %v6627 = vunpack.c.l.b16 %v4707
      %v6628 = vunpack.c.l.b16 %v4708
      %v6629 = vunpack.c.l.b16 %v4709
      %v6630 = vunpack.c.l.b16 %v4710
      %v6631 = vunpack.c.l.b16 %v4711
      %v6632 = vunpack.c.l.b16 %v4712
      %v6633 = vunpack.c.l.b16 %v4713
      %v6634 = vunpack.c.l.b16 %v4714
      %v6635 = vunpack.c.l.b16 %v4715
      %v6636 = vunpack.c.l.b16 %v4716
      %v6637 = vunpack.c.l.b16 %v4717
      %v6638 = vunpack.c.l.b16 %v4718
      %v6639 = vunpack.c.l.b16 %v4719
      %v6640 = vunpack.c.l.b16 %v4720
      %v6641 = vunpack.c.l.b16 %v4721
      %v6642 = vunpack.c.l.b16 %v4722
      %v6643 = vunpack.c.l.b16 %v4723
      %v6644 = vunpack.c.l.b16 %v4724
      %v6645 = vunpack.c.l.b16 %v4725
      %v6646 = vunpack.c.l.b16 %v4726
      %v6647 = vunpack.c.l.b16 %v4727
      %v6648 = vunpack.c.l.b16 %v4728
      %v6649 = vunpack.c.l.b16 %v4729
      %v6650 = vunpack.c.l.b16 %v4730
      %v6651 = vunpack.c.l.b16 %v4731
      %v6652 = vunpack.c.l.b16 %v4732
      %v6653 = vunpack.c.l.b16 %v4733
      %v6654 = vunpack.c.l.b16 %v4734
      %v6655 = vunpack.c.l.b16 %v4735
      %v6656 = vunpack.c.l.b16 %v4736
      %v6657 = vunpack.c.l.b16 %v4737
      %v6658 = vunpack.c.l.b16 %v4738
      %v6659 = vunpack.c.l.b16 %v4739
      %v6660 = vunpack.c.l.b16 %v4740
      %v6661 = vunpack.c.l.b16 %v4741
      %v6662 = vunpack.c.l.b16 %v4742
      %v6663 = vunpack.c.l.b16 %v4743
      %v6664 = vunpack.c.l.b16 %v4744
      %v6665 = vunpack.c.l.b16 %v4745
      %v6666 = vunpack.c.l.b16 %v4746
      %v6667 = vunpack.c.l.b16 %v4747
      %v6668 = vpack.c.b16 %v6573, %v6572
      %v6669 = vpack.c.b16 %v6574, %v6574
      %v6670 = vpack.c.b16 %v6576, %v6575
      %v6671 = vpack.c.b16 %v6577, %v6577
      %v6672 = vpack.c.b16 %v6579, %v6578
      %v6673 = vpack.c.b16 %v6580, %v6580
      %v6674 = vpack.c.b16 %v6582, %v6581
      %v6675 = vpack.c.b16 %v6583, %v6583
      %v6676 = vpack.c.b16 %v6585, %v6584
      %v6677 = vpack.c.b16 %v6586, %v6586
      %v6678 = vpack.c.b16 %v6588, %v6587
      %v6679 = vpack.c.b16 %v6589, %v6589
      %v6680 = vpack.c.b16 %v6591, %v6590
      %v6681 = vpack.c.b16 %v6592, %v6592
      %v6682 = vpack.c.b16 %v6594, %v6593
      %v6683 = vpack.c.b16 %v6595, %v6595
      %v6684 = vpack.c.b16 %v6597, %v6596
      %v6685 = vpack.c.b16 %v6598, %v6598
      %v6686 = vpack.c.b16 %v6600, %v6599
      %v6687 = vpack.c.b16 %v6601, %v6601
      %v6688 = vpack.c.b16 %v6603, %v6602
      %v6689 = vpack.c.b16 %v6604, %v6604
      %v6690 = vpack.c.b16 %v6606, %v6605
      %v6691 = vpack.c.b16 %v6607, %v6607
      %v6692 = vpack.c.b16 %v6609, %v6608
      %v6693 = vpack.c.b16 %v6610, %v6610
      %v6694 = vpack.c.b16 %v6612, %v6611
      %v6695 = vpack.c.b16 %v6613, %v6613
      %v6696 = vpack.c.b16 %v6615, %v6614
      %v6697 = vpack.c.b16 %v6616, %v6616
      %v6698 = vpack.c.b16 %v6618, %v6617
      %v6699 = vpack.c.b16 %v6619, %v6619
      %v6700 = vpack.c.b16 %v6621, %v6620
      %v6701 = vpack.c.b16 %v6622, %v6622
      %v6702 = vpack.c.b16 %v6624, %v6623
      %v6703 = vpack.c.b16 %v6625, %v6625
      %v6704 = vpack.c.b16 %v6627, %v6626
      %v6705 = vpack.c.b16 %v6628, %v6628
      %v6706 = vpack.c.b16 %v6630, %v6629
      %v6707 = vpack.c.b16 %v6631, %v6631
      %v6708 = vpack.c.b16 %v6633, %v6632
      %v6709 = vpack.c.b16 %v6634, %v6634
      %v6710 = vpack.c.b16 %v6636, %v6635
      %v6711 = vpack.c.b16 %v6637, %v6637
      %v6712 = vpack.c.b16 %v6639, %v6638
      %v6713 = vpack.c.b16 %v6640, %v6640
      %v6714 = vpack.c.b16 %v6642, %v6641
      %v6715 = vpack.c.b16 %v6643, %v6643
      %v6716 = vpack.c.b16 %v6645, %v6644
      %v6717 = vpack.c.b16 %v6646, %v6646
      %v6718 = vpack.c.b16 %v6648, %v6647
      %v6719 = vpack.c.b16 %v6649, %v6649
      %v6720 = vpack.c.b16 %v6651, %v6650
      %v6721 = vpack.c.b16 %v6652, %v6652
      %v6722 = vpack.c.b16 %v6654, %v6653
      %v6723 = vpack.c.b16 %v6655, %v6655
      %v6724 = vpack.c.b16 %v6657, %v6656
      %v6725 = vpack.c.b16 %v6658, %v6658
      %v6726 = vpack.c.b16 %v6660, %v6659
      %v6727 = vpack.c.b16 %v6661, %v6661
      %v6728 = vpack.c.b16 %v6663, %v6662
      %v6729 = vpack.c.b16 %v6664, %v6664
      %v6730 = vpack.c.b16 %v6666, %v6665
      %v6731 = vpack.c.b16 %v6667, %v6667
      %v6733 = vshrl.u32 %v6668, 16
      %v6735 = vshll.u32 %v6668, 16
      %v6737 = vrot.slane %v6735, 1
      %v6738 = vor.u32 %v6733, %v6737
      %v6740 = vshll.u32 %v6669, 16
      %v6742 = vrot.slane %v6740, 1
      %v6743 = vsel %vm1188, %v6738, %v6742
      %v6745 = vshrl.u32 %v6670, 16
      %v6747 = vshll.u32 %v6670, 16
      %v6749 = vrot.slane %v6747, 1
      %v6750 = vor.u32 %v6745, %v6749
      %v6752 = vshll.u32 %v6671, 16
      %v6754 = vrot.slane %v6752, 1
      %v6755 = vsel %vm1188, %v6750, %v6754
      %v6757 = vshrl.u32 %v6672, 16
      %v6759 = vshll.u32 %v6672, 16
      %v6761 = vrot.slane %v6759, 1
      %v6762 = vor.u32 %v6757, %v6761
      %v6764 = vshll.u32 %v6673, 16
      %v6766 = vrot.slane %v6764, 1
      %v6767 = vsel %vm1188, %v6762, %v6766
      %v6769 = vshrl.u32 %v6674, 16
      %v6771 = vshll.u32 %v6674, 16
      %v6773 = vrot.slane %v6771, 1
      %v6774 = vor.u32 %v6769, %v6773
      %v6776 = vshll.u32 %v6675, 16
      %v6778 = vrot.slane %v6776, 1
      %v6779 = vsel %vm1188, %v6774, %v6778
      %v6781 = vshrl.u32 %v6676, 16
      %v6783 = vshll.u32 %v6676, 16
      %v6785 = vrot.slane %v6783, 1
      %v6786 = vor.u32 %v6781, %v6785
      %v6788 = vshll.u32 %v6677, 16
      %v6790 = vrot.slane %v6788, 1
      %v6791 = vsel %vm1188, %v6786, %v6790
      %v6793 = vshrl.u32 %v6678, 16
      %v6795 = vshll.u32 %v6678, 16
      %v6797 = vrot.slane %v6795, 1
      %v6798 = vor.u32 %v6793, %v6797
      %v6800 = vshll.u32 %v6679, 16
      %v6802 = vrot.slane %v6800, 1
      %v6803 = vsel %vm1188, %v6798, %v6802
      %v6805 = vshrl.u32 %v6680, 16
      %v6807 = vshll.u32 %v6680, 16
      %v6809 = vrot.slane %v6807, 1
      %v6810 = vor.u32 %v6805, %v6809
      %v6812 = vshll.u32 %v6681, 16
      %v6814 = vrot.slane %v6812, 1
      %v6815 = vsel %vm1188, %v6810, %v6814
      %v6817 = vshrl.u32 %v6682, 16
      %v6819 = vshll.u32 %v6682, 16
      %v6821 = vrot.slane %v6819, 1
      %v6822 = vor.u32 %v6817, %v6821
      %v6824 = vshll.u32 %v6683, 16
      %v6826 = vrot.slane %v6824, 1
      %v6827 = vsel %vm1188, %v6822, %v6826
      %v6829 = vshrl.u32 %v6684, 16
      %v6831 = vshll.u32 %v6684, 16
      %v6833 = vrot.slane %v6831, 1
      %v6834 = vor.u32 %v6829, %v6833
      %v6836 = vshll.u32 %v6685, 16
      %v6838 = vrot.slane %v6836, 1
      %v6839 = vsel %vm1188, %v6834, %v6838
      %v6841 = vshrl.u32 %v6686, 16
      %v6843 = vshll.u32 %v6686, 16
      %v6845 = vrot.slane %v6843, 1
      %v6846 = vor.u32 %v6841, %v6845
      %v6848 = vshll.u32 %v6687, 16
      %v6850 = vrot.slane %v6848, 1
      %v6851 = vsel %vm1188, %v6846, %v6850
      %v6853 = vshrl.u32 %v6688, 16
      %v6855 = vshll.u32 %v6688, 16
      %v6857 = vrot.slane %v6855, 1
      %v6858 = vor.u32 %v6853, %v6857
      %v6860 = vshll.u32 %v6689, 16
      %v6862 = vrot.slane %v6860, 1
      %v6863 = vsel %vm1188, %v6858, %v6862
      %v6865 = vshrl.u32 %v6690, 16
      %v6867 = vshll.u32 %v6690, 16
      %v6869 = vrot.slane %v6867, 1
      %v6870 = vor.u32 %v6865, %v6869
      %v6872 = vshll.u32 %v6691, 16
      %v6874 = vrot.slane %v6872, 1
      %v6875 = vsel %vm1188, %v6870, %v6874
      %v6877 = vshrl.u32 %v6692, 16
      %v6879 = vshll.u32 %v6692, 16
      %v6881 = vrot.slane %v6879, 1
      %v6882 = vor.u32 %v6877, %v6881
      %v6884 = vshll.u32 %v6693, 16
      %v6886 = vrot.slane %v6884, 1
      %v6887 = vsel %vm1188, %v6882, %v6886
      %v6889 = vshrl.u32 %v6694, 16
      %v6891 = vshll.u32 %v6694, 16
      %v6893 = vrot.slane %v6891, 1
      %v6894 = vor.u32 %v6889, %v6893
      %v6896 = vshll.u32 %v6695, 16
      %v6898 = vrot.slane %v6896, 1
      %v6899 = vsel %vm1188, %v6894, %v6898
      %v6901 = vshrl.u32 %v6696, 16
      %v6903 = vshll.u32 %v6696, 16
      %v6905 = vrot.slane %v6903, 1
      %v6906 = vor.u32 %v6901, %v6905
      %v6908 = vshll.u32 %v6697, 16
      %v6910 = vrot.slane %v6908, 1
      %v6911 = vsel %vm1188, %v6906, %v6910
      %v6913 = vshrl.u32 %v6698, 16
      %v6915 = vshll.u32 %v6698, 16
      %v6917 = vrot.slane %v6915, 1
      %v6918 = vor.u32 %v6913, %v6917
      %v6920 = vshll.u32 %v6699, 16
      %v6922 = vrot.slane %v6920, 1
      %v6923 = vsel %vm1188, %v6918, %v6922
      %v6925 = vshrl.u32 %v6700, 16
      %v6927 = vshll.u32 %v6700, 16
      %v6929 = vrot.slane %v6927, 1
      %v6930 = vor.u32 %v6925, %v6929
      %v6932 = vshll.u32 %v6701, 16
      %v6934 = vrot.slane %v6932, 1
      %v6935 = vsel %vm1188, %v6930, %v6934
      %v6937 = vshrl.u32 %v6702, 16
      %v6939 = vshll.u32 %v6702, 16
      %v6941 = vrot.slane %v6939, 1
      %v6942 = vor.u32 %v6937, %v6941
      %v6944 = vshll.u32 %v6703, 16
      %v6946 = vrot.slane %v6944, 1
      %v6947 = vsel %vm1188, %v6942, %v6946
      %v6949 = vshrl.u32 %v6704, 16
      %v6951 = vshll.u32 %v6704, 16
      %v6953 = vrot.slane %v6951, 1
      %v6954 = vor.u32 %v6949, %v6953
      %v6956 = vshll.u32 %v6705, 16
      %v6958 = vrot.slane %v6956, 1
      %v6959 = vsel %vm1188, %v6954, %v6958
      %v6961 = vshrl.u32 %v6706, 16
      %v6963 = vshll.u32 %v6706, 16
      %v6965 = vrot.slane %v6963, 1
      %v6966 = vor.u32 %v6961, %v6965
      %v6968 = vshll.u32 %v6707, 16
      %v6970 = vrot.slane %v6968, 1
      %v6971 = vsel %vm1188, %v6966, %v6970
      %v6973 = vshrl.u32 %v6708, 16
      %v6975 = vshll.u32 %v6708, 16
      %v6977 = vrot.slane %v6975, 1
      %v6978 = vor.u32 %v6973, %v6977
      %v6980 = vshll.u32 %v6709, 16
      %v6982 = vrot.slane %v6980, 1
      %v6983 = vsel %vm1188, %v6978, %v6982
      %v6985 = vshrl.u32 %v6710, 16
      %v6987 = vshll.u32 %v6710, 16
      %v6989 = vrot.slane %v6987, 1
      %v6990 = vor.u32 %v6985, %v6989
      %v6992 = vshll.u32 %v6711, 16
      %v6994 = vrot.slane %v6992, 1
      %v6995 = vsel %vm1188, %v6990, %v6994
      %v6997 = vshrl.u32 %v6712, 16
      %v6999 = vshll.u32 %v6712, 16
      %v7001 = vrot.slane %v6999, 1
      %v7002 = vor.u32 %v6997, %v7001
      %v7004 = vshll.u32 %v6713, 16
      %v7006 = vrot.slane %v7004, 1
      %v7007 = vsel %vm1188, %v7002, %v7006
      %v7009 = vshrl.u32 %v6714, 16
      %v7011 = vshll.u32 %v6714, 16
      %v7013 = vrot.slane %v7011, 1
      %v7014 = vor.u32 %v7009, %v7013
      %v7016 = vshll.u32 %v6715, 16
      %v7018 = vrot.slane %v7016, 1
      %v7019 = vsel %vm1188, %v7014, %v7018
      %v7021 = vshrl.u32 %v6716, 16
      %v7023 = vshll.u32 %v6716, 16
      %v7025 = vrot.slane %v7023, 1
      %v7026 = vor.u32 %v7021, %v7025
      %v7028 = vshll.u32 %v6717, 16
      %v7030 = vrot.slane %v7028, 1
      %v7031 = vsel %vm1188, %v7026, %v7030
      %v7033 = vshrl.u32 %v6718, 16
      %v7035 = vshll.u32 %v6718, 16
      %v7037 = vrot.slane %v7035, 1
      %v7038 = vor.u32 %v7033, %v7037
      %v7040 = vshll.u32 %v6719, 16
      %v7042 = vrot.slane %v7040, 1
      %v7043 = vsel %vm1188, %v7038, %v7042
      %v7045 = vshrl.u32 %v6720, 16
      %v7047 = vshll.u32 %v6720, 16
      %v7049 = vrot.slane %v7047, 1
      %v7050 = vor.u32 %v7045, %v7049
      %v7052 = vshll.u32 %v6721, 16
      %v7054 = vrot.slane %v7052, 1
      %v7055 = vsel %vm1188, %v7050, %v7054
      %v7057 = vshrl.u32 %v6722, 16
      %v7059 = vshll.u32 %v6722, 16
      %v7061 = vrot.slane %v7059, 1
      %v7062 = vor.u32 %v7057, %v7061
      %v7064 = vshll.u32 %v6723, 16
      %v7066 = vrot.slane %v7064, 1
      %v7067 = vsel %vm1188, %v7062, %v7066
      %v7069 = vshrl.u32 %v6724, 16
      %v7071 = vshll.u32 %v6724, 16
      %v7073 = vrot.slane %v7071, 1
      %v7074 = vor.u32 %v7069, %v7073
      %v7076 = vshll.u32 %v6725, 16
      %v7078 = vrot.slane %v7076, 1
      %v7079 = vsel %vm1188, %v7074, %v7078
      %v7081 = vshrl.u32 %v6726, 16
      %v7083 = vshll.u32 %v6726, 16
      %v7085 = vrot.slane %v7083, 1
      %v7086 = vor.u32 %v7081, %v7085
      %v7088 = vshll.u32 %v6727, 16
      %v7090 = vrot.slane %v7088, 1
      %v7091 = vsel %vm1188, %v7086, %v7090
      %v7093 = vshrl.u32 %v6728, 16
      %v7095 = vshll.u32 %v6728, 16
      %v7097 = vrot.slane %v7095, 1
      %v7098 = vor.u32 %v7093, %v7097
      %v7100 = vshll.u32 %v6729, 16
      %v7102 = vrot.slane %v7100, 1
      %v7103 = vsel %vm1188, %v7098, %v7102
      %v7105 = vshrl.u32 %v6730, 16
      %v7107 = vshll.u32 %v6730, 16
      %v7109 = vrot.slane %v7107, 1
      %v7110 = vor.u32 %v7105, %v7109
      %v7112 = vshll.u32 %v6731, 16
      %v7114 = vrot.slane %v7112, 1
      %v7115 = vsel %vm1188, %v7110, %v7114
      %7116 = vrot.lane.b32.xlu0 %v6743, 24
      %v7117 = vpop.permute.xlu0 %7116
      %7118 = vrot.lane.b32.xlu0 %v6755, 24
      %v7119 = vpop.permute.xlu0 %7118
      %7120 = vrot.lane.b32.xlu0 %v6767, 24
      %v7121 = vpop.permute.xlu0 %7120
      %7122 = vrot.lane.b32.xlu0 %v6779, 24
      %v7123 = vpop.permute.xlu0 %7122
      %7124 = vrot.lane.b32.xlu0 %v6791, 24
      %v7125 = vpop.permute.xlu0 %7124
      %7126 = vrot.lane.b32.xlu0 %v6803, 24
      %v7127 = vpop.permute.xlu0 %7126
      %7128 = vrot.lane.b32.xlu0 %v6815, 24
      %v7129 = vpop.permute.xlu0 %7128
      %7130 = vrot.lane.b32.xlu0 %v6827, 24
      %v7131 = vpop.permute.xlu0 %7130
      %7132 = vrot.lane.b32.xlu0 %v6839, 24
      %v7133 = vpop.permute.xlu0 %7132
      %7134 = vrot.lane.b32.xlu0 %v6851, 24
      %v7135 = vpop.permute.xlu0 %7134
      %7136 = vrot.lane.b32.xlu0 %v6863, 24
      %v7137 = vpop.permute.xlu0 %7136
      %7138 = vrot.lane.b32.xlu0 %v6875, 24
      %v7139 = vpop.permute.xlu0 %7138
      %7140 = vrot.lane.b32.xlu0 %v6887, 24
      %v7141 = vpop.permute.xlu0 %7140
      %7142 = vrot.lane.b32.xlu0 %v6899, 24
      %v7143 = vpop.permute.xlu0 %7142
      %7144 = vrot.lane.b32.xlu0 %v6911, 24
      %v7145 = vpop.permute.xlu0 %7144
      %7146 = vrot.lane.b32.xlu0 %v6923, 24
      %v7147 = vpop.permute.xlu0 %7146
      %7148 = vrot.lane.b32.xlu0 %v6935, 24
      %v7149 = vpop.permute.xlu0 %7148
      %7150 = vrot.lane.b32.xlu0 %v6947, 24
      %v7151 = vpop.permute.xlu0 %7150
      %7152 = vrot.lane.b32.xlu0 %v6959, 24
      %v7153 = vpop.permute.xlu0 %7152
      %7154 = vrot.lane.b32.xlu0 %v6971, 24
      %v7155 = vpop.permute.xlu0 %7154
      %7156 = vrot.lane.b32.xlu0 %v6983, 24
      %v7157 = vpop.permute.xlu0 %7156
      %7158 = vrot.lane.b32.xlu0 %v6995, 24
      %v7159 = vpop.permute.xlu0 %7158
      %7160 = vrot.lane.b32.xlu0 %v7007, 24
      %v7161 = vpop.permute.xlu0 %7160
      %7162 = vrot.lane.b32.xlu0 %v7019, 24
      %v7163 = vpop.permute.xlu0 %7162
      %7164 = vrot.lane.b32.xlu0 %v7031, 24
      %v7165 = vpop.permute.xlu0 %7164
      %7166 = vrot.lane.b32.xlu0 %v7043, 24
      %v7167 = vpop.permute.xlu0 %7166
      %7168 = vrot.lane.b32.xlu0 %v7055, 24
      %v7169 = vpop.permute.xlu0 %7168
      %7170 = vrot.lane.b32.xlu0 %v7067, 24
      %v7171 = vpop.permute.xlu0 %7170
      %7172 = vrot.lane.b32.xlu0 %v7079, 24
      %v7173 = vpop.permute.xlu0 %7172
      %7174 = vrot.lane.b32.xlu0 %v7091, 24
      %v7175 = vpop.permute.xlu0 %7174
      %7176 = vrot.lane.b32.xlu0 %v7103, 24
      %v7177 = vpop.permute.xlu0 %7176
      %7178 = vrot.lane.b32.xlu0 %v7115, 24
      %v7179 = vpop.permute.xlu0 %7178
      %v7182 = vsel %vm3621, %v996, %v4749
      %v7185 = vsel %vm3621, %v997, %v4751
      %v7188 = vsel %vm3621, %v998, %v4753
      %v7191 = vsel %vm3621, %v999, %v4755
      %v7194 = vsel %vm3621, %v1000, %v4757
      %v7197 = vsel %vm3621, %v1001, %v4759
      %v7200 = vsel %vm3621, %v1002, %v4761
      %v7203 = vsel %vm3621, %v1003, %v4763
      %v7206 = vsel %vm3621, %v1004, %v4765
      %v7209 = vsel %vm3621, %v1005, %v4767
      %v7212 = vsel %vm3621, %v1006, %v4769
      %v7215 = vsel %vm3621, %v1007, %v4771
      %v7218 = vsel %vm3621, %v1008, %v4773
      %v7221 = vsel %vm3621, %v1009, %v4775
      %v7224 = vsel %vm3621, %v1010, %v4777
      %v7227 = vsel %vm3621, %v1011, %v4779
      %v7230 = vsel %vm3621, %v1012, %v4781
      %v7233 = vsel %vm3621, %v1013, %v4783
      %v7236 = vsel %vm3621, %v1014, %v4785
      %v7239 = vsel %vm3621, %v1015, %v4787
      %v7242 = vsel %vm3621, %v1016, %v4789
      %v7245 = vsel %vm3621, %v1017, %v4791
      %v7248 = vsel %vm3621, %v1018, %v4793
      %v7251 = vsel %vm3621, %v1019, %v4795
      %v7254 = vsel %vm3621, %v1020, %v4797
      %v7257 = vsel %vm3621, %v1021, %v4799
      %v7260 = vsel %vm3621, %v1022, %v4801
      %v7263 = vsel %vm3621, %v1023, %v4803
      %v7266 = vsel %vm3621, %v1024, %v4805
      %v7269 = vsel %vm3621, %v1025, %v4807
      %v7272 = vsel %vm3621, %v1026, %v4809
      %v7275 = vsel %vm3621, %v1027, %v4811
      %v7277 = vsel %vm3686, %v7182, %v5453
      %v7279 = vsel %vm3686, %v7185, %v5455
      %v7281 = vsel %vm3686, %v7188, %v5457
      %v7283 = vsel %vm3686, %v7191, %v5459
      %v7285 = vsel %vm3686, %v7194, %v5461
      %v7287 = vsel %vm3686, %v7197, %v5463
      %v7289 = vsel %vm3686, %v7200, %v5465
      %v7291 = vsel %vm3686, %v7203, %v5467
      %v7293 = vsel %vm3686, %v7206, %v5469
      %v7295 = vsel %vm3686, %v7209, %v5471
      %v7297 = vsel %vm3686, %v7212, %v5473
      %v7299 = vsel %vm3686, %v7215, %v5475
      %v7301 = vsel %vm3686, %v7218, %v5477
      %v7303 = vsel %vm3686, %v7221, %v5479
      %v7305 = vsel %vm3686, %v7224, %v5481
      %v7307 = vsel %vm3686, %v7227, %v5483
      %v7309 = vsel %vm3686, %v7230, %v5485
      %v7311 = vsel %vm3686, %v7233, %v5487
      %v7313 = vsel %vm3686, %v7236, %v5489
      %v7315 = vsel %vm3686, %v7239, %v5491
      %v7317 = vsel %vm3686, %v7242, %v5493
      %v7319 = vsel %vm3686, %v7245, %v5495
      %v7321 = vsel %vm3686, %v7248, %v5497
      %v7323 = vsel %vm3686, %v7251, %v5499
      %v7325 = vsel %vm3686, %v7254, %v5501
      %v7327 = vsel %vm3686, %v7257, %v5503
      %v7329 = vsel %vm3686, %v7260, %v5505
      %v7331 = vsel %vm3686, %v7263, %v5507
      %v7333 = vsel %vm3686, %v7266, %v5509
      %v7335 = vsel %vm3686, %v7269, %v5511
      %v7337 = vsel %vm3686, %v7272, %v5513
      %v7339 = vsel %vm3686, %v7275, %v5515
      %v7341 = vsel %vm3751, %v7277, %v5517
      %v7343 = vsel %vm3751, %v7279, %v5519
      %v7345 = vsel %vm3751, %v7281, %v5521
      %v7347 = vsel %vm3751, %v7283, %v5523
      %v7349 = vsel %vm3751, %v7285, %v5525
      %v7351 = vsel %vm3751, %v7287, %v5527
      %v7353 = vsel %vm3751, %v7289, %v5529
      %v7355 = vsel %vm3751, %v7291, %v5531
      %v7357 = vsel %vm3751, %v7293, %v5533
      %v7359 = vsel %vm3751, %v7295, %v5535
      %v7361 = vsel %vm3751, %v7297, %v5537
      %v7363 = vsel %vm3751, %v7299, %v5539
      %v7365 = vsel %vm3751, %v7301, %v5541
      %v7367 = vsel %vm3751, %v7303, %v5543
      %v7369 = vsel %vm3751, %v7305, %v5545
      %v7371 = vsel %vm3751, %v7307, %v5547
      %v7373 = vsel %vm3751, %v7309, %v5549
      %v7375 = vsel %vm3751, %v7311, %v5551
      %v7377 = vsel %vm3751, %v7313, %v5553
      %v7379 = vsel %vm3751, %v7315, %v5555
      %v7381 = vsel %vm3751, %v7317, %v5557
      %v7383 = vsel %vm3751, %v7319, %v5559
      %v7385 = vsel %vm3751, %v7321, %v5561
      %v7387 = vsel %vm3751, %v7323, %v5563
      %v7389 = vsel %vm3751, %v7325, %v5565
      %v7391 = vsel %vm3751, %v7327, %v5567
      %v7393 = vsel %vm3751, %v7329, %v5569
      %v7395 = vsel %vm3751, %v7331, %v5571
      %v7397 = vsel %vm3751, %v7333, %v5573
      %v7399 = vsel %vm3751, %v7335, %v5575
      %v7401 = vsel %vm3751, %v7337, %v5577
      %v7403 = vsel %vm3751, %v7339, %v5579
      %v7405 = vsel %vm3816, %v7341, %v5581
      %v7407 = vsel %vm3816, %v7343, %v5583
      %v7409 = vsel %vm3816, %v7345, %v5585
      %v7411 = vsel %vm3816, %v7347, %v5587
      %v7413 = vsel %vm3816, %v7349, %v5589
      %v7415 = vsel %vm3816, %v7351, %v5591
      %v7417 = vsel %vm3816, %v7353, %v5593
      %v7419 = vsel %vm3816, %v7355, %v5595
      %v7421 = vsel %vm3816, %v7357, %v5597
      %v7423 = vsel %vm3816, %v7359, %v5599
      %v7425 = vsel %vm3816, %v7361, %v5601
      %v7427 = vsel %vm3816, %v7363, %v5603
      %v7429 = vsel %vm3816, %v7365, %v5605
      %v7431 = vsel %vm3816, %v7367, %v5607
      %v7433 = vsel %vm3816, %v7369, %v5609
      %v7435 = vsel %vm3816, %v7371, %v5611
      %v7437 = vsel %vm3816, %v7373, %v5613
      %v7439 = vsel %vm3816, %v7375, %v5615
      %v7441 = vsel %vm3816, %v7377, %v5617
      %v7443 = vsel %vm3816, %v7379, %v5619
      %v7445 = vsel %vm3816, %v7381, %v5621
      %v7447 = vsel %vm3816, %v7383, %v5623
      %v7449 = vsel %vm3816, %v7385, %v5625
      %v7451 = vsel %vm3816, %v7387, %v5627
      %v7453 = vsel %vm3816, %v7389, %v5629
      %v7455 = vsel %vm3816, %v7391, %v5631
      %v7457 = vsel %vm3816, %v7393, %v5633
      %v7459 = vsel %vm3816, %v7395, %v5635
      %v7461 = vsel %vm3816, %v7397, %v5637
      %v7463 = vsel %vm3816, %v7399, %v5639
      %v7465 = vsel %vm3816, %v7401, %v5641
      %v7467 = vsel %vm3816, %v7403, %v5643
      %v7469 = vsel %vm3881, %v7405, %v6285
      %v7471 = vsel %vm3881, %v7407, %v6287
      %v7473 = vsel %vm3881, %v7409, %v6289
      %v7475 = vsel %vm3881, %v7411, %v6291
      %v7477 = vsel %vm3881, %v7413, %v6293
      %v7479 = vsel %vm3881, %v7415, %v6295
      %v7481 = vsel %vm3881, %v7417, %v6297
      %v7483 = vsel %vm3881, %v7419, %v6299
      %v7485 = vsel %vm3881, %v7421, %v6301
      %v7487 = vsel %vm3881, %v7423, %v6303
      %v7489 = vsel %vm3881, %v7425, %v6305
      %v7491 = vsel %vm3881, %v7427, %v6307
      %v7493 = vsel %vm3881, %v7429, %v6309
      %v7495 = vsel %vm3881, %v7431, %v6311
      %v7497 = vsel %vm3881, %v7433, %v6313
      %v7499 = vsel %vm3881, %v7435, %v6315
      %v7501 = vsel %vm3881, %v7437, %v6317
      %v7503 = vsel %vm3881, %v7439, %v6319
      %v7505 = vsel %vm3881, %v7441, %v6321
      %v7507 = vsel %vm3881, %v7443, %v6323
      %v7509 = vsel %vm3881, %v7445, %v6325
      %v7511 = vsel %vm3881, %v7447, %v6327
      %v7513 = vsel %vm3881, %v7449, %v6329
      %v7515 = vsel %vm3881, %v7451, %v6331
      %v7517 = vsel %vm3881, %v7453, %v6333
      %v7519 = vsel %vm3881, %v7455, %v6335
      %v7521 = vsel %vm3881, %v7457, %v6337
      %v7523 = vsel %vm3881, %v7459, %v6339
      %v7525 = vsel %vm3881, %v7461, %v6341
      %v7527 = vsel %vm3881, %v7463, %v6343
      %v7529 = vsel %vm3881, %v7465, %v6345
      %v7531 = vsel %vm3881, %v7467, %v6347
      %v7533 = vsel %vm3946, %v7469, %v6349
      %v7535 = vsel %vm3946, %v7471, %v6351
      %v7537 = vsel %vm3946, %v7473, %v6353
      %v7539 = vsel %vm3946, %v7475, %v6355
      %v7541 = vsel %vm3946, %v7477, %v6357
      %v7543 = vsel %vm3946, %v7479, %v6359
      %v7545 = vsel %vm3946, %v7481, %v6361
      %v7547 = vsel %vm3946, %v7483, %v6363
      %v7549 = vsel %vm3946, %v7485, %v6365
      %v7551 = vsel %vm3946, %v7487, %v6367
      %v7553 = vsel %vm3946, %v7489, %v6369
      %v7555 = vsel %vm3946, %v7491, %v6371
      %v7557 = vsel %vm3946, %v7493, %v6373
      %v7559 = vsel %vm3946, %v7495, %v6375
      %v7561 = vsel %vm3946, %v7497, %v6377
      %v7563 = vsel %vm3946, %v7499, %v6379
      %v7565 = vsel %vm3946, %v7501, %v6381
      %v7567 = vsel %vm3946, %v7503, %v6383
      %v7569 = vsel %vm3946, %v7505, %v6385
      %v7571 = vsel %vm3946, %v7507, %v6387
      %v7573 = vsel %vm3946, %v7509, %v6389
      %v7575 = vsel %vm3946, %v7511, %v6391
      %v7577 = vsel %vm3946, %v7513, %v6393
      %v7579 = vsel %vm3946, %v7515, %v6395
      %v7581 = vsel %vm3946, %v7517, %v6397
      %v7583 = vsel %vm3946, %v7519, %v6399
      %v7585 = vsel %vm3946, %v7521, %v6401
      %v7587 = vsel %vm3946, %v7523, %v6403
      %v7589 = vsel %vm3946, %v7525, %v6405
      %v7591 = vsel %vm3946, %v7527, %v6407
      %v7593 = vsel %vm3946, %v7529, %v6409
      %v7595 = vsel %vm3946, %v7531, %v6411
      %v7597 = vsel %vm4011, %v7533, %v6413
      %v7599 = vsel %vm4011, %v7535, %v6415
      %v7601 = vsel %vm4011, %v7537, %v6417
      %v7603 = vsel %vm4011, %v7539, %v6419
      %v7605 = vsel %vm4011, %v7541, %v6421
      %v7607 = vsel %vm4011, %v7543, %v6423
      %v7609 = vsel %vm4011, %v7545, %v6425
      %v7611 = vsel %vm4011, %v7547, %v6427
      %v7613 = vsel %vm4011, %v7549, %v6429
      %v7615 = vsel %vm4011, %v7551, %v6431
      %v7617 = vsel %vm4011, %v7553, %v6433
      %v7619 = vsel %vm4011, %v7555, %v6435
      %v7621 = vsel %vm4011, %v7557, %v6437
      %v7623 = vsel %vm4011, %v7559, %v6439
      %v7625 = vsel %vm4011, %v7561, %v6441
      %v7627 = vsel %vm4011, %v7563, %v6443
      %v7629 = vsel %vm4011, %v7565, %v6445
      %v7631 = vsel %vm4011, %v7567, %v6447
      %v7633 = vsel %vm4011, %v7569, %v6449
      %v7635 = vsel %vm4011, %v7571, %v6451
      %v7637 = vsel %vm4011, %v7573, %v6453
      %v7639 = vsel %vm4011, %v7575, %v6455
      %v7641 = vsel %vm4011, %v7577, %v6457
      %v7643 = vsel %vm4011, %v7579, %v6459
      %v7645 = vsel %vm4011, %v7581, %v6461
      %v7647 = vsel %vm4011, %v7583, %v6463
      %v7649 = vsel %vm4011, %v7585, %v6465
      %v7651 = vsel %vm4011, %v7587, %v6467
      %v7653 = vsel %vm4011, %v7589, %v6469
      %v7655 = vsel %vm4011, %v7591, %v6471
      %v7657 = vsel %vm4011, %v7593, %v6473
      %v7659 = vsel %vm4011, %v7595, %v6475
      %v7661 = vsel %vm4076, %v7597, %v7117
      %v7663 = vsel %vm4076, %v7599, %v7119
      %v7665 = vsel %vm4076, %v7601, %v7121
      %v7667 = vsel %vm4076, %v7603, %v7123
      %v7669 = vsel %vm4076, %v7605, %v7125
      %v7671 = vsel %vm4076, %v7607, %v7127
      %v7673 = vsel %vm4076, %v7609, %v7129
      %v7675 = vsel %vm4076, %v7611, %v7131
      %v7677 = vsel %vm4076, %v7613, %v7133
      %v7679 = vsel %vm4076, %v7615, %v7135
      %v7681 = vsel %vm4076, %v7617, %v7137
      %v7683 = vsel %vm4076, %v7619, %v7139
      %v7685 = vsel %vm4076, %v7621, %v7141
      %v7687 = vsel %vm4076, %v7623, %v7143
      %v7689 = vsel %vm4076, %v7625, %v7145
      %v7691 = vsel %vm4076, %v7627, %v7147
      %v7693 = vsel %vm4076, %v7629, %v7149
      %v7695 = vsel %vm4076, %v7631, %v7151
      %v7697 = vsel %vm4076, %v7633, %v7153
      %v7699 = vsel %vm4076, %v7635, %v7155
      %v7701 = vsel %vm4076, %v7637, %v7157
      %v7703 = vsel %vm4076, %v7639, %v7159
      %v7705 = vsel %vm4076, %v7641, %v7161
      %v7707 = vsel %vm4076, %v7643, %v7163
      %v7709 = vsel %vm4076, %v7645, %v7165
      %v7711 = vsel %vm4076, %v7647, %v7167
      %v7713 = vsel %vm4076, %v7649, %v7169
      %v7715 = vsel %vm4076, %v7651, %v7171
      %v7717 = vsel %vm4076, %v7653, %v7173
      %v7719 = vsel %vm4076, %v7655, %v7175
      %v7721 = vsel %vm4076, %v7657, %v7177
      %v7723 = vsel %vm4076, %v7659, %v7179
      %v7724 = vsel %vm4155, %v7661, 0
      %v7726 = vsel %vm4155, %v7663, 0
      %v7728 = vsel %vm4155, %v7665, 0
      %v7730 = vsel %vm4155, %v7667, 0
      %v7732 = vsel %vm4155, %v7669, 0
      %v7734 = vsel %vm4155, %v7671, 0
      %v7736 = vsel %vm4155, %v7673, 0
      %v7738 = vsel %vm4155, %v7675, 0
      %v7740 = vsel %vm4155, %v7677, 0
      %v7742 = vsel %vm4155, %v7679, 0
      %v7744 = vsel %vm4155, %v7681, 0
      %v7746 = vsel %vm4155, %v7683, 0
      %v7748 = vsel %vm4155, %v7685, 0
      %v7750 = vsel %vm4155, %v7687, 0
      %v7752 = vsel %vm4155, %v7689, 0
      %v7754 = vsel %vm4155, %v7691, 0
      %v7756 = vsel %vm4155, %v7693, 0
      %v7758 = vsel %vm4155, %v7695, 0
      %v7760 = vsel %vm4155, %v7697, 0
      %v7762 = vsel %vm4155, %v7699, 0
      %v7764 = vsel %vm4155, %v7701, 0
      %v7766 = vsel %vm4155, %v7703, 0
      %v7768 = vsel %vm4155, %v7705, 0
      %v7770 = vsel %vm4155, %v7707, 0
      %v7772 = vsel %vm4155, %v7709, 0
      %v7774 = vsel %vm4155, %v7711, 0
      %v7776 = vsel %vm4155, %v7713, 0
      %v7778 = vsel %vm4155, %v7715, 0
      %v7780 = vsel %vm4155, %v7717, 0
      %v7782 = vsel %vm4155, %v7719, 0
      %v7784 = vsel %vm4155, %v7721, 0
      %v7786 = vsel %vm4155, %v7723, 0
      %7788 = vmatpush.bf16.msra.mxu0 0
      %7789 = vmatpush.bf16.msra.mxu0 0
      %7790 = vmatpush.bf16.msra.mxu0 0
      %7791 = vmatpush.bf16.msra.mxu0 0
      %7792 = vmatpush.bf16.msra.mxu0 0
      %7793 = vmatpush.bf16.msra.mxu0 0
      %7794 = vmatpush.bf16.msra.mxu0 %v4225
      %7795 = vmatpush.bf16.msra.mxu0 %v4152
      %7796 = vmatmul.bf16.gmra.mxu0 %v7724
      %v7797 = vpop.f32.mrf.mxu0
      %v7798 = vadd.f32 %v4142, %v7797
      %v7799 = vpop.f32.mrf.mxu0
      %v7800 = vadd.f32 %v4142, %v7799
      %7801 = vmatmul.bf16.gmra.mxu0 %v7726
      %v7802 = vpop.f32.mrf.mxu0
      %v7803 = vadd.f32 %v4142, %v7802
      %v7804 = vpop.f32.mrf.mxu0
      %v7805 = vadd.f32 %v4142, %v7804
      %7806 = vmatmul.bf16.gmra.mxu0 %v7728
      %v7807 = vpop.f32.mrf.mxu0
      %v7808 = vadd.f32 %v4142, %v7807
      %v7809 = vpop.f32.mrf.mxu0
      %v7810 = vadd.f32 %v4142, %v7809
      %7811 = vmatmul.bf16.gmra.mxu0 %v7730
      %v7812 = vpop.f32.mrf.mxu0
      %v7813 = vadd.f32 %v4142, %v7812
      %v7814 = vpop.f32.mrf.mxu0
      %v7815 = vadd.f32 %v4142, %v7814
      %7816 = vmatmul.bf16.gmra.mxu0 %v7732
      %v7817 = vpop.f32.mrf.mxu0
      %v7818 = vadd.f32 %v4142, %v7817
      %v7819 = vpop.f32.mrf.mxu0
      %v7820 = vadd.f32 %v4142, %v7819
      %7821 = vmatmul.bf16.gmra.mxu0 %v7734
      %v7822 = vpop.f32.mrf.mxu0
      %v7823 = vadd.f32 %v4142, %v7822
      %v7824 = vpop.f32.mrf.mxu0
      %v7825 = vadd.f32 %v4142, %v7824
      %7826 = vmatmul.bf16.gmra.mxu0 %v7736
      %v7827 = vpop.f32.mrf.mxu0
      %v7828 = vadd.f32 %v4142, %v7827
      %v7829 = vpop.f32.mrf.mxu0
      %v7830 = vadd.f32 %v4142, %v7829
      %7831 = vmatmul.bf16.gmra.mxu0 %v7738
      %v7832 = vpop.f32.mrf.mxu0
      %v7833 = vadd.f32 %v4142, %v7832
      %v7834 = vpop.f32.mrf.mxu0
      %v7835 = vadd.f32 %v4142, %v7834
      %7836 = vmatmul.bf16.gmra.mxu0 %v7740
      %v7837 = vpop.f32.mrf.mxu0
      %v7838 = vadd.f32 %v4142, %v7837
      %v7839 = vpop.f32.mrf.mxu0
      %v7840 = vadd.f32 %v4142, %v7839
      %7841 = vmatmul.bf16.gmra.mxu0 %v7742
      %v7842 = vpop.f32.mrf.mxu0
      %v7843 = vadd.f32 %v4142, %v7842
      %v7844 = vpop.f32.mrf.mxu0
      %v7845 = vadd.f32 %v4142, %v7844
      %7846 = vmatmul.bf16.gmra.mxu0 %v7744
      %v7847 = vpop.f32.mrf.mxu0
      %v7848 = vadd.f32 %v4142, %v7847
      %v7849 = vpop.f32.mrf.mxu0
      %v7850 = vadd.f32 %v4142, %v7849
      %7851 = vmatmul.bf16.gmra.mxu0 %v7746
      %v7852 = vpop.f32.mrf.mxu0
      %v7853 = vadd.f32 %v4142, %v7852
      %v7854 = vpop.f32.mrf.mxu0
      %v7855 = vadd.f32 %v4142, %v7854
      %7856 = vmatmul.bf16.gmra.mxu0 %v7748
      %v7857 = vpop.f32.mrf.mxu0
      %v7858 = vadd.f32 %v4142, %v7857
      %v7859 = vpop.f32.mrf.mxu0
      %v7860 = vadd.f32 %v4142, %v7859
      %7861 = vmatmul.bf16.gmra.mxu0 %v7750
      %v7862 = vpop.f32.mrf.mxu0
      %v7863 = vadd.f32 %v4142, %v7862
      %v7864 = vpop.f32.mrf.mxu0
      %v7865 = vadd.f32 %v4142, %v7864
      %7866 = vmatmul.bf16.gmra.mxu0 %v7752
      %v7867 = vpop.f32.mrf.mxu0
      %v7868 = vadd.f32 %v4142, %v7867
      %v7869 = vpop.f32.mrf.mxu0
      %v7870 = vadd.f32 %v4142, %v7869
      %7871 = vmatmul.bf16.gmra.mxu0 %v7754
      %v7872 = vpop.f32.mrf.mxu0
      %v7873 = vadd.f32 %v4142, %v7872
      %v7874 = vpop.f32.mrf.mxu0
      %v7875 = vadd.f32 %v4142, %v7874
      %7876 = vmatmul.bf16.gmra.mxu0 %v7756
      %v7877 = vpop.f32.mrf.mxu0
      %v7878 = vadd.f32 %v4142, %v7877
      %v7879 = vpop.f32.mrf.mxu0
      %v7880 = vadd.f32 %v4142, %v7879
      %7881 = vmatmul.bf16.gmra.mxu0 %v7758
      %v7882 = vpop.f32.mrf.mxu0
      %v7883 = vadd.f32 %v4142, %v7882
      %v7884 = vpop.f32.mrf.mxu0
      %v7885 = vadd.f32 %v4142, %v7884
      %7886 = vmatmul.bf16.gmra.mxu0 %v7760
      %v7887 = vpop.f32.mrf.mxu0
      %v7888 = vadd.f32 %v4142, %v7887
      %v7889 = vpop.f32.mrf.mxu0
      %v7890 = vadd.f32 %v4142, %v7889
      %7891 = vmatmul.bf16.gmra.mxu0 %v7762
      %v7892 = vpop.f32.mrf.mxu0
      %v7893 = vadd.f32 %v4142, %v7892
      %v7894 = vpop.f32.mrf.mxu0
      %v7895 = vadd.f32 %v4142, %v7894
      %7896 = vmatmul.bf16.gmra.mxu0 %v7764
      %v7897 = vpop.f32.mrf.mxu0
      %v7898 = vadd.f32 %v4142, %v7897
      %v7899 = vpop.f32.mrf.mxu0
      %v7900 = vadd.f32 %v4142, %v7899
      %7901 = vmatmul.bf16.gmra.mxu0 %v7766
      %v7902 = vpop.f32.mrf.mxu0
      %v7903 = vadd.f32 %v4142, %v7902
      %v7904 = vpop.f32.mrf.mxu0
      %v7905 = vadd.f32 %v4142, %v7904
      %7906 = vmatmul.bf16.gmra.mxu0 %v7768
      %v7907 = vpop.f32.mrf.mxu0
      %v7908 = vadd.f32 %v4142, %v7907
      %v7909 = vpop.f32.mrf.mxu0
      %v7910 = vadd.f32 %v4142, %v7909
      %7911 = vmatmul.bf16.gmra.mxu0 %v7770
      %v7912 = vpop.f32.mrf.mxu0
      %v7913 = vadd.f32 %v4142, %v7912
      %v7914 = vpop.f32.mrf.mxu0
      %v7915 = vadd.f32 %v4142, %v7914
      %7916 = vmatmul.bf16.gmra.mxu0 %v7772
      %v7917 = vpop.f32.mrf.mxu0
      %v7918 = vadd.f32 %v4142, %v7917
      %v7919 = vpop.f32.mrf.mxu0
      %v7920 = vadd.f32 %v4142, %v7919
      %7921 = vmatmul.bf16.gmra.mxu0 %v7774
      %v7922 = vpop.f32.mrf.mxu0
      %v7923 = vadd.f32 %v4142, %v7922
      %v7924 = vpop.f32.mrf.mxu0
      %v7925 = vadd.f32 %v4142, %v7924
      %7926 = vmatmul.bf16.gmra.mxu0 %v7776
      %v7927 = vpop.f32.mrf.mxu0
      %v7928 = vadd.f32 %v4142, %v7927
      %v7929 = vpop.f32.mrf.mxu0
      %v7930 = vadd.f32 %v4142, %v7929
      %7931 = vmatmul.bf16.gmra.mxu0 %v7778
      %v7932 = vpop.f32.mrf.mxu0
      %v7933 = vadd.f32 %v4142, %v7932
      %v7934 = vpop.f32.mrf.mxu0
      %v7935 = vadd.f32 %v4142, %v7934
      %7936 = vmatmul.bf16.gmra.mxu0 %v7780
      %v7937 = vpop.f32.mrf.mxu0
      %v7938 = vadd.f32 %v4142, %v7937
      %v7939 = vpop.f32.mrf.mxu0
      %v7940 = vadd.f32 %v4142, %v7939
      %7941 = vmatmul.bf16.gmra.mxu0 %v7782
      %v7942 = vpop.f32.mrf.mxu0
      %v7943 = vadd.f32 %v4142, %v7942
      %v7944 = vpop.f32.mrf.mxu0
      %v7945 = vadd.f32 %v4142, %v7944
      %7946 = vmatmul.bf16.gmra.mxu0 %v7784
      %v7947 = vpop.f32.mrf.mxu0
      %v7948 = vadd.f32 %v4142, %v7947
      %v7949 = vpop.f32.mrf.mxu0
      %v7950 = vadd.f32 %v4142, %v7949
      %7951 = vmatmul.bf16.gmra.mxu0 %v7786
      %v7952 = vpop.f32.mrf.mxu0
      %v7953 = vadd.f32 %v4142, %v7952
      %v7954 = vpop.f32.mrf.mxu0
      %v7955 = vadd.f32 %v4142, %v7954
      %7956 = vdwg.mxu0
      %v7957 = vmax.f32 %v7798, 0.0
      %v7958 = vmax.f32 %v7800, 0.0
      %v7959 = vmax.f32 %v7803, 0.0
      %v7960 = vmax.f32 %v7805, 0.0
      %v7961 = vmax.f32 %v7808, 0.0
      %v7962 = vmax.f32 %v7810, 0.0
      %v7963 = vmax.f32 %v7813, 0.0
      %v7964 = vmax.f32 %v7815, 0.0
      %v7965 = vmax.f32 %v7818, 0.0
      %v7966 = vmax.f32 %v7820, 0.0
      %v7967 = vmax.f32 %v7823, 0.0
      %v7968 = vmax.f32 %v7825, 0.0
      %v7969 = vmax.f32 %v7828, 0.0
      %v7970 = vmax.f32 %v7830, 0.0
      %v7971 = vmax.f32 %v7833, 0.0
      %v7972 = vmax.f32 %v7835, 0.0
      %v7973 = vmax.f32 %v7838, 0.0
      %v7974 = vmax.f32 %v7840, 0.0
      %v7975 = vmax.f32 %v7843, 0.0
      %v7976 = vmax.f32 %v7845, 0.0
      %v7977 = vmax.f32 %v7848, 0.0
      %v7978 = vmax.f32 %v7850, 0.0
      %v7979 = vmax.f32 %v7853, 0.0
      %v7980 = vmax.f32 %v7855, 0.0
      %v7981 = vmax.f32 %v7858, 0.0
      %v7982 = vmax.f32 %v7860, 0.0
      %v7983 = vmax.f32 %v7863, 0.0
      %v7984 = vmax.f32 %v7865, 0.0
      %v7985 = vmax.f32 %v7868, 0.0
      %v7986 = vmax.f32 %v7870, 0.0
      %v7987 = vmax.f32 %v7873, 0.0
      %v7988 = vmax.f32 %v7875, 0.0
      %v7989 = vmax.f32 %v7878, 0.0
      %v7990 = vmax.f32 %v7880, 0.0
      %v7991 = vmax.f32 %v7883, 0.0
      %v7992 = vmax.f32 %v7885, 0.0
      %v7993 = vmax.f32 %v7888, 0.0
      %v7994 = vmax.f32 %v7890, 0.0
      %v7995 = vmax.f32 %v7893, 0.0
      %v7996 = vmax.f32 %v7895, 0.0
      %v7997 = vmax.f32 %v7898, 0.0
      %v7998 = vmax.f32 %v7900, 0.0
      %v7999 = vmax.f32 %v7903, 0.0
      %v8000 = vmax.f32 %v7905, 0.0
      %v8001 = vmax.f32 %v7908, 0.0
      %v8002 = vmax.f32 %v7910, 0.0
      %v8003 = vmax.f32 %v7913, 0.0
      %v8004 = vmax.f32 %v7915, 0.0
      %v8005 = vmax.f32 %v7918, 0.0
      %v8006 = vmax.f32 %v7920, 0.0
      %v8007 = vmax.f32 %v7923, 0.0
      %v8008 = vmax.f32 %v7925, 0.0
      %v8009 = vmax.f32 %v7928, 0.0
      %v8010 = vmax.f32 %v7930, 0.0
      %v8011 = vmax.f32 %v7933, 0.0
      %v8012 = vmax.f32 %v7935, 0.0
      %v8013 = vmax.f32 %v7938, 0.0
      %v8014 = vmax.f32 %v7940, 0.0
      %v8015 = vmax.f32 %v7943, 0.0
      %v8016 = vmax.f32 %v7945, 0.0
      %v8017 = vmax.f32 %v7948, 0.0
      %v8018 = vmax.f32 %v7950, 0.0
      %v8019 = vmax.f32 %v7953, 0.0
      %v8020 = vmax.f32 %v7955, 0.0
      %v8021 = vmax.f32 %v4396, %v7957
      %v8022 = vmax.f32 %v4397, %v7958
      %v8023 = vmax.f32 %v4398, %v7959
      %v8024 = vmax.f32 %v4399, %v7960
      %v8025 = vmax.f32 %v4400, %v7961
      %v8026 = vmax.f32 %v4401, %v7962
      %v8027 = vmax.f32 %v4402, %v7963
      %v8028 = vmax.f32 %v4403, %v7964
      %v8029 = vmax.f32 %v4404, %v7965
      %v8030 = vmax.f32 %v4405, %v7966
      %v8031 = vmax.f32 %v4406, %v7967
      %v8032 = vmax.f32 %v4407, %v7968
      %v8033 = vmax.f32 %v4408, %v7969
      %v8034 = vmax.f32 %v4409, %v7970
      %v8035 = vmax.f32 %v4410, %v7971
      %v8036 = vmax.f32 %v4411, %v7972
      %v8037 = vmax.f32 %v4412, %v7973
      %v8038 = vmax.f32 %v4413, %v7974
      %v8039 = vmax.f32 %v4414, %v7975
      %v8040 = vmax.f32 %v4415, %v7976
      %v8041 = vmax.f32 %v4416, %v7977
      %v8042 = vmax.f32 %v4417, %v7978
      %v8043 = vmax.f32 %v4418, %v7979
      %v8044 = vmax.f32 %v4419, %v7980
      %v8045 = vmax.f32 %v4420, %v7981
      %v8046 = vmax.f32 %v4421, %v7982
      %v8047 = vmax.f32 %v4422, %v7983
      %v8048 = vmax.f32 %v4423, %v7984
      %v8049 = vmax.f32 %v4424, %v7985
      %v8050 = vmax.f32 %v4425, %v7986
      %v8051 = vmax.f32 %v4426, %v7987
      %v8052 = vmax.f32 %v4427, %v7988
      %v8053 = vmax.f32 %v4428, %v7989
      %v8054 = vmax.f32 %v4429, %v7990
      %v8055 = vmax.f32 %v4430, %v7991
      %v8056 = vmax.f32 %v4431, %v7992
      %v8057 = vmax.f32 %v4432, %v7993
      %v8058 = vmax.f32 %v4433, %v7994
      %v8059 = vmax.f32 %v4434, %v7995
      %v8060 = vmax.f32 %v4435, %v7996
      %v8061 = vmax.f32 %v4436, %v7997
      %v8062 = vmax.f32 %v4437, %v7998
      %v8063 = vmax.f32 %v4438, %v7999
      %v8064 = vmax.f32 %v4439, %v8000
      %v8065 = vmax.f32 %v4440, %v8001
      %v8066 = vmax.f32 %v4441, %v8002
      %v8067 = vmax.f32 %v4442, %v8003
      %v8068 = vmax.f32 %v4443, %v8004
      %v8069 = vmax.f32 %v4444, %v8005
      %v8070 = vmax.f32 %v4445, %v8006
      %v8071 = vmax.f32 %v4446, %v8007
      %v8072 = vmax.f32 %v4447, %v8008
      %v8073 = vmax.f32 %v4448, %v8009
      %v8074 = vmax.f32 %v4449, %v8010
      %v8075 = vmax.f32 %v4450, %v8011
      %v8076 = vmax.f32 %v4451, %v8012
      %v8077 = vmax.f32 %v4452, %v8013
      %v8078 = vmax.f32 %v4453, %v8014
      %v8079 = vmax.f32 %v4454, %v8015
      %v8080 = vmax.f32 %v4455, %v8016
      %v8081 = vmax.f32 %v4456, %v8017
      %v8082 = vmax.f32 %v4457, %v8018
      %v8083 = vmax.f32 %v4458, %v8019
      %v8084 = vmax.f32 %v4459, %v8020
      %v8085 = vmax.f32 %v8021, %v8023
      %v8086 = vmax.f32 %v8022, %v8024
      %v8087 = vmax.f32 %v8025, %v8027
      %v8088 = vmax.f32 %v8026, %v8028
      %v8089 = vmax.f32 %v8029, %v8031
      %v8090 = vmax.f32 %v8030, %v8032
      %v8091 = vmax.f32 %v8033, %v8035
      %v8092 = vmax.f32 %v8034, %v8036
      %v8093 = vmax.f32 %v8037, %v8039
      %v8094 = vmax.f32 %v8038, %v8040
      %v8095 = vmax.f32 %v8041, %v8043
      %v8096 = vmax.f32 %v8042, %v8044
      %v8097 = vmax.f32 %v8045, %v8047
      %v8098 = vmax.f32 %v8046, %v8048
      %v8099 = vmax.f32 %v8049, %v8051
      %v8100 = vmax.f32 %v8050, %v8052
      %v8101 = vmax.f32 %v8053, %v8055
      %v8102 = vmax.f32 %v8054, %v8056
      %v8103 = vmax.f32 %v8057, %v8059
      %v8104 = vmax.f32 %v8058, %v8060
      %v8105 = vmax.f32 %v8061, %v8063
      %v8106 = vmax.f32 %v8062, %v8064
      %v8107 = vmax.f32 %v8065, %v8067
      %v8108 = vmax.f32 %v8066, %v8068
      %v8109 = vmax.f32 %v8069, %v8071
      %v8110 = vmax.f32 %v8070, %v8072
      %v8111 = vmax.f32 %v8073, %v8075
      %v8112 = vmax.f32 %v8074, %v8076
      %v8113 = vmax.f32 %v8077, %v8079
      %v8114 = vmax.f32 %v8078, %v8080
      %v8115 = vmax.f32 %v8081, %v8083
      %v8116 = vmax.f32 %v8082, %v8084
      %v8117 = vpack.c.bf16 %v8085, %v8085
      %v8118 = vpack.c.bf16 %v8086, %v8086
      %v8119 = vpack.c.bf16 %v8087, %v8087
      %v8120 = vpack.c.bf16 %v8088, %v8088
      %v8121 = vpack.c.bf16 %v8089, %v8089
      %v8122 = vpack.c.bf16 %v8090, %v8090
      %v8123 = vpack.c.bf16 %v8091, %v8091
      %v8124 = vpack.c.bf16 %v8092, %v8092
      %v8125 = vpack.c.bf16 %v8093, %v8093
      %v8126 = vpack.c.bf16 %v8094, %v8094
      %v8127 = vpack.c.bf16 %v8095, %v8095
      %v8128 = vpack.c.bf16 %v8096, %v8096
      %v8129 = vpack.c.bf16 %v8097, %v8097
      %v8130 = vpack.c.bf16 %v8098, %v8098
      %v8131 = vpack.c.bf16 %v8099, %v8099
      %v8132 = vpack.c.bf16 %v8100, %v8100
      %v8133 = vpack.c.bf16 %v8101, %v8101
      %v8134 = vpack.c.bf16 %v8102, %v8102
      %v8135 = vpack.c.bf16 %v8103, %v8103
      %v8136 = vpack.c.bf16 %v8104, %v8104
      %v8137 = vpack.c.bf16 %v8105, %v8105
      %v8138 = vpack.c.bf16 %v8106, %v8106
      %v8139 = vpack.c.bf16 %v8107, %v8107
      %v8140 = vpack.c.bf16 %v8108, %v8108
      %v8141 = vpack.c.bf16 %v8109, %v8109
      %v8142 = vpack.c.bf16 %v8110, %v8110
      %v8143 = vpack.c.bf16 %v8111, %v8111
      %v8144 = vpack.c.bf16 %v8112, %v8112
      %v8145 = vpack.c.bf16 %v8113, %v8113
      %v8146 = vpack.c.bf16 %v8114, %v8114
      %v8147 = vpack.c.bf16 %v8115, %v8115
      %v8148 = vpack.c.bf16 %v8116, %v8116
      %vm8149 = vcmask 125952
      %8150 = vst.msk [vmem:[%s217] sm:$0xf] %vm8149, %v8117
      %8151 = vst.msk [vmem:[%s217 + $0x4] sm:$0xf] %vm8149, %v8118
      %8152 = vst.msk [vmem:[%s217 + $0x8] sm:$0xf] %vm8149, %v8119
      %8153 = vst.msk [vmem:[%s217 + $0xc] sm:$0xf] %vm8149, %v8120
      %8154 = vst.msk [vmem:[%s217 + $0x10] sm:$0xf] %vm8149, %v8121
      %8155 = vst.msk [vmem:[%s217 + $0x14] sm:$0xf] %vm8149, %v8122
      %8156 = vst.msk [vmem:[%s217 + $0x18] sm:$0xf] %vm8149, %v8123
      %8157 = vst.msk [vmem:[%s217 + $0x1c] sm:$0xf] %vm8149, %v8124
      %8158 = vst.msk [vmem:[%s217 + $0x20] sm:$0xf] %vm8149, %v8125
      %8159 = vst.msk [vmem:[%s217 + $0x24] sm:$0xf] %vm8149, %v8126
      %8160 = vst.msk [vmem:[%s217 + $0x28] sm:$0xf] %vm8149, %v8127
      %8161 = vst.msk [vmem:[%s217 + $0x2c] sm:$0xf] %vm8149, %v8128
      %8162 = vst.msk [vmem:[%s217 + $0x30] sm:$0xf] %vm8149, %v8129
      %8163 = vst.msk [vmem:[%s217 + $0x34] sm:$0xf] %vm8149, %v8130
      %8164 = vst.msk [vmem:[%s217 + $0x38] sm:$0xf] %vm8149, %v8131
      %8165 = vst.msk [vmem:[%s217 + $0x3c] sm:$0xf] %vm8149, %v8132
      %8166 = vst.msk [vmem:[%s217 + $0x40] sm:$0xf] %vm8149, %v8133
      %8167 = vst.msk [vmem:[%s217 + $0x44] sm:$0xf] %vm8149, %v8134
      %8168 = vst.msk [vmem:[%s217 + $0x48] sm:$0xf] %vm8149, %v8135
      %8169 = vst.msk [vmem:[%s217 + $0x4c] sm:$0xf] %vm8149, %v8136
      %8170 = vst.msk [vmem:[%s217 + $0x50] sm:$0xf] %vm8149, %v8137
      %8171 = vst.msk [vmem:[%s217 + $0x54] sm:$0xf] %vm8149, %v8138
      %8172 = vst.msk [vmem:[%s217 + $0x58] sm:$0xf] %vm8149, %v8139
      %8173 = vst.msk [vmem:[%s217 + $0x5c] sm:$0xf] %vm8149, %v8140
      %8174 = vst.msk [vmem:[%s217 + $0x60] sm:$0xf] %vm8149, %v8141
      %8175 = vst.msk [vmem:[%s217 + $0x64] sm:$0xf] %vm8149, %v8142
      %8176 = vst.msk [vmem:[%s217 + $0x68] sm:$0xf] %vm8149, %v8143
      %8177 = vst.msk [vmem:[%s217 + $0x6c] sm:$0xf] %vm8149, %v8144
      %8178 = vst.msk [vmem:[%s217 + $0x70] sm:$0xf] %vm8149, %v8145
      %8179 = vst.msk [vmem:[%s217 + $0x74] sm:$0xf] %vm8149, %v8146
      %8180 = vst.msk [vmem:[%s217 + $0x78] sm:$0xf] %vm8149, %v8147
      %8181 = vst.msk [vmem:[%s217 + $0x7c] sm:$0xf] %vm8149, %v8148
      %p8182 = scmp.lt.s32.totalorder %s15, 1
      %s8183 = scalar_select %p8182, %s15, 1
      %s8184 = smul.addr %s8183, 32
      %s8185 = smul.addr %s8184, 4
      %s8186 = scalar_lea.vmem %s4, %s8185
      // Predicated region
      $region37: #{simple_cnn_forward.3} parent=35 // pred_check
        %p8187 = pneg %p127
      $region38: #{simple_cnn_forward.3} parent=35 // pred_check_branch
        %8189 = sbr.rel (%p8187) target = $region40
      $region39: #{simple_cnn_forward.3} parent=35 // pred_region
        _
      $region40: #{simple_cnn_forward.3} parent=35 // pred_fallthru
        _
    $region36: #{simple_cnn_forward.3} parent=5 // pred_fallthru
      _
    %p8190 = scmp.le.s32.totalorder 2, %s10
    // Predicated region
    $region41: #{simple_cnn_forward.3} parent=5 // pred_check
      %p8191 = pneg %p8190
    $region42: #{simple_cnn_forward.3} parent=5 // pred_check_branch
      %8193 = sbr.rel (%p8191) target = $region44
    $region43: #{simple_cnn_forward.3} parent=5 // pred_region
      %s8194 = ssub.s32 %s10, 2
      // Predicated region
      $region45: #{simple_cnn_forward.3} parent=43 // pred_check
        %p8195 = pneg %p133
      $region46: #{simple_cnn_forward.3} parent=43 // pred_check_branch
        %8197 = sbr.rel (%p8195) target = $region48
      $region47: #{simple_cnn_forward.3} parent=43 // pred_region
        %p8198 = scmp.lt.s32.totalorder %s16, 1
        %s8199 = scalar_select %p8198, %s16, 1
        %s8200 = smul.addr %s8199, 32
        %s8201 = smul.addr %s8200, 4
        %s8202 = scalar_lea.vmem %s4, %s8201
      $region48: #{simple_cnn_forward.3} parent=43 // pred_fallthru
        _
    $region44: #{simple_cnn_forward.3} parent=5 // pred_fallthru
      _
  $region6: #{simple_cnn_forward.3} parent=0 // loop_footer
    %s14 = sadd.s32 1, %s10
  $region7: #{simple_cnn_forward.3} parent=0 // loop_footer_branch
    %9 = sbr.rel target = $region3
  $region8: #{simple_cnn_forward.3} parent=0 // loop_exit
    _

</llo_original>
